<compile_context>
chip_gen: v5e
topology: v5e:2x2
jax: 0.10.0
libtpu: 0.0.40
codegen_flags: <defaults>
</compile_context>

<pallas_src>
import jax
import jax.numpy as jnp
from jax.experimental import pallas as pl
from jax.experimental.pallas import tpu as pltpu

CP = 128  # padded channel / lane width

# (Cout, Cin, K, stride) for the five conv layers (static config, not traced)
CONV_DEFS = [(24, 3, 5, 2), (36, 24, 5, 2), (48, 36, 5, 2), (64, 48, 3, 1), (64, 64, 3, 1)]


def _round_up(x, m):
    return (x + m - 1) // m * m


# ----------------------------------------------------------------------------
# XLA-side im2col (lane-dense tap packing for the conv GEMMs)
# ----------------------------------------------------------------------------
def _im2col(x, K, s, kpad):
    """x: [B, H, W, C] -> ([B, OH*OW, kpad] bf16, OH, OW).  Lane order (kh, kw, c)."""
    B, H, W, C = x.shape
    OH = (H - K) // s + 1
    OW = (W - K) // s + 1
    cols = [x[:, kh:kh + s * (OH - 1) + 1:s, kw:kw + s * (OW - 1) + 1:s, :]
            for kh in range(K) for kw in range(K)]
    p = jnp.concatenate(cols, axis=-1).reshape(B, OH * OW, K * K * C)
    p = jnp.pad(p, ((0, 0), (0, 0), (0, kpad - K * K * C))).astype(jnp.bfloat16)
    return p, OH, OW


def _pick_block_batch(B, per_image_bytes, budget=8 * 1024 * 1024):
    """Images per grid step: >=2 steps when possible (v7x 2 TCs), bounded VMEM."""
    bb = B // 2 if (B % 2 == 0 and B >= 2) else B
    while bb > 1 and bb % 2 == 0 and bb * per_image_bytes > budget:
        bb //= 2
    return max(bb, 1)


# ----------------------------------------------------------------------------
# Generic GEMM + bias + ReLU kernel (used for conv1 / conv2)
# ----------------------------------------------------------------------------
def _gemm_bias_relu_kernel(x_ref, w_ref, b_ref, o_ref):
    y = jnp.dot(x_ref[...], w_ref[...], preferred_element_type=jnp.float32)
    o_ref[...] = jnp.maximum(y + b_ref[...], 0.0).astype(o_ref.dtype)


def _gemm_bias_relu(x, w, b, tm):
    M, K = x.shape
    N = w.shape[1]
    return pl.pallas_call(
        _gemm_bias_relu_kernel,
        out_shape=jax.ShapeDtypeStruct((M, N), jnp.bfloat16),
        grid=(M // tm,),
        in_specs=[pl.BlockSpec((tm, K), lambda i: (i, 0)),
                  pl.BlockSpec((K, N), lambda i: (0, 0)),   # weights resident
                  pl.BlockSpec((1, N), lambda i: (0, 0))],  # bias
        out_specs=pl.BlockSpec((tm, N), lambda i: (i, 0)),
        compiler_params=pltpu.CompilerParams(dimension_semantics=("parallel",)),
    )(x, w, b)


# ----------------------------------------------------------------------------
# Fused tail: conv3 + conv4 + conv5 + FC head in ONE pallas_call
# ----------------------------------------------------------------------------
def _make_tail_kernel(BB, S3, S4, S5):
    def kernel(*refs):
        x3_ref = refs[0]
        w3, b3, w4, b4, w5, b5 = refs[1:7]
        fc = [(refs[7 + 2 * i], refs[8 + 2 * i]) for i in range(5)]
        o_ref = refs[-1]

        def dense(lhs, w_ref, b_ref, relu=True):
            y = jnp.dot(lhs.astype(jnp.bfloat16), w_ref[...],
                        preferred_element_type=jnp.float32) + b_ref[...]
            return jnp.maximum(y, 0.0) if relu else y

        def gather3x3(h, side_in, side_out):
            # h: [side_in^2 * BB, 128] position-major (f32, slices tile-aligned
            # when BB is a multiple of 8).  Returns LHS [side_out^2 * BB, 9*128]
            # with lane blocks in (kh, kw) order matching the tap-block weights.
            rows = []
            for oy in range(side_out):
                for ox in range(side_out):
                    taps = []
                    for kh in range(3):
                        for kw in range(3):
                            pos = (oy + kh) * side_in + (ox + kw)
                            taps.append(h[pos * BB:(pos + 1) * BB, :])
                    rows.append(jnp.concatenate(taps, axis=-1))
            return rows[0] if len(rows) == 1 else jnp.concatenate(rows, axis=0)

        h3 = dense(x3_ref[...], w3, b3)                 # conv3: [S3^2*BB, 128] f32
        h4 = dense(gather3x3(h3, S3, S4), w4, b4)       # conv4: [S4^2*BB, 128]
        h5 = dense(gather3x3(h4, S4, S5), w5, b5)       # conv5: [S5^2*BB, 128]

        # Flatten conv5 positions into lanes; the torch NCHW-flatten permutation
        # is folded into fc[0]'s weight rows (layout (pos, channel)).
        if S5 * S5 > 1:
            h = jnp.concatenate([h5[p * BB:(p + 1) * BB, :] for p in range(S5 * S5)],
                                axis=-1)
        else:
            h = h5
        for li, (w_ref, b_ref) in enumerate(fc):
            h = dense(h, w_ref, b_ref, relu=(li < 4))
        o_ref[...] = h                                   # [BB, 128] f32, col 0 real

    return kernel


def _fused_tail(x3, conv_tail, fc_params, BB, S3):
    nblk, rows, k3p = x3.shape
    S4, S5 = S3 - 2, S3 - 4
    B = nblk * BB
    kernel = _make_tail_kernel(BB, S3, S4, S5)

    args = [x3]
    for (w, b) in list(conv_tail) + list(fc_params):
        args += [w, b]

    in_specs = [pl.BlockSpec((None, rows, k3p), lambda i: (i, 0, 0))]
    in_specs += [pl.BlockSpec(a.shape, lambda i: (0, 0)) for a in args[1:]]

    return pl.pallas_call(
        kernel,
        out_shape=jax.ShapeDtypeStruct((B, CP), jnp.float32),
        grid=(nblk,),
        in_specs=in_specs,
        out_specs=pl.BlockSpec((BB, CP), lambda i: (i, 0)),
        compiler_params=pltpu.CompilerParams(dimension_semantics=("parallel",)),
    )(*args)


# ----------------------------------------------------------------------------
# Parameters: generated in PyTorch layout, then converted ONCE to kernel layout
# ----------------------------------------------------------------------------
def make_params(input_image_size, key):
    sides = [input_image_size]
    for (_, _, k, s) in CONV_DEFS:
        sides.append((sides[-1] - k) // s + 1)
    assert sides[-1] >= 1, "input image too small for the conv stack"
    fsz = sides[-1] ** 2

    fc_defs = [(64 * fsz, 1164), (1164, 100), (100, 50), (50, 10), (10, 1)]
    keys = jax.random.split(key, 2 * (len(CONV_DEFS) + len(fc_defs)))
    ki = 0

    conv_params = []
    for li, (co, ci, k, s) in enumerate(CONV_DEFS):
        w_t = 0.05 * jax.random.normal(keys[ki], (co, ci, k, k), jnp.float32); ki += 1
        b_t = 0.01 * jax.random.normal(keys[ki], (co,), jnp.float32); ki += 1
        w = jnp.transpose(w_t, (2, 3, 1, 0))                     # [K, K, Cin, Cout]
        if li < 3:
            # dense im2col contraction: rows ordered (kh, kw, c), lane-padded
            kin = k * k * ci
            w = w.reshape(kin, co)
            w = jnp.pad(w, ((0, _round_up(kin, CP) - kin), (0, CP - co)))
        else:
            # tap-block contraction for the fused tail: rows = (kh,kw) blocks of
            # 128 lanes (Cin padded to 128 inside each block)
            w = w.reshape(k * k, ci, co)
            w = jnp.pad(w, ((0, 0), (0, CP - ci), (0, CP - co)))
            w = w.reshape(k * k * CP, CP)
        b = jnp.pad(b_t, (0, CP - co)).reshape(1, CP).astype(jnp.float32)
        conv_params.append((w.astype(jnp.bfloat16), b))

    fc_params = []
    for li, (fin, fout) in enumerate(fc_defs):
        w_t = 0.05 * jax.random.normal(keys[ki], (fout, fin), jnp.float32); ki += 1
        b_t = 0.01 * jax.random.normal(keys[ki], (fout,), jnp.float32); ki += 1
        fout_p = _round_up(fout, CP)
        if li == 0:
            # torch flattens conv5 output NCHW (c, y, x); the fused tail feeds
            # FC1 lane blocks ordered (pos, c) -> fold the permutation + padding
            # into the weight rows: row p*128 + c  <->  torch col c*fsz + p.
            wt = w_t.reshape(fout, 64, fsz)                      # [out, c, p]
            wt = jnp.transpose(wt, (2, 1, 0))                    # [p, c, out]
            wt = jnp.pad(wt, ((0, 0), (0, CP - 64), (0, fout_p - fout)))
            w = wt.reshape(fsz * CP, fout_p)
        else:
            fin_p = _round_up(fin, CP)
            w = jnp.pad(w_t.T, ((0, fin_p - fin), (0, fout_p - fout)))
        b = jnp.pad(b_t, (0, fout_p - fout)).reshape(1, fout_p).astype(jnp.float32)
        fc_params.append((w.astype(jnp.bfloat16), b))

    return {"conv": conv_params, "fc": fc_params}


# ----------------------------------------------------------------------------
# Full forward pass (3 pallas_calls total)
# ----------------------------------------------------------------------------
def steering_prediction_forward(x_nchw, params):
    convs = params["conv"]
    fcs = params["fc"]
    B = x_nchw.shape[0]

    # NCHW f32 -> NHWC bf16 (3 channels; NOT padded to 128 lanes in HBM)
    x = jnp.transpose(x_nchw.astype(jnp.float32), (0, 2, 3, 1)).astype(jnp.bfloat16)

    # ---- conv1, conv2: one lane-dense GEMM each (im2col built by XLA) ----
    for li in range(2):
        co, ci, k, s = CONV_DEFS[li]
        w, b = convs[li]
        patches, oh, ow = _im2col(x, k, s, w.shape[0])           # [B, L, Kp] bf16
        L = oh * ow
        Lp = _round_up(L, 8)
        patches = jnp.pad(patches, ((0, 0), (0, Lp - L), (0, 0)))
        lhs = patches.reshape(B * Lp, w.shape[0])
        per_img = Lp * (w.shape[0] + 2 * CP) * 2 * 2             # ~VMEM bytes / image
        bb = _pick_block_batch(B, per_img)
        y = _gemm_bias_relu(lhs, w, b, tm=Lp * bb)               # [B*Lp, 128] bf16
        x = y.reshape(B, Lp, CP)[:, :L, :co].reshape(B, oh, ow, co)
    # TODO(synk): for large images, the im2col buffers grow ~K^2x; switch
    # conv1/conv2 to in-kernel strided patch loads and set an explicit
    # vmem_limit_bytes / row-tile per generation (v7x has only 64 MiB VMEM).

    # ---- fused tail: conv3 + conv4 + conv5 + FC head in ONE pallas_call ----
    w3 = convs[2][0]
    patches, S3, _ = _im2col(x, CONV_DEFS[2][2], CONV_DEFS[2][3], w3.shape[0])
    L3 = S3 * S3
    BBt = 8 if B % 8 == 0 else B   # multiple of 8 keeps in-kernel slices tile-aligned
    nblk = B // BBt
    # position-major layout inside each batch block: row = pos * BBt + img
    x3 = (patches.reshape(nblk, BBt, L3, w3.shape[0])
                 .transpose(0, 2, 1, 3)
                 .reshape(nblk, L3 * BBt, w3.shape[0]))
    # TODO(synk): for v7x, split the tail into >=2 grid steps (BBt=8 each) once
    # B >= 16 so both TensorCores get work; at B=8 one step keeps slices aligned.
    out = _fused_tail(x3, convs[2:], fcs, BBt, S3)
    return out[:, :1]


if __name__ == "__main__":
    INPUT_IMAGE_SIZE = 64   # conv stack: 64 -> 30 -> 13 -> 5 -> 3 -> 1
    BATCH = 8               # multiple of 8 -> tile-aligned batch blocking

    key = jax.random.PRNGKey(0)
    pkey, xkey = jax.random.split(key)
    params = make_params(INPUT_IMAGE_SIZE, pkey)

    x = jax.random.normal(xkey, (BATCH, 3, INPUT_IMAGE_SIZE, INPUT_IMAGE_SIZE), jnp.float32)

    fwd = jax.jit(steering_prediction_forward)
    pred = jax.block_until_ready(fwd(x, params))

    assert pred.shape == (BATCH, 1), pred.shape
    assert pred.dtype == jnp.float32
    assert bool(jnp.all(jnp.isfinite(pred)))
    print("KERNEL_OK")
</pallas_src>

<mosaic_0001>
module attributes {stable_mosaic.version = 11 : i64} {
  func.func @_gemm_bias_relu_kernel(%arg0: i32, %arg1: memref<3616x128xbf16, #tpu.memory_space<vmem>>, %arg2: memref<128x128xbf16, #tpu.memory_space<vmem>>, %arg3: memref<1x128xf32, #tpu.memory_space<vmem>>, %arg4: memref<3616x128xbf16, #tpu.memory_space<vmem>>) attributes {dimension_semantics = [#tpu.dimension_semantics<parallel>], iteration_bounds = array<i64: 2>, scalar_prefetch = 0 : i64, scratch_operands = 0 : i64, tpu.core_type = #tpu.core_type<tc>, window_params = [{transform_indices = @transform_0, window_bounds = array<i64: 3616, 128>}, {pipeline_mode = #tpu.pipeline_mode<synchronous>, transform_indices = @transform_1, window_bounds = array<i64: 128, 128>}, {pipeline_mode = #tpu.pipeline_mode<synchronous>, transform_indices = @transform_2, window_bounds = array<i64: 1, 128>}, {transform_indices = @transform_3, window_bounds = array<i64: 3616, 128>}]} {
    %c0 = arith.constant 0 : index
    %c0_0 = arith.constant 0 : index
    %0 = vector.load %arg1[%c0, %c0_0] : memref<3616x128xbf16, #tpu.memory_space<vmem>>, vector<3616x128xbf16>
    %c0_1 = arith.constant 0 : index
    %c0_2 = arith.constant 0 : index
    %1 = vector.load %arg2[%c0_1, %c0_2] : memref<128x128xbf16, #tpu.memory_space<vmem>>, vector<128x128xbf16>
    %cst = arith.constant dense<0.000000e+00> : vector<3616x128xf32>
    %2 = tpu.matmul %0, %1, %cst {dimension_numbers = #tpu.dot_dimension_numbers<[1], [0], [0], [1], [0, 0, 1, 1], [], []>} : vector<3616x128xbf16>, vector<128x128xbf16>, vector<3616x128xf32> -> vector<3616x128xf32>
    %c0_3 = arith.constant 0 : index
    %c0_4 = arith.constant 0 : index
    %3 = vector.load %arg3[%c0_3, %c0_4] : memref<1x128xf32, #tpu.memory_space<vmem>>, vector<1x128xf32>
    %4 = vector.broadcast %3 : vector<1x128xf32> to vector<3616x128xf32>
    %5 = arith.addf %2, %4 : vector<3616x128xf32>
    %cst_5 = arith.constant 0.000000e+00 : f32
    %6 = vector.broadcast %cst_5 : f32 to vector<3616x128xf32>
    %7 = arith.maximumf %5, %6 : vector<3616x128xf32>
    %8 = arith.truncf %7 : vector<3616x128xf32> to vector<3616x128xbf16>
    %c0_6 = arith.constant 0 : index
    %c0_7 = arith.constant 0 : index
    %9 = vector.load %arg4[%c0_6, %c0_7] : memref<3616x128xbf16, #tpu.memory_space<vmem>>, vector<3616x128xbf16>
    tpu.vector_store %arg4[%c0_6, %c0_7], %8 {strides = array<i32>} : memref<3616x128xbf16, #tpu.memory_space<vmem>>, vector<3616x128xbf16>,
    return
  }
  func.func @transform_0(%arg0: i32) -> (i32, i32) {
    %c0_i32 = arith.constant 0 : i32
    %c0_i32_0 = arith.constant 0 : i32
    return %arg0, %c0_i32 : i32, i32
  }
  func.func @transform_1(%arg0: i32) -> (i32, i32) {
    %c0_i32 = arith.constant 0 : i32
    %c0_i32_0 = arith.constant 0 : i32
    %c0_i32_1 = arith.constant 0 : i32
    return %c0_i32, %c0_i32_0 : i32, i32
  }
  func.func @transform_2(%arg0: i32) -> (i32, i32) {
    %c0_i32 = arith.constant 0 : i32
    %c0_i32_0 = arith.constant 0 : i32
    %c0_i32_1 = arith.constant 0 : i32
    return %c0_i32, %c0_i32_0 : i32, i32
  }
  func.func @transform_3(%arg0: i32) -> (i32, i32) {
    %c0_i32 = arith.constant 0 : i32
    %c0_i32_0 = arith.constant 0 : i32
    return %arg0, %c0_i32 : i32, i32
  }
}

module attributes {stable_mosaic.version = 11 : i64} {
  func.func @_gemm_bias_relu_kernel(%arg0: i32, %arg1: memref<704x640xbf16, #tpu.memory_space<vmem>>, %arg2: memref<640x128xbf16, #tpu.memory_space<vmem>>, %arg3: memref<1x128xf32, #tpu.memory_space<vmem>>, %arg4: memref<704x128xbf16, #tpu.memory_space<vmem>>) attributes {dimension_semantics = [#tpu.dimension_semantics<parallel>], iteration_bounds = array<i64: 2>, scalar_prefetch = 0 : i64, scratch_operands = 0 : i64, tpu.core_type = #tpu.core_type<tc>, window_params = [{transform_indices = @transform_0, window_bounds = array<i64: 704, 640>}, {pipeline_mode = #tpu.pipeline_mode<synchronous>, transform_indices = @transform_1, window_bounds = array<i64: 640, 128>}, {pipeline_mode = #tpu.pipeline_mode<synchronous>, transform_indices = @transform_2, window_bounds = array<i64: 1, 128>}, {transform_indices = @transform_3, window_bounds = array<i64: 704, 128>}]} {
    %c0 = arith.constant 0 : index
    %c0_0 = arith.constant 0 : index
    %0 = vector.load %arg1[%c0, %c0_0] : memref<704x640xbf16, #tpu.memory_space<vmem>>, vector<704x640xbf16>
    %c0_1 = arith.constant 0 : index
    %c0_2 = arith.constant 0 : index
    %1 = vector.load %arg2[%c0_1, %c0_2] : memref<640x128xbf16, #tpu.memory_space<vmem>>, vector<640x128xbf16>
    %cst = arith.constant dense<0.000000e+00> : vector<704x128xf32>
    %2 = tpu.matmul %0, %1, %cst {dimension_numbers = #tpu.dot_dimension_numbers<[1], [0], [0], [1], [0, 0, 1, 1], [], []>} : vector<704x640xbf16>, vector<640x128xbf16>, vector<704x128xf32> -> vector<704x128xf32>
    %c0_3 = arith.constant 0 : index
    %c0_4 = arith.constant 0 : index
    %3 = vector.load %arg3[%c0_3, %c0_4] : memref<1x128xf32, #tpu.memory_space<vmem>>, vector<1x128xf32>
    %4 = vector.broadcast %3 : vector<1x128xf32> to vector<704x128xf32>
    %5 = arith.addf %2, %4 : vector<704x128xf32>
    %cst_5 = arith.constant 0.000000e+00 : f32
    %6 = vector.broadcast %cst_5 : f32 to vector<704x128xf32>
    %7 = arith.maximumf %5, %6 : vector<704x128xf32>
    %8 = arith.truncf %7 : vector<704x128xf32> to vector<704x128xbf16>
    %c0_6 = arith.constant 0 : index
    %c0_7 = arith.constant 0 : index
    %9 = vector.load %arg4[%c0_6, %c0_7] : memref<704x128xbf16, #tpu.memory_space<vmem>>, vector<704x128xbf16>
    tpu.vector_store %arg4[%c0_6, %c0_7], %8 {strides = array<i32>} : memref<704x128xbf16, #tpu.memory_space<vmem>>, vector<704x128xbf16>,
    return
  }
  func.func @transform_0(%arg0: i32) -> (i32, i32) {
    %c0_i32 = arith.constant 0 : i32
    %c0_i32_0 = arith.constant 0 : i32
    return %arg0, %c0_i32 : i32, i32
  }
  func.func @transform_1(%arg0: i32) -> (i32, i32) {
    %c0_i32 = arith.constant 0 : i32
    %c0_i32_0 = arith.constant 0 : i32
    %c0_i32_1 = arith.constant 0 : i32
    return %c0_i32, %c0_i32_0 : i32, i32
  }
  func.func @transform_2(%arg0: i32) -> (i32, i32) {
    %c0_i32 = arith.constant 0 : i32
    %c0_i32_0 = arith.constant 0 : i32
    %c0_i32_1 = arith.constant 0 : i32
    return %c0_i32, %c0_i32_0 : i32, i32
  }
  func.func @transform_3(%arg0: i32) -> (i32, i32) {
    %c0_i32 = arith.constant 0 : i32
    %c0_i32_0 = arith.constant 0 : i32
    return %arg0, %c0_i32 : i32, i32
  }
}

module attributes {stable_mosaic.version = 11 : i64} {
  func.func @kernel(%arg0: i32, %arg1: memref<1x200x1024xbf16, #tpu.memory_space<vmem>>, %arg2: memref<1024x128xbf16, #tpu.memory_space<vmem>>, %arg3: memref<1x128xf32, #tpu.memory_space<vmem>>, %arg4: memref<1152x128xbf16, #tpu.memory_space<vmem>>, %arg5: memref<1x128xf32, #tpu.memory_space<vmem>>, %arg6: memref<1152x128xbf16, #tpu.memory_space<vmem>>, %arg7: memref<1x128xf32, #tpu.memory_space<vmem>>, %arg8: memref<128x1280xbf16, #tpu.memory_space<vmem>>, %arg9: memref<1x1280xf32, #tpu.memory_space<vmem>>, %arg10: memref<1280x128xbf16, #tpu.memory_space<vmem>>, %arg11: memref<1x128xf32, #tpu.memory_space<vmem>>, %arg12: memref<128x128xbf16, #tpu.memory_space<vmem>>, %arg13: memref<1x128xf32, #tpu.memory_space<vmem>>, %arg14: memref<128x128xbf16, #tpu.memory_space<vmem>>, %arg15: memref<1x128xf32, #tpu.memory_space<vmem>>, %arg16: memref<128x128xbf16, #tpu.memory_space<vmem>>, %arg17: memref<1x128xf32, #tpu.memory_space<vmem>>, %arg18: memref<8x128xf32, #tpu.memory_space<vmem>>) attributes {dimension_semantics = [#tpu.dimension_semantics<parallel>], iteration_bounds = array<i64: 1>, scalar_prefetch = 0 : i64, scratch_operands = 0 : i64, tpu.core_type = #tpu.core_type<tc>, window_params = [{transform_indices = @transform_0, window_bounds = array<i64: 1, 200, 1024>}, {pipeline_mode = #tpu.pipeline_mode<synchronous>, transform_indices = @transform_1, window_bounds = array<i64: 1024, 128>}, {pipeline_mode = #tpu.pipeline_mode<synchronous>, transform_indices = @transform_2, window_bounds = array<i64: 1, 128>}, {pipeline_mode = #tpu.pipeline_mode<synchronous>, transform_indices = @transform_3, window_bounds = array<i64: 1152, 128>}, {pipeline_mode = #tpu.pipeline_mode<synchronous>, transform_indices = @transform_4, window_bounds = array<i64: 1, 128>}, {pipeline_mode = #tpu.pipeline_mode<synchronous>, transform_indices = @transform_5, window_bounds = array<i64: 1152, 128>}, {pipeline_mode = #tpu.pipeline_mode<synchronous>, transform_indices = @transform_6, window_bounds = array<i64: 1, 128>}, {pipeline_mode = #tpu.pipeline_mode<synchronous>, transform_indices = @transform_7, window_bounds = array<i64: 128, 1280>}, {pipeline_mode = #tpu.pipeline_mode<synchronous>, transform_indices = @transform_8, window_bounds = array<i64: 1, 1280>}, {pipeline_mode = #tpu.pipeline_mode<synchronous>, transform_indices = @transform_9, window_bounds = array<i64: 1280, 128>}, {pipeline_mode = #tpu.pipeline_mode<synchronous>, transform_indices = @transform_10, window_bounds = array<i64: 1, 128>}, {pipeline_mode = #tpu.pipeline_mode<synchronous>, transform_indices = @transform_11, window_bounds = array<i64: 128, 128>}, {pipeline_mode = #tpu.pipeline_mode<synchronous>, transform_indices = @transform_12, window_bounds = array<i64: 1, 128>}, {pipeline_mode = #tpu.pipeline_mode<synchronous>, transform_indices = @transform_13, window_bounds = array<i64: 128, 128>}, {pipeline_mode = #tpu.pipeline_mode<synchronous>, transform_indices = @transform_14, window_bounds = array<i64: 1, 128>}, {pipeline_mode = #tpu.pipeline_mode<synchronous>, transform_indices = @transform_15, window_bounds = array<i64: 128, 128>}, {pipeline_mode = #tpu.pipeline_mode<synchronous>, transform_indices = @transform_16, window_bounds = array<i64: 1, 128>}, {transform_indices = @transform_17, window_bounds = array<i64: 8, 128>}]} {
    %c0 = arith.constant 0 : index
    %c0_0 = arith.constant 0 : index
    %c0_1 = arith.constant 0 : index
    %0 = vector.load %arg1[%c0, %c0_0, %c0_1] : memref<1x200x1024xbf16, #tpu.memory_space<vmem>>, vector<1x200x1024xbf16>
    %1 = vector.shape_cast %0 : vector<1x200x1024xbf16> to vector<200x1024xbf16>
    %c0_2 = arith.constant 0 : index
    %c0_3 = arith.constant 0 : index
    %2 = vector.load %arg2[%c0_2, %c0_3] : memref<1024x128xbf16, #tpu.memory_space<vmem>>, vector<1024x128xbf16>
    %cst = arith.constant dense<0.000000e+00> : vector<200x128xf32>
    %3 = tpu.matmul %1, %2, %cst {dimension_numbers = #tpu.dot_dimension_numbers<[1], [0], [0], [1], [0, 0, 1, 1], [], []>} : vector<200x1024xbf16>, vector<1024x128xbf16>, vector<200x128xf32> -> vector<200x128xf32>
    %c0_4 = arith.constant 0 : index
    %c0_5 = arith.constant 0 : index
    %4 = vector.load %arg3[%c0_4, %c0_5] : memref<1x128xf32, #tpu.memory_space<vmem>>, vector<1x128xf32>
    %5 = vector.broadcast %4 : vector<1x128xf32> to vector<200x128xf32>
    %6 = arith.addf %3, %5 : vector<200x128xf32>
    %cst_6 = arith.constant 0.000000e+00 : f32
    %7 = vector.broadcast %cst_6 : f32 to vector<200x128xf32>
    %8 = arith.maximumf %6, %7 : vector<200x128xf32>
    %9 = vector.extract_strided_slice %8 {offsets = [0, 0], sizes = [8, 128], strides = [1, 1]} : vector<200x128xf32> to vector<8x128xf32>
    %10 = vector.extract_strided_slice %8 {offsets = [8, 0], sizes = [8, 128], strides = [1, 1]} : vector<200x128xf32> to vector<8x128xf32>
    %11 = vector.extract_strided_slice %8 {offsets = [16, 0], sizes = [8, 128], strides = [1, 1]} : vector<200x128xf32> to vector<8x128xf32>
    %12 = vector.extract_strided_slice %8 {offsets = [40, 0], sizes = [8, 128], strides = [1, 1]} : vector<200x128xf32> to vector<8x128xf32>
    %13 = vector.extract_strided_slice %8 {offsets = [48, 0], sizes = [8, 128], strides = [1, 1]} : vector<200x128xf32> to vector<8x128xf32>
    %14 = vector.extract_strided_slice %8 {offsets = [56, 0], sizes = [8, 128], strides = [1, 1]} : vector<200x128xf32> to vector<8x128xf32>
    %15 = vector.extract_strided_slice %8 {offsets = [80, 0], sizes = [8, 128], strides = [1, 1]} : vector<200x128xf32> to vector<8x128xf32>
    %16 = vector.extract_strided_slice %8 {offsets = [88, 0], sizes = [8, 128], strides = [1, 1]} : vector<200x128xf32> to vector<8x128xf32>
    %17 = vector.extract_strided_slice %8 {offsets = [96, 0], sizes = [8, 128], strides = [1, 1]} : vector<200x128xf32> to vector<8x128xf32>
    %18 = tpu.concatenate %9, %10, %11, %12, %13, %14, %15, %16, %17 in 1 : vector<8x128xf32>, vector<8x128xf32>, vector<8x128xf32>, vector<8x128xf32>, vector<8x128xf32>, vector<8x128xf32>, vector<8x128xf32>, vector<8x128xf32>, vector<8x128xf32> -> vector<8x1152xf32>
    %19 = vector.extract_strided_slice %8 {offsets = [8, 0], sizes = [8, 128], strides = [1, 1]} : vector<200x128xf32> to vector<8x128xf32>
    %20 = vector.extract_strided_slice %8 {offsets = [16, 0], sizes = [8, 128], strides = [1, 1]} : vector<200x128xf32> to vector<8x128xf32>
    %21 = vector.extract_strided_slice %8 {offsets = [24, 0], sizes = [8, 128], strides = [1, 1]} : vector<200x128xf32> to vector<8x128xf32>
    %22 = vector.extract_strided_slice %8 {offsets = [48, 0], sizes = [8, 128], strides = [1, 1]} : vector<200x128xf32> to vector<8x128xf32>
    %23 = vector.extract_strided_slice %8 {offsets = [56, 0], sizes = [8, 128], strides = [1, 1]} : vector<200x128xf32> to vector<8x128xf32>
    %24 = vector.extract_strided_slice %8 {offsets = [64, 0], sizes = [8, 128], strides = [1, 1]} : vector<200x128xf32> to vector<8x128xf32>
    %25 = vector.extract_strided_slice %8 {offsets = [88, 0], sizes = [8, 128], strides = [1, 1]} : vector<200x128xf32> to vector<8x128xf32>
    %26 = vector.extract_strided_slice %8 {offsets = [96, 0], sizes = [8, 128], strides = [1, 1]} : vector<200x128xf32> to vector<8x128xf32>
    %27 = vector.extract_strided_slice %8 {offsets = [104, 0], sizes = [8, 128], strides = [1, 1]} : vector<200x128xf32> to vector<8x128xf32>
    %28 = tpu.concatenate %19, %20, %21, %22, %23, %24, %25, %26, %27 in 1 : vector<8x128xf32>, vector<8x128xf32>, vector<8x128xf32>, vector<8x128xf32>, vector<8x128xf32>, vector<8x128xf32>, vector<8x128xf32>, vector<8x128xf32>, vector<8x128xf32> -> vector<8x1152xf32>
    %29 = vector.extract_strided_slice %8 {offsets = [16, 0], sizes = [8, 128], strides = [1, 1]} : vector<200x128xf32> to vector<8x128xf32>
    %30 = vector.extract_strided_slice %8 {offsets = [24, 0], sizes = [8, 128], strides = [1, 1]} : vector<200x128xf32> to vector<8x128xf32>
    %31 = vector.extract_strided_slice %8 {offsets = [32, 0], sizes = [8, 128], strides = [1, 1]} : vector<200x128xf32> to vector<8x128xf32>
    %32 = vector.extract_strided_slice %8 {offsets = [56, 0], sizes = [8, 128], strides = [1, 1]} : vector<200x128xf32> to vector<8x128xf32>
    %33 = vector.extract_strided_slice %8 {offsets = [64, 0], sizes = [8, 128], strides = [1, 1]} : vector<200x128xf32> to vector<8x128xf32>
    %34 = vector.extract_strided_slice %8 {offsets = [72, 0], sizes = [8, 128], strides = [1, 1]} : vector<200x128xf32> to vector<8x128xf32>
    %35 = vector.extract_strided_slice %8 {offsets = [96, 0], sizes = [8, 128], strides = [1, 1]} : vector<200x128xf32> to vector<8x128xf32>
    %36 = vector.extract_strided_slice %8 {offsets = [104, 0], sizes = [8, 128], strides = [1, 1]} : vector<200x128xf32> to vector<8x128xf32>
    %37 = vector.extract_strided_slice %8 {offsets = [112, 0], sizes = [8, 128], strides = [1, 1]} : vector<200x128xf32> to vector<8x128xf32>
    %38 = tpu.concatenate %29, %30, %31, %32, %33, %34, %35, %36, %37 in 1 : vector<8x128xf32>, vector<8x128xf32>, vector<8x128xf32>, vector<8x128xf32>, vector<8x128xf32>, vector<8x128xf32>, vector<8x128xf32>, vector<8x128xf32>, vector<8x128xf32> -> vector<8x1152xf32>
    %39 = vector.extract_strided_slice %8 {offsets = [40, 0], sizes = [8, 128], strides = [1, 1]} : vector<200x128xf32> to vector<8x128xf32>
    %40 = vector.extract_strided_slice %8 {offsets = [48, 0], sizes = [8, 128], strides = [1, 1]} : vector<200x128xf32> to vector<8x128xf32>
    %41 = vector.extract_strided_slice %8 {offsets = [56, 0], sizes = [8, 128], strides = [1, 1]} : vector<200x128xf32> to vector<8x128xf32>
    %42 = vector.extract_strided_slice %8 {offsets = [80, 0], sizes = [8, 128], strides = [1, 1]} : vector<200x128xf32> to vector<8x128xf32>
    %43 = vector.extract_strided_slice %8 {offsets = [88, 0], sizes = [8, 128], strides = [1, 1]} : vector<200x128xf32> to vector<8x128xf32>
    %44 = vector.extract_strided_slice %8 {offsets = [96, 0], sizes = [8, 128], strides = [1, 1]} : vector<200x128xf32> to vector<8x128xf32>
    %45 = vector.extract_strided_slice %8 {offsets = [120, 0], sizes = [8, 128], strides = [1, 1]} : vector<200x128xf32> to vector<8x128xf32>
    %46 = vector.extract_strided_slice %8 {offsets = [128, 0], sizes = [8, 128], strides = [1, 1]} : vector<200x128xf32> to vector<8x128xf32>
    %47 = vector.extract_strided_slice %8 {offsets = [136, 0], sizes = [8, 128], strides = [1, 1]} : vector<200x128xf32> to vector<8x128xf32>
    %48 = tpu.concatenate %39, %40, %41, %42, %43, %44, %45, %46, %47 in 1 : vector<8x128xf32>, vector<8x128xf32>, vector<8x128xf32>, vector<8x128xf32>, vector<8x128xf32>, vector<8x128xf32>, vector<8x128xf32>, vector<8x128xf32>, vector<8x128xf32> -> vector<8x1152xf32>
    %49 = vector.extract_strided_slice %8 {offsets = [48, 0], sizes = [8, 128], strides = [1, 1]} : vector<200x128xf32> to vector<8x128xf32>
    %50 = vector.extract_strided_slice %8 {offsets = [56, 0], sizes = [8, 128], strides = [1, 1]} : vector<200x128xf32> to vector<8x128xf32>
    %51 = vector.extract_strided_slice %8 {offsets = [64, 0], sizes = [8, 128], strides = [1, 1]} : vector<200x128xf32> to vector<8x128xf32>
    %52 = vector.extract_strided_slice %8 {offsets = [88, 0], sizes = [8, 128], strides = [1, 1]} : vector<200x128xf32> to vector<8x128xf32>
    %53 = vector.extract_strided_slice %8 {offsets = [96, 0], sizes = [8, 128], strides = [1, 1]} : vector<200x128xf32> to vector<8x128xf32>
    %54 = vector.extract_strided_slice %8 {offsets = [104, 0], sizes = [8, 128], strides = [1, 1]} : vector<200x128xf32> to vector<8x128xf32>
    %55 = vector.extract_strided_slice %8 {offsets = [128, 0], sizes = [8, 128], strides = [1, 1]} : vector<200x128xf32> to vector<8x128xf32>
    %56 = vector.extract_strided_slice %8 {offsets = [136, 0], sizes = [8, 128], strides = [1, 1]} : vector<200x128xf32> to vector<8x128xf32>
    %57 = vector.extract_strided_slice %8 {offsets = [144, 0], sizes = [8, 128], strides = [1, 1]} : vector<200x128xf32> to vector<8x128xf32>
    %58 = tpu.concatenate %49, %50, %51, %52, %53, %54, %55, %56, %57 in 1 : vector<8x128xf32>, vector<8x128xf32>, vector<8x128xf32>, vector<8x128xf32>, vector<8x128xf32>, vector<8x128xf32>, vector<8x128xf32>, vector<8x128xf32>, vector<8x128xf32> -> vector<8x1152xf32>
    %59 = vector.extract_strided_slice %8 {offsets = [56, 0], sizes = [8, 128], strides = [1, 1]} : vector<200x128xf32> to vector<8x128xf32>
    %60 = vector.extract_strided_slice %8 {offsets = [64, 0], sizes = [8, 128], strides = [1, 1]} : vector<200x128xf32> to vector<8x128xf32>
    %61 = vector.extract_strided_slice %8 {offsets = [72, 0], sizes = [8, 128], strides = [1, 1]} : vector<200x128xf32> to vector<8x128xf32>
    %62 = vector.extract_strided_slice %8 {offsets = [96, 0], sizes = [8, 128], strides = [1, 1]} : vector<200x128xf32> to vector<8x128xf32>
    %63 = vector.extract_strided_slice %8 {offsets = [104, 0], sizes = [8, 128], strides = [1, 1]} : vector<200x128xf32> to vector<8x128xf32>
    %64 = vector.extract_strided_slice %8 {offsets = [112, 0], sizes = [8, 128], strides = [1, 1]} : vector<200x128xf32> to vector<8x128xf32>
    %65 = vector.extract_strided_slice %8 {offsets = [136, 0], sizes = [8, 128], strides = [1, 1]} : vector<200x128xf32> to vector<8x128xf32>
    %66 = vector.extract_strided_slice %8 {offsets = [144, 0], sizes = [8, 128], strides = [1, 1]} : vector<200x128xf32> to vector<8x128xf32>
    %67 = vector.extract_strided_slice %8 {offsets = [152, 0], sizes = [8, 128], strides = [1, 1]} : vector<200x128xf32> to vector<8x128xf32>
    %68 = tpu.concatenate %59, %60, %61, %62, %63, %64, %65, %66, %67 in 1 : vector<8x128xf32>, vector<8x128xf32>, vector<8x128xf32>, vector<8x128xf32>, vector<8x128xf32>, vector<8x128xf32>, vector<8x128xf32>, vector<8x128xf32>, vector<8x128xf32> -> vector<8x1152xf32>
    %69 = vector.extract_strided_slice %8 {offsets = [80, 0], sizes = [8, 128], strides = [1, 1]} : vector<200x128xf32> to vector<8x128xf32>
    %70 = vector.extract_strided_slice %8 {offsets = [88, 0], sizes = [8, 128], strides = [1, 1]} : vector<200x128xf32> to vector<8x128xf32>
    %71 = vector.extract_strided_slice %8 {offsets = [96, 0], sizes = [8, 128], strides = [1, 1]} : vector<200x128xf32> to vector<8x128xf32>
    %72 = vector.extract_strided_slice %8 {offsets = [120, 0], sizes = [8, 128], strides = [1, 1]} : vector<200x128xf32> to vector<8x128xf32>
    %73 = vector.extract_strided_slice %8 {offsets = [128, 0], sizes = [8, 128], strides = [1, 1]} : vector<200x128xf32> to vector<8x128xf32>
    %74 = vector.extract_strided_slice %8 {offsets = [136, 0], sizes = [8, 128], strides = [1, 1]} : vector<200x128xf32> to vector<8x128xf32>
    %75 = vector.extract_strided_slice %8 {offsets = [160, 0], sizes = [8, 128], strides = [1, 1]} : vector<200x128xf32> to vector<8x128xf32>
    %76 = vector.extract_strided_slice %8 {offsets = [168, 0], sizes = [8, 128], strides = [1, 1]} : vector<200x128xf32> to vector<8x128xf32>
    %77 = vector.extract_strided_slice %8 {offsets = [176, 0], sizes = [8, 128], strides = [1, 1]} : vector<200x128xf32> to vector<8x128xf32>
    %78 = tpu.concatenate %69, %70, %71, %72, %73, %74, %75, %76, %77 in 1 : vector<8x128xf32>, vector<8x128xf32>, vector<8x128xf32>, vector<8x128xf32>, vector<8x128xf32>, vector<8x128xf32>, vector<8x128xf32>, vector<8x128xf32>, vector<8x128xf32> -> vector<8x1152xf32>
    %79 = vector.extract_strided_slice %8 {offsets = [88, 0], sizes = [8, 128], strides = [1, 1]} : vector<200x128xf32> to vector<8x128xf32>
    %80 = vector.extract_strided_slice %8 {offsets = [96, 0], sizes = [8, 128], strides = [1, 1]} : vector<200x128xf32> to vector<8x128xf32>
    %81 = vector.extract_strided_slice %8 {offsets = [104, 0], sizes = [8, 128], strides = [1, 1]} : vector<200x128xf32> to vector<8x128xf32>
    %82 = vector.extract_strided_slice %8 {offsets = [128, 0], sizes = [8, 128], strides = [1, 1]} : vector<200x128xf32> to vector<8x128xf32>
    %83 = vector.extract_strided_slice %8 {offsets = [136, 0], sizes = [8, 128], strides = [1, 1]} : vector<200x128xf32> to vector<8x128xf32>
    %84 = vector.extract_strided_slice %8 {offsets = [144, 0], sizes = [8, 128], strides = [1, 1]} : vector<200x128xf32> to vector<8x128xf32>
    %85 = vector.extract_strided_slice %8 {offsets = [168, 0], sizes = [8, 128], strides = [1, 1]} : vector<200x128xf32> to vector<8x128xf32>
    %86 = vector.extract_strided_slice %8 {offsets = [176, 0], sizes = [8, 128], strides = [1, 1]} : vector<200x128xf32> to vector<8x128xf32>
    %87 = vector.extract_strided_slice %8 {offsets = [184, 0], sizes = [8, 128], strides = [1, 1]} : vector<200x128xf32> to vector<8x128xf32>
    %88 = tpu.concatenate %79, %80, %81, %82, %83, %84, %85, %86, %87 in 1 : vector<8x128xf32>, vector<8x128xf32>, vector<8x128xf32>, vector<8x128xf32>, vector<8x128xf32>, vector<8x128xf32>, vector<8x128xf32>, vector<8x128xf32>, vector<8x128xf32> -> vector<8x1152xf32>
    %89 = vector.extract_strided_slice %8 {offsets = [96, 0], sizes = [8, 128], strides = [1, 1]} : vector<200x128xf32> to vector<8x128xf32>
    %90 = vector.extract_strided_slice %8 {offsets = [104, 0], sizes = [8, 128], strides = [1, 1]} : vector<200x128xf32> to vector<8x128xf32>
    %91 = vector.extract_strided_slice %8 {offsets = [112, 0], sizes = [8, 128], strides = [1, 1]} : vector<200x128xf32> to vector<8x128xf32>
    %92 = vector.extract_strided_slice %8 {offsets = [136, 0], sizes = [8, 128], strides = [1, 1]} : vector<200x128xf32> to vector<8x128xf32>
    %93 = vector.extract_strided_slice %8 {offsets = [144, 0], sizes = [8, 128], strides = [1, 1]} : vector<200x128xf32> to vector<8x128xf32>
    %94 = vector.extract_strided_slice %8 {offsets = [152, 0], sizes = [8, 128], strides = [1, 1]} : vector<200x128xf32> to vector<8x128xf32>
    %95 = vector.extract_strided_slice %8 {offsets = [176, 0], sizes = [8, 128], strides = [1, 1]} : vector<200x128xf32> to vector<8x128xf32>
    %96 = vector.extract_strided_slice %8 {offsets = [184, 0], sizes = [8, 128], strides = [1, 1]} : vector<200x128xf32> to vector<8x128xf32>
    %97 = vector.extract_strided_slice %8 {offsets = [192, 0], sizes = [8, 128], strides = [1, 1]} : vector<200x128xf32> to vector<8x128xf32>
    %98 = tpu.concatenate %89, %90, %91, %92, %93, %94, %95, %96, %97 in 1 : vector<8x128xf32>, vector<8x128xf32>, vector<8x128xf32>, vector<8x128xf32>, vector<8x128xf32>, vector<8x128xf32>, vector<8x128xf32>, vector<8x128xf32>, vector<8x128xf32> -> vector<8x1152xf32>
    %99 = tpu.concatenate %18, %28, %38, %48, %58, %68, %78, %88, %98 in 0 : vector<8x1152xf32>, vector<8x1152xf32>, vector<8x1152xf32>, vector<8x1152xf32>, vector<8x1152xf32>, vector<8x1152xf32>, vector<8x1152xf32>, vector<8x1152xf32>, vector<8x1152xf32> -> vector<72x1152xf32>
    %100 = arith.truncf %99 : vector<72x1152xf32> to vector<72x1152xbf16>
    %c0_7 = arith.constant 0 : index
    %c0_8 = arith.constant 0 : index
    %101 = vector.load %arg4[%c0_7, %c0_8] : memref<1152x128xbf16, #tpu.memory_space<vmem>>, vector<1152x128xbf16>
    %cst_9 = arith.constant dense<0.000000e+00> : vector<72x128xf32>
    %102 = tpu.matmul %100, %101, %cst_9 {dimension_numbers = #tpu.dot_dimension_numbers<[1], [0], [0], [1], [0, 0, 1, 1], [], []>} : vector<72x1152xbf16>, vector<1152x128xbf16>, vector<72x128xf32> -> vector<72x128xf32>
    %c0_10 = arith.constant 0 : index
    %c0_11 = arith.constant 0 : index
    %103 = vector.load %arg5[%c0_10, %c0_11] : memref<1x128xf32, #tpu.memory_space<vmem>>, vector<1x128xf32>
    %104 = vector.broadcast %103 : vector<1x128xf32> to vector<72x128xf32>
    %105 = arith.addf %102, %104 : vector<72x128xf32>
    %cst_12 = arith.constant 0.000000e+00 : f32
    %106 = vector.broadcast %cst_12 : f32 to vector<72x128xf32>
    %107 = arith.maximumf %105, %106 : vector<72x128xf32>
    %108 = vector.extract_strided_slice %107 {offsets = [0, 0], sizes = [8, 128], strides = [1, 1]} : vector<72x128xf32> to vector<8x128xf32>
    %109 = vector.extract_strided_slice %107 {offsets = [8, 0], sizes = [8, 128], strides = [1, 1]} : vector<72x128xf32> to vector<8x128xf32>
    %110 = vector.extract_strided_slice %107 {offsets = [16, 0], sizes = [8, 128], strides = [1, 1]} : vector<72x128xf32> to vector<8x128xf32>
    %111 = vector.extract_strided_slice %107 {offsets = [24, 0], sizes = [8, 128], strides = [1, 1]} : vector<72x128xf32> to vector<8x128xf32>
    %112 = vector.extract_strided_slice %107 {offsets = [32, 0], sizes = [8, 128], strides = [1, 1]} : vector<72x128xf32> to vector<8x128xf32>
    %113 = vector.extract_strided_slice %107 {offsets = [40, 0], sizes = [8, 128], strides = [1, 1]} : vector<72x128xf32> to vector<8x128xf32>
    %114 = vector.extract_strided_slice %107 {offsets = [48, 0], sizes = [8, 128], strides = [1, 1]} : vector<72x128xf32> to vector<8x128xf32>
    %115 = vector.extract_strided_slice %107 {offsets = [56, 0], sizes = [8, 128], strides = [1, 1]} : vector<72x128xf32> to vector<8x128xf32>
    %116 = vector.extract_strided_slice %107 {offsets = [64, 0], sizes = [8, 128], strides = [1, 1]} : vector<72x128xf32> to vector<8x128xf32>
    %117 = tpu.concatenate %108, %109, %110, %111, %112, %113, %114, %115, %116 in 1 : vector<8x128xf32>, vector<8x128xf32>, vector<8x128xf32>, vector<8x128xf32>, vector<8x128xf32>, vector<8x128xf32>, vector<8x128xf32>, vector<8x128xf32>, vector<8x128xf32> -> vector<8x1152xf32>
    %118 = arith.truncf %117 : vector<8x1152xf32> to vector<8x1152xbf16>
    %c0_13 = arith.constant 0 : index
    %c0_14 = arith.constant 0 : index
    %119 = vector.load %arg6[%c0_13, %c0_14] : memref<1152x128xbf16, #tpu.memory_space<vmem>>, vector<1152x128xbf16>
    %cst_15 = arith.constant dense<0.000000e+00> : vector<8x128xf32>
    %120 = tpu.matmul %118, %119, %cst_15 {dimension_numbers = #tpu.dot_dimension_numbers<[1], [0], [0], [1], [0, 0, 1, 1], [], []>} : vector<8x1152xbf16>, vector<1152x128xbf16>, vector<8x128xf32> -> vector<8x128xf32>
    %c0_16 = arith.constant 0 : index
    %c0_17 = arith.constant 0 : index
    %121 = vector.load %arg7[%c0_16, %c0_17] : memref<1x128xf32, #tpu.memory_space<vmem>>, vector<1x128xf32>
    %122 = vector.broadcast %121 : vector<1x128xf32> to vector<8x128xf32>
    %123 = arith.addf %120, %122 : vector<8x128xf32>
    %cst_18 = arith.constant 0.000000e+00 : f32
    %124 = vector.broadcast %cst_18 : f32 to vector<8x128xf32>
    %125 = arith.maximumf %123, %124 : vector<8x128xf32>
    %126 = arith.truncf %125 : vector<8x128xf32> to vector<8x128xbf16>
    %c0_19 = arith.constant 0 : index
    %c0_20 = arith.constant 0 : index
    %127 = vector.load %arg8[%c0_19, %c0_20] : memref<128x1280xbf16, #tpu.memory_space<vmem>>, vector<128x1280xbf16>
    %cst_21 = arith.constant dense<0.000000e+00> : vector<8x1280xf32>
    %128 = tpu.matmul %126, %127, %cst_21 {dimension_numbers = #tpu.dot_dimension_numbers<[1], [0], [0], [1], [0, 0, 1, 1], [], []>} : vector<8x128xbf16>, vector<128x1280xbf16>, vector<8x1280xf32> -> vector<8x1280xf32>
    %c0_22 = arith.constant 0 : index
    %c0_23 = arith.constant 0 : index
    %129 = vector.load %arg9[%c0_22, %c0_23] : memref<1x1280xf32, #tpu.memory_space<vmem>>, vector<1x1280xf32>
    %130 = vector.broadcast %129 : vector<1x1280xf32> to vector<8x1280xf32>
    %131 = arith.addf %128, %130 : vector<8x1280xf32>
    %cst_24 = arith.constant 0.000000e+00 : f32
    %132 = vector.broadcast %cst_24 : f32 to vector<8x1280xf32>
    %133 = arith.maximumf %131, %132 : vector<8x1280xf32>
    %134 = arith.truncf %133 : vector<8x1280xf32> to vector<8x1280xbf16>
    %c0_25 = arith.constant 0 : index
    %c0_26 = arith.constant 0 : index
    %135 = vector.load %arg10[%c0_25, %c0_26] : memref<1280x128xbf16, #tpu.memory_space<vmem>>, vector<1280x128xbf16>
    %cst_27 = arith.constant dense<0.000000e+00> : vector<8x128xf32>
    %136 = tpu.matmul %134, %135, %cst_27 {dimension_numbers = #tpu.dot_dimension_numbers<[1], [0], [0], [1], [0, 0, 1, 1], [], []>} : vector<8x1280xbf16>, vector<1280x128xbf16>, vector<8x128xf32> -> vector<8x128xf32>
    %c0_28 = arith.constant 0 : index
    %c0_29 = arith.constant 0 : index
    %137 = vector.load %arg11[%c0_28, %c0_29] : memref<1x128xf32, #tpu.memory_space<vmem>>, vector<1x128xf32>
    %138 = vector.broadcast %137 : vector<1x128xf32> to vector<8x128xf32>
    %139 = arith.addf %136, %138 : vector<8x128xf32>
    %cst_30 = arith.constant 0.000000e+00 : f32
    %140 = vector.broadcast %cst_30 : f32 to vector<8x128xf32>
    %141 = arith.maximumf %139, %140 : vector<8x128xf32>
    %142 = arith.truncf %141 : vector<8x128xf32> to vector<8x128xbf16>
    %c0_31 = arith.constant 0 : index
    %c0_32 = arith.constant 0 : index
    %143 = vector.load %arg12[%c0_31, %c0_32] : memref<128x128xbf16, #tpu.memory_space<vmem>>, vector<128x128xbf16>
    %cst_33 = arith.constant dense<0.000000e+00> : vector<8x128xf32>
    %144 = tpu.matmul %142, %143, %cst_33 {dimension_numbers = #tpu.dot_dimension_numbers<[1], [0], [0], [1], [0, 0, 1, 1], [], []>} : vector<8x128xbf16>, vector<128x128xbf16>, vector<8x128xf32> -> vector<8x128xf32>
    %c0_34 = arith.constant 0 : index
    %c0_35 = arith.constant 0 : index
    %145 = vector.load %arg13[%c0_34, %c0_35] : memref<1x128xf32, #tpu.memory_space<vmem>>, vector<1x128xf32>
    %146 = vector.broadcast %145 : vector<1x128xf32> to vector<8x128xf32>
    %147 = arith.addf %144, %146 : vector<8x128xf32>
    %cst_36 = arith.constant 0.000000e+00 : f32
    %148 = vector.broadcast %cst_36 : f32 to vector<8x128xf32>
    %149 = arith.maximumf %147, %148 : vector<8x128xf32>
    %150 = arith.truncf %149 : vector<8x128xf32> to vector<8x128xbf16>
    %c0_37 = arith.constant 0 : index
    %c0_38 = arith.constant 0 : index
    %151 = vector.load %arg14[%c0_37, %c0_38] : memref<128x128xbf16, #tpu.memory_space<vmem>>, vector<128x128xbf16>
    %cst_39 = arith.constant dense<0.000000e+00> : vector<8x128xf32>
    %152 = tpu.matmul %150, %151, %cst_39 {dimension_numbers = #tpu.dot_dimension_numbers<[1], [0], [0], [1], [0, 0, 1, 1], [], []>} : vector<8x128xbf16>, vector<128x128xbf16>, vector<8x128xf32> -> vector<8x128xf32>
    %c0_40 = arith.constant 0 : index
    %c0_41 = arith.constant 0 : index
    %153 = vector.load %arg15[%c0_40, %c0_41] : memref<1x128xf32, #tpu.memory_space<vmem>>, vector<1x128xf32>
    %154 = vector.broadcast %153 : vector<1x128xf32> to vector<8x128xf32>
    %155 = arith.addf %152, %154 : vector<8x128xf32>
    %cst_42 = arith.constant 0.000000e+00 : f32
    %156 = vector.broadcast %cst_42 : f32 to vector<8x128xf32>
    %157 = arith.maximumf %155, %156 : vector<8x128xf32>
    %158 = arith.truncf %157 : vector<8x128xf32> to vector<8x128xbf16>
    %c0_43 = arith.constant 0 : index
    %c0_44 = arith.constant 0 : index
    %159 = vector.load %arg16[%c0_43, %c0_44] : memref<128x128xbf16, #tpu.memory_space<vmem>>, vector<128x128xbf16>
    %cst_45 = arith.constant dense<0.000000e+00> : vector<8x128xf32>
    %160 = tpu.matmul %158, %159, %cst_45 {dimension_numbers = #tpu.dot_dimension_numbers<[1], [0], [0], [1], [0, 0, 1, 1], [], []>} : vector<8x128xbf16>, vector<128x128xbf16>, vector<8x128xf32> -> vector<8x128xf32>
    %c0_46 = arith.constant 0 : index
    %c0_47 = arith.constant 0 : index
    %161 = vector.load %arg17[%c0_46, %c0_47] : memref<1x128xf32, #tpu.memory_space<vmem>>, vector<1x128xf32>
    %162 = vector.broadcast %161 : vector<1x128xf32> to vector<8x128xf32>
    %163 = arith.addf %160, %162 : vector<8x128xf32>
    %c0_48 = arith.constant 0 : index
    %c0_49 = arith.constant 0 : index
    %164 = vector.load %arg18[%c0_48, %c0_49] : memref<8x128xf32, #tpu.memory_space<vmem>>, vector<8x128xf32>
    tpu.vector_store %arg18[%c0_48, %c0_49], %163 {strides = array<i32>} : memref<8x128xf32, #tpu.memory_space<vmem>>, vector<8x128xf32>,
    return
  }
  func.func @transform_0(%arg0: i32) -> (i32, i32, i32) {
    %c0_i32 = arith.constant 0 : i32
    %c0_i32_0 = arith.constant 0 : i32
    %c0_i32_1 = arith.constant 0 : i32
    return %arg0, %c0_i32, %c0_i32_0 : i32, i32, i32
  }
  func.func @transform_1(%arg0: i32) -> (i32, i32) {
    %c0_i32 = arith.constant 0 : i32
    %c0_i32_0 = arith.constant 0 : i32
    %c0_i32_1 = arith.constant 0 : i32
    return %c0_i32, %c0_i32_0 : i32, i32
  }
  func.func @transform_2(%arg0: i32) -> (i32, i32) {
    %c0_i32 = arith.constant 0 : i32
    %c0_i32_0 = arith.constant 0 : i32
    %c0_i32_1 = arith.constant 0 : i32
    return %c0_i32, %c0_i32_0 : i32, i32
  }
  func.func @transform_3(%arg0: i32) -> (i32, i32) {
    %c0_i32 = arith.constant 0 : i32
    %c0_i32_0 = arith.constant 0 : i32
    %c0_i32_1 = arith.constant 0 : i32
    return %c0_i32, %c0_i32_0 : i32, i32
  }
  func.func @transform_4(%arg0: i32) -> (i32, i32) {
    %c0_i32 = arith.constant 0 : i32
    %c0_i32_0 = arith.constant 0 : i32
    %c0_i32_1 = arith.constant 0 : i32
    return %c0_i32, %c0_i32_0 : i32, i32
  }
  func.func @transform_5(%arg0: i32) -> (i32, i32) {
    %c0_i32 = arith.constant 0 : i32
    %c0_i32_0 = arith.constant 0 : i32
    %c0_i32_1 = arith.constant 0 : i32
    return %c0_i32, %c0_i32_0 : i32, i32
  }
  func.func @transform_6(%arg0: i32) -> (i32, i32) {
    %c0_i32 = arith.constant 0 : i32
    %c0_i32_0 = arith.constant 0 : i32
    %c0_i32_1 = arith.constant 0 : i32
    return %c0_i32, %c0_i32_0 : i32, i32
  }
  func.func @transform_7(%arg0: i32) -> (i32, i32) {
    %c0_i32 = arith.constant 0 : i32
    %c0_i32_0 = arith.constant 0 : i32
    %c0_i32_1 = arith.constant 0 : i32
    return %c0_i32, %c0_i32_0 : i32, i32
  }
  func.func @transform_8(%arg0: i32) -> (i32, i32) {
    %c0_i32 = arith.constant 0 : i32
    %c0_i32_0 = arith.constant 0 : i32
    %c0_i32_1 = arith.constant 0 : i32
    return %c0_i32, %c0_i32_0 : i32, i32
  }
  func.func @transform_9(%arg0: i32) -> (i32, i32) {
    %c0_i32 = arith.constant 0 : i32
    %c0_i32_0 = arith.constant 0 : i32
    %c0_i32_1 = arith.constant 0 : i32
    return %c0_i32, %c0_i32_0 : i32, i32
  }
  func.func @transform_10(%arg0: i32) -> (i32, i32) {
    %c0_i32 = arith.constant 0 : i32
    %c0_i32_0 = arith.constant 0 : i32
    %c0_i32_1 = arith.constant 0 : i32
    return %c0_i32, %c0_i32_0 : i32, i32
  }
  func.func @transform_11(%arg0: i32) -> (i32, i32) {
    %c0_i32 = arith.constant 0 : i32
    %c0_i32_0 = arith.constant 0 : i32
    %c0_i32_1 = arith.constant 0 : i32
    return %c0_i32, %c0_i32_0 : i32, i32
  }
  func.func @transform_12(%arg0: i32) -> (i32, i32) {
    %c0_i32 = arith.constant 0 : i32
    %c0_i32_0 = arith.constant 0 : i32
    %c0_i32_1 = arith.constant 0 : i32
    return %c0_i32, %c0_i32_0 : i32, i32
  }
  func.func @transform_13(%arg0: i32) -> (i32, i32) {
    %c0_i32 = arith.constant 0 : i32
    %c0_i32_0 = arith.constant 0 : i32
    %c0_i32_1 = arith.constant 0 : i32
    return %c0_i32, %c0_i32_0 : i32, i32
  }
  func.func @transform_14(%arg0: i32) -> (i32, i32) {
    %c0_i32 = arith.constant 0 : i32
    %c0_i32_0 = arith.constant 0 : i32
    %c0_i32_1 = arith.constant 0 : i32
    return %c0_i32, %c0_i32_0 : i32, i32
  }
  func.func @transform_15(%arg0: i32) -> (i32, i32) {
    %c0_i32 = arith.constant 0 : i32
    %c0_i32_0 = arith.constant 0 : i32
    %c0_i32_1 = arith.constant 0 : i32
    return %c0_i32, %c0_i32_0 : i32, i32
  }
  func.func @transform_16(%arg0: i32) -> (i32, i32) {
    %c0_i32 = arith.constant 0 : i32
    %c0_i32_0 = arith.constant 0 : i32
    %c0_i32_1 = arith.constant 0 : i32
    return %c0_i32, %c0_i32_0 : i32, i32
  }
  func.func @transform_17(%arg0: i32) -> (i32, i32) {
    %c0_i32 = arith.constant 0 : i32
    %c0_i32_0 = arith.constant 0 : i32
    return %arg0, %c0_i32 : i32, i32
  }
}

</mosaic_0001>

<llo_original>
// kernel: steering_prediction_forward.3
$region0: #{steering_prediction_forward.3}
  #allocation0 [shape = 'u32[]', space=smem, size = 0x4, offset = 0x4, fixed_abs, tag = 'smem constant byte address 0x4 - core index']
  #allocation1 [shape = 'u32[72,128]{1,0:T(1,128)}', space=vmem, size = 0x9000, scoped, tag = 'internal scratch']
  %s0 = inlined_call_operand.vmem [shape: bf16[7232,128], index: 0, kind: input, shape index: {}]
  %s1 = inlined_call_operand.vmem [shape: bf16[128,128], index: 1, kind: input, shape index: {}]
  %s2 = inlined_call_operand.vmem [shape: f32[1,128], index: 2, kind: input, shape index: {}]
  %s3 = inlined_call_operand.vmem [shape: bf16[7232,128], index: 3, kind: output, shape index: {}]
  %s4 = sld [smem:[#allocation0]]
  $region45: #{steering_prediction_forward.3} parent=0
    _
  %s6 = ssub.s32 1, %s4
  %s7 = scalar_select 0, %s6, %s4
  loop: start=0, step=1, limit=4
  $region2: #{steering_prediction_forward.3} parent=0 // loop_pre_header
    _
  $region3: #{steering_prediction_forward.3} parent=0 // loop_header
    %s9 = sphi 0, %s13
    %p10 = scmp.ge.s32.totalorder %s9, 4
    %s19 = sphi 0, %s21
    %s22 = sphi 0, %s19
    %s23 = sphi 0, %s22
    %s39 = sphi 0, %s23
    %s43 = sphi 0, %s43
    %s45 = sphi 0, %s43
    %s46 = sphi 0, %s45
    %s60 = sphi 0, %s46
    %s64 = sphi 0, %s64
    %s66 = sphi 0, %s64
    %s67 = sphi 0, %s66
    %s81 = sphi 0, %s67
    %s87 = sphi 0, %s89
    %s90 = sphi 0, %s87
    %s91 = sphi 0, %s90
    %s107 = sphi 0, %s91
  $region4: #{steering_prediction_forward.3} parent=0 // loop_header_branch
    %12 = sbr.rel (%p10) target = $region8
  $region5: #{steering_prediction_forward.3} parent=0 // loop_body
    %s14 = ssub.s32 %s9, 1
    %s15 = ssub.s32 %s9, 2
    %s16 = sadd.s32 %s9, 1
    %s17 = ssub.s32 %s9, %s16
    %p18 = scmp.eq.s32.totalorder %s17, 0
    %s20 = sadd.s32 %s19, 1
    %s21 = scalar_select %p18, %s19, %s20
    %p24 = pneg %p18
    %p25 = scmp.eq.s32.totalorder %s9, 1
    %p26 = por %p24, %p25
    %p27 = scmp.ne.s32.totalorder %s19, %s22
    %p28 = scmp.eq.s32.totalorder %s9, 0
    %p29 = por %p27, %p28
    %p30 = scmp.ne.s32.totalorder %s19, %s22
    %p31 = scmp.eq.s32.totalorder %s14, 1
    %p32 = por %p30, %p31
    %p33 = scmp.ne.s32.totalorder %s22, %s23
    %p34 = scmp.eq.s32.totalorder %s14, 0
    %p35 = por %p33, %p34
    %p36 = scmp.ne.s32.totalorder %s22, %s23
    %p37 = scmp.eq.s32.totalorder %s15, 1
    %p38 = por %p36, %p37
    %p40 = scmp.ne.s32.totalorder %s23, %s39
    %p41 = scmp.eq.s32.totalorder %s15, 0
    %p42 = por %p40, %p41
    %s44 = sadd.s32 %s43, 1
    %p47 = scmp.eq.s32.totalorder %s9, 1
    %p48 = scmp.ne.s32.totalorder %s43, %s45
    %p49 = scmp.eq.s32.totalorder %s9, 0
    %p50 = por %p48, %p49
    %p51 = scmp.ne.s32.totalorder %s43, %s45
    %p52 = scmp.eq.s32.totalorder %s14, 1
    %p53 = por %p51, %p52
    %p54 = scmp.ne.s32.totalorder %s45, %s46
    %p55 = scmp.eq.s32.totalorder %s14, 0
    %p56 = por %p54, %p55
    %p57 = scmp.ne.s32.totalorder %s45, %s46
    %p58 = scmp.eq.s32.totalorder %s15, 1
    %p59 = por %p57, %p58
    %p61 = scmp.ne.s32.totalorder %s46, %s60
    %p62 = scmp.eq.s32.totalorder %s15, 0
    %p63 = por %p61, %p62
    %s65 = sadd.s32 %s64, 1
    %p68 = scmp.eq.s32.totalorder %s9, 1
    %p69 = scmp.ne.s32.totalorder %s64, %s66
    %p70 = scmp.eq.s32.totalorder %s9, 0
    %p71 = por %p69, %p70
    %p72 = scmp.ne.s32.totalorder %s64, %s66
    %p73 = scmp.eq.s32.totalorder %s14, 1
    %p74 = por %p72, %p73
    %p75 = scmp.ne.s32.totalorder %s66, %s67
    %p76 = scmp.eq.s32.totalorder %s14, 0
    %p77 = por %p75, %p76
    %p78 = scmp.ne.s32.totalorder %s66, %s67
    %p79 = scmp.eq.s32.totalorder %s15, 1
    %p80 = por %p78, %p79
    %p82 = scmp.ne.s32.totalorder %s67, %s81
    %p83 = scmp.eq.s32.totalorder %s15, 0
    %p84 = por %p82, %p83
    %s85 = ssub.s32 %s9, %s16
    %p86 = scmp.eq.s32.totalorder %s85, 0
    %s88 = sadd.s32 %s87, 1
    %s89 = scalar_select %p86, %s87, %s88
    %p92 = pneg %p86
    %p93 = scmp.eq.s32.totalorder %s9, 1
    %p94 = por %p92, %p93
    %p95 = scmp.ne.s32.totalorder %s87, %s90
    %p96 = scmp.eq.s32.totalorder %s9, 0
    %p97 = por %p95, %p96
    %p98 = scmp.ne.s32.totalorder %s87, %s90
    %p99 = scmp.eq.s32.totalorder %s14, 1
    %p100 = por %p98, %p99
    %p101 = scmp.ne.s32.totalorder %s90, %s91
    %p102 = scmp.eq.s32.totalorder %s14, 0
    %p103 = por %p101, %p102
    %p104 = scmp.ne.s32.totalorder %s90, %s91
    %p105 = scmp.eq.s32.totalorder %s15, 1
    %p106 = por %p104, %p105
    %p108 = scmp.ne.s32.totalorder %s91, %s107
    %p109 = scmp.eq.s32.totalorder %s15, 0
    %p110 = por %p108, %p109
    %p111 = scmp.le.s32.totalorder 1, %s9
    %p112 = scmp.lt.s32.totalorder %s9, 3
    %p113 = pnand %p111, %p112
    %p114 = pneg %p113
    // Predicated region
    $region9: #{steering_prediction_forward.3} parent=5 // pred_check
      _
    $region10: #{steering_prediction_forward.3} parent=5 // pred_check_branch
      %116 = sbr.rel (%p113) target = $region12
    $region11: #{steering_prediction_forward.3} parent=5 // pred_region
      %s117 = ssub.s32 %s9, 1
      // Predicated region
      $region13: #{steering_prediction_forward.3} parent=11 // pred_check
        %p118 = pneg %p56
      $region14: #{steering_prediction_forward.3} parent=11 // pred_check_branch
        %120 = sbr.rel (%p118) target = $region16
      $region15: #{steering_prediction_forward.3} parent=11 // pred_region
        _
      $region16: #{steering_prediction_forward.3} parent=11 // pred_fallthru
        _
      // Predicated region
      $region17: #{steering_prediction_forward.3} parent=11 // pred_check
        %p121 = pneg %p77
      $region18: #{steering_prediction_forward.3} parent=11 // pred_check_branch
        %123 = sbr.rel (%p121) target = $region20
      $region19: #{steering_prediction_forward.3} parent=11 // pred_region
        _
      $region20: #{steering_prediction_forward.3} parent=11 // pred_fallthru
        _
    $region12: #{steering_prediction_forward.3} parent=5 // pred_fallthru
      _
    %p124 = scmp.lt.s32.totalorder %s9, 2
    // Predicated region
    $region21: #{steering_prediction_forward.3} parent=5 // pred_check
      %p125 = pneg %p124
    $region22: #{steering_prediction_forward.3} parent=5 // pred_check_branch
      %127 = sbr.rel (%p125) target = $region24
    $region23: #{steering_prediction_forward.3} parent=5 // pred_region
      // Predicated region
      $region25: #{steering_prediction_forward.3} parent=23 // pred_check
        %p128 = pneg %p29
      $region26: #{steering_prediction_forward.3} parent=23 // pred_check_branch
        %130 = sbr.rel (%p128) target = $region28
      $region27: #{steering_prediction_forward.3} parent=23 // pred_region
        %s131 = smul.u32 452, %s9
        %p132 = scmp.lt.s32.totalorder %s131, 903
        %s133 = scalar_select %p132, %s131, 903
        %s134 = smul.addr %s133, 4
        %s135 = scalar_lea.vmem %s0, %s134
        %s136 = smul.u32 452, %s9
      $region28: #{steering_prediction_forward.3} parent=23 // pred_fallthru
        _
    $region24: #{steering_prediction_forward.3} parent=5 // pred_fallthru
      _
    %p137 = scmp.le.s32.totalorder 1, %s9
    %p138 = scmp.lt.s32.totalorder %s9, 3
    %p139 = pnand %p137, %p138
    %p140 = pneg %p139
    // Predicated region
    $region29: #{steering_prediction_forward.3} parent=5 // pred_check
      _
    $region30: #{steering_prediction_forward.3} parent=5 // pred_check_branch
      %142 = sbr.rel (%p139) target = $region32
    $region31: #{steering_prediction_forward.3} parent=5 // pred_region
      %s143 = ssub.s32 %s9, 1
      %s144 = smul.u32 452, %s14
      %p145 = scmp.lt.s32.totalorder %s144, 903
      %s146 = scalar_select %p145, %s144, 903
      %s147 = smul.addr %s146, 4
      %s148 = scalar_lea.vmem %s0, %s147
      %p149 = pneg %p35
      %p150 = pneg %p32
      %p151 = pneg %p56
      %p152 = pneg %p53
      %p153 = pneg %p77
      %p154 = pneg %p74
      %p155 = pneg %p103
      %p156 = pneg %p100
      %s157 = smul.u32 452, %s14
      %p158 = scmp.lt.s32.totalorder %s157, 903
      %s159 = scalar_select %p158, %s157, 903
      %s160 = smul.addr %s159, 4
      %s161 = scalar_lea.vmem %s3, %s160
      %s162 = smul.u32 452, %s14
      %p163 = scmp.lt.s32.totalorder %s162, 903
      %s164 = scalar_select %p163, %s162, 903
      %s165 = smul.addr %s164, 4
      %s166 = scalar_lea.vmem %s0, %s165
      %s167 = smul.u32 452, %s14
      %s168 = smul.u32 452, %s14
      %p169 = scmp.lt.s32.totalorder %s168, 903
      %s170 = scalar_select %p169, %s168, 903
      %s171 = smul.addr %s170, 4
      %s172 = scalar_lea.vmem %s3, %s171
      %s173 = smul.u32 452, %s14
      %v174 = vld [vmem:[%s166] sm:$0xf]
      %v175 = vld [vmem:[%s166 + $0x4] sm:$0xf]
      %v176 = vld [vmem:[%s166 + $0x8] sm:$0xf]
      %v177 = vld [vmem:[%s166 + $0xc] sm:$0xf]
      %v178 = vld [vmem:[%s166 + $0x10] sm:$0xf]
      %v179 = vld [vmem:[%s166 + $0x14] sm:$0xf]
      %v180 = vld [vmem:[%s166 + $0x18] sm:$0xf]
      %v181 = vld [vmem:[%s166 + $0x1c] sm:$0xf]
      %v182 = vld [vmem:[%s166 + $0x20] sm:$0xf]
      %v183 = vld [vmem:[%s166 + $0x24] sm:$0xf]
      %v184 = vld [vmem:[%s166 + $0x28] sm:$0xf]
      %v185 = vld [vmem:[%s166 + $0x2c] sm:$0xf]
      %v186 = vld [vmem:[%s166 + $0x30] sm:$0xf]
      %v187 = vld [vmem:[%s166 + $0x34] sm:$0xf]
      %v188 = vld [vmem:[%s166 + $0x38] sm:$0xf]
      %v189 = vld [vmem:[%s166 + $0x3c] sm:$0xf]
      %v190 = vld [vmem:[%s166 + $0x40] sm:$0xf]
      %v191 = vld [vmem:[%s166 + $0x44] sm:$0xf]
      %v192 = vld [vmem:[%s166 + $0x48] sm:$0xf]
      %v193 = vld [vmem:[%s166 + $0x4c] sm:$0xf]
      %v194 = vld [vmem:[%s166 + $0x50] sm:$0xf]
      %v195 = vld [vmem:[%s166 + $0x54] sm:$0xf]
      %v196 = vld [vmem:[%s166 + $0x58] sm:$0xf]
      %v197 = vld [vmem:[%s166 + $0x5c] sm:$0xf]
      %v198 = vld [vmem:[%s166 + $0x60] sm:$0xf]
      %v199 = vld [vmem:[%s166 + $0x64] sm:$0xf]
      %v200 = vld [vmem:[%s166 + $0x68] sm:$0xf]
      %v201 = vld [vmem:[%s166 + $0x6c] sm:$0xf]
      %v202 = vld [vmem:[%s166 + $0x70] sm:$0xf]
      %v203 = vld [vmem:[%s166 + $0x74] sm:$0xf]
      %v204 = vld [vmem:[%s166 + $0x78] sm:$0xf]
      %v205 = vld [vmem:[%s166 + $0x7c] sm:$0xf]
      %v206 = vld [vmem:[%s166 + $0x80] sm:$0xf]
      %v207 = vld [vmem:[%s166 + $0x84] sm:$0xf]
      %v208 = vld [vmem:[%s166 + $0x88] sm:$0xf]
      %v209 = vld [vmem:[%s166 + $0x8c] sm:$0xf]
      %v210 = vld [vmem:[%s166 + $0x90] sm:$0xf]
      %v211 = vld [vmem:[%s166 + $0x94] sm:$0xf]
      %v212 = vld [vmem:[%s166 + $0x98] sm:$0xf]
      %v213 = vld [vmem:[%s166 + $0x9c] sm:$0xf]
      %v214 = vld [vmem:[%s166 + $0xa0] sm:$0xf]
      %v215 = vld [vmem:[%s166 + $0xa4] sm:$0xf]
      %v216 = vld [vmem:[%s166 + $0xa8] sm:$0xf]
      %v217 = vld [vmem:[%s166 + $0xac] sm:$0xf]
      %v218 = vld [vmem:[%s166 + $0xb0] sm:$0xf]
      %v219 = vld [vmem:[%s166 + $0xb4] sm:$0xf]
      %v220 = vld [vmem:[%s166 + $0xb8] sm:$0xf]
      %v221 = vld [vmem:[%s166 + $0xbc] sm:$0xf]
      %v222 = vld [vmem:[%s166 + $0xc0] sm:$0xf]
      %v223 = vld [vmem:[%s166 + $0xc4] sm:$0xf]
      %v224 = vld [vmem:[%s166 + $0xc8] sm:$0xf]
      %v225 = vld [vmem:[%s166 + $0xcc] sm:$0xf]
      %v226 = vld [vmem:[%s166 + $0xd0] sm:$0xf]
      %v227 = vld [vmem:[%s166 + $0xd4] sm:$0xf]
      %v228 = vld [vmem:[%s166 + $0xd8] sm:$0xf]
      %v229 = vld [vmem:[%s166 + $0xdc] sm:$0xf]
      %v230 = vld [vmem:[%s166 + $0xe0] sm:$0xf]
      %v231 = vld [vmem:[%s166 + $0xe4] sm:$0xf]
      %v232 = vld [vmem:[%s166 + $0xe8] sm:$0xf]
      %v233 = vld [vmem:[%s166 + $0xec] sm:$0xf]
      %v234 = vld [vmem:[%s166 + $0xf0] sm:$0xf]
      %v235 = vld [vmem:[%s166 + $0xf4] sm:$0xf]
      %v236 = vld [vmem:[%s166 + $0xf8] sm:$0xf]
      %v237 = vld [vmem:[%s166 + $0xfc] sm:$0xf]
      %v238 = vld [vmem:[%s166 + $0x100] sm:$0xf]
      %v239 = vld [vmem:[%s166 + $0x104] sm:$0xf]
      %v240 = vld [vmem:[%s166 + $0x108] sm:$0xf]
      %v241 = vld [vmem:[%s166 + $0x10c] sm:$0xf]
      %v242 = vld [vmem:[%s166 + $0x110] sm:$0xf]
      %v243 = vld [vmem:[%s166 + $0x114] sm:$0xf]
      %v244 = vld [vmem:[%s166 + $0x118] sm:$0xf]
      %v245 = vld [vmem:[%s166 + $0x11c] sm:$0xf]
      %v246 = vld [vmem:[%s166 + $0x120] sm:$0xf]
      %v247 = vld [vmem:[%s166 + $0x124] sm:$0xf]
      %v248 = vld [vmem:[%s166 + $0x128] sm:$0xf]
      %v249 = vld [vmem:[%s166 + $0x12c] sm:$0xf]
      %v250 = vld [vmem:[%s166 + $0x130] sm:$0xf]
      %v251 = vld [vmem:[%s166 + $0x134] sm:$0xf]
      %v252 = vld [vmem:[%s166 + $0x138] sm:$0xf]
      %v253 = vld [vmem:[%s166 + $0x13c] sm:$0xf]
      %v254 = vld [vmem:[%s166 + $0x140] sm:$0xf]
      %v255 = vld [vmem:[%s166 + $0x144] sm:$0xf]
      %v256 = vld [vmem:[%s166 + $0x148] sm:$0xf]
      %v257 = vld [vmem:[%s166 + $0x14c] sm:$0xf]
      %v258 = vld [vmem:[%s166 + $0x150] sm:$0xf]
      %v259 = vld [vmem:[%s166 + $0x154] sm:$0xf]
      %v260 = vld [vmem:[%s166 + $0x158] sm:$0xf]
      %v261 = vld [vmem:[%s166 + $0x15c] sm:$0xf]
      %v262 = vld [vmem:[%s166 + $0x160] sm:$0xf]
      %v263 = vld [vmem:[%s166 + $0x164] sm:$0xf]
      %v264 = vld [vmem:[%s166 + $0x168] sm:$0xf]
      %v265 = vld [vmem:[%s166 + $0x16c] sm:$0xf]
      %v266 = vld [vmem:[%s166 + $0x170] sm:$0xf]
      %v267 = vld [vmem:[%s166 + $0x174] sm:$0xf]
      %v268 = vld [vmem:[%s166 + $0x178] sm:$0xf]
      %v269 = vld [vmem:[%s166 + $0x17c] sm:$0xf]
      %v270 = vld [vmem:[%s166 + $0x180] sm:$0xf]
      %v271 = vld [vmem:[%s166 + $0x184] sm:$0xf]
      %v272 = vld [vmem:[%s166 + $0x188] sm:$0xf]
      %v273 = vld [vmem:[%s166 + $0x18c] sm:$0xf]
      %v274 = vld [vmem:[%s166 + $0x190] sm:$0xf]
      %v275 = vld [vmem:[%s166 + $0x194] sm:$0xf]
      %v276 = vld [vmem:[%s166 + $0x198] sm:$0xf]
      %v277 = vld [vmem:[%s166 + $0x19c] sm:$0xf]
      %v278 = vld [vmem:[%s166 + $0x1a0] sm:$0xf]
      %v279 = vld [vmem:[%s166 + $0x1a4] sm:$0xf]
      %v280 = vld [vmem:[%s166 + $0x1a8] sm:$0xf]
      %v281 = vld [vmem:[%s166 + $0x1ac] sm:$0xf]
      %v282 = vld [vmem:[%s166 + $0x1b0] sm:$0xf]
      %v283 = vld [vmem:[%s166 + $0x1b4] sm:$0xf]
      %v284 = vld [vmem:[%s166 + $0x1b8] sm:$0xf]
      %v285 = vld [vmem:[%s166 + $0x1bc] sm:$0xf]
      %v286 = vld [vmem:[%s166 + $0x1c0] sm:$0xf]
      %v287 = vld [vmem:[%s166 + $0x1c4] sm:$0xf]
      %v288 = vld [vmem:[%s166 + $0x1c8] sm:$0xf]
      %v289 = vld [vmem:[%s166 + $0x1cc] sm:$0xf]
      %v290 = vld [vmem:[%s166 + $0x1d0] sm:$0xf]
      %v291 = vld [vmem:[%s166 + $0x1d4] sm:$0xf]
      %v292 = vld [vmem:[%s166 + $0x1d8] sm:$0xf]
      %v293 = vld [vmem:[%s166 + $0x1dc] sm:$0xf]
      %v294 = vld [vmem:[%s166 + $0x1e0] sm:$0xf]
      %v295 = vld [vmem:[%s166 + $0x1e4] sm:$0xf]
      %v296 = vld [vmem:[%s166 + $0x1e8] sm:$0xf]
      %v297 = vld [vmem:[%s166 + $0x1ec] sm:$0xf]
      %v298 = vld [vmem:[%s166 + $0x1f0] sm:$0xf]
      %v299 = vld [vmem:[%s166 + $0x1f4] sm:$0xf]
      %v300 = vld [vmem:[%s166 + $0x1f8] sm:$0xf]
      %v301 = vld [vmem:[%s166 + $0x1fc] sm:$0xf]
      %v302 = vld [vmem:[%s166 + $0x200] sm:$0xf]
      %v303 = vld [vmem:[%s166 + $0x204] sm:$0xf]
      %v304 = vld [vmem:[%s166 + $0x208] sm:$0xf]
      %v305 = vld [vmem:[%s166 + $0x20c] sm:$0xf]
      %v306 = vld [vmem:[%s166 + $0x210] sm:$0xf]
      %v307 = vld [vmem:[%s166 + $0x214] sm:$0xf]
      %v308 = vld [vmem:[%s166 + $0x218] sm:$0xf]
      %v309 = vld [vmem:[%s166 + $0x21c] sm:$0xf]
      %v310 = vld [vmem:[%s166 + $0x220] sm:$0xf]
      %v311 = vld [vmem:[%s166 + $0x224] sm:$0xf]
      %v312 = vld [vmem:[%s166 + $0x228] sm:$0xf]
      %v313 = vld [vmem:[%s166 + $0x22c] sm:$0xf]
      %v314 = vld [vmem:[%s166 + $0x230] sm:$0xf]
      %v315 = vld [vmem:[%s166 + $0x234] sm:$0xf]
      %v316 = vld [vmem:[%s166 + $0x238] sm:$0xf]
      %v317 = vld [vmem:[%s166 + $0x23c] sm:$0xf]
      %v318 = vld [vmem:[%s166 + $0x240] sm:$0xf]
      %v319 = vld [vmem:[%s166 + $0x244] sm:$0xf]
      %v320 = vld [vmem:[%s166 + $0x248] sm:$0xf]
      %v321 = vld [vmem:[%s166 + $0x24c] sm:$0xf]
      %v322 = vld [vmem:[%s166 + $0x250] sm:$0xf]
      %v323 = vld [vmem:[%s166 + $0x254] sm:$0xf]
      %v324 = vld [vmem:[%s166 + $0x258] sm:$0xf]
      %v325 = vld [vmem:[%s166 + $0x25c] sm:$0xf]
      %v326 = vld [vmem:[%s166 + $0x260] sm:$0xf]
      %v327 = vld [vmem:[%s166 + $0x264] sm:$0xf]
      %v328 = vld [vmem:[%s166 + $0x268] sm:$0xf]
      %v329 = vld [vmem:[%s166 + $0x26c] sm:$0xf]
      %v330 = vld [vmem:[%s166 + $0x270] sm:$0xf]
      %v331 = vld [vmem:[%s166 + $0x274] sm:$0xf]
      %v332 = vld [vmem:[%s166 + $0x278] sm:$0xf]
      %v333 = vld [vmem:[%s166 + $0x27c] sm:$0xf]
      %v334 = vld [vmem:[%s166 + $0x280] sm:$0xf]
      %v335 = vld [vmem:[%s166 + $0x284] sm:$0xf]
      %v336 = vld [vmem:[%s166 + $0x288] sm:$0xf]
      %v337 = vld [vmem:[%s166 + $0x28c] sm:$0xf]
      %v338 = vld [vmem:[%s166 + $0x290] sm:$0xf]
      %v339 = vld [vmem:[%s166 + $0x294] sm:$0xf]
      %v340 = vld [vmem:[%s166 + $0x298] sm:$0xf]
      %v341 = vld [vmem:[%s166 + $0x29c] sm:$0xf]
      %v342 = vld [vmem:[%s166 + $0x2a0] sm:$0xf]
      %v343 = vld [vmem:[%s166 + $0x2a4] sm:$0xf]
      %v344 = vld [vmem:[%s166 + $0x2a8] sm:$0xf]
      %v345 = vld [vmem:[%s166 + $0x2ac] sm:$0xf]
      %v346 = vld [vmem:[%s166 + $0x2b0] sm:$0xf]
      %v347 = vld [vmem:[%s166 + $0x2b4] sm:$0xf]
      %v348 = vld [vmem:[%s166 + $0x2b8] sm:$0xf]
      %v349 = vld [vmem:[%s166 + $0x2bc] sm:$0xf]
      %v350 = vld [vmem:[%s166 + $0x2c0] sm:$0xf]
      %v351 = vld [vmem:[%s166 + $0x2c4] sm:$0xf]
      %v352 = vld [vmem:[%s166 + $0x2c8] sm:$0xf]
      %v353 = vld [vmem:[%s166 + $0x2cc] sm:$0xf]
      %v354 = vld [vmem:[%s166 + $0x2d0] sm:$0xf]
      %v355 = vld [vmem:[%s166 + $0x2d4] sm:$0xf]
      %v356 = vld [vmem:[%s166 + $0x2d8] sm:$0xf]
      %v357 = vld [vmem:[%s166 + $0x2dc] sm:$0xf]
      %v358 = vld [vmem:[%s166 + $0x2e0] sm:$0xf]
      %v359 = vld [vmem:[%s166 + $0x2e4] sm:$0xf]
      %v360 = vld [vmem:[%s166 + $0x2e8] sm:$0xf]
      %v361 = vld [vmem:[%s166 + $0x2ec] sm:$0xf]
      %v362 = vld [vmem:[%s166 + $0x2f0] sm:$0xf]
      %v363 = vld [vmem:[%s166 + $0x2f4] sm:$0xf]
      %v364 = vld [vmem:[%s166 + $0x2f8] sm:$0xf]
      %v365 = vld [vmem:[%s166 + $0x2fc] sm:$0xf]
      %v366 = vld [vmem:[%s166 + $0x300] sm:$0xf]
      %v367 = vld [vmem:[%s166 + $0x304] sm:$0xf]
      %v368 = vld [vmem:[%s166 + $0x308] sm:$0xf]
      %v369 = vld [vmem:[%s166 + $0x30c] sm:$0xf]
      %v370 = vld [vmem:[%s166 + $0x310] sm:$0xf]
      %v371 = vld [vmem:[%s166 + $0x314] sm:$0xf]
      %v372 = vld [vmem:[%s166 + $0x318] sm:$0xf]
      %v373 = vld [vmem:[%s166 + $0x31c] sm:$0xf]
      %v374 = vld [vmem:[%s166 + $0x320] sm:$0xf]
      %v375 = vld [vmem:[%s166 + $0x324] sm:$0xf]
      %v376 = vld [vmem:[%s166 + $0x328] sm:$0xf]
      %v377 = vld [vmem:[%s166 + $0x32c] sm:$0xf]
      %v378 = vld [vmem:[%s166 + $0x330] sm:$0xf]
      %v379 = vld [vmem:[%s166 + $0x334] sm:$0xf]
      %v380 = vld [vmem:[%s166 + $0x338] sm:$0xf]
      %v381 = vld [vmem:[%s166 + $0x33c] sm:$0xf]
      %v382 = vld [vmem:[%s166 + $0x340] sm:$0xf]
      %v383 = vld [vmem:[%s166 + $0x344] sm:$0xf]
      %v384 = vld [vmem:[%s166 + $0x348] sm:$0xf]
      %v385 = vld [vmem:[%s166 + $0x34c] sm:$0xf]
      %v386 = vld [vmem:[%s166 + $0x350] sm:$0xf]
      %v387 = vld [vmem:[%s166 + $0x354] sm:$0xf]
      %v388 = vld [vmem:[%s166 + $0x358] sm:$0xf]
      %v389 = vld [vmem:[%s166 + $0x35c] sm:$0xf]
      %v390 = vld [vmem:[%s166 + $0x360] sm:$0xf]
      %v391 = vld [vmem:[%s166 + $0x364] sm:$0xf]
      %v392 = vld [vmem:[%s166 + $0x368] sm:$0xf]
      %v393 = vld [vmem:[%s166 + $0x36c] sm:$0xf]
      %v394 = vld [vmem:[%s166 + $0x370] sm:$0xf]
      %v395 = vld [vmem:[%s166 + $0x374] sm:$0xf]
      %v396 = vld [vmem:[%s166 + $0x378] sm:$0xf]
      %v397 = vld [vmem:[%s166 + $0x37c] sm:$0xf]
      %v398 = vld [vmem:[%s166 + $0x380] sm:$0xf]
      %v399 = vld [vmem:[%s166 + $0x384] sm:$0xf]
      %v400 = vld [vmem:[%s166 + $0x388] sm:$0xf]
      %v401 = vld [vmem:[%s166 + $0x38c] sm:$0xf]
      %v402 = vld [vmem:[%s166 + $0x390] sm:$0xf]
      %v403 = vld [vmem:[%s166 + $0x394] sm:$0xf]
      %v404 = vld [vmem:[%s166 + $0x398] sm:$0xf]
      %v405 = vld [vmem:[%s166 + $0x39c] sm:$0xf]
      %v406 = vld [vmem:[%s166 + $0x3a0] sm:$0xf]
      %v407 = vld [vmem:[%s166 + $0x3a4] sm:$0xf]
      %v408 = vld [vmem:[%s166 + $0x3a8] sm:$0xf]
      %v409 = vld [vmem:[%s166 + $0x3ac] sm:$0xf]
      %v410 = vld [vmem:[%s166 + $0x3b0] sm:$0xf]
      %v411 = vld [vmem:[%s166 + $0x3b4] sm:$0xf]
      %v412 = vld [vmem:[%s166 + $0x3b8] sm:$0xf]
      %v413 = vld [vmem:[%s166 + $0x3bc] sm:$0xf]
      %v414 = vld [vmem:[%s166 + $0x3c0] sm:$0xf]
      %v415 = vld [vmem:[%s166 + $0x3c4] sm:$0xf]
      %v416 = vld [vmem:[%s166 + $0x3c8] sm:$0xf]
      %v417 = vld [vmem:[%s166 + $0x3cc] sm:$0xf]
      %v418 = vld [vmem:[%s166 + $0x3d0] sm:$0xf]
      %v419 = vld [vmem:[%s166 + $0x3d4] sm:$0xf]
      %v420 = vld [vmem:[%s166 + $0x3d8] sm:$0xf]
      %v421 = vld [vmem:[%s166 + $0x3dc] sm:$0xf]
      %v422 = vld [vmem:[%s166 + $0x3e0] sm:$0xf]
      %v423 = vld [vmem:[%s166 + $0x3e4] sm:$0xf]
      %v424 = vld [vmem:[%s166 + $0x3e8] sm:$0xf]
      %v425 = vld [vmem:[%s166 + $0x3ec] sm:$0xf]
      %v426 = vld [vmem:[%s166 + $0x3f0] sm:$0xf]
      %v427 = vld [vmem:[%s166 + $0x3f4] sm:$0xf]
      %v428 = vld [vmem:[%s166 + $0x3f8] sm:$0xf]
      %v429 = vld [vmem:[%s166 + $0x3fc] sm:$0xf]
      %v430 = vld [vmem:[%s166 + $0x400] sm:$0xf]
      %v431 = vld [vmem:[%s166 + $0x404] sm:$0xf]
      %v432 = vld [vmem:[%s166 + $0x408] sm:$0xf]
      %v433 = vld [vmem:[%s166 + $0x40c] sm:$0xf]
      %v434 = vld [vmem:[%s166 + $0x410] sm:$0xf]
      %v435 = vld [vmem:[%s166 + $0x414] sm:$0xf]
      %v436 = vld [vmem:[%s166 + $0x418] sm:$0xf]
      %v437 = vld [vmem:[%s166 + $0x41c] sm:$0xf]
      %v438 = vld [vmem:[%s166 + $0x420] sm:$0xf]
      %v439 = vld [vmem:[%s166 + $0x424] sm:$0xf]
      %v440 = vld [vmem:[%s166 + $0x428] sm:$0xf]
      %v441 = vld [vmem:[%s166 + $0x42c] sm:$0xf]
      %v442 = vld [vmem:[%s166 + $0x430] sm:$0xf]
      %v443 = vld [vmem:[%s166 + $0x434] sm:$0xf]
      %v444 = vld [vmem:[%s166 + $0x438] sm:$0xf]
      %v445 = vld [vmem:[%s166 + $0x43c] sm:$0xf]
      %v446 = vld [vmem:[%s166 + $0x440] sm:$0xf]
      %v447 = vld [vmem:[%s166 + $0x444] sm:$0xf]
      %v448 = vld [vmem:[%s166 + $0x448] sm:$0xf]
      %v449 = vld [vmem:[%s166 + $0x44c] sm:$0xf]
      %v450 = vld [vmem:[%s166 + $0x450] sm:$0xf]
      %v451 = vld [vmem:[%s166 + $0x454] sm:$0xf]
      %v452 = vld [vmem:[%s166 + $0x458] sm:$0xf]
      %v453 = vld [vmem:[%s166 + $0x45c] sm:$0xf]
      %v454 = vld [vmem:[%s166 + $0x460] sm:$0xf]
      %v455 = vld [vmem:[%s166 + $0x464] sm:$0xf]
      %v456 = vld [vmem:[%s166 + $0x468] sm:$0xf]
      %v457 = vld [vmem:[%s166 + $0x46c] sm:$0xf]
      %v458 = vld [vmem:[%s166 + $0x470] sm:$0xf]
      %v459 = vld [vmem:[%s166 + $0x474] sm:$0xf]
      %v460 = vld [vmem:[%s166 + $0x478] sm:$0xf]
      %v461 = vld [vmem:[%s166 + $0x47c] sm:$0xf]
      %v462 = vld [vmem:[%s166 + $0x480] sm:$0xf]
      %v463 = vld [vmem:[%s166 + $0x484] sm:$0xf]
      %v464 = vld [vmem:[%s166 + $0x488] sm:$0xf]
      %v465 = vld [vmem:[%s166 + $0x48c] sm:$0xf]
      %v466 = vld [vmem:[%s166 + $0x490] sm:$0xf]
      %v467 = vld [vmem:[%s166 + $0x494] sm:$0xf]
      %v468 = vld [vmem:[%s166 + $0x498] sm:$0xf]
      %v469 = vld [vmem:[%s166 + $0x49c] sm:$0xf]
      %v470 = vld [vmem:[%s166 + $0x4a0] sm:$0xf]
      %v471 = vld [vmem:[%s166 + $0x4a4] sm:$0xf]
      %v472 = vld [vmem:[%s166 + $0x4a8] sm:$0xf]
      %v473 = vld [vmem:[%s166 + $0x4ac] sm:$0xf]
      %v474 = vld [vmem:[%s166 + $0x4b0] sm:$0xf]
      %v475 = vld [vmem:[%s166 + $0x4b4] sm:$0xf]
      %v476 = vld [vmem:[%s166 + $0x4b8] sm:$0xf]
      %v477 = vld [vmem:[%s166 + $0x4bc] sm:$0xf]
      %v478 = vld [vmem:[%s166 + $0x4c0] sm:$0xf]
      %v479 = vld [vmem:[%s166 + $0x4c4] sm:$0xf]
      %v480 = vld [vmem:[%s166 + $0x4c8] sm:$0xf]
      %v481 = vld [vmem:[%s166 + $0x4cc] sm:$0xf]
      %v482 = vld [vmem:[%s166 + $0x4d0] sm:$0xf]
      %v483 = vld [vmem:[%s166 + $0x4d4] sm:$0xf]
      %v484 = vld [vmem:[%s166 + $0x4d8] sm:$0xf]
      %v485 = vld [vmem:[%s166 + $0x4dc] sm:$0xf]
      %v486 = vld [vmem:[%s166 + $0x4e0] sm:$0xf]
      %v487 = vld [vmem:[%s166 + $0x4e4] sm:$0xf]
      %v488 = vld [vmem:[%s166 + $0x4e8] sm:$0xf]
      %v489 = vld [vmem:[%s166 + $0x4ec] sm:$0xf]
      %v490 = vld [vmem:[%s166 + $0x4f0] sm:$0xf]
      %v491 = vld [vmem:[%s166 + $0x4f4] sm:$0xf]
      %v492 = vld [vmem:[%s166 + $0x4f8] sm:$0xf]
      %v493 = vld [vmem:[%s166 + $0x4fc] sm:$0xf]
      %v494 = vld [vmem:[%s166 + $0x500] sm:$0xf]
      %v495 = vld [vmem:[%s166 + $0x504] sm:$0xf]
      %v496 = vld [vmem:[%s166 + $0x508] sm:$0xf]
      %v497 = vld [vmem:[%s166 + $0x50c] sm:$0xf]
      %v498 = vld [vmem:[%s166 + $0x510] sm:$0xf]
      %v499 = vld [vmem:[%s166 + $0x514] sm:$0xf]
      %v500 = vld [vmem:[%s166 + $0x518] sm:$0xf]
      %v501 = vld [vmem:[%s166 + $0x51c] sm:$0xf]
      %v502 = vld [vmem:[%s166 + $0x520] sm:$0xf]
      %v503 = vld [vmem:[%s166 + $0x524] sm:$0xf]
      %v504 = vld [vmem:[%s166 + $0x528] sm:$0xf]
      %v505 = vld [vmem:[%s166 + $0x52c] sm:$0xf]
      %v506 = vld [vmem:[%s166 + $0x530] sm:$0xf]
      %v507 = vld [vmem:[%s166 + $0x534] sm:$0xf]
      %v508 = vld [vmem:[%s166 + $0x538] sm:$0xf]
      %v509 = vld [vmem:[%s166 + $0x53c] sm:$0xf]
      %v510 = vld [vmem:[%s166 + $0x540] sm:$0xf]
      %v511 = vld [vmem:[%s166 + $0x544] sm:$0xf]
      %v512 = vld [vmem:[%s166 + $0x548] sm:$0xf]
      %v513 = vld [vmem:[%s166 + $0x54c] sm:$0xf]
      %v514 = vld [vmem:[%s166 + $0x550] sm:$0xf]
      %v515 = vld [vmem:[%s166 + $0x554] sm:$0xf]
      %v516 = vld [vmem:[%s166 + $0x558] sm:$0xf]
      %v517 = vld [vmem:[%s166 + $0x55c] sm:$0xf]
      %v518 = vld [vmem:[%s166 + $0x560] sm:$0xf]
      %v519 = vld [vmem:[%s166 + $0x564] sm:$0xf]
      %v520 = vld [vmem:[%s166 + $0x568] sm:$0xf]
      %v521 = vld [vmem:[%s166 + $0x56c] sm:$0xf]
      %v522 = vld [vmem:[%s166 + $0x570] sm:$0xf]
      %v523 = vld [vmem:[%s166 + $0x574] sm:$0xf]
      %v524 = vld [vmem:[%s166 + $0x578] sm:$0xf]
      %v525 = vld [vmem:[%s166 + $0x57c] sm:$0xf]
      %v526 = vld [vmem:[%s166 + $0x580] sm:$0xf]
      %v527 = vld [vmem:[%s166 + $0x584] sm:$0xf]
      %v528 = vld [vmem:[%s166 + $0x588] sm:$0xf]
      %v529 = vld [vmem:[%s166 + $0x58c] sm:$0xf]
      %v530 = vld [vmem:[%s166 + $0x590] sm:$0xf]
      %v531 = vld [vmem:[%s166 + $0x594] sm:$0xf]
      %v532 = vld [vmem:[%s166 + $0x598] sm:$0xf]
      %v533 = vld [vmem:[%s166 + $0x59c] sm:$0xf]
      %v534 = vld [vmem:[%s166 + $0x5a0] sm:$0xf]
      %v535 = vld [vmem:[%s166 + $0x5a4] sm:$0xf]
      %v536 = vld [vmem:[%s166 + $0x5a8] sm:$0xf]
      %v537 = vld [vmem:[%s166 + $0x5ac] sm:$0xf]
      %v538 = vld [vmem:[%s166 + $0x5b0] sm:$0xf]
      %v539 = vld [vmem:[%s166 + $0x5b4] sm:$0xf]
      %v540 = vld [vmem:[%s166 + $0x5b8] sm:$0xf]
      %v541 = vld [vmem:[%s166 + $0x5bc] sm:$0xf]
      %v542 = vld [vmem:[%s166 + $0x5c0] sm:$0xf]
      %v543 = vld [vmem:[%s166 + $0x5c4] sm:$0xf]
      %v544 = vld [vmem:[%s166 + $0x5c8] sm:$0xf]
      %v545 = vld [vmem:[%s166 + $0x5cc] sm:$0xf]
      %v546 = vld [vmem:[%s166 + $0x5d0] sm:$0xf]
      %v547 = vld [vmem:[%s166 + $0x5d4] sm:$0xf]
      %v548 = vld [vmem:[%s166 + $0x5d8] sm:$0xf]
      %v549 = vld [vmem:[%s166 + $0x5dc] sm:$0xf]
      %v550 = vld [vmem:[%s166 + $0x5e0] sm:$0xf]
      %v551 = vld [vmem:[%s166 + $0x5e4] sm:$0xf]
      %v552 = vld [vmem:[%s166 + $0x5e8] sm:$0xf]
      %v553 = vld [vmem:[%s166 + $0x5ec] sm:$0xf]
      %v554 = vld [vmem:[%s166 + $0x5f0] sm:$0xf]
      %v555 = vld [vmem:[%s166 + $0x5f4] sm:$0xf]
      %v556 = vld [vmem:[%s166 + $0x5f8] sm:$0xf]
      %v557 = vld [vmem:[%s166 + $0x5fc] sm:$0xf]
      %v558 = vld [vmem:[%s166 + $0x600] sm:$0xf]
      %v559 = vld [vmem:[%s166 + $0x604] sm:$0xf]
      %v560 = vld [vmem:[%s166 + $0x608] sm:$0xf]
      %v561 = vld [vmem:[%s166 + $0x60c] sm:$0xf]
      %v562 = vld [vmem:[%s166 + $0x610] sm:$0xf]
      %v563 = vld [vmem:[%s166 + $0x614] sm:$0xf]
      %v564 = vld [vmem:[%s166 + $0x618] sm:$0xf]
      %v565 = vld [vmem:[%s166 + $0x61c] sm:$0xf]
      %v566 = vld [vmem:[%s166 + $0x620] sm:$0xf]
      %v567 = vld [vmem:[%s166 + $0x624] sm:$0xf]
      %v568 = vld [vmem:[%s166 + $0x628] sm:$0xf]
      %v569 = vld [vmem:[%s166 + $0x62c] sm:$0xf]
      %v570 = vld [vmem:[%s166 + $0x630] sm:$0xf]
      %v571 = vld [vmem:[%s166 + $0x634] sm:$0xf]
      %v572 = vld [vmem:[%s166 + $0x638] sm:$0xf]
      %v573 = vld [vmem:[%s166 + $0x63c] sm:$0xf]
      %v574 = vld [vmem:[%s166 + $0x640] sm:$0xf]
      %v575 = vld [vmem:[%s166 + $0x644] sm:$0xf]
      %v576 = vld [vmem:[%s166 + $0x648] sm:$0xf]
      %v577 = vld [vmem:[%s166 + $0x64c] sm:$0xf]
      %v578 = vld [vmem:[%s166 + $0x650] sm:$0xf]
      %v579 = vld [vmem:[%s166 + $0x654] sm:$0xf]
      %v580 = vld [vmem:[%s166 + $0x658] sm:$0xf]
      %v581 = vld [vmem:[%s166 + $0x65c] sm:$0xf]
      %v582 = vld [vmem:[%s166 + $0x660] sm:$0xf]
      %v583 = vld [vmem:[%s166 + $0x664] sm:$0xf]
      %v584 = vld [vmem:[%s166 + $0x668] sm:$0xf]
      %v585 = vld [vmem:[%s166 + $0x66c] sm:$0xf]
      %v586 = vld [vmem:[%s166 + $0x670] sm:$0xf]
      %v587 = vld [vmem:[%s166 + $0x674] sm:$0xf]
      %v588 = vld [vmem:[%s166 + $0x678] sm:$0xf]
      %v589 = vld [vmem:[%s166 + $0x67c] sm:$0xf]
      %v590 = vld [vmem:[%s166 + $0x680] sm:$0xf]
      %v591 = vld [vmem:[%s166 + $0x684] sm:$0xf]
      %v592 = vld [vmem:[%s166 + $0x688] sm:$0xf]
      %v593 = vld [vmem:[%s166 + $0x68c] sm:$0xf]
      %v594 = vld [vmem:[%s166 + $0x690] sm:$0xf]
      %v595 = vld [vmem:[%s166 + $0x694] sm:$0xf]
      %v596 = vld [vmem:[%s166 + $0x698] sm:$0xf]
      %v597 = vld [vmem:[%s166 + $0x69c] sm:$0xf]
      %v598 = vld [vmem:[%s166 + $0x6a0] sm:$0xf]
      %v599 = vld [vmem:[%s166 + $0x6a4] sm:$0xf]
      %v600 = vld [vmem:[%s166 + $0x6a8] sm:$0xf]
      %v601 = vld [vmem:[%s166 + $0x6ac] sm:$0xf]
      %v602 = vld [vmem:[%s166 + $0x6b0] sm:$0xf]
      %v603 = vld [vmem:[%s166 + $0x6b4] sm:$0xf]
      %v604 = vld [vmem:[%s166 + $0x6b8] sm:$0xf]
      %v605 = vld [vmem:[%s166 + $0x6bc] sm:$0xf]
      %v606 = vld [vmem:[%s166 + $0x6c0] sm:$0xf]
      %v607 = vld [vmem:[%s166 + $0x6c4] sm:$0xf]
      %v608 = vld [vmem:[%s166 + $0x6c8] sm:$0xf]
      %v609 = vld [vmem:[%s166 + $0x6cc] sm:$0xf]
      %v610 = vld [vmem:[%s166 + $0x6d0] sm:$0xf]
      %v611 = vld [vmem:[%s166 + $0x6d4] sm:$0xf]
      %v612 = vld [vmem:[%s166 + $0x6d8] sm:$0xf]
      %v613 = vld [vmem:[%s166 + $0x6dc] sm:$0xf]
      %v614 = vld [vmem:[%s166 + $0x6e0] sm:$0xf]
      %v615 = vld [vmem:[%s166 + $0x6e4] sm:$0xf]
      %v616 = vld [vmem:[%s166 + $0x6e8] sm:$0xf]
      %v617 = vld [vmem:[%s166 + $0x6ec] sm:$0xf]
      %v618 = vld [vmem:[%s166 + $0x6f0] sm:$0xf]
      %v619 = vld [vmem:[%s166 + $0x6f4] sm:$0xf]
      %v620 = vld [vmem:[%s166 + $0x6f8] sm:$0xf]
      %v621 = vld [vmem:[%s166 + $0x6fc] sm:$0xf]
      %v622 = vld [vmem:[%s166 + $0x700] sm:$0xf]
      %v623 = vld [vmem:[%s166 + $0x704] sm:$0xf]
      %v624 = vld [vmem:[%s166 + $0x708] sm:$0xf]
      %v625 = vld [vmem:[%s166 + $0x70c] sm:$0xf]
      %v626 = vld [vmem:[%s1] sm:$0xf]
      %v627 = vld [vmem:[%s1 + $0x4] sm:$0xf]
      %v628 = vld [vmem:[%s1 + $0x8] sm:$0xf]
      %v629 = vld [vmem:[%s1 + $0xc] sm:$0xf]
      %v630 = vld [vmem:[%s1 + $0x10] sm:$0xf]
      %v631 = vld [vmem:[%s1 + $0x14] sm:$0xf]
      %v632 = vld [vmem:[%s1 + $0x18] sm:$0xf]
      %v633 = vld [vmem:[%s1 + $0x1c] sm:$0xf]
      %v634 = vld [vmem:[%s1 + $0x20] sm:$0xf]
      %v635 = vld [vmem:[%s1 + $0x24] sm:$0xf]
      %v636 = vld [vmem:[%s1 + $0x28] sm:$0xf]
      %v637 = vld [vmem:[%s1 + $0x2c] sm:$0xf]
      %v638 = vld [vmem:[%s1 + $0x30] sm:$0xf]
      %v639 = vld [vmem:[%s1 + $0x34] sm:$0xf]
      %v640 = vld [vmem:[%s1 + $0x38] sm:$0xf]
      %v641 = vld [vmem:[%s1 + $0x3c] sm:$0xf]
      %v642 = vld [vmem:[%s2] sm:$0x1]
      %v644 = vperm.slane %v642, 0
      %v1098 = vunpack.c.l.b16 %v174
      %v1099 = vunpack.c.l.b16 %v175
      %v1100 = vunpack.c.l.b16 %v176
      %v1101 = vunpack.c.l.b16 %v177
      %v1102 = vunpack.c.l.b16 %v178
      %v1103 = vunpack.c.l.b16 %v179
      %v1104 = vunpack.c.l.b16 %v180
      %v1105 = vunpack.c.l.b16 %v181
      %v1106 = vunpack.c.l.b16 %v182
      %v1107 = vunpack.c.l.b16 %v183
      %v1108 = vunpack.c.l.b16 %v184
      %v1109 = vunpack.c.l.b16 %v185
      %v1110 = vunpack.c.l.b16 %v186
      %v1111 = vunpack.c.l.b16 %v187
      %v1112 = vunpack.c.l.b16 %v188
      %v1113 = vunpack.c.l.b16 %v189
      %v1114 = vunpack.c.l.b16 %v190
      %v1115 = vunpack.c.l.b16 %v191
      %v1116 = vunpack.c.l.b16 %v192
      %v1117 = vunpack.c.l.b16 %v193
      %v1118 = vunpack.c.l.b16 %v194
      %v1119 = vunpack.c.l.b16 %v195
      %v1120 = vunpack.c.l.b16 %v196
      %v1121 = vunpack.c.l.b16 %v197
      %v1122 = vunpack.c.l.b16 %v198
      %v1123 = vunpack.c.l.b16 %v199
      %v1124 = vunpack.c.l.b16 %v200
      %v1125 = vunpack.c.l.b16 %v201
      %v1126 = vunpack.c.l.b16 %v202
      %v1127 = vunpack.c.l.b16 %v203
      %v1128 = vunpack.c.l.b16 %v204
      %v1129 = vunpack.c.l.b16 %v205
      %v1130 = vunpack.c.l.b16 %v206
      %v1131 = vunpack.c.l.b16 %v207
      %v1132 = vunpack.c.l.b16 %v208
      %v1133 = vunpack.c.l.b16 %v209
      %v1134 = vunpack.c.l.b16 %v210
      %v1135 = vunpack.c.l.b16 %v211
      %v1136 = vunpack.c.l.b16 %v212
      %v1137 = vunpack.c.l.b16 %v213
      %v1138 = vunpack.c.l.b16 %v214
      %v1139 = vunpack.c.l.b16 %v215
      %v1140 = vunpack.c.l.b16 %v216
      %v1141 = vunpack.c.l.b16 %v217
      %v1142 = vunpack.c.l.b16 %v218
      %v1143 = vunpack.c.l.b16 %v219
      %v1144 = vunpack.c.l.b16 %v220
      %v1145 = vunpack.c.l.b16 %v221
      %v1146 = vunpack.c.l.b16 %v222
      %v1147 = vunpack.c.l.b16 %v223
      %v1148 = vunpack.c.l.b16 %v224
      %v1149 = vunpack.c.l.b16 %v225
      %v1150 = vunpack.c.l.b16 %v226
      %v1151 = vunpack.c.l.b16 %v227
      %v1152 = vunpack.c.l.b16 %v228
      %v1153 = vunpack.c.l.b16 %v229
      %v1154 = vunpack.c.l.b16 %v230
      %v1155 = vunpack.c.l.b16 %v231
      %v1156 = vunpack.c.l.b16 %v232
      %v1157 = vunpack.c.l.b16 %v233
      %v1158 = vunpack.c.l.b16 %v234
      %v1159 = vunpack.c.l.b16 %v235
      %v1160 = vunpack.c.l.b16 %v236
      %v1161 = vunpack.c.l.b16 %v237
      %v1162 = vunpack.c.l.b16 %v238
      %v1163 = vunpack.c.l.b16 %v239
      %v1164 = vunpack.c.l.b16 %v240
      %v1165 = vunpack.c.l.b16 %v241
      %v1166 = vunpack.c.l.b16 %v242
      %v1167 = vunpack.c.l.b16 %v243
      %v1168 = vunpack.c.l.b16 %v244
      %v1169 = vunpack.c.l.b16 %v245
      %v1170 = vunpack.c.l.b16 %v246
      %v1171 = vunpack.c.l.b16 %v247
      %v1172 = vunpack.c.l.b16 %v248
      %v1173 = vunpack.c.l.b16 %v249
      %v1174 = vunpack.c.l.b16 %v250
      %v1175 = vunpack.c.l.b16 %v251
      %v1176 = vunpack.c.l.b16 %v252
      %v1177 = vunpack.c.l.b16 %v253
      %v1178 = vunpack.c.l.b16 %v254
      %v1179 = vunpack.c.l.b16 %v255
      %v1180 = vunpack.c.l.b16 %v256
      %v1181 = vunpack.c.l.b16 %v257
      %v1182 = vunpack.c.l.b16 %v258
      %v1183 = vunpack.c.l.b16 %v259
      %v1184 = vunpack.c.l.b16 %v260
      %v1185 = vunpack.c.l.b16 %v261
      %v1186 = vunpack.c.l.b16 %v262
      %v1187 = vunpack.c.l.b16 %v263
      %v1188 = vunpack.c.l.b16 %v264
      %v1189 = vunpack.c.l.b16 %v265
      %v1190 = vunpack.c.l.b16 %v266
      %v1191 = vunpack.c.l.b16 %v267
      %v1192 = vunpack.c.l.b16 %v268
      %v1193 = vunpack.c.l.b16 %v269
      %v1194 = vunpack.c.l.b16 %v270
      %v1195 = vunpack.c.l.b16 %v271
      %v1196 = vunpack.c.l.b16 %v272
      %v1197 = vunpack.c.l.b16 %v273
      %v1198 = vunpack.c.l.b16 %v274
      %v1199 = vunpack.c.l.b16 %v275
      %v1200 = vunpack.c.l.b16 %v276
      %v1201 = vunpack.c.l.b16 %v277
      %v1202 = vunpack.c.l.b16 %v278
      %v1203 = vunpack.c.l.b16 %v279
      %v1204 = vunpack.c.l.b16 %v280
      %v1205 = vunpack.c.l.b16 %v281
      %v1206 = vunpack.c.l.b16 %v282
      %v1207 = vunpack.c.l.b16 %v283
      %v1208 = vunpack.c.l.b16 %v284
      %v1209 = vunpack.c.l.b16 %v285
      %v1210 = vunpack.c.l.b16 %v286
      %v1211 = vunpack.c.l.b16 %v287
      %v1212 = vunpack.c.l.b16 %v288
      %v1213 = vunpack.c.l.b16 %v289
      %v1214 = vunpack.c.l.b16 %v290
      %v1215 = vunpack.c.l.b16 %v291
      %v1216 = vunpack.c.l.b16 %v292
      %v1217 = vunpack.c.l.b16 %v293
      %v1218 = vunpack.c.l.b16 %v294
      %v1219 = vunpack.c.l.b16 %v295
      %v1220 = vunpack.c.l.b16 %v296
      %v1221 = vunpack.c.l.b16 %v297
      %v1222 = vunpack.c.l.b16 %v298
      %v1223 = vunpack.c.l.b16 %v299
      %v1224 = vunpack.c.l.b16 %v300
      %v1225 = vunpack.c.l.b16 %v301
      %v1226 = vunpack.c.l.b16 %v302
      %v1227 = vunpack.c.l.b16 %v303
      %v1228 = vunpack.c.l.b16 %v304
      %v1229 = vunpack.c.l.b16 %v305
      %v1230 = vunpack.c.l.b16 %v306
      %v1231 = vunpack.c.l.b16 %v307
      %v1232 = vunpack.c.l.b16 %v308
      %v1233 = vunpack.c.l.b16 %v309
      %v1234 = vunpack.c.l.b16 %v310
      %v1235 = vunpack.c.l.b16 %v311
      %v1236 = vunpack.c.l.b16 %v312
      %v1237 = vunpack.c.l.b16 %v313
      %v1238 = vunpack.c.l.b16 %v314
      %v1239 = vunpack.c.l.b16 %v315
      %v1240 = vunpack.c.l.b16 %v316
      %v1241 = vunpack.c.l.b16 %v317
      %v1242 = vunpack.c.l.b16 %v318
      %v1243 = vunpack.c.l.b16 %v319
      %v1244 = vunpack.c.l.b16 %v320
      %v1245 = vunpack.c.l.b16 %v321
      %v1246 = vunpack.c.l.b16 %v322
      %v1247 = vunpack.c.l.b16 %v323
      %v1248 = vunpack.c.l.b16 %v324
      %v1249 = vunpack.c.l.b16 %v325
      %v1250 = vunpack.c.l.b16 %v326
      %v1251 = vunpack.c.l.b16 %v327
      %v1252 = vunpack.c.l.b16 %v328
      %v1253 = vunpack.c.l.b16 %v329
      %v1254 = vunpack.c.l.b16 %v330
      %v1255 = vunpack.c.l.b16 %v331
      %v1256 = vunpack.c.l.b16 %v332
      %v1257 = vunpack.c.l.b16 %v333
      %v1258 = vunpack.c.l.b16 %v334
      %v1259 = vunpack.c.l.b16 %v335
      %v1260 = vunpack.c.l.b16 %v336
      %v1261 = vunpack.c.l.b16 %v337
      %v1262 = vunpack.c.l.b16 %v338
      %v1263 = vunpack.c.l.b16 %v339
      %v1264 = vunpack.c.l.b16 %v340
      %v1265 = vunpack.c.l.b16 %v341
      %v1266 = vunpack.c.l.b16 %v342
      %v1267 = vunpack.c.l.b16 %v343
      %v1268 = vunpack.c.l.b16 %v344
      %v1269 = vunpack.c.l.b16 %v345
      %v1270 = vunpack.c.l.b16 %v346
      %v1271 = vunpack.c.l.b16 %v347
      %v1272 = vunpack.c.l.b16 %v348
      %v1273 = vunpack.c.l.b16 %v349
      %v1274 = vunpack.c.l.b16 %v350
      %v1275 = vunpack.c.l.b16 %v351
      %v1276 = vunpack.c.l.b16 %v352
      %v1277 = vunpack.c.l.b16 %v353
      %v1278 = vunpack.c.l.b16 %v354
      %v1279 = vunpack.c.l.b16 %v355
      %v1280 = vunpack.c.l.b16 %v356
      %v1281 = vunpack.c.l.b16 %v357
      %v1282 = vunpack.c.l.b16 %v358
      %v1283 = vunpack.c.l.b16 %v359
      %v1284 = vunpack.c.l.b16 %v360
      %v1285 = vunpack.c.l.b16 %v361
      %v1286 = vunpack.c.l.b16 %v362
      %v1287 = vunpack.c.l.b16 %v363
      %v1288 = vunpack.c.l.b16 %v364
      %v1289 = vunpack.c.l.b16 %v365
      %v1290 = vunpack.c.l.b16 %v366
      %v1291 = vunpack.c.l.b16 %v367
      %v1292 = vunpack.c.l.b16 %v368
      %v1293 = vunpack.c.l.b16 %v369
      %v1294 = vunpack.c.l.b16 %v370
      %v1295 = vunpack.c.l.b16 %v371
      %v1296 = vunpack.c.l.b16 %v372
      %v1297 = vunpack.c.l.b16 %v373
      %v1298 = vunpack.c.l.b16 %v374
      %v1299 = vunpack.c.l.b16 %v375
      %v1300 = vunpack.c.l.b16 %v376
      %v1301 = vunpack.c.l.b16 %v377
      %v1302 = vunpack.c.l.b16 %v378
      %v1303 = vunpack.c.l.b16 %v379
      %v1304 = vunpack.c.l.b16 %v380
      %v1305 = vunpack.c.l.b16 %v381
      %v1306 = vunpack.c.l.b16 %v382
      %v1307 = vunpack.c.l.b16 %v383
      %v1308 = vunpack.c.l.b16 %v384
      %v1309 = vunpack.c.l.b16 %v385
      %v1310 = vunpack.c.l.b16 %v386
      %v1311 = vunpack.c.l.b16 %v387
      %v1312 = vunpack.c.l.b16 %v388
      %v1313 = vunpack.c.l.b16 %v389
      %v1314 = vunpack.c.l.b16 %v390
      %v1315 = vunpack.c.l.b16 %v391
      %v1316 = vunpack.c.l.b16 %v392
      %v1317 = vunpack.c.l.b16 %v393
      %v1318 = vunpack.c.l.b16 %v394
      %v1319 = vunpack.c.l.b16 %v395
      %v1320 = vunpack.c.l.b16 %v396
      %v1321 = vunpack.c.l.b16 %v397
      %v1322 = vunpack.c.l.b16 %v398
      %v1323 = vunpack.c.l.b16 %v399
      %v1324 = vunpack.c.l.b16 %v400
      %v1325 = vunpack.c.l.b16 %v401
      %v1326 = vunpack.c.l.b16 %v402
      %v1327 = vunpack.c.l.b16 %v403
      %v1328 = vunpack.c.l.b16 %v404
      %v1329 = vunpack.c.l.b16 %v405
      %v1330 = vunpack.c.l.b16 %v406
      %v1331 = vunpack.c.l.b16 %v407
      %v1332 = vunpack.c.l.b16 %v408
      %v1333 = vunpack.c.l.b16 %v409
      %v1334 = vunpack.c.l.b16 %v410
      %v1335 = vunpack.c.l.b16 %v411
      %v1336 = vunpack.c.l.b16 %v412
      %v1337 = vunpack.c.l.b16 %v413
      %v1338 = vunpack.c.l.b16 %v414
      %v1339 = vunpack.c.l.b16 %v415
      %v1340 = vunpack.c.l.b16 %v416
      %v1341 = vunpack.c.l.b16 %v417
      %v1342 = vunpack.c.l.b16 %v418
      %v1343 = vunpack.c.l.b16 %v419
      %v1344 = vunpack.c.l.b16 %v420
      %v1345 = vunpack.c.l.b16 %v421
      %v1346 = vunpack.c.l.b16 %v422
      %v1347 = vunpack.c.l.b16 %v423
      %v1348 = vunpack.c.l.b16 %v424
      %v1349 = vunpack.c.l.b16 %v425
      %v1350 = vunpack.c.l.b16 %v426
      %v1351 = vunpack.c.l.b16 %v427
      %v1352 = vunpack.c.l.b16 %v428
      %v1353 = vunpack.c.l.b16 %v429
      %v1354 = vunpack.c.l.b16 %v430
      %v1355 = vunpack.c.l.b16 %v431
      %v1356 = vunpack.c.l.b16 %v432
      %v1357 = vunpack.c.l.b16 %v433
      %v1358 = vunpack.c.l.b16 %v434
      %v1359 = vunpack.c.l.b16 %v435
      %v1360 = vunpack.c.l.b16 %v436
      %v1361 = vunpack.c.l.b16 %v437
      %v1362 = vunpack.c.l.b16 %v438
      %v1363 = vunpack.c.l.b16 %v439
      %v1364 = vunpack.c.l.b16 %v440
      %v1365 = vunpack.c.l.b16 %v441
      %v1366 = vunpack.c.l.b16 %v442
      %v1367 = vunpack.c.l.b16 %v443
      %v1368 = vunpack.c.l.b16 %v444
      %v1369 = vunpack.c.l.b16 %v445
      %v1370 = vunpack.c.l.b16 %v446
      %v1371 = vunpack.c.l.b16 %v447
      %v1372 = vunpack.c.l.b16 %v448
      %v1373 = vunpack.c.l.b16 %v449
      %v1374 = vunpack.c.l.b16 %v450
      %v1375 = vunpack.c.l.b16 %v451
      %v1376 = vunpack.c.l.b16 %v452
      %v1377 = vunpack.c.l.b16 %v453
      %v1378 = vunpack.c.l.b16 %v454
      %v1379 = vunpack.c.l.b16 %v455
      %v1380 = vunpack.c.l.b16 %v456
      %v1381 = vunpack.c.l.b16 %v457
      %v1382 = vunpack.c.l.b16 %v458
      %v1383 = vunpack.c.l.b16 %v459
      %v1384 = vunpack.c.l.b16 %v460
      %v1385 = vunpack.c.l.b16 %v461
      %v1386 = vunpack.c.l.b16 %v462
      %v1387 = vunpack.c.l.b16 %v463
      %v1388 = vunpack.c.l.b16 %v464
      %v1389 = vunpack.c.l.b16 %v465
      %v1390 = vunpack.c.l.b16 %v466
      %v1391 = vunpack.c.l.b16 %v467
      %v1392 = vunpack.c.l.b16 %v468
      %v1393 = vunpack.c.l.b16 %v469
      %v1394 = vunpack.c.l.b16 %v470
      %v1395 = vunpack.c.l.b16 %v471
      %v1396 = vunpack.c.l.b16 %v472
      %v1397 = vunpack.c.l.b16 %v473
      %v1398 = vunpack.c.l.b16 %v474
      %v1399 = vunpack.c.l.b16 %v475
      %v1400 = vunpack.c.l.b16 %v476
      %v1401 = vunpack.c.l.b16 %v477
      %v1402 = vunpack.c.l.b16 %v478
      %v1403 = vunpack.c.l.b16 %v479
      %v1404 = vunpack.c.l.b16 %v480
      %v1405 = vunpack.c.l.b16 %v481
      %v1406 = vunpack.c.l.b16 %v482
      %v1407 = vunpack.c.l.b16 %v483
      %v1408 = vunpack.c.l.b16 %v484
      %v1409 = vunpack.c.l.b16 %v485
      %v1410 = vunpack.c.l.b16 %v486
      %v1411 = vunpack.c.l.b16 %v487
      %v1412 = vunpack.c.l.b16 %v488
      %v1413 = vunpack.c.l.b16 %v489
      %v1414 = vunpack.c.l.b16 %v490
      %v1415 = vunpack.c.l.b16 %v491
      %v1416 = vunpack.c.l.b16 %v492
      %v1417 = vunpack.c.l.b16 %v493
      %v1418 = vunpack.c.l.b16 %v494
      %v1419 = vunpack.c.l.b16 %v495
      %v1420 = vunpack.c.l.b16 %v496
      %v1421 = vunpack.c.l.b16 %v497
      %v1422 = vunpack.c.l.b16 %v498
      %v1423 = vunpack.c.l.b16 %v499
      %v1424 = vunpack.c.l.b16 %v500
      %v1425 = vunpack.c.l.b16 %v501
      %v1426 = vunpack.c.l.b16 %v502
      %v1427 = vunpack.c.l.b16 %v503
      %v1428 = vunpack.c.l.b16 %v504
      %v1429 = vunpack.c.l.b16 %v505
      %v1430 = vunpack.c.l.b16 %v506
      %v1431 = vunpack.c.l.b16 %v507
      %v1432 = vunpack.c.l.b16 %v508
      %v1433 = vunpack.c.l.b16 %v509
      %v1434 = vunpack.c.l.b16 %v510
      %v1435 = vunpack.c.l.b16 %v511
      %v1436 = vunpack.c.l.b16 %v512
      %v1437 = vunpack.c.l.b16 %v513
      %v1438 = vunpack.c.l.b16 %v514
      %v1439 = vunpack.c.l.b16 %v515
      %v1440 = vunpack.c.l.b16 %v516
      %v1441 = vunpack.c.l.b16 %v517
      %v1442 = vunpack.c.l.b16 %v518
      %v1443 = vunpack.c.l.b16 %v519
      %v1444 = vunpack.c.l.b16 %v520
      %v1445 = vunpack.c.l.b16 %v521
      %v1446 = vunpack.c.l.b16 %v522
      %v1447 = vunpack.c.l.b16 %v523
      %v1448 = vunpack.c.l.b16 %v524
      %v1449 = vunpack.c.l.b16 %v525
      %v1450 = vunpack.c.l.b16 %v526
      %v1451 = vunpack.c.l.b16 %v527
      %v1452 = vunpack.c.l.b16 %v528
      %v1453 = vunpack.c.l.b16 %v529
      %v1454 = vunpack.c.l.b16 %v530
      %v1455 = vunpack.c.l.b16 %v531
      %v1456 = vunpack.c.l.b16 %v532
      %v1457 = vunpack.c.l.b16 %v533
      %v1458 = vunpack.c.l.b16 %v534
      %v1459 = vunpack.c.l.b16 %v535
      %v1460 = vunpack.c.l.b16 %v536
      %v1461 = vunpack.c.l.b16 %v537
      %v1462 = vunpack.c.l.b16 %v538
      %v1463 = vunpack.c.l.b16 %v539
      %v1464 = vunpack.c.l.b16 %v540
      %v1465 = vunpack.c.l.b16 %v541
      %v1466 = vunpack.c.l.b16 %v542
      %v1467 = vunpack.c.l.b16 %v543
      %v1468 = vunpack.c.l.b16 %v544
      %v1469 = vunpack.c.l.b16 %v545
      %v1470 = vunpack.c.l.b16 %v546
      %v1471 = vunpack.c.l.b16 %v547
      %v1472 = vunpack.c.l.b16 %v548
      %v1473 = vunpack.c.l.b16 %v549
      %v1474 = vunpack.c.l.b16 %v550
      %v1475 = vunpack.c.l.b16 %v551
      %v1476 = vunpack.c.l.b16 %v552
      %v1477 = vunpack.c.l.b16 %v553
      %v1478 = vunpack.c.l.b16 %v554
      %v1479 = vunpack.c.l.b16 %v555
      %v1480 = vunpack.c.l.b16 %v556
      %v1481 = vunpack.c.l.b16 %v557
      %v1482 = vunpack.c.l.b16 %v558
      %v1483 = vunpack.c.l.b16 %v559
      %v1484 = vunpack.c.l.b16 %v560
      %v1485 = vunpack.c.l.b16 %v561
      %v1486 = vunpack.c.l.b16 %v562
      %v1487 = vunpack.c.l.b16 %v563
      %v1488 = vunpack.c.l.b16 %v564
      %v1489 = vunpack.c.l.b16 %v565
      %v1490 = vunpack.c.l.b16 %v566
      %v1491 = vunpack.c.l.b16 %v567
      %v1492 = vunpack.c.l.b16 %v568
      %v1493 = vunpack.c.l.b16 %v569
      %v1494 = vunpack.c.l.b16 %v570
      %v1495 = vunpack.c.l.b16 %v571
      %v1496 = vunpack.c.l.b16 %v572
      %v1497 = vunpack.c.l.b16 %v573
      %v1498 = vunpack.c.l.b16 %v574
      %v1499 = vunpack.c.l.b16 %v575
      %v1500 = vunpack.c.l.b16 %v576
      %v1501 = vunpack.c.l.b16 %v577
      %v1502 = vunpack.c.l.b16 %v578
      %v1503 = vunpack.c.l.b16 %v579
      %v1504 = vunpack.c.l.b16 %v580
      %v1505 = vunpack.c.l.b16 %v581
      %v1506 = vunpack.c.l.b16 %v582
      %v1507 = vunpack.c.l.b16 %v583
      %v1508 = vunpack.c.l.b16 %v584
      %v1509 = vunpack.c.l.b16 %v585
      %v1510 = vunpack.c.l.b16 %v586
      %v1511 = vunpack.c.l.b16 %v587
      %v1512 = vunpack.c.l.b16 %v588
      %v1513 = vunpack.c.l.b16 %v589
      %v1514 = vunpack.c.l.b16 %v590
      %v1515 = vunpack.c.l.b16 %v591
      %v1516 = vunpack.c.l.b16 %v592
      %v1517 = vunpack.c.l.b16 %v593
      %v1518 = vunpack.c.l.b16 %v594
      %v1519 = vunpack.c.l.b16 %v595
      %v1520 = vunpack.c.l.b16 %v596
      %v1521 = vunpack.c.l.b16 %v597
      %v1522 = vunpack.c.l.b16 %v598
      %v1523 = vunpack.c.l.b16 %v599
      %v1524 = vunpack.c.l.b16 %v600
      %v1525 = vunpack.c.l.b16 %v601
      %v1526 = vunpack.c.l.b16 %v602
      %v1527 = vunpack.c.l.b16 %v603
      %v1528 = vunpack.c.l.b16 %v604
      %v1529 = vunpack.c.l.b16 %v605
      %v1530 = vunpack.c.l.b16 %v606
      %v1531 = vunpack.c.l.b16 %v607
      %v1532 = vunpack.c.l.b16 %v608
      %v1533 = vunpack.c.l.b16 %v609
      %v1534 = vunpack.c.l.b16 %v610
      %v1535 = vunpack.c.l.b16 %v611
      %v1536 = vunpack.c.l.b16 %v612
      %v1537 = vunpack.c.l.b16 %v613
      %v1538 = vunpack.c.l.b16 %v614
      %v1539 = vunpack.c.l.b16 %v615
      %v1540 = vunpack.c.l.b16 %v616
      %v1541 = vunpack.c.l.b16 %v617
      %v1542 = vunpack.c.l.b16 %v618
      %v1543 = vunpack.c.l.b16 %v619
      %v1544 = vunpack.c.l.b16 %v620
      %v1545 = vunpack.c.l.b16 %v621
      %v1546 = vunpack.c.l.b16 %v622
      %v1547 = vunpack.c.l.b16 %v623
      %v1548 = vunpack.c.l.b16 %v624
      %v1549 = vunpack.c.l.b16 %v625
      %v1550 = vpack.c.b16 %v1099, %v1098
      %v1551 = vpack.c.b16 %v1101, %v1100
      %v1552 = vpack.c.b16 %v1103, %v1102
      %v1553 = vpack.c.b16 %v1105, %v1104
      %v1554 = vpack.c.b16 %v1107, %v1106
      %v1555 = vpack.c.b16 %v1109, %v1108
      %v1556 = vpack.c.b16 %v1111, %v1110
      %v1557 = vpack.c.b16 %v1113, %v1112
      %v1558 = vpack.c.b16 %v1115, %v1114
      %v1559 = vpack.c.b16 %v1117, %v1116
      %v1560 = vpack.c.b16 %v1119, %v1118
      %v1561 = vpack.c.b16 %v1121, %v1120
      %v1562 = vpack.c.b16 %v1123, %v1122
      %v1563 = vpack.c.b16 %v1125, %v1124
      %v1564 = vpack.c.b16 %v1127, %v1126
      %v1565 = vpack.c.b16 %v1129, %v1128
      %v1566 = vpack.c.b16 %v1131, %v1130
      %v1567 = vpack.c.b16 %v1133, %v1132
      %v1568 = vpack.c.b16 %v1135, %v1134
      %v1569 = vpack.c.b16 %v1137, %v1136
      %v1570 = vpack.c.b16 %v1139, %v1138
      %v1571 = vpack.c.b16 %v1141, %v1140
      %v1572 = vpack.c.b16 %v1143, %v1142
      %v1573 = vpack.c.b16 %v1145, %v1144
      %v1574 = vpack.c.b16 %v1147, %v1146
      %v1575 = vpack.c.b16 %v1149, %v1148
      %v1576 = vpack.c.b16 %v1151, %v1150
      %v1577 = vpack.c.b16 %v1153, %v1152
      %v1578 = vpack.c.b16 %v1155, %v1154
      %v1579 = vpack.c.b16 %v1157, %v1156
      %v1580 = vpack.c.b16 %v1159, %v1158
      %v1581 = vpack.c.b16 %v1161, %v1160
      %v1582 = vpack.c.b16 %v1163, %v1162
      %v1583 = vpack.c.b16 %v1165, %v1164
      %v1584 = vpack.c.b16 %v1167, %v1166
      %v1585 = vpack.c.b16 %v1169, %v1168
      %v1586 = vpack.c.b16 %v1171, %v1170
      %v1587 = vpack.c.b16 %v1173, %v1172
      %v1588 = vpack.c.b16 %v1175, %v1174
      %v1589 = vpack.c.b16 %v1177, %v1176
      %v1590 = vpack.c.b16 %v1179, %v1178
      %v1591 = vpack.c.b16 %v1181, %v1180
      %v1592 = vpack.c.b16 %v1183, %v1182
      %v1593 = vpack.c.b16 %v1185, %v1184
      %v1594 = vpack.c.b16 %v1187, %v1186
      %v1595 = vpack.c.b16 %v1189, %v1188
      %v1596 = vpack.c.b16 %v1191, %v1190
      %v1597 = vpack.c.b16 %v1193, %v1192
      %v1598 = vpack.c.b16 %v1195, %v1194
      %v1599 = vpack.c.b16 %v1197, %v1196
      %v1600 = vpack.c.b16 %v1199, %v1198
      %v1601 = vpack.c.b16 %v1201, %v1200
      %v1602 = vpack.c.b16 %v1203, %v1202
      %v1603 = vpack.c.b16 %v1205, %v1204
      %v1604 = vpack.c.b16 %v1207, %v1206
      %v1605 = vpack.c.b16 %v1209, %v1208
      %v1606 = vpack.c.b16 %v1211, %v1210
      %v1607 = vpack.c.b16 %v1213, %v1212
      %v1608 = vpack.c.b16 %v1215, %v1214
      %v1609 = vpack.c.b16 %v1217, %v1216
      %v1610 = vpack.c.b16 %v1219, %v1218
      %v1611 = vpack.c.b16 %v1221, %v1220
      %v1612 = vpack.c.b16 %v1223, %v1222
      %v1613 = vpack.c.b16 %v1225, %v1224
      %v1614 = vpack.c.b16 %v1227, %v1226
      %v1615 = vpack.c.b16 %v1229, %v1228
      %v1616 = vpack.c.b16 %v1231, %v1230
      %v1617 = vpack.c.b16 %v1233, %v1232
      %v1618 = vpack.c.b16 %v1235, %v1234
      %v1619 = vpack.c.b16 %v1237, %v1236
      %v1620 = vpack.c.b16 %v1239, %v1238
      %v1621 = vpack.c.b16 %v1241, %v1240
      %v1622 = vpack.c.b16 %v1243, %v1242
      %v1623 = vpack.c.b16 %v1245, %v1244
      %v1624 = vpack.c.b16 %v1247, %v1246
      %v1625 = vpack.c.b16 %v1249, %v1248
      %v1626 = vpack.c.b16 %v1251, %v1250
      %v1627 = vpack.c.b16 %v1253, %v1252
      %v1628 = vpack.c.b16 %v1255, %v1254
      %v1629 = vpack.c.b16 %v1257, %v1256
      %v1630 = vpack.c.b16 %v1259, %v1258
      %v1631 = vpack.c.b16 %v1261, %v1260
      %v1632 = vpack.c.b16 %v1263, %v1262
      %v1633 = vpack.c.b16 %v1265, %v1264
      %v1634 = vpack.c.b16 %v1267, %v1266
      %v1635 = vpack.c.b16 %v1269, %v1268
      %v1636 = vpack.c.b16 %v1271, %v1270
      %v1637 = vpack.c.b16 %v1273, %v1272
      %v1638 = vpack.c.b16 %v1275, %v1274
      %v1639 = vpack.c.b16 %v1277, %v1276
      %v1640 = vpack.c.b16 %v1279, %v1278
      %v1641 = vpack.c.b16 %v1281, %v1280
      %v1642 = vpack.c.b16 %v1283, %v1282
      %v1643 = vpack.c.b16 %v1285, %v1284
      %v1644 = vpack.c.b16 %v1287, %v1286
      %v1645 = vpack.c.b16 %v1289, %v1288
      %v1646 = vpack.c.b16 %v1291, %v1290
      %v1647 = vpack.c.b16 %v1293, %v1292
      %v1648 = vpack.c.b16 %v1295, %v1294
      %v1649 = vpack.c.b16 %v1297, %v1296
      %v1650 = vpack.c.b16 %v1299, %v1298
      %v1651 = vpack.c.b16 %v1301, %v1300
      %v1652 = vpack.c.b16 %v1303, %v1302
      %v1653 = vpack.c.b16 %v1305, %v1304
      %v1654 = vpack.c.b16 %v1307, %v1306
      %v1655 = vpack.c.b16 %v1309, %v1308
      %v1656 = vpack.c.b16 %v1311, %v1310
      %v1657 = vpack.c.b16 %v1313, %v1312
      %v1658 = vpack.c.b16 %v1315, %v1314
      %v1659 = vpack.c.b16 %v1317, %v1316
      %v1660 = vpack.c.b16 %v1319, %v1318
      %v1661 = vpack.c.b16 %v1321, %v1320
      %v1662 = vpack.c.b16 %v1323, %v1322
      %v1663 = vpack.c.b16 %v1325, %v1324
      %v1664 = vpack.c.b16 %v1327, %v1326
      %v1665 = vpack.c.b16 %v1329, %v1328
      %v1666 = vpack.c.b16 %v1331, %v1330
      %v1667 = vpack.c.b16 %v1333, %v1332
      %v1668 = vpack.c.b16 %v1335, %v1334
      %v1669 = vpack.c.b16 %v1337, %v1336
      %v1670 = vpack.c.b16 %v1339, %v1338
      %v1671 = vpack.c.b16 %v1341, %v1340
      %v1672 = vpack.c.b16 %v1343, %v1342
      %v1673 = vpack.c.b16 %v1345, %v1344
      %v1674 = vpack.c.b16 %v1347, %v1346
      %v1675 = vpack.c.b16 %v1349, %v1348
      %v1676 = vpack.c.b16 %v1351, %v1350
      %v1677 = vpack.c.b16 %v1353, %v1352
      %v1678 = vpack.c.b16 %v1355, %v1354
      %v1679 = vpack.c.b16 %v1357, %v1356
      %v1680 = vpack.c.b16 %v1359, %v1358
      %v1681 = vpack.c.b16 %v1361, %v1360
      %v1682 = vpack.c.b16 %v1363, %v1362
      %v1683 = vpack.c.b16 %v1365, %v1364
      %v1684 = vpack.c.b16 %v1367, %v1366
      %v1685 = vpack.c.b16 %v1369, %v1368
      %v1686 = vpack.c.b16 %v1371, %v1370
      %v1687 = vpack.c.b16 %v1373, %v1372
      %v1688 = vpack.c.b16 %v1375, %v1374
      %v1689 = vpack.c.b16 %v1377, %v1376
      %v1690 = vpack.c.b16 %v1379, %v1378
      %v1691 = vpack.c.b16 %v1381, %v1380
      %v1692 = vpack.c.b16 %v1383, %v1382
      %v1693 = vpack.c.b16 %v1385, %v1384
      %v1694 = vpack.c.b16 %v1387, %v1386
      %v1695 = vpack.c.b16 %v1389, %v1388
      %v1696 = vpack.c.b16 %v1391, %v1390
      %v1697 = vpack.c.b16 %v1393, %v1392
      %v1698 = vpack.c.b16 %v1395, %v1394
      %v1699 = vpack.c.b16 %v1397, %v1396
      %v1700 = vpack.c.b16 %v1399, %v1398
      %v1701 = vpack.c.b16 %v1401, %v1400
      %v1702 = vpack.c.b16 %v1403, %v1402
      %v1703 = vpack.c.b16 %v1405, %v1404
      %v1704 = vpack.c.b16 %v1407, %v1406
      %v1705 = vpack.c.b16 %v1409, %v1408
      %v1706 = vpack.c.b16 %v1411, %v1410
      %v1707 = vpack.c.b16 %v1413, %v1412
      %v1708 = vpack.c.b16 %v1415, %v1414
      %v1709 = vpack.c.b16 %v1417, %v1416
      %v1710 = vpack.c.b16 %v1419, %v1418
      %v1711 = vpack.c.b16 %v1421, %v1420
      %v1712 = vpack.c.b16 %v1423, %v1422
      %v1713 = vpack.c.b16 %v1425, %v1424
      %v1714 = vpack.c.b16 %v1427, %v1426
      %v1715 = vpack.c.b16 %v1429, %v1428
      %v1716 = vpack.c.b16 %v1431, %v1430
      %v1717 = vpack.c.b16 %v1433, %v1432
      %v1718 = vpack.c.b16 %v1435, %v1434
      %v1719 = vpack.c.b16 %v1437, %v1436
      %v1720 = vpack.c.b16 %v1439, %v1438
      %v1721 = vpack.c.b16 %v1441, %v1440
      %v1722 = vpack.c.b16 %v1443, %v1442
      %v1723 = vpack.c.b16 %v1445, %v1444
      %v1724 = vpack.c.b16 %v1447, %v1446
      %v1725 = vpack.c.b16 %v1449, %v1448
      %v1726 = vpack.c.b16 %v1451, %v1450
      %v1727 = vpack.c.b16 %v1453, %v1452
      %v1728 = vpack.c.b16 %v1455, %v1454
      %v1729 = vpack.c.b16 %v1457, %v1456
      %v1730 = vpack.c.b16 %v1459, %v1458
      %v1731 = vpack.c.b16 %v1461, %v1460
      %v1732 = vpack.c.b16 %v1463, %v1462
      %v1733 = vpack.c.b16 %v1465, %v1464
      %v1734 = vpack.c.b16 %v1467, %v1466
      %v1735 = vpack.c.b16 %v1469, %v1468
      %v1736 = vpack.c.b16 %v1471, %v1470
      %v1737 = vpack.c.b16 %v1473, %v1472
      %v1738 = vpack.c.b16 %v1475, %v1474
      %v1739 = vpack.c.b16 %v1477, %v1476
      %v1740 = vpack.c.b16 %v1479, %v1478
      %v1741 = vpack.c.b16 %v1481, %v1480
      %v1742 = vpack.c.b16 %v1483, %v1482
      %v1743 = vpack.c.b16 %v1485, %v1484
      %v1744 = vpack.c.b16 %v1487, %v1486
      %v1745 = vpack.c.b16 %v1489, %v1488
      %v1746 = vpack.c.b16 %v1491, %v1490
      %v1747 = vpack.c.b16 %v1493, %v1492
      %v1748 = vpack.c.b16 %v1495, %v1494
      %v1749 = vpack.c.b16 %v1497, %v1496
      %v1750 = vpack.c.b16 %v1499, %v1498
      %v1751 = vpack.c.b16 %v1501, %v1500
      %v1752 = vpack.c.b16 %v1503, %v1502
      %v1753 = vpack.c.b16 %v1505, %v1504
      %v1754 = vpack.c.b16 %v1507, %v1506
      %v1755 = vpack.c.b16 %v1509, %v1508
      %v1756 = vpack.c.b16 %v1511, %v1510
      %v1757 = vpack.c.b16 %v1513, %v1512
      %v1758 = vpack.c.b16 %v1515, %v1514
      %v1759 = vpack.c.b16 %v1517, %v1516
      %v1760 = vpack.c.b16 %v1519, %v1518
      %v1761 = vpack.c.b16 %v1521, %v1520
      %v1762 = vpack.c.b16 %v1523, %v1522
      %v1763 = vpack.c.b16 %v1525, %v1524
      %v1764 = vpack.c.b16 %v1527, %v1526
      %v1765 = vpack.c.b16 %v1529, %v1528
      %v1766 = vpack.c.b16 %v1531, %v1530
      %v1767 = vpack.c.b16 %v1533, %v1532
      %v1768 = vpack.c.b16 %v1535, %v1534
      %v1769 = vpack.c.b16 %v1537, %v1536
      %v1770 = vpack.c.b16 %v1539, %v1538
      %v1771 = vpack.c.b16 %v1541, %v1540
      %v1772 = vpack.c.b16 %v1543, %v1542
      %v1773 = vpack.c.b16 %v1545, %v1544
      %v1774 = vpack.c.b16 %v1547, %v1546
      %v1775 = vpack.c.b16 %v1549, %v1548
      %v2018 = vunpack.c.l.b16 %v626
      %v2019 = vunpack.c.l.b16 %v627
      %v2020 = vunpack.c.l.b16 %v628
      %v2021 = vunpack.c.l.b16 %v629
      %v2022 = vunpack.c.l.b16 %v630
      %v2023 = vunpack.c.l.b16 %v631
      %v2024 = vunpack.c.l.b16 %v632
      %v2025 = vunpack.c.l.b16 %v633
      %v2026 = vunpack.c.l.b16 %v634
      %v2027 = vunpack.c.l.b16 %v635
      %v2028 = vunpack.c.l.b16 %v636
      %v2029 = vunpack.c.l.b16 %v637
      %v2030 = vunpack.c.l.b16 %v638
      %v2031 = vunpack.c.l.b16 %v639
      %v2032 = vunpack.c.l.b16 %v640
      %v2033 = vunpack.c.l.b16 %v641
      %v2034 = vpack.c.b16 %v2019, %v2018
      %v2035 = vpack.c.b16 %v2021, %v2020
      %v2036 = vpack.c.b16 %v2023, %v2022
      %v2037 = vpack.c.b16 %v2025, %v2024
      %v2038 = vpack.c.b16 %v2027, %v2026
      %v2039 = vpack.c.b16 %v2029, %v2028
      %v2040 = vpack.c.b16 %v2031, %v2030
      %v2041 = vpack.c.b16 %v2033, %v2032
      %2050 = vmatpush.bf16.msra.mxu0 %v2041
      %2051 = vmatpush.bf16.msra.mxu0 %v2040
      %2052 = vmatpush.bf16.msra.mxu0 %v2039
      %2053 = vmatpush.bf16.msra.mxu0 %v2038
      %2054 = vmatpush.bf16.msra.mxu0 %v2037
      %2055 = vmatpush.bf16.msra.mxu0 %v2036
      %2056 = vmatpush.bf16.msra.mxu0 %v2035
      %2057 = vmatpush.bf16.msra.mxu0 %v2034
      %2058 = vmatmul.bf16.gmra.mxu0 %v1550
      %v2059 = vpop.f32.mrf.mxu0
      %v2060 = vadd.f32 %v644, %v2059
      %v2061 = vpop.f32.mrf.mxu0
      %v2062 = vadd.f32 %v644, %v2061
      %2063 = vmatmul.bf16.gmra.mxu0 %v1551
      %v2064 = vpop.f32.mrf.mxu0
      %v2065 = vadd.f32 %v644, %v2064
      %v2066 = vpop.f32.mrf.mxu0
      %v2067 = vadd.f32 %v644, %v2066
      %2068 = vmatmul.bf16.gmra.mxu0 %v1552
      %v2069 = vpop.f32.mrf.mxu0
      %v2070 = vadd.f32 %v644, %v2069
      %v2071 = vpop.f32.mrf.mxu0
      %v2072 = vadd.f32 %v644, %v2071
      %2073 = vmatmul.bf16.gmra.mxu0 %v1553
      %v2074 = vpop.f32.mrf.mxu0
      %v2075 = vadd.f32 %v644, %v2074
      %v2076 = vpop.f32.mrf.mxu0
      %v2077 = vadd.f32 %v644, %v2076
      %2078 = vmatmul.bf16.gmra.mxu0 %v1554
      %v2079 = vpop.f32.mrf.mxu0
      %v2080 = vadd.f32 %v644, %v2079
      %v2081 = vpop.f32.mrf.mxu0
      %v2082 = vadd.f32 %v644, %v2081
      %2083 = vmatmul.bf16.gmra.mxu0 %v1555
      %v2084 = vpop.f32.mrf.mxu0
      %v2085 = vadd.f32 %v644, %v2084
      %v2086 = vpop.f32.mrf.mxu0
      %v2087 = vadd.f32 %v644, %v2086
      %2088 = vmatmul.bf16.gmra.mxu0 %v1556
      %v2089 = vpop.f32.mrf.mxu0
      %v2090 = vadd.f32 %v644, %v2089
      %v2091 = vpop.f32.mrf.mxu0
      %v2092 = vadd.f32 %v644, %v2091
      %2093 = vmatmul.bf16.gmra.mxu0 %v1557
      %v2094 = vpop.f32.mrf.mxu0
      %v2095 = vadd.f32 %v644, %v2094
      %v2096 = vpop.f32.mrf.mxu0
      %v2097 = vadd.f32 %v644, %v2096
      %2098 = vmatmul.bf16.gmra.mxu0 %v1558
      %v2099 = vpop.f32.mrf.mxu0
      %v2100 = vadd.f32 %v644, %v2099
      %v2101 = vpop.f32.mrf.mxu0
      %v2102 = vadd.f32 %v644, %v2101
      %2103 = vmatmul.bf16.gmra.mxu0 %v1559
      %v2104 = vpop.f32.mrf.mxu0
      %v2105 = vadd.f32 %v644, %v2104
      %v2106 = vpop.f32.mrf.mxu0
      %v2107 = vadd.f32 %v644, %v2106
      %2108 = vmatmul.bf16.gmra.mxu0 %v1560
      %v2109 = vpop.f32.mrf.mxu0
      %v2110 = vadd.f32 %v644, %v2109
      %v2111 = vpop.f32.mrf.mxu0
      %v2112 = vadd.f32 %v644, %v2111
      %2113 = vmatmul.bf16.gmra.mxu0 %v1561
      %v2114 = vpop.f32.mrf.mxu0
      %v2115 = vadd.f32 %v644, %v2114
      %v2116 = vpop.f32.mrf.mxu0
      %v2117 = vadd.f32 %v644, %v2116
      %2118 = vmatmul.bf16.gmra.mxu0 %v1562
      %v2119 = vpop.f32.mrf.mxu0
      %v2120 = vadd.f32 %v644, %v2119
      %v2121 = vpop.f32.mrf.mxu0
      %v2122 = vadd.f32 %v644, %v2121
      %2123 = vmatmul.bf16.gmra.mxu0 %v1563
      %v2124 = vpop.f32.mrf.mxu0
      %v2125 = vadd.f32 %v644, %v2124
      %v2126 = vpop.f32.mrf.mxu0
      %v2127 = vadd.f32 %v644, %v2126
      %2128 = vmatmul.bf16.gmra.mxu0 %v1564
      %v2129 = vpop.f32.mrf.mxu0
      %v2130 = vadd.f32 %v644, %v2129
      %v2131 = vpop.f32.mrf.mxu0
      %v2132 = vadd.f32 %v644, %v2131
      %2133 = vmatmul.bf16.gmra.mxu0 %v1565
      %v2134 = vpop.f32.mrf.mxu0
      %v2135 = vadd.f32 %v644, %v2134
      %v2136 = vpop.f32.mrf.mxu0
      %v2137 = vadd.f32 %v644, %v2136
      %2138 = vmatmul.bf16.gmra.mxu0 %v1566
      %v2139 = vpop.f32.mrf.mxu0
      %v2140 = vadd.f32 %v644, %v2139
      %v2141 = vpop.f32.mrf.mxu0
      %v2142 = vadd.f32 %v644, %v2141
      %2143 = vmatmul.bf16.gmra.mxu0 %v1567
      %v2144 = vpop.f32.mrf.mxu0
      %v2145 = vadd.f32 %v644, %v2144
      %v2146 = vpop.f32.mrf.mxu0
      %v2147 = vadd.f32 %v644, %v2146
      %2148 = vmatmul.bf16.gmra.mxu0 %v1568
      %v2149 = vpop.f32.mrf.mxu0
      %v2150 = vadd.f32 %v644, %v2149
      %v2151 = vpop.f32.mrf.mxu0
      %v2152 = vadd.f32 %v644, %v2151
      %2153 = vmatmul.bf16.gmra.mxu0 %v1569
      %v2154 = vpop.f32.mrf.mxu0
      %v2155 = vadd.f32 %v644, %v2154
      %v2156 = vpop.f32.mrf.mxu0
      %v2157 = vadd.f32 %v644, %v2156
      %2158 = vmatmul.bf16.gmra.mxu0 %v1570
      %v2159 = vpop.f32.mrf.mxu0
      %v2160 = vadd.f32 %v644, %v2159
      %v2161 = vpop.f32.mrf.mxu0
      %v2162 = vadd.f32 %v644, %v2161
      %2163 = vmatmul.bf16.gmra.mxu0 %v1571
      %v2164 = vpop.f32.mrf.mxu0
      %v2165 = vadd.f32 %v644, %v2164
      %v2166 = vpop.f32.mrf.mxu0
      %v2167 = vadd.f32 %v644, %v2166
      %2168 = vmatmul.bf16.gmra.mxu0 %v1572
      %v2169 = vpop.f32.mrf.mxu0
      %v2170 = vadd.f32 %v644, %v2169
      %v2171 = vpop.f32.mrf.mxu0
      %v2172 = vadd.f32 %v644, %v2171
      %2173 = vmatmul.bf16.gmra.mxu0 %v1573
      %v2174 = vpop.f32.mrf.mxu0
      %v2175 = vadd.f32 %v644, %v2174
      %v2176 = vpop.f32.mrf.mxu0
      %v2177 = vadd.f32 %v644, %v2176
      %2178 = vmatmul.bf16.gmra.mxu0 %v1574
      %v2179 = vpop.f32.mrf.mxu0
      %v2180 = vadd.f32 %v644, %v2179
      %v2181 = vpop.f32.mrf.mxu0
      %v2182 = vadd.f32 %v644, %v2181
      %2183 = vmatmul.bf16.gmra.mxu0 %v1575
      %v2184 = vpop.f32.mrf.mxu0
      %v2185 = vadd.f32 %v644, %v2184
      %v2186 = vpop.f32.mrf.mxu0
      %v2187 = vadd.f32 %v644, %v2186
      %2188 = vmatmul.bf16.gmra.mxu0 %v1576
      %v2189 = vpop.f32.mrf.mxu0
      %v2190 = vadd.f32 %v644, %v2189
      %v2191 = vpop.f32.mrf.mxu0
      %v2192 = vadd.f32 %v644, %v2191
      %2193 = vmatmul.bf16.gmra.mxu0 %v1577
      %v2194 = vpop.f32.mrf.mxu0
      %v2195 = vadd.f32 %v644, %v2194
      %v2196 = vpop.f32.mrf.mxu0
      %v2197 = vadd.f32 %v644, %v2196
      %2198 = vmatmul.bf16.gmra.mxu0 %v1578
      %v2199 = vpop.f32.mrf.mxu0
      %v2200 = vadd.f32 %v644, %v2199
      %v2201 = vpop.f32.mrf.mxu0
      %v2202 = vadd.f32 %v644, %v2201
      %2203 = vmatmul.bf16.gmra.mxu0 %v1579
      %v2204 = vpop.f32.mrf.mxu0
      %v2205 = vadd.f32 %v644, %v2204
      %v2206 = vpop.f32.mrf.mxu0
      %v2207 = vadd.f32 %v644, %v2206
      %2208 = vmatmul.bf16.gmra.mxu0 %v1580
      %v2209 = vpop.f32.mrf.mxu0
      %v2210 = vadd.f32 %v644, %v2209
      %v2211 = vpop.f32.mrf.mxu0
      %v2212 = vadd.f32 %v644, %v2211
      %2213 = vmatmul.bf16.gmra.mxu0 %v1581
      %v2214 = vpop.f32.mrf.mxu0
      %v2215 = vadd.f32 %v644, %v2214
      %v2216 = vpop.f32.mrf.mxu0
      %v2217 = vadd.f32 %v644, %v2216
      %2218 = vmatmul.bf16.gmra.mxu0 %v1582
      %v2219 = vpop.f32.mrf.mxu0
      %v2220 = vadd.f32 %v644, %v2219
      %v2221 = vpop.f32.mrf.mxu0
      %v2222 = vadd.f32 %v644, %v2221
      %2223 = vmatmul.bf16.gmra.mxu0 %v1583
      %v2224 = vpop.f32.mrf.mxu0
      %v2225 = vadd.f32 %v644, %v2224
      %v2226 = vpop.f32.mrf.mxu0
      %v2227 = vadd.f32 %v644, %v2226
      %2228 = vmatmul.bf16.gmra.mxu0 %v1584
      %v2229 = vpop.f32.mrf.mxu0
      %v2230 = vadd.f32 %v644, %v2229
      %v2231 = vpop.f32.mrf.mxu0
      %v2232 = vadd.f32 %v644, %v2231
      %2233 = vmatmul.bf16.gmra.mxu0 %v1585
      %v2234 = vpop.f32.mrf.mxu0
      %v2235 = vadd.f32 %v644, %v2234
      %v2236 = vpop.f32.mrf.mxu0
      %v2237 = vadd.f32 %v644, %v2236
      %2238 = vmatmul.bf16.gmra.mxu0 %v1586
      %v2239 = vpop.f32.mrf.mxu0
      %v2240 = vadd.f32 %v644, %v2239
      %v2241 = vpop.f32.mrf.mxu0
      %v2242 = vadd.f32 %v644, %v2241
      %2243 = vmatmul.bf16.gmra.mxu0 %v1587
      %v2244 = vpop.f32.mrf.mxu0
      %v2245 = vadd.f32 %v644, %v2244
      %v2246 = vpop.f32.mrf.mxu0
      %v2247 = vadd.f32 %v644, %v2246
      %2248 = vmatmul.bf16.gmra.mxu0 %v1588
      %v2249 = vpop.f32.mrf.mxu0
      %v2250 = vadd.f32 %v644, %v2249
      %v2251 = vpop.f32.mrf.mxu0
      %v2252 = vadd.f32 %v644, %v2251
      %2253 = vmatmul.bf16.gmra.mxu0 %v1589
      %v2254 = vpop.f32.mrf.mxu0
      %v2255 = vadd.f32 %v644, %v2254
      %v2256 = vpop.f32.mrf.mxu0
      %v2257 = vadd.f32 %v644, %v2256
      %2258 = vmatmul.bf16.gmra.mxu0 %v1590
      %v2259 = vpop.f32.mrf.mxu0
      %v2260 = vadd.f32 %v644, %v2259
      %v2261 = vpop.f32.mrf.mxu0
      %v2262 = vadd.f32 %v644, %v2261
      %2263 = vmatmul.bf16.gmra.mxu0 %v1591
      %v2264 = vpop.f32.mrf.mxu0
      %v2265 = vadd.f32 %v644, %v2264
      %v2266 = vpop.f32.mrf.mxu0
      %v2267 = vadd.f32 %v644, %v2266
      %2268 = vmatmul.bf16.gmra.mxu0 %v1592
      %v2269 = vpop.f32.mrf.mxu0
      %v2270 = vadd.f32 %v644, %v2269
      %v2271 = vpop.f32.mrf.mxu0
      %v2272 = vadd.f32 %v644, %v2271
      %2273 = vmatmul.bf16.gmra.mxu0 %v1593
      %v2274 = vpop.f32.mrf.mxu0
      %v2275 = vadd.f32 %v644, %v2274
      %v2276 = vpop.f32.mrf.mxu0
      %v2277 = vadd.f32 %v644, %v2276
      %2278 = vmatmul.bf16.gmra.mxu0 %v1594
      %v2279 = vpop.f32.mrf.mxu0
      %v2280 = vadd.f32 %v644, %v2279
      %v2281 = vpop.f32.mrf.mxu0
      %v2282 = vadd.f32 %v644, %v2281
      %2283 = vmatmul.bf16.gmra.mxu0 %v1595
      %v2284 = vpop.f32.mrf.mxu0
      %v2285 = vadd.f32 %v644, %v2284
      %v2286 = vpop.f32.mrf.mxu0
      %v2287 = vadd.f32 %v644, %v2286
      %2288 = vmatmul.bf16.gmra.mxu0 %v1596
      %v2289 = vpop.f32.mrf.mxu0
      %v2290 = vadd.f32 %v644, %v2289
      %v2291 = vpop.f32.mrf.mxu0
      %v2292 = vadd.f32 %v644, %v2291
      %2293 = vmatmul.bf16.gmra.mxu0 %v1597
      %v2294 = vpop.f32.mrf.mxu0
      %v2295 = vadd.f32 %v644, %v2294
      %v2296 = vpop.f32.mrf.mxu0
      %v2297 = vadd.f32 %v644, %v2296
      %2298 = vmatmul.bf16.gmra.mxu0 %v1598
      %v2299 = vpop.f32.mrf.mxu0
      %v2300 = vadd.f32 %v644, %v2299
      %v2301 = vpop.f32.mrf.mxu0
      %v2302 = vadd.f32 %v644, %v2301
      %2303 = vmatmul.bf16.gmra.mxu0 %v1599
      %v2304 = vpop.f32.mrf.mxu0
      %v2305 = vadd.f32 %v644, %v2304
      %v2306 = vpop.f32.mrf.mxu0
      %v2307 = vadd.f32 %v644, %v2306
      %2308 = vmatmul.bf16.gmra.mxu0 %v1600
      %v2309 = vpop.f32.mrf.mxu0
      %v2310 = vadd.f32 %v644, %v2309
      %v2311 = vpop.f32.mrf.mxu0
      %v2312 = vadd.f32 %v644, %v2311
      %2313 = vmatmul.bf16.gmra.mxu0 %v1601
      %v2314 = vpop.f32.mrf.mxu0
      %v2315 = vadd.f32 %v644, %v2314
      %v2316 = vpop.f32.mrf.mxu0
      %v2317 = vadd.f32 %v644, %v2316
      %2318 = vmatmul.bf16.gmra.mxu0 %v1602
      %v2319 = vpop.f32.mrf.mxu0
      %v2320 = vadd.f32 %v644, %v2319
      %v2321 = vpop.f32.mrf.mxu0
      %v2322 = vadd.f32 %v644, %v2321
      %2323 = vmatmul.bf16.gmra.mxu0 %v1603
      %v2324 = vpop.f32.mrf.mxu0
      %v2325 = vadd.f32 %v644, %v2324
      %v2326 = vpop.f32.mrf.mxu0
      %v2327 = vadd.f32 %v644, %v2326
      %2328 = vmatmul.bf16.gmra.mxu0 %v1604
      %v2329 = vpop.f32.mrf.mxu0
      %v2330 = vadd.f32 %v644, %v2329
      %v2331 = vpop.f32.mrf.mxu0
      %v2332 = vadd.f32 %v644, %v2331
      %2333 = vmatmul.bf16.gmra.mxu0 %v1605
      %v2334 = vpop.f32.mrf.mxu0
      %v2335 = vadd.f32 %v644, %v2334
      %v2336 = vpop.f32.mrf.mxu0
      %v2337 = vadd.f32 %v644, %v2336
      %2338 = vmatmul.bf16.gmra.mxu0 %v1606
      %v2339 = vpop.f32.mrf.mxu0
      %v2340 = vadd.f32 %v644, %v2339
      %v2341 = vpop.f32.mrf.mxu0
      %v2342 = vadd.f32 %v644, %v2341
      %2343 = vmatmul.bf16.gmra.mxu0 %v1607
      %v2344 = vpop.f32.mrf.mxu0
      %v2345 = vadd.f32 %v644, %v2344
      %v2346 = vpop.f32.mrf.mxu0
      %v2347 = vadd.f32 %v644, %v2346
      %2348 = vmatmul.bf16.gmra.mxu0 %v1608
      %v2349 = vpop.f32.mrf.mxu0
      %v2350 = vadd.f32 %v644, %v2349
      %v2351 = vpop.f32.mrf.mxu0
      %v2352 = vadd.f32 %v644, %v2351
      %2353 = vmatmul.bf16.gmra.mxu0 %v1609
      %v2354 = vpop.f32.mrf.mxu0
      %v2355 = vadd.f32 %v644, %v2354
      %v2356 = vpop.f32.mrf.mxu0
      %v2357 = vadd.f32 %v644, %v2356
      %2358 = vmatmul.bf16.gmra.mxu0 %v1610
      %v2359 = vpop.f32.mrf.mxu0
      %v2360 = vadd.f32 %v644, %v2359
      %v2361 = vpop.f32.mrf.mxu0
      %v2362 = vadd.f32 %v644, %v2361
      %2363 = vmatmul.bf16.gmra.mxu0 %v1611
      %v2364 = vpop.f32.mrf.mxu0
      %v2365 = vadd.f32 %v644, %v2364
      %v2366 = vpop.f32.mrf.mxu0
      %v2367 = vadd.f32 %v644, %v2366
      %2368 = vmatmul.bf16.gmra.mxu0 %v1612
      %v2369 = vpop.f32.mrf.mxu0
      %v2370 = vadd.f32 %v644, %v2369
      %v2371 = vpop.f32.mrf.mxu0
      %v2372 = vadd.f32 %v644, %v2371
      %2373 = vmatmul.bf16.gmra.mxu0 %v1613
      %v2374 = vpop.f32.mrf.mxu0
      %v2375 = vadd.f32 %v644, %v2374
      %v2376 = vpop.f32.mrf.mxu0
      %v2377 = vadd.f32 %v644, %v2376
      %2378 = vmatmul.bf16.gmra.mxu0 %v1614
      %v2379 = vpop.f32.mrf.mxu0
      %v2380 = vadd.f32 %v644, %v2379
      %v2381 = vpop.f32.mrf.mxu0
      %v2382 = vadd.f32 %v644, %v2381
      %2383 = vmatmul.bf16.gmra.mxu0 %v1615
      %v2384 = vpop.f32.mrf.mxu0
      %v2385 = vadd.f32 %v644, %v2384
      %v2386 = vpop.f32.mrf.mxu0
      %v2387 = vadd.f32 %v644, %v2386
      %2388 = vmatmul.bf16.gmra.mxu0 %v1616
      %v2389 = vpop.f32.mrf.mxu0
      %v2390 = vadd.f32 %v644, %v2389
      %v2391 = vpop.f32.mrf.mxu0
      %v2392 = vadd.f32 %v644, %v2391
      %2393 = vmatmul.bf16.gmra.mxu0 %v1617
      %v2394 = vpop.f32.mrf.mxu0
      %v2395 = vadd.f32 %v644, %v2394
      %v2396 = vpop.f32.mrf.mxu0
      %v2397 = vadd.f32 %v644, %v2396
      %2398 = vmatmul.bf16.gmra.mxu0 %v1618
      %v2399 = vpop.f32.mrf.mxu0
      %v2400 = vadd.f32 %v644, %v2399
      %v2401 = vpop.f32.mrf.mxu0
      %v2402 = vadd.f32 %v644, %v2401
      %2403 = vmatmul.bf16.gmra.mxu0 %v1619
      %v2404 = vpop.f32.mrf.mxu0
      %v2405 = vadd.f32 %v644, %v2404
      %v2406 = vpop.f32.mrf.mxu0
      %v2407 = vadd.f32 %v644, %v2406
      %2408 = vmatmul.bf16.gmra.mxu0 %v1620
      %v2409 = vpop.f32.mrf.mxu0
      %v2410 = vadd.f32 %v644, %v2409
      %v2411 = vpop.f32.mrf.mxu0
      %v2412 = vadd.f32 %v644, %v2411
      %2413 = vmatmul.bf16.gmra.mxu0 %v1621
      %v2414 = vpop.f32.mrf.mxu0
      %v2415 = vadd.f32 %v644, %v2414
      %v2416 = vpop.f32.mrf.mxu0
      %v2417 = vadd.f32 %v644, %v2416
      %2418 = vmatmul.bf16.gmra.mxu0 %v1622
      %v2419 = vpop.f32.mrf.mxu0
      %v2420 = vadd.f32 %v644, %v2419
      %v2421 = vpop.f32.mrf.mxu0
      %v2422 = vadd.f32 %v644, %v2421
      %2423 = vmatmul.bf16.gmra.mxu0 %v1623
      %v2424 = vpop.f32.mrf.mxu0
      %v2425 = vadd.f32 %v644, %v2424
      %v2426 = vpop.f32.mrf.mxu0
      %v2427 = vadd.f32 %v644, %v2426
      %2428 = vmatmul.bf16.gmra.mxu0 %v1624
      %v2429 = vpop.f32.mrf.mxu0
      %v2430 = vadd.f32 %v644, %v2429
      %v2431 = vpop.f32.mrf.mxu0
      %v2432 = vadd.f32 %v644, %v2431
      %2433 = vmatmul.bf16.gmra.mxu0 %v1625
      %v2434 = vpop.f32.mrf.mxu0
      %v2435 = vadd.f32 %v644, %v2434
      %v2436 = vpop.f32.mrf.mxu0
      %v2437 = vadd.f32 %v644, %v2436
      %2438 = vmatmul.bf16.gmra.mxu0 %v1626
      %v2439 = vpop.f32.mrf.mxu0
      %v2440 = vadd.f32 %v644, %v2439
      %v2441 = vpop.f32.mrf.mxu0
      %v2442 = vadd.f32 %v644, %v2441
      %2443 = vmatmul.bf16.gmra.mxu0 %v1627
      %v2444 = vpop.f32.mrf.mxu0
      %v2445 = vadd.f32 %v644, %v2444
      %v2446 = vpop.f32.mrf.mxu0
      %v2447 = vadd.f32 %v644, %v2446
      %2448 = vmatmul.bf16.gmra.mxu0 %v1628
      %v2449 = vpop.f32.mrf.mxu0
      %v2450 = vadd.f32 %v644, %v2449
      %v2451 = vpop.f32.mrf.mxu0
      %v2452 = vadd.f32 %v644, %v2451
      %2453 = vmatmul.bf16.gmra.mxu0 %v1629
      %v2454 = vpop.f32.mrf.mxu0
      %v2455 = vadd.f32 %v644, %v2454
      %v2456 = vpop.f32.mrf.mxu0
      %v2457 = vadd.f32 %v644, %v2456
      %2458 = vmatmul.bf16.gmra.mxu0 %v1630
      %v2459 = vpop.f32.mrf.mxu0
      %v2460 = vadd.f32 %v644, %v2459
      %v2461 = vpop.f32.mrf.mxu0
      %v2462 = vadd.f32 %v644, %v2461
      %2463 = vmatmul.bf16.gmra.mxu0 %v1631
      %v2464 = vpop.f32.mrf.mxu0
      %v2465 = vadd.f32 %v644, %v2464
      %v2466 = vpop.f32.mrf.mxu0
      %v2467 = vadd.f32 %v644, %v2466
      %2468 = vmatmul.bf16.gmra.mxu0 %v1632
      %v2469 = vpop.f32.mrf.mxu0
      %v2470 = vadd.f32 %v644, %v2469
      %v2471 = vpop.f32.mrf.mxu0
      %v2472 = vadd.f32 %v644, %v2471
      %2473 = vmatmul.bf16.gmra.mxu0 %v1633
      %v2474 = vpop.f32.mrf.mxu0
      %v2475 = vadd.f32 %v644, %v2474
      %v2476 = vpop.f32.mrf.mxu0
      %v2477 = vadd.f32 %v644, %v2476
      %2478 = vmatmul.bf16.gmra.mxu0 %v1634
      %v2479 = vpop.f32.mrf.mxu0
      %v2480 = vadd.f32 %v644, %v2479
      %v2481 = vpop.f32.mrf.mxu0
      %v2482 = vadd.f32 %v644, %v2481
      %2483 = vmatmul.bf16.gmra.mxu0 %v1635
      %v2484 = vpop.f32.mrf.mxu0
      %v2485 = vadd.f32 %v644, %v2484
      %v2486 = vpop.f32.mrf.mxu0
      %v2487 = vadd.f32 %v644, %v2486
      %2488 = vmatmul.bf16.gmra.mxu0 %v1636
      %v2489 = vpop.f32.mrf.mxu0
      %v2490 = vadd.f32 %v644, %v2489
      %v2491 = vpop.f32.mrf.mxu0
      %v2492 = vadd.f32 %v644, %v2491
      %2493 = vmatmul.bf16.gmra.mxu0 %v1637
      %v2494 = vpop.f32.mrf.mxu0
      %v2495 = vadd.f32 %v644, %v2494
      %v2496 = vpop.f32.mrf.mxu0
      %v2497 = vadd.f32 %v644, %v2496
      %2498 = vmatmul.bf16.gmra.mxu0 %v1638
      %v2499 = vpop.f32.mrf.mxu0
      %v2500 = vadd.f32 %v644, %v2499
      %v2501 = vpop.f32.mrf.mxu0
      %v2502 = vadd.f32 %v644, %v2501
      %2503 = vmatmul.bf16.gmra.mxu0 %v1639
      %v2504 = vpop.f32.mrf.mxu0
      %v2505 = vadd.f32 %v644, %v2504
      %v2506 = vpop.f32.mrf.mxu0
      %v2507 = vadd.f32 %v644, %v2506
      %2508 = vmatmul.bf16.gmra.mxu0 %v1640
      %v2509 = vpop.f32.mrf.mxu0
      %v2510 = vadd.f32 %v644, %v2509
      %v2511 = vpop.f32.mrf.mxu0
      %v2512 = vadd.f32 %v644, %v2511
      %2513 = vmatmul.bf16.gmra.mxu0 %v1641
      %v2514 = vpop.f32.mrf.mxu0
      %v2515 = vadd.f32 %v644, %v2514
      %v2516 = vpop.f32.mrf.mxu0
      %v2517 = vadd.f32 %v644, %v2516
      %2518 = vmatmul.bf16.gmra.mxu0 %v1642
      %v2519 = vpop.f32.mrf.mxu0
      %v2520 = vadd.f32 %v644, %v2519
      %v2521 = vpop.f32.mrf.mxu0
      %v2522 = vadd.f32 %v644, %v2521
      %2523 = vmatmul.bf16.gmra.mxu0 %v1643
      %v2524 = vpop.f32.mrf.mxu0
      %v2525 = vadd.f32 %v644, %v2524
      %v2526 = vpop.f32.mrf.mxu0
      %v2527 = vadd.f32 %v644, %v2526
      %2528 = vmatmul.bf16.gmra.mxu0 %v1644
      %v2529 = vpop.f32.mrf.mxu0
      %v2530 = vadd.f32 %v644, %v2529
      %v2531 = vpop.f32.mrf.mxu0
      %v2532 = vadd.f32 %v644, %v2531
      %2533 = vmatmul.bf16.gmra.mxu0 %v1645
      %v2534 = vpop.f32.mrf.mxu0
      %v2535 = vadd.f32 %v644, %v2534
      %v2536 = vpop.f32.mrf.mxu0
      %v2537 = vadd.f32 %v644, %v2536
      %2538 = vmatmul.bf16.gmra.mxu0 %v1646
      %v2539 = vpop.f32.mrf.mxu0
      %v2540 = vadd.f32 %v644, %v2539
      %v2541 = vpop.f32.mrf.mxu0
      %v2542 = vadd.f32 %v644, %v2541
      %2543 = vmatmul.bf16.gmra.mxu0 %v1647
      %v2544 = vpop.f32.mrf.mxu0
      %v2545 = vadd.f32 %v644, %v2544
      %v2546 = vpop.f32.mrf.mxu0
      %v2547 = vadd.f32 %v644, %v2546
      %2548 = vmatmul.bf16.gmra.mxu0 %v1648
      %v2549 = vpop.f32.mrf.mxu0
      %v2550 = vadd.f32 %v644, %v2549
      %v2551 = vpop.f32.mrf.mxu0
      %v2552 = vadd.f32 %v644, %v2551
      %2553 = vmatmul.bf16.gmra.mxu0 %v1649
      %v2554 = vpop.f32.mrf.mxu0
      %v2555 = vadd.f32 %v644, %v2554
      %v2556 = vpop.f32.mrf.mxu0
      %v2557 = vadd.f32 %v644, %v2556
      %2558 = vmatmul.bf16.gmra.mxu0 %v1650
      %v2559 = vpop.f32.mrf.mxu0
      %v2560 = vadd.f32 %v644, %v2559
      %v2561 = vpop.f32.mrf.mxu0
      %v2562 = vadd.f32 %v644, %v2561
      %2563 = vmatmul.bf16.gmra.mxu0 %v1651
      %v2564 = vpop.f32.mrf.mxu0
      %v2565 = vadd.f32 %v644, %v2564
      %v2566 = vpop.f32.mrf.mxu0
      %v2567 = vadd.f32 %v644, %v2566
      %2568 = vmatmul.bf16.gmra.mxu0 %v1652
      %v2569 = vpop.f32.mrf.mxu0
      %v2570 = vadd.f32 %v644, %v2569
      %v2571 = vpop.f32.mrf.mxu0
      %v2572 = vadd.f32 %v644, %v2571
      %2573 = vmatmul.bf16.gmra.mxu0 %v1653
      %v2574 = vpop.f32.mrf.mxu0
      %v2575 = vadd.f32 %v644, %v2574
      %v2576 = vpop.f32.mrf.mxu0
      %v2577 = vadd.f32 %v644, %v2576
      %2578 = vmatmul.bf16.gmra.mxu0 %v1654
      %v2579 = vpop.f32.mrf.mxu0
      %v2580 = vadd.f32 %v644, %v2579
      %v2581 = vpop.f32.mrf.mxu0
      %v2582 = vadd.f32 %v644, %v2581
      %2583 = vmatmul.bf16.gmra.mxu0 %v1655
      %v2584 = vpop.f32.mrf.mxu0
      %v2585 = vadd.f32 %v644, %v2584
      %v2586 = vpop.f32.mrf.mxu0
      %v2587 = vadd.f32 %v644, %v2586
      %2588 = vmatmul.bf16.gmra.mxu0 %v1656
      %v2589 = vpop.f32.mrf.mxu0
      %v2590 = vadd.f32 %v644, %v2589
      %v2591 = vpop.f32.mrf.mxu0
      %v2592 = vadd.f32 %v644, %v2591
      %2593 = vmatmul.bf16.gmra.mxu0 %v1657
      %v2594 = vpop.f32.mrf.mxu0
      %v2595 = vadd.f32 %v644, %v2594
      %v2596 = vpop.f32.mrf.mxu0
      %v2597 = vadd.f32 %v644, %v2596
      %2598 = vmatmul.bf16.gmra.mxu0 %v1658
      %v2599 = vpop.f32.mrf.mxu0
      %v2600 = vadd.f32 %v644, %v2599
      %v2601 = vpop.f32.mrf.mxu0
      %v2602 = vadd.f32 %v644, %v2601
      %2603 = vmatmul.bf16.gmra.mxu0 %v1659
      %v2604 = vpop.f32.mrf.mxu0
      %v2605 = vadd.f32 %v644, %v2604
      %v2606 = vpop.f32.mrf.mxu0
      %v2607 = vadd.f32 %v644, %v2606
      %2608 = vmatmul.bf16.gmra.mxu0 %v1660
      %v2609 = vpop.f32.mrf.mxu0
      %v2610 = vadd.f32 %v644, %v2609
      %v2611 = vpop.f32.mrf.mxu0
      %v2612 = vadd.f32 %v644, %v2611
      %2613 = vmatmul.bf16.gmra.mxu0 %v1661
      %v2614 = vpop.f32.mrf.mxu0
      %v2615 = vadd.f32 %v644, %v2614
      %v2616 = vpop.f32.mrf.mxu0
      %v2617 = vadd.f32 %v644, %v2616
      %2618 = vmatmul.bf16.gmra.mxu0 %v1662
      %v2619 = vpop.f32.mrf.mxu0
      %v2620 = vadd.f32 %v644, %v2619
      %v2621 = vpop.f32.mrf.mxu0
      %v2622 = vadd.f32 %v644, %v2621
      %2623 = vmatmul.bf16.gmra.mxu0 %v1663
      %v2624 = vpop.f32.mrf.mxu0
      %v2625 = vadd.f32 %v644, %v2624
      %v2626 = vpop.f32.mrf.mxu0
      %v2627 = vadd.f32 %v644, %v2626
      %2628 = vmatmul.bf16.gmra.mxu0 %v1664
      %v2629 = vpop.f32.mrf.mxu0
      %v2630 = vadd.f32 %v644, %v2629
      %v2631 = vpop.f32.mrf.mxu0
      %v2632 = vadd.f32 %v644, %v2631
      %2633 = vmatmul.bf16.gmra.mxu0 %v1665
      %v2634 = vpop.f32.mrf.mxu0
      %v2635 = vadd.f32 %v644, %v2634
      %v2636 = vpop.f32.mrf.mxu0
      %v2637 = vadd.f32 %v644, %v2636
      %2638 = vmatmul.bf16.gmra.mxu0 %v1666
      %v2639 = vpop.f32.mrf.mxu0
      %v2640 = vadd.f32 %v644, %v2639
      %v2641 = vpop.f32.mrf.mxu0
      %v2642 = vadd.f32 %v644, %v2641
      %2643 = vmatmul.bf16.gmra.mxu0 %v1667
      %v2644 = vpop.f32.mrf.mxu0
      %v2645 = vadd.f32 %v644, %v2644
      %v2646 = vpop.f32.mrf.mxu0
      %v2647 = vadd.f32 %v644, %v2646
      %2648 = vmatmul.bf16.gmra.mxu0 %v1668
      %v2649 = vpop.f32.mrf.mxu0
      %v2650 = vadd.f32 %v644, %v2649
      %v2651 = vpop.f32.mrf.mxu0
      %v2652 = vadd.f32 %v644, %v2651
      %2653 = vmatmul.bf16.gmra.mxu0 %v1669
      %v2654 = vpop.f32.mrf.mxu0
      %v2655 = vadd.f32 %v644, %v2654
      %v2656 = vpop.f32.mrf.mxu0
      %v2657 = vadd.f32 %v644, %v2656
      %2658 = vmatmul.bf16.gmra.mxu0 %v1670
      %v2659 = vpop.f32.mrf.mxu0
      %v2660 = vadd.f32 %v644, %v2659
      %v2661 = vpop.f32.mrf.mxu0
      %v2662 = vadd.f32 %v644, %v2661
      %2663 = vmatmul.bf16.gmra.mxu0 %v1671
      %v2664 = vpop.f32.mrf.mxu0
      %v2665 = vadd.f32 %v644, %v2664
      %v2666 = vpop.f32.mrf.mxu0
      %v2667 = vadd.f32 %v644, %v2666
      %2668 = vmatmul.bf16.gmra.mxu0 %v1672
      %v2669 = vpop.f32.mrf.mxu0
      %v2670 = vadd.f32 %v644, %v2669
      %v2671 = vpop.f32.mrf.mxu0
      %v2672 = vadd.f32 %v644, %v2671
      %2673 = vmatmul.bf16.gmra.mxu0 %v1673
      %v2674 = vpop.f32.mrf.mxu0
      %v2675 = vadd.f32 %v644, %v2674
      %v2676 = vpop.f32.mrf.mxu0
      %v2677 = vadd.f32 %v644, %v2676
      %2678 = vmatmul.bf16.gmra.mxu0 %v1674
      %v2679 = vpop.f32.mrf.mxu0
      %v2680 = vadd.f32 %v644, %v2679
      %v2681 = vpop.f32.mrf.mxu0
      %v2682 = vadd.f32 %v644, %v2681
      %2683 = vmatmul.bf16.gmra.mxu0 %v1675
      %v2684 = vpop.f32.mrf.mxu0
      %v2685 = vadd.f32 %v644, %v2684
      %v2686 = vpop.f32.mrf.mxu0
      %v2687 = vadd.f32 %v644, %v2686
      %2688 = vmatmul.bf16.gmra.mxu0 %v1676
      %v2689 = vpop.f32.mrf.mxu0
      %v2690 = vadd.f32 %v644, %v2689
      %v2691 = vpop.f32.mrf.mxu0
      %v2692 = vadd.f32 %v644, %v2691
      %2693 = vmatmul.bf16.gmra.mxu0 %v1677
      %v2694 = vpop.f32.mrf.mxu0
      %v2695 = vadd.f32 %v644, %v2694
      %v2696 = vpop.f32.mrf.mxu0
      %v2697 = vadd.f32 %v644, %v2696
      %2698 = vmatmul.bf16.gmra.mxu0 %v1678
      %v2699 = vpop.f32.mrf.mxu0
      %v2700 = vadd.f32 %v644, %v2699
      %v2701 = vpop.f32.mrf.mxu0
      %v2702 = vadd.f32 %v644, %v2701
      %2703 = vmatmul.bf16.gmra.mxu0 %v1679
      %v2704 = vpop.f32.mrf.mxu0
      %v2705 = vadd.f32 %v644, %v2704
      %v2706 = vpop.f32.mrf.mxu0
      %v2707 = vadd.f32 %v644, %v2706
      %2708 = vmatmul.bf16.gmra.mxu0 %v1680
      %v2709 = vpop.f32.mrf.mxu0
      %v2710 = vadd.f32 %v644, %v2709
      %v2711 = vpop.f32.mrf.mxu0
      %v2712 = vadd.f32 %v644, %v2711
      %2713 = vmatmul.bf16.gmra.mxu0 %v1681
      %v2714 = vpop.f32.mrf.mxu0
      %v2715 = vadd.f32 %v644, %v2714
      %v2716 = vpop.f32.mrf.mxu0
      %v2717 = vadd.f32 %v644, %v2716
      %2718 = vmatmul.bf16.gmra.mxu0 %v1682
      %v2719 = vpop.f32.mrf.mxu0
      %v2720 = vadd.f32 %v644, %v2719
      %v2721 = vpop.f32.mrf.mxu0
      %v2722 = vadd.f32 %v644, %v2721
      %2723 = vmatmul.bf16.gmra.mxu0 %v1683
      %v2724 = vpop.f32.mrf.mxu0
      %v2725 = vadd.f32 %v644, %v2724
      %v2726 = vpop.f32.mrf.mxu0
      %v2727 = vadd.f32 %v644, %v2726
      %2728 = vmatmul.bf16.gmra.mxu0 %v1684
      %v2729 = vpop.f32.mrf.mxu0
      %v2730 = vadd.f32 %v644, %v2729
      %v2731 = vpop.f32.mrf.mxu0
      %v2732 = vadd.f32 %v644, %v2731
      %2733 = vmatmul.bf16.gmra.mxu0 %v1685
      %v2734 = vpop.f32.mrf.mxu0
      %v2735 = vadd.f32 %v644, %v2734
      %v2736 = vpop.f32.mrf.mxu0
      %v2737 = vadd.f32 %v644, %v2736
      %2738 = vmatmul.bf16.gmra.mxu0 %v1686
      %v2739 = vpop.f32.mrf.mxu0
      %v2740 = vadd.f32 %v644, %v2739
      %v2741 = vpop.f32.mrf.mxu0
      %v2742 = vadd.f32 %v644, %v2741
      %2743 = vmatmul.bf16.gmra.mxu0 %v1687
      %v2744 = vpop.f32.mrf.mxu0
      %v2745 = vadd.f32 %v644, %v2744
      %v2746 = vpop.f32.mrf.mxu0
      %v2747 = vadd.f32 %v644, %v2746
      %2748 = vmatmul.bf16.gmra.mxu0 %v1688
      %v2749 = vpop.f32.mrf.mxu0
      %v2750 = vadd.f32 %v644, %v2749
      %v2751 = vpop.f32.mrf.mxu0
      %v2752 = vadd.f32 %v644, %v2751
      %2753 = vmatmul.bf16.gmra.mxu0 %v1689
      %v2754 = vpop.f32.mrf.mxu0
      %v2755 = vadd.f32 %v644, %v2754
      %v2756 = vpop.f32.mrf.mxu0
      %v2757 = vadd.f32 %v644, %v2756
      %2758 = vmatmul.bf16.gmra.mxu0 %v1690
      %v2759 = vpop.f32.mrf.mxu0
      %v2760 = vadd.f32 %v644, %v2759
      %v2761 = vpop.f32.mrf.mxu0
      %v2762 = vadd.f32 %v644, %v2761
      %2763 = vmatmul.bf16.gmra.mxu0 %v1691
      %v2764 = vpop.f32.mrf.mxu0
      %v2765 = vadd.f32 %v644, %v2764
      %v2766 = vpop.f32.mrf.mxu0
      %v2767 = vadd.f32 %v644, %v2766
      %2768 = vmatmul.bf16.gmra.mxu0 %v1692
      %v2769 = vpop.f32.mrf.mxu0
      %v2770 = vadd.f32 %v644, %v2769
      %v2771 = vpop.f32.mrf.mxu0
      %v2772 = vadd.f32 %v644, %v2771
      %2773 = vmatmul.bf16.gmra.mxu0 %v1693
      %v2774 = vpop.f32.mrf.mxu0
      %v2775 = vadd.f32 %v644, %v2774
      %v2776 = vpop.f32.mrf.mxu0
      %v2777 = vadd.f32 %v644, %v2776
      %2778 = vmatmul.bf16.gmra.mxu0 %v1694
      %v2779 = vpop.f32.mrf.mxu0
      %v2780 = vadd.f32 %v644, %v2779
      %v2781 = vpop.f32.mrf.mxu0
      %v2782 = vadd.f32 %v644, %v2781
      %2783 = vmatmul.bf16.gmra.mxu0 %v1695
      %v2784 = vpop.f32.mrf.mxu0
      %v2785 = vadd.f32 %v644, %v2784
      %v2786 = vpop.f32.mrf.mxu0
      %v2787 = vadd.f32 %v644, %v2786
      %2788 = vmatmul.bf16.gmra.mxu0 %v1696
      %v2789 = vpop.f32.mrf.mxu0
      %v2790 = vadd.f32 %v644, %v2789
      %v2791 = vpop.f32.mrf.mxu0
      %v2792 = vadd.f32 %v644, %v2791
      %2793 = vmatmul.bf16.gmra.mxu0 %v1697
      %v2794 = vpop.f32.mrf.mxu0
      %v2795 = vadd.f32 %v644, %v2794
      %v2796 = vpop.f32.mrf.mxu0
      %v2797 = vadd.f32 %v644, %v2796
      %2798 = vmatmul.bf16.gmra.mxu0 %v1698
      %v2799 = vpop.f32.mrf.mxu0
      %v2800 = vadd.f32 %v644, %v2799
      %v2801 = vpop.f32.mrf.mxu0
      %v2802 = vadd.f32 %v644, %v2801
      %2803 = vmatmul.bf16.gmra.mxu0 %v1699
      %v2804 = vpop.f32.mrf.mxu0
      %v2805 = vadd.f32 %v644, %v2804
      %v2806 = vpop.f32.mrf.mxu0
      %v2807 = vadd.f32 %v644, %v2806
      %2808 = vmatmul.bf16.gmra.mxu0 %v1700
      %v2809 = vpop.f32.mrf.mxu0
      %v2810 = vadd.f32 %v644, %v2809
      %v2811 = vpop.f32.mrf.mxu0
      %v2812 = vadd.f32 %v644, %v2811
      %2813 = vmatmul.bf16.gmra.mxu0 %v1701
      %v2814 = vpop.f32.mrf.mxu0
      %v2815 = vadd.f32 %v644, %v2814
      %v2816 = vpop.f32.mrf.mxu0
      %v2817 = vadd.f32 %v644, %v2816
      %2818 = vmatmul.bf16.gmra.mxu0 %v1702
      %v2819 = vpop.f32.mrf.mxu0
      %v2820 = vadd.f32 %v644, %v2819
      %v2821 = vpop.f32.mrf.mxu0
      %v2822 = vadd.f32 %v644, %v2821
      %2823 = vmatmul.bf16.gmra.mxu0 %v1703
      %v2824 = vpop.f32.mrf.mxu0
      %v2825 = vadd.f32 %v644, %v2824
      %v2826 = vpop.f32.mrf.mxu0
      %v2827 = vadd.f32 %v644, %v2826
      %2828 = vmatmul.bf16.gmra.mxu0 %v1704
      %v2829 = vpop.f32.mrf.mxu0
      %v2830 = vadd.f32 %v644, %v2829
      %v2831 = vpop.f32.mrf.mxu0
      %v2832 = vadd.f32 %v644, %v2831
      %2833 = vmatmul.bf16.gmra.mxu0 %v1705
      %v2834 = vpop.f32.mrf.mxu0
      %v2835 = vadd.f32 %v644, %v2834
      %v2836 = vpop.f32.mrf.mxu0
      %v2837 = vadd.f32 %v644, %v2836
      %2838 = vmatmul.bf16.gmra.mxu0 %v1706
      %v2839 = vpop.f32.mrf.mxu0
      %v2840 = vadd.f32 %v644, %v2839
      %v2841 = vpop.f32.mrf.mxu0
      %v2842 = vadd.f32 %v644, %v2841
      %2843 = vmatmul.bf16.gmra.mxu0 %v1707
      %v2844 = vpop.f32.mrf.mxu0
      %v2845 = vadd.f32 %v644, %v2844
      %v2846 = vpop.f32.mrf.mxu0
      %v2847 = vadd.f32 %v644, %v2846
      %2848 = vmatmul.bf16.gmra.mxu0 %v1708
      %v2849 = vpop.f32.mrf.mxu0
      %v2850 = vadd.f32 %v644, %v2849
      %v2851 = vpop.f32.mrf.mxu0
      %v2852 = vadd.f32 %v644, %v2851
      %2853 = vmatmul.bf16.gmra.mxu0 %v1709
      %v2854 = vpop.f32.mrf.mxu0
      %v2855 = vadd.f32 %v644, %v2854
      %v2856 = vpop.f32.mrf.mxu0
      %v2857 = vadd.f32 %v644, %v2856
      %2858 = vmatmul.bf16.gmra.mxu0 %v1710
      %v2859 = vpop.f32.mrf.mxu0
      %v2860 = vadd.f32 %v644, %v2859
      %v2861 = vpop.f32.mrf.mxu0
      %v2862 = vadd.f32 %v644, %v2861
      %2863 = vmatmul.bf16.gmra.mxu0 %v1711
      %v2864 = vpop.f32.mrf.mxu0
      %v2865 = vadd.f32 %v644, %v2864
      %v2866 = vpop.f32.mrf.mxu0
      %v2867 = vadd.f32 %v644, %v2866
      %2868 = vmatmul.bf16.gmra.mxu0 %v1712
      %v2869 = vpop.f32.mrf.mxu0
      %v2870 = vadd.f32 %v644, %v2869
      %v2871 = vpop.f32.mrf.mxu0
      %v2872 = vadd.f32 %v644, %v2871
      %2873 = vmatmul.bf16.gmra.mxu0 %v1713
      %v2874 = vpop.f32.mrf.mxu0
      %v2875 = vadd.f32 %v644, %v2874
      %v2876 = vpop.f32.mrf.mxu0
      %v2877 = vadd.f32 %v644, %v2876
      %2878 = vmatmul.bf16.gmra.mxu0 %v1714
      %v2879 = vpop.f32.mrf.mxu0
      %v2880 = vadd.f32 %v644, %v2879
      %v2881 = vpop.f32.mrf.mxu0
      %v2882 = vadd.f32 %v644, %v2881
      %2883 = vmatmul.bf16.gmra.mxu0 %v1715
      %v2884 = vpop.f32.mrf.mxu0
      %v2885 = vadd.f32 %v644, %v2884
      %v2886 = vpop.f32.mrf.mxu0
      %v2887 = vadd.f32 %v644, %v2886
      %2888 = vmatmul.bf16.gmra.mxu0 %v1716
      %v2889 = vpop.f32.mrf.mxu0
      %v2890 = vadd.f32 %v644, %v2889
      %v2891 = vpop.f32.mrf.mxu0
      %v2892 = vadd.f32 %v644, %v2891
      %2893 = vmatmul.bf16.gmra.mxu0 %v1717
      %v2894 = vpop.f32.mrf.mxu0
      %v2895 = vadd.f32 %v644, %v2894
      %v2896 = vpop.f32.mrf.mxu0
      %v2897 = vadd.f32 %v644, %v2896
      %2898 = vmatmul.bf16.gmra.mxu0 %v1718
      %v2899 = vpop.f32.mrf.mxu0
      %v2900 = vadd.f32 %v644, %v2899
      %v2901 = vpop.f32.mrf.mxu0
      %v2902 = vadd.f32 %v644, %v2901
      %2903 = vmatmul.bf16.gmra.mxu0 %v1719
      %v2904 = vpop.f32.mrf.mxu0
      %v2905 = vadd.f32 %v644, %v2904
      %v2906 = vpop.f32.mrf.mxu0
      %v2907 = vadd.f32 %v644, %v2906
      %2908 = vmatmul.bf16.gmra.mxu0 %v1720
      %v2909 = vpop.f32.mrf.mxu0
      %v2910 = vadd.f32 %v644, %v2909
      %v2911 = vpop.f32.mrf.mxu0
      %v2912 = vadd.f32 %v644, %v2911
      %2913 = vmatmul.bf16.gmra.mxu0 %v1721
      %v2914 = vpop.f32.mrf.mxu0
      %v2915 = vadd.f32 %v644, %v2914
      %v2916 = vpop.f32.mrf.mxu0
      %v2917 = vadd.f32 %v644, %v2916
      %2918 = vmatmul.bf16.gmra.mxu0 %v1722
      %v2919 = vpop.f32.mrf.mxu0
      %v2920 = vadd.f32 %v644, %v2919
      %v2921 = vpop.f32.mrf.mxu0
      %v2922 = vadd.f32 %v644, %v2921
      %2923 = vmatmul.bf16.gmra.mxu0 %v1723
      %v2924 = vpop.f32.mrf.mxu0
      %v2925 = vadd.f32 %v644, %v2924
      %v2926 = vpop.f32.mrf.mxu0
      %v2927 = vadd.f32 %v644, %v2926
      %2928 = vmatmul.bf16.gmra.mxu0 %v1724
      %v2929 = vpop.f32.mrf.mxu0
      %v2930 = vadd.f32 %v644, %v2929
      %v2931 = vpop.f32.mrf.mxu0
      %v2932 = vadd.f32 %v644, %v2931
      %2933 = vmatmul.bf16.gmra.mxu0 %v1725
      %v2934 = vpop.f32.mrf.mxu0
      %v2935 = vadd.f32 %v644, %v2934
      %v2936 = vpop.f32.mrf.mxu0
      %v2937 = vadd.f32 %v644, %v2936
      %2938 = vmatmul.bf16.gmra.mxu0 %v1726
      %v2939 = vpop.f32.mrf.mxu0
      %v2940 = vadd.f32 %v644, %v2939
      %v2941 = vpop.f32.mrf.mxu0
      %v2942 = vadd.f32 %v644, %v2941
      %2943 = vmatmul.bf16.gmra.mxu0 %v1727
      %v2944 = vpop.f32.mrf.mxu0
      %v2945 = vadd.f32 %v644, %v2944
      %v2946 = vpop.f32.mrf.mxu0
      %v2947 = vadd.f32 %v644, %v2946
      %2948 = vmatmul.bf16.gmra.mxu0 %v1728
      %v2949 = vpop.f32.mrf.mxu0
      %v2950 = vadd.f32 %v644, %v2949
      %v2951 = vpop.f32.mrf.mxu0
      %v2952 = vadd.f32 %v644, %v2951
      %2953 = vmatmul.bf16.gmra.mxu0 %v1729
      %v2954 = vpop.f32.mrf.mxu0
      %v2955 = vadd.f32 %v644, %v2954
      %v2956 = vpop.f32.mrf.mxu0
      %v2957 = vadd.f32 %v644, %v2956
      %2958 = vmatmul.bf16.gmra.mxu0 %v1730
      %v2959 = vpop.f32.mrf.mxu0
      %v2960 = vadd.f32 %v644, %v2959
      %v2961 = vpop.f32.mrf.mxu0
      %v2962 = vadd.f32 %v644, %v2961
      %2963 = vmatmul.bf16.gmra.mxu0 %v1731
      %v2964 = vpop.f32.mrf.mxu0
      %v2965 = vadd.f32 %v644, %v2964
      %v2966 = vpop.f32.mrf.mxu0
      %v2967 = vadd.f32 %v644, %v2966
      %2968 = vmatmul.bf16.gmra.mxu0 %v1732
      %v2969 = vpop.f32.mrf.mxu0
      %v2970 = vadd.f32 %v644, %v2969
      %v2971 = vpop.f32.mrf.mxu0
      %v2972 = vadd.f32 %v644, %v2971
      %2973 = vmatmul.bf16.gmra.mxu0 %v1733
      %v2974 = vpop.f32.mrf.mxu0
      %v2975 = vadd.f32 %v644, %v2974
      %v2976 = vpop.f32.mrf.mxu0
      %v2977 = vadd.f32 %v644, %v2976
      %2978 = vmatmul.bf16.gmra.mxu0 %v1734
      %v2979 = vpop.f32.mrf.mxu0
      %v2980 = vadd.f32 %v644, %v2979
      %v2981 = vpop.f32.mrf.mxu0
      %v2982 = vadd.f32 %v644, %v2981
      %2983 = vmatmul.bf16.gmra.mxu0 %v1735
      %v2984 = vpop.f32.mrf.mxu0
      %v2985 = vadd.f32 %v644, %v2984
      %v2986 = vpop.f32.mrf.mxu0
      %v2987 = vadd.f32 %v644, %v2986
      %2988 = vmatmul.bf16.gmra.mxu0 %v1736
      %v2989 = vpop.f32.mrf.mxu0
      %v2990 = vadd.f32 %v644, %v2989
      %v2991 = vpop.f32.mrf.mxu0
      %v2992 = vadd.f32 %v644, %v2991
      %2993 = vmatmul.bf16.gmra.mxu0 %v1737
      %v2994 = vpop.f32.mrf.mxu0
      %v2995 = vadd.f32 %v644, %v2994
      %v2996 = vpop.f32.mrf.mxu0
      %v2997 = vadd.f32 %v644, %v2996
      %2998 = vmatmul.bf16.gmra.mxu0 %v1738
      %v2999 = vpop.f32.mrf.mxu0
      %v3000 = vadd.f32 %v644, %v2999
      %v3001 = vpop.f32.mrf.mxu0
      %v3002 = vadd.f32 %v644, %v3001
      %3003 = vmatmul.bf16.gmra.mxu0 %v1739
      %v3004 = vpop.f32.mrf.mxu0
      %v3005 = vadd.f32 %v644, %v3004
      %v3006 = vpop.f32.mrf.mxu0
      %v3007 = vadd.f32 %v644, %v3006
      %3008 = vmatmul.bf16.gmra.mxu0 %v1740
      %v3009 = vpop.f32.mrf.mxu0
      %v3010 = vadd.f32 %v644, %v3009
      %v3011 = vpop.f32.mrf.mxu0
      %v3012 = vadd.f32 %v644, %v3011
      %3013 = vmatmul.bf16.gmra.mxu0 %v1741
      %v3014 = vpop.f32.mrf.mxu0
      %v3015 = vadd.f32 %v644, %v3014
      %v3016 = vpop.f32.mrf.mxu0
      %v3017 = vadd.f32 %v644, %v3016
      %3018 = vmatmul.bf16.gmra.mxu0 %v1742
      %v3019 = vpop.f32.mrf.mxu0
      %v3020 = vadd.f32 %v644, %v3019
      %v3021 = vpop.f32.mrf.mxu0
      %v3022 = vadd.f32 %v644, %v3021
      %3023 = vmatmul.bf16.gmra.mxu0 %v1743
      %v3024 = vpop.f32.mrf.mxu0
      %v3025 = vadd.f32 %v644, %v3024
      %v3026 = vpop.f32.mrf.mxu0
      %v3027 = vadd.f32 %v644, %v3026
      %3028 = vmatmul.bf16.gmra.mxu0 %v1744
      %v3029 = vpop.f32.mrf.mxu0
      %v3030 = vadd.f32 %v644, %v3029
      %v3031 = vpop.f32.mrf.mxu0
      %v3032 = vadd.f32 %v644, %v3031
      %3033 = vmatmul.bf16.gmra.mxu0 %v1745
      %v3034 = vpop.f32.mrf.mxu0
      %v3035 = vadd.f32 %v644, %v3034
      %v3036 = vpop.f32.mrf.mxu0
      %v3037 = vadd.f32 %v644, %v3036
      %3038 = vmatmul.bf16.gmra.mxu0 %v1746
      %v3039 = vpop.f32.mrf.mxu0
      %v3040 = vadd.f32 %v644, %v3039
      %v3041 = vpop.f32.mrf.mxu0
      %v3042 = vadd.f32 %v644, %v3041
      %3043 = vmatmul.bf16.gmra.mxu0 %v1747
      %v3044 = vpop.f32.mrf.mxu0
      %v3045 = vadd.f32 %v644, %v3044
      %v3046 = vpop.f32.mrf.mxu0
      %v3047 = vadd.f32 %v644, %v3046
      %3048 = vmatmul.bf16.gmra.mxu0 %v1748
      %v3049 = vpop.f32.mrf.mxu0
      %v3050 = vadd.f32 %v644, %v3049
      %v3051 = vpop.f32.mrf.mxu0
      %v3052 = vadd.f32 %v644, %v3051
      %3053 = vmatmul.bf16.gmra.mxu0 %v1749
      %v3054 = vpop.f32.mrf.mxu0
      %v3055 = vadd.f32 %v644, %v3054
      %v3056 = vpop.f32.mrf.mxu0
      %v3057 = vadd.f32 %v644, %v3056
      %3058 = vmatmul.bf16.gmra.mxu0 %v1750
      %v3059 = vpop.f32.mrf.mxu0
      %v3060 = vadd.f32 %v644, %v3059
      %v3061 = vpop.f32.mrf.mxu0
      %v3062 = vadd.f32 %v644, %v3061
      %3063 = vmatmul.bf16.gmra.mxu0 %v1751
      %v3064 = vpop.f32.mrf.mxu0
      %v3065 = vadd.f32 %v644, %v3064
      %v3066 = vpop.f32.mrf.mxu0
      %v3067 = vadd.f32 %v644, %v3066
      %3068 = vmatmul.bf16.gmra.mxu0 %v1752
      %v3069 = vpop.f32.mrf.mxu0
      %v3070 = vadd.f32 %v644, %v3069
      %v3071 = vpop.f32.mrf.mxu0
      %v3072 = vadd.f32 %v644, %v3071
      %3073 = vmatmul.bf16.gmra.mxu0 %v1753
      %v3074 = vpop.f32.mrf.mxu0
      %v3075 = vadd.f32 %v644, %v3074
      %v3076 = vpop.f32.mrf.mxu0
      %v3077 = vadd.f32 %v644, %v3076
      %3078 = vmatmul.bf16.gmra.mxu0 %v1754
      %v3079 = vpop.f32.mrf.mxu0
      %v3080 = vadd.f32 %v644, %v3079
      %v3081 = vpop.f32.mrf.mxu0
      %v3082 = vadd.f32 %v644, %v3081
      %3083 = vmatmul.bf16.gmra.mxu0 %v1755
      %v3084 = vpop.f32.mrf.mxu0
      %v3085 = vadd.f32 %v644, %v3084
      %v3086 = vpop.f32.mrf.mxu0
      %v3087 = vadd.f32 %v644, %v3086
      %3088 = vmatmul.bf16.gmra.mxu0 %v1756
      %v3089 = vpop.f32.mrf.mxu0
      %v3090 = vadd.f32 %v644, %v3089
      %v3091 = vpop.f32.mrf.mxu0
      %v3092 = vadd.f32 %v644, %v3091
      %3093 = vmatmul.bf16.gmra.mxu0 %v1757
      %v3094 = vpop.f32.mrf.mxu0
      %v3095 = vadd.f32 %v644, %v3094
      %v3096 = vpop.f32.mrf.mxu0
      %v3097 = vadd.f32 %v644, %v3096
      %3098 = vmatmul.bf16.gmra.mxu0 %v1758
      %v3099 = vpop.f32.mrf.mxu0
      %v3100 = vadd.f32 %v644, %v3099
      %v3101 = vpop.f32.mrf.mxu0
      %v3102 = vadd.f32 %v644, %v3101
      %3103 = vmatmul.bf16.gmra.mxu0 %v1759
      %v3104 = vpop.f32.mrf.mxu0
      %v3105 = vadd.f32 %v644, %v3104
      %v3106 = vpop.f32.mrf.mxu0
      %v3107 = vadd.f32 %v644, %v3106
      %3108 = vmatmul.bf16.gmra.mxu0 %v1760
      %v3109 = vpop.f32.mrf.mxu0
      %v3110 = vadd.f32 %v644, %v3109
      %v3111 = vpop.f32.mrf.mxu0
      %v3112 = vadd.f32 %v644, %v3111
      %3113 = vmatmul.bf16.gmra.mxu0 %v1761
      %v3114 = vpop.f32.mrf.mxu0
      %v3115 = vadd.f32 %v644, %v3114
      %v3116 = vpop.f32.mrf.mxu0
      %v3117 = vadd.f32 %v644, %v3116
      %3118 = vmatmul.bf16.gmra.mxu0 %v1762
      %v3119 = vpop.f32.mrf.mxu0
      %v3120 = vadd.f32 %v644, %v3119
      %v3121 = vpop.f32.mrf.mxu0
      %v3122 = vadd.f32 %v644, %v3121
      %3123 = vmatmul.bf16.gmra.mxu0 %v1763
      %v3124 = vpop.f32.mrf.mxu0
      %v3125 = vadd.f32 %v644, %v3124
      %v3126 = vpop.f32.mrf.mxu0
      %v3127 = vadd.f32 %v644, %v3126
      %3128 = vmatmul.bf16.gmra.mxu0 %v1764
      %v3129 = vpop.f32.mrf.mxu0
      %v3130 = vadd.f32 %v644, %v3129
      %v3131 = vpop.f32.mrf.mxu0
      %v3132 = vadd.f32 %v644, %v3131
      %3133 = vmatmul.bf16.gmra.mxu0 %v1765
      %v3134 = vpop.f32.mrf.mxu0
      %v3135 = vadd.f32 %v644, %v3134
      %v3136 = vpop.f32.mrf.mxu0
      %v3137 = vadd.f32 %v644, %v3136
      %3138 = vmatmul.bf16.gmra.mxu0 %v1766
      %v3139 = vpop.f32.mrf.mxu0
      %v3140 = vadd.f32 %v644, %v3139
      %v3141 = vpop.f32.mrf.mxu0
      %v3142 = vadd.f32 %v644, %v3141
      %3143 = vmatmul.bf16.gmra.mxu0 %v1767
      %v3144 = vpop.f32.mrf.mxu0
      %v3145 = vadd.f32 %v644, %v3144
      %v3146 = vpop.f32.mrf.mxu0
      %v3147 = vadd.f32 %v644, %v3146
      %3148 = vmatmul.bf16.gmra.mxu0 %v1768
      %v3149 = vpop.f32.mrf.mxu0
      %v3150 = vadd.f32 %v644, %v3149
      %v3151 = vpop.f32.mrf.mxu0
      %v3152 = vadd.f32 %v644, %v3151
      %3153 = vmatmul.bf16.gmra.mxu0 %v1769
      %v3154 = vpop.f32.mrf.mxu0
      %v3155 = vadd.f32 %v644, %v3154
      %v3156 = vpop.f32.mrf.mxu0
      %v3157 = vadd.f32 %v644, %v3156
      %3158 = vmatmul.bf16.gmra.mxu0 %v1770
      %v3159 = vpop.f32.mrf.mxu0
      %v3160 = vadd.f32 %v644, %v3159
      %v3161 = vpop.f32.mrf.mxu0
      %v3162 = vadd.f32 %v644, %v3161
      %3163 = vmatmul.bf16.gmra.mxu0 %v1771
      %v3164 = vpop.f32.mrf.mxu0
      %v3165 = vadd.f32 %v644, %v3164
      %v3166 = vpop.f32.mrf.mxu0
      %v3167 = vadd.f32 %v644, %v3166
      %3168 = vmatmul.bf16.gmra.mxu0 %v1772
      %v3169 = vpop.f32.mrf.mxu0
      %v3170 = vadd.f32 %v644, %v3169
      %v3171 = vpop.f32.mrf.mxu0
      %v3172 = vadd.f32 %v644, %v3171
      %3173 = vmatmul.bf16.gmra.mxu0 %v1773
      %v3174 = vpop.f32.mrf.mxu0
      %v3175 = vadd.f32 %v644, %v3174
      %v3176 = vpop.f32.mrf.mxu0
      %v3177 = vadd.f32 %v644, %v3176
      %3178 = vmatmul.bf16.gmra.mxu0 %v1774
      %v3179 = vpop.f32.mrf.mxu0
      %v3180 = vadd.f32 %v644, %v3179
      %v3181 = vpop.f32.mrf.mxu0
      %v3182 = vadd.f32 %v644, %v3181
      %3183 = vmatmul.bf16.gmra.mxu0 %v1775
      %v3184 = vpop.f32.mrf.mxu0
      %v3185 = vadd.f32 %v644, %v3184
      %v3186 = vpop.f32.mrf.mxu0
      %v3187 = vadd.f32 %v644, %v3186
      %3188 = vdwg.mxu0
      %v3189 = vmax.f32 %v2060, 0.0
      %v3190 = vmax.f32 %v2062, 0.0
      %v3191 = vmax.f32 %v2065, 0.0
      %v3192 = vmax.f32 %v2067, 0.0
      %v3193 = vmax.f32 %v2070, 0.0
      %v3194 = vmax.f32 %v2072, 0.0
      %v3195 = vmax.f32 %v2075, 0.0
      %v3196 = vmax.f32 %v2077, 0.0
      %v3197 = vmax.f32 %v2080, 0.0
      %v3198 = vmax.f32 %v2082, 0.0
      %v3199 = vmax.f32 %v2085, 0.0
      %v3200 = vmax.f32 %v2087, 0.0
      %v3201 = vmax.f32 %v2090, 0.0
      %v3202 = vmax.f32 %v2092, 0.0
      %v3203 = vmax.f32 %v2095, 0.0
      %v3204 = vmax.f32 %v2097, 0.0
      %v3205 = vmax.f32 %v2100, 0.0
      %v3206 = vmax.f32 %v2102, 0.0
      %v3207 = vmax.f32 %v2105, 0.0
      %v3208 = vmax.f32 %v2107, 0.0
      %v3209 = vmax.f32 %v2110, 0.0
      %v3210 = vmax.f32 %v2112, 0.0
      %v3211 = vmax.f32 %v2115, 0.0
      %v3212 = vmax.f32 %v2117, 0.0
      %v3213 = vmax.f32 %v2120, 0.0
      %v3214 = vmax.f32 %v2122, 0.0
      %v3215 = vmax.f32 %v2125, 0.0
      %v3216 = vmax.f32 %v2127, 0.0
      %v3217 = vmax.f32 %v2130, 0.0
      %v3218 = vmax.f32 %v2132, 0.0
      %v3219 = vmax.f32 %v2135, 0.0
      %v3220 = vmax.f32 %v2137, 0.0
      %v3221 = vmax.f32 %v2140, 0.0
      %v3222 = vmax.f32 %v2142, 0.0
      %v3223 = vmax.f32 %v2145, 0.0
      %v3224 = vmax.f32 %v2147, 0.0
      %v3225 = vmax.f32 %v2150, 0.0
      %v3226 = vmax.f32 %v2152, 0.0
      %v3227 = vmax.f32 %v2155, 0.0
      %v3228 = vmax.f32 %v2157, 0.0
      %v3229 = vmax.f32 %v2160, 0.0
      %v3230 = vmax.f32 %v2162, 0.0
      %v3231 = vmax.f32 %v2165, 0.0
      %v3232 = vmax.f32 %v2167, 0.0
      %v3233 = vmax.f32 %v2170, 0.0
      %v3234 = vmax.f32 %v2172, 0.0
      %v3235 = vmax.f32 %v2175, 0.0
      %v3236 = vmax.f32 %v2177, 0.0
      %v3237 = vmax.f32 %v2180, 0.0
      %v3238 = vmax.f32 %v2182, 0.0
      %v3239 = vmax.f32 %v2185, 0.0
      %v3240 = vmax.f32 %v2187, 0.0
      %v3241 = vmax.f32 %v2190, 0.0
      %v3242 = vmax.f32 %v2192, 0.0
      %v3243 = vmax.f32 %v2195, 0.0
      %v3244 = vmax.f32 %v2197, 0.0
      %v3245 = vmax.f32 %v2200, 0.0
      %v3246 = vmax.f32 %v2202, 0.0
      %v3247 = vmax.f32 %v2205, 0.0
      %v3248 = vmax.f32 %v2207, 0.0
      %v3249 = vmax.f32 %v2210, 0.0
      %v3250 = vmax.f32 %v2212, 0.0
      %v3251 = vmax.f32 %v2215, 0.0
      %v3252 = vmax.f32 %v2217, 0.0
      %v3253 = vmax.f32 %v2220, 0.0
      %v3254 = vmax.f32 %v2222, 0.0
      %v3255 = vmax.f32 %v2225, 0.0
      %v3256 = vmax.f32 %v2227, 0.0
      %v3257 = vmax.f32 %v2230, 0.0
      %v3258 = vmax.f32 %v2232, 0.0
      %v3259 = vmax.f32 %v2235, 0.0
      %v3260 = vmax.f32 %v2237, 0.0
      %v3261 = vmax.f32 %v2240, 0.0
      %v3262 = vmax.f32 %v2242, 0.0
      %v3263 = vmax.f32 %v2245, 0.0
      %v3264 = vmax.f32 %v2247, 0.0
      %v3265 = vmax.f32 %v2250, 0.0
      %v3266 = vmax.f32 %v2252, 0.0
      %v3267 = vmax.f32 %v2255, 0.0
      %v3268 = vmax.f32 %v2257, 0.0
      %v3269 = vmax.f32 %v2260, 0.0
      %v3270 = vmax.f32 %v2262, 0.0
      %v3271 = vmax.f32 %v2265, 0.0
      %v3272 = vmax.f32 %v2267, 0.0
      %v3273 = vmax.f32 %v2270, 0.0
      %v3274 = vmax.f32 %v2272, 0.0
      %v3275 = vmax.f32 %v2275, 0.0
      %v3276 = vmax.f32 %v2277, 0.0
      %v3277 = vmax.f32 %v2280, 0.0
      %v3278 = vmax.f32 %v2282, 0.0
      %v3279 = vmax.f32 %v2285, 0.0
      %v3280 = vmax.f32 %v2287, 0.0
      %v3281 = vmax.f32 %v2290, 0.0
      %v3282 = vmax.f32 %v2292, 0.0
      %v3283 = vmax.f32 %v2295, 0.0
      %v3284 = vmax.f32 %v2297, 0.0
      %v3285 = vmax.f32 %v2300, 0.0
      %v3286 = vmax.f32 %v2302, 0.0
      %v3287 = vmax.f32 %v2305, 0.0
      %v3288 = vmax.f32 %v2307, 0.0
      %v3289 = vmax.f32 %v2310, 0.0
      %v3290 = vmax.f32 %v2312, 0.0
      %v3291 = vmax.f32 %v2315, 0.0
      %v3292 = vmax.f32 %v2317, 0.0
      %v3293 = vmax.f32 %v2320, 0.0
      %v3294 = vmax.f32 %v2322, 0.0
      %v3295 = vmax.f32 %v2325, 0.0
      %v3296 = vmax.f32 %v2327, 0.0
      %v3297 = vmax.f32 %v2330, 0.0
      %v3298 = vmax.f32 %v2332, 0.0
      %v3299 = vmax.f32 %v2335, 0.0
      %v3300 = vmax.f32 %v2337, 0.0
      %v3301 = vmax.f32 %v2340, 0.0
      %v3302 = vmax.f32 %v2342, 0.0
      %v3303 = vmax.f32 %v2345, 0.0
      %v3304 = vmax.f32 %v2347, 0.0
      %v3305 = vmax.f32 %v2350, 0.0
      %v3306 = vmax.f32 %v2352, 0.0
      %v3307 = vmax.f32 %v2355, 0.0
      %v3308 = vmax.f32 %v2357, 0.0
      %v3309 = vmax.f32 %v2360, 0.0
      %v3310 = vmax.f32 %v2362, 0.0
      %v3311 = vmax.f32 %v2365, 0.0
      %v3312 = vmax.f32 %v2367, 0.0
      %v3313 = vmax.f32 %v2370, 0.0
      %v3314 = vmax.f32 %v2372, 0.0
      %v3315 = vmax.f32 %v2375, 0.0
      %v3316 = vmax.f32 %v2377, 0.0
      %v3317 = vmax.f32 %v2380, 0.0
      %v3318 = vmax.f32 %v2382, 0.0
      %v3319 = vmax.f32 %v2385, 0.0
      %v3320 = vmax.f32 %v2387, 0.0
      %v3321 = vmax.f32 %v2390, 0.0
      %v3322 = vmax.f32 %v2392, 0.0
      %v3323 = vmax.f32 %v2395, 0.0
      %v3324 = vmax.f32 %v2397, 0.0
      %v3325 = vmax.f32 %v2400, 0.0
      %v3326 = vmax.f32 %v2402, 0.0
      %v3327 = vmax.f32 %v2405, 0.0
      %v3328 = vmax.f32 %v2407, 0.0
      %v3329 = vmax.f32 %v2410, 0.0
      %v3330 = vmax.f32 %v2412, 0.0
      %v3331 = vmax.f32 %v2415, 0.0
      %v3332 = vmax.f32 %v2417, 0.0
      %v3333 = vmax.f32 %v2420, 0.0
      %v3334 = vmax.f32 %v2422, 0.0
      %v3335 = vmax.f32 %v2425, 0.0
      %v3336 = vmax.f32 %v2427, 0.0
      %v3337 = vmax.f32 %v2430, 0.0
      %v3338 = vmax.f32 %v2432, 0.0
      %v3339 = vmax.f32 %v2435, 0.0
      %v3340 = vmax.f32 %v2437, 0.0
      %v3341 = vmax.f32 %v2440, 0.0
      %v3342 = vmax.f32 %v2442, 0.0
      %v3343 = vmax.f32 %v2445, 0.0
      %v3344 = vmax.f32 %v2447, 0.0
      %v3345 = vmax.f32 %v2450, 0.0
      %v3346 = vmax.f32 %v2452, 0.0
      %v3347 = vmax.f32 %v2455, 0.0
      %v3348 = vmax.f32 %v2457, 0.0
      %v3349 = vmax.f32 %v2460, 0.0
      %v3350 = vmax.f32 %v2462, 0.0
      %v3351 = vmax.f32 %v2465, 0.0
      %v3352 = vmax.f32 %v2467, 0.0
      %v3353 = vmax.f32 %v2470, 0.0
      %v3354 = vmax.f32 %v2472, 0.0
      %v3355 = vmax.f32 %v2475, 0.0
      %v3356 = vmax.f32 %v2477, 0.0
      %v3357 = vmax.f32 %v2480, 0.0
      %v3358 = vmax.f32 %v2482, 0.0
      %v3359 = vmax.f32 %v2485, 0.0
      %v3360 = vmax.f32 %v2487, 0.0
      %v3361 = vmax.f32 %v2490, 0.0
      %v3362 = vmax.f32 %v2492, 0.0
      %v3363 = vmax.f32 %v2495, 0.0
      %v3364 = vmax.f32 %v2497, 0.0
      %v3365 = vmax.f32 %v2500, 0.0
      %v3366 = vmax.f32 %v2502, 0.0
      %v3367 = vmax.f32 %v2505, 0.0
      %v3368 = vmax.f32 %v2507, 0.0
      %v3369 = vmax.f32 %v2510, 0.0
      %v3370 = vmax.f32 %v2512, 0.0
      %v3371 = vmax.f32 %v2515, 0.0
      %v3372 = vmax.f32 %v2517, 0.0
      %v3373 = vmax.f32 %v2520, 0.0
      %v3374 = vmax.f32 %v2522, 0.0
      %v3375 = vmax.f32 %v2525, 0.0
      %v3376 = vmax.f32 %v2527, 0.0
      %v3377 = vmax.f32 %v2530, 0.0
      %v3378 = vmax.f32 %v2532, 0.0
      %v3379 = vmax.f32 %v2535, 0.0
      %v3380 = vmax.f32 %v2537, 0.0
      %v3381 = vmax.f32 %v2540, 0.0
      %v3382 = vmax.f32 %v2542, 0.0
      %v3383 = vmax.f32 %v2545, 0.0
      %v3384 = vmax.f32 %v2547, 0.0
      %v3385 = vmax.f32 %v2550, 0.0
      %v3386 = vmax.f32 %v2552, 0.0
      %v3387 = vmax.f32 %v2555, 0.0
      %v3388 = vmax.f32 %v2557, 0.0
      %v3389 = vmax.f32 %v2560, 0.0
      %v3390 = vmax.f32 %v2562, 0.0
      %v3391 = vmax.f32 %v2565, 0.0
      %v3392 = vmax.f32 %v2567, 0.0
      %v3393 = vmax.f32 %v2570, 0.0
      %v3394 = vmax.f32 %v2572, 0.0
      %v3395 = vmax.f32 %v2575, 0.0
      %v3396 = vmax.f32 %v2577, 0.0
      %v3397 = vmax.f32 %v2580, 0.0
      %v3398 = vmax.f32 %v2582, 0.0
      %v3399 = vmax.f32 %v2585, 0.0
      %v3400 = vmax.f32 %v2587, 0.0
      %v3401 = vmax.f32 %v2590, 0.0
      %v3402 = vmax.f32 %v2592, 0.0
      %v3403 = vmax.f32 %v2595, 0.0
      %v3404 = vmax.f32 %v2597, 0.0
      %v3405 = vmax.f32 %v2600, 0.0
      %v3406 = vmax.f32 %v2602, 0.0
      %v3407 = vmax.f32 %v2605, 0.0
      %v3408 = vmax.f32 %v2607, 0.0
      %v3409 = vmax.f32 %v2610, 0.0
      %v3410 = vmax.f32 %v2612, 0.0
      %v3411 = vmax.f32 %v2615, 0.0
      %v3412 = vmax.f32 %v2617, 0.0
      %v3413 = vmax.f32 %v2620, 0.0
      %v3414 = vmax.f32 %v2622, 0.0
      %v3415 = vmax.f32 %v2625, 0.0
      %v3416 = vmax.f32 %v2627, 0.0
      %v3417 = vmax.f32 %v2630, 0.0
      %v3418 = vmax.f32 %v2632, 0.0
      %v3419 = vmax.f32 %v2635, 0.0
      %v3420 = vmax.f32 %v2637, 0.0
      %v3421 = vmax.f32 %v2640, 0.0
      %v3422 = vmax.f32 %v2642, 0.0
      %v3423 = vmax.f32 %v2645, 0.0
      %v3424 = vmax.f32 %v2647, 0.0
      %v3425 = vmax.f32 %v2650, 0.0
      %v3426 = vmax.f32 %v2652, 0.0
      %v3427 = vmax.f32 %v2655, 0.0
      %v3428 = vmax.f32 %v2657, 0.0
      %v3429 = vmax.f32 %v2660, 0.0
      %v3430 = vmax.f32 %v2662, 0.0
      %v3431 = vmax.f32 %v2665, 0.0
      %v3432 = vmax.f32 %v2667, 0.0
      %v3433 = vmax.f32 %v2670, 0.0
      %v3434 = vmax.f32 %v2672, 0.0
      %v3435 = vmax.f32 %v2675, 0.0
      %v3436 = vmax.f32 %v2677, 0.0
      %v3437 = vmax.f32 %v2680, 0.0
      %v3438 = vmax.f32 %v2682, 0.0
      %v3439 = vmax.f32 %v2685, 0.0
      %v3440 = vmax.f32 %v2687, 0.0
      %v3441 = vmax.f32 %v2690, 0.0
      %v3442 = vmax.f32 %v2692, 0.0
      %v3443 = vmax.f32 %v2695, 0.0
      %v3444 = vmax.f32 %v2697, 0.0
      %v3445 = vmax.f32 %v2700, 0.0
      %v3446 = vmax.f32 %v2702, 0.0
      %v3447 = vmax.f32 %v2705, 0.0
      %v3448 = vmax.f32 %v2707, 0.0
      %v3449 = vmax.f32 %v2710, 0.0
      %v3450 = vmax.f32 %v2712, 0.0
      %v3451 = vmax.f32 %v2715, 0.0
      %v3452 = vmax.f32 %v2717, 0.0
      %v3453 = vmax.f32 %v2720, 0.0
      %v3454 = vmax.f32 %v2722, 0.0
      %v3455 = vmax.f32 %v2725, 0.0
      %v3456 = vmax.f32 %v2727, 0.0
      %v3457 = vmax.f32 %v2730, 0.0
      %v3458 = vmax.f32 %v2732, 0.0
      %v3459 = vmax.f32 %v2735, 0.0
      %v3460 = vmax.f32 %v2737, 0.0
      %v3461 = vmax.f32 %v2740, 0.0
      %v3462 = vmax.f32 %v2742, 0.0
      %v3463 = vmax.f32 %v2745, 0.0
      %v3464 = vmax.f32 %v2747, 0.0
      %v3465 = vmax.f32 %v2750, 0.0
      %v3466 = vmax.f32 %v2752, 0.0
      %v3467 = vmax.f32 %v2755, 0.0
      %v3468 = vmax.f32 %v2757, 0.0
      %v3469 = vmax.f32 %v2760, 0.0
      %v3470 = vmax.f32 %v2762, 0.0
      %v3471 = vmax.f32 %v2765, 0.0
      %v3472 = vmax.f32 %v2767, 0.0
      %v3473 = vmax.f32 %v2770, 0.0
      %v3474 = vmax.f32 %v2772, 0.0
      %v3475 = vmax.f32 %v2775, 0.0
      %v3476 = vmax.f32 %v2777, 0.0
      %v3477 = vmax.f32 %v2780, 0.0
      %v3478 = vmax.f32 %v2782, 0.0
      %v3479 = vmax.f32 %v2785, 0.0
      %v3480 = vmax.f32 %v2787, 0.0
      %v3481 = vmax.f32 %v2790, 0.0
      %v3482 = vmax.f32 %v2792, 0.0
      %v3483 = vmax.f32 %v2795, 0.0
      %v3484 = vmax.f32 %v2797, 0.0
      %v3485 = vmax.f32 %v2800, 0.0
      %v3486 = vmax.f32 %v2802, 0.0
      %v3487 = vmax.f32 %v2805, 0.0
      %v3488 = vmax.f32 %v2807, 0.0
      %v3489 = vmax.f32 %v2810, 0.0
      %v3490 = vmax.f32 %v2812, 0.0
      %v3491 = vmax.f32 %v2815, 0.0
      %v3492 = vmax.f32 %v2817, 0.0
      %v3493 = vmax.f32 %v2820, 0.0
      %v3494 = vmax.f32 %v2822, 0.0
      %v3495 = vmax.f32 %v2825, 0.0
      %v3496 = vmax.f32 %v2827, 0.0
      %v3497 = vmax.f32 %v2830, 0.0
      %v3498 = vmax.f32 %v2832, 0.0
      %v3499 = vmax.f32 %v2835, 0.0
      %v3500 = vmax.f32 %v2837, 0.0
      %v3501 = vmax.f32 %v2840, 0.0
      %v3502 = vmax.f32 %v2842, 0.0
      %v3503 = vmax.f32 %v2845, 0.0
      %v3504 = vmax.f32 %v2847, 0.0
      %v3505 = vmax.f32 %v2850, 0.0
      %v3506 = vmax.f32 %v2852, 0.0
      %v3507 = vmax.f32 %v2855, 0.0
      %v3508 = vmax.f32 %v2857, 0.0
      %v3509 = vmax.f32 %v2860, 0.0
      %v3510 = vmax.f32 %v2862, 0.0
      %v3511 = vmax.f32 %v2865, 0.0
      %v3512 = vmax.f32 %v2867, 0.0
      %v3513 = vmax.f32 %v2870, 0.0
      %v3514 = vmax.f32 %v2872, 0.0
      %v3515 = vmax.f32 %v2875, 0.0
      %v3516 = vmax.f32 %v2877, 0.0
      %v3517 = vmax.f32 %v2880, 0.0
      %v3518 = vmax.f32 %v2882, 0.0
      %v3519 = vmax.f32 %v2885, 0.0
      %v3520 = vmax.f32 %v2887, 0.0
      %v3521 = vmax.f32 %v2890, 0.0
      %v3522 = vmax.f32 %v2892, 0.0
      %v3523 = vmax.f32 %v2895, 0.0
      %v3524 = vmax.f32 %v2897, 0.0
      %v3525 = vmax.f32 %v2900, 0.0
      %v3526 = vmax.f32 %v2902, 0.0
      %v3527 = vmax.f32 %v2905, 0.0
      %v3528 = vmax.f32 %v2907, 0.0
      %v3529 = vmax.f32 %v2910, 0.0
      %v3530 = vmax.f32 %v2912, 0.0
      %v3531 = vmax.f32 %v2915, 0.0
      %v3532 = vmax.f32 %v2917, 0.0
      %v3533 = vmax.f32 %v2920, 0.0
      %v3534 = vmax.f32 %v2922, 0.0
      %v3535 = vmax.f32 %v2925, 0.0
      %v3536 = vmax.f32 %v2927, 0.0
      %v3537 = vmax.f32 %v2930, 0.0
      %v3538 = vmax.f32 %v2932, 0.0
      %v3539 = vmax.f32 %v2935, 0.0
      %v3540 = vmax.f32 %v2937, 0.0
      %v3541 = vmax.f32 %v2940, 0.0
      %v3542 = vmax.f32 %v2942, 0.0
      %v3543 = vmax.f32 %v2945, 0.0
      %v3544 = vmax.f32 %v2947, 0.0
      %v3545 = vmax.f32 %v2950, 0.0
      %v3546 = vmax.f32 %v2952, 0.0
      %v3547 = vmax.f32 %v2955, 0.0
      %v3548 = vmax.f32 %v2957, 0.0
      %v3549 = vmax.f32 %v2960, 0.0
      %v3550 = vmax.f32 %v2962, 0.0
      %v3551 = vmax.f32 %v2965, 0.0
      %v3552 = vmax.f32 %v2967, 0.0
      %v3553 = vmax.f32 %v2970, 0.0
      %v3554 = vmax.f32 %v2972, 0.0
      %v3555 = vmax.f32 %v2975, 0.0
      %v3556 = vmax.f32 %v2977, 0.0
      %v3557 = vmax.f32 %v2980, 0.0
      %v3558 = vmax.f32 %v2982, 0.0
      %v3559 = vmax.f32 %v2985, 0.0
      %v3560 = vmax.f32 %v2987, 0.0
      %v3561 = vmax.f32 %v2990, 0.0
      %v3562 = vmax.f32 %v2992, 0.0
      %v3563 = vmax.f32 %v2995, 0.0
      %v3564 = vmax.f32 %v2997, 0.0
      %v3565 = vmax.f32 %v3000, 0.0
      %v3566 = vmax.f32 %v3002, 0.0
      %v3567 = vmax.f32 %v3005, 0.0
      %v3568 = vmax.f32 %v3007, 0.0
      %v3569 = vmax.f32 %v3010, 0.0
      %v3570 = vmax.f32 %v3012, 0.0
      %v3571 = vmax.f32 %v3015, 0.0
      %v3572 = vmax.f32 %v3017, 0.0
      %v3573 = vmax.f32 %v3020, 0.0
      %v3574 = vmax.f32 %v3022, 0.0
      %v3575 = vmax.f32 %v3025, 0.0
      %v3576 = vmax.f32 %v3027, 0.0
      %v3577 = vmax.f32 %v3030, 0.0
      %v3578 = vmax.f32 %v3032, 0.0
      %v3579 = vmax.f32 %v3035, 0.0
      %v3580 = vmax.f32 %v3037, 0.0
      %v3581 = vmax.f32 %v3040, 0.0
      %v3582 = vmax.f32 %v3042, 0.0
      %v3583 = vmax.f32 %v3045, 0.0
      %v3584 = vmax.f32 %v3047, 0.0
      %v3585 = vmax.f32 %v3050, 0.0
      %v3586 = vmax.f32 %v3052, 0.0
      %v3587 = vmax.f32 %v3055, 0.0
      %v3588 = vmax.f32 %v3057, 0.0
      %v3589 = vmax.f32 %v3060, 0.0
      %v3590 = vmax.f32 %v3062, 0.0
      %v3591 = vmax.f32 %v3065, 0.0
      %v3592 = vmax.f32 %v3067, 0.0
      %v3593 = vmax.f32 %v3070, 0.0
      %v3594 = vmax.f32 %v3072, 0.0
      %v3595 = vmax.f32 %v3075, 0.0
      %v3596 = vmax.f32 %v3077, 0.0
      %v3597 = vmax.f32 %v3080, 0.0
      %v3598 = vmax.f32 %v3082, 0.0
      %v3599 = vmax.f32 %v3085, 0.0
      %v3600 = vmax.f32 %v3087, 0.0
      %v3601 = vmax.f32 %v3090, 0.0
      %v3602 = vmax.f32 %v3092, 0.0
      %v3603 = vmax.f32 %v3095, 0.0
      %v3604 = vmax.f32 %v3097, 0.0
      %v3605 = vmax.f32 %v3100, 0.0
      %v3606 = vmax.f32 %v3102, 0.0
      %v3607 = vmax.f32 %v3105, 0.0
      %v3608 = vmax.f32 %v3107, 0.0
      %v3609 = vmax.f32 %v3110, 0.0
      %v3610 = vmax.f32 %v3112, 0.0
      %v3611 = vmax.f32 %v3115, 0.0
      %v3612 = vmax.f32 %v3117, 0.0
      %v3613 = vmax.f32 %v3120, 0.0
      %v3614 = vmax.f32 %v3122, 0.0
      %v3615 = vmax.f32 %v3125, 0.0
      %v3616 = vmax.f32 %v3127, 0.0
      %v3617 = vmax.f32 %v3130, 0.0
      %v3618 = vmax.f32 %v3132, 0.0
      %v3619 = vmax.f32 %v3135, 0.0
      %v3620 = vmax.f32 %v3137, 0.0
      %v3621 = vmax.f32 %v3140, 0.0
      %v3622 = vmax.f32 %v3142, 0.0
      %v3623 = vmax.f32 %v3145, 0.0
      %v3624 = vmax.f32 %v3147, 0.0
      %v3625 = vmax.f32 %v3150, 0.0
      %v3626 = vmax.f32 %v3152, 0.0
      %v3627 = vmax.f32 %v3155, 0.0
      %v3628 = vmax.f32 %v3157, 0.0
      %v3629 = vmax.f32 %v3160, 0.0
      %v3630 = vmax.f32 %v3162, 0.0
      %v3631 = vmax.f32 %v3165, 0.0
      %v3632 = vmax.f32 %v3167, 0.0
      %v3633 = vmax.f32 %v3170, 0.0
      %v3634 = vmax.f32 %v3172, 0.0
      %v3635 = vmax.f32 %v3175, 0.0
      %v3636 = vmax.f32 %v3177, 0.0
      %v3637 = vmax.f32 %v3180, 0.0
      %v3638 = vmax.f32 %v3182, 0.0
      %v3639 = vmax.f32 %v3185, 0.0
      %v3640 = vmax.f32 %v3187, 0.0
      %v3641 = vpack.c.bf16 %v3189, %v3189
      %v3642 = vpack.c.bf16 %v3190, %v3190
      %v3643 = vpack.c.bf16 %v3191, %v3191
      %v3644 = vpack.c.bf16 %v3192, %v3192
      %v3645 = vpack.c.bf16 %v3193, %v3193
      %v3646 = vpack.c.bf16 %v3194, %v3194
      %v3647 = vpack.c.bf16 %v3195, %v3195
      %v3648 = vpack.c.bf16 %v3196, %v3196
      %v3649 = vpack.c.bf16 %v3197, %v3197
      %v3650 = vpack.c.bf16 %v3198, %v3198
      %v3651 = vpack.c.bf16 %v3199, %v3199
      %v3652 = vpack.c.bf16 %v3200, %v3200
      %v3653 = vpack.c.bf16 %v3201, %v3201
      %v3654 = vpack.c.bf16 %v3202, %v3202
      %v3655 = vpack.c.bf16 %v3203, %v3203
      %v3656 = vpack.c.bf16 %v3204, %v3204
      %v3657 = vpack.c.bf16 %v3205, %v3205
      %v3658 = vpack.c.bf16 %v3206, %v3206
      %v3659 = vpack.c.bf16 %v3207, %v3207
      %v3660 = vpack.c.bf16 %v3208, %v3208
      %v3661 = vpack.c.bf16 %v3209, %v3209
      %v3662 = vpack.c.bf16 %v3210, %v3210
      %v3663 = vpack.c.bf16 %v3211, %v3211
      %v3664 = vpack.c.bf16 %v3212, %v3212
      %v3665 = vpack.c.bf16 %v3213, %v3213
      %v3666 = vpack.c.bf16 %v3214, %v3214
      %v3667 = vpack.c.bf16 %v3215, %v3215
      %v3668 = vpack.c.bf16 %v3216, %v3216
      %v3669 = vpack.c.bf16 %v3217, %v3217
      %v3670 = vpack.c.bf16 %v3218, %v3218
      %v3671 = vpack.c.bf16 %v3219, %v3219
      %v3672 = vpack.c.bf16 %v3220, %v3220
      %v3673 = vpack.c.bf16 %v3221, %v3221
      %v3674 = vpack.c.bf16 %v3222, %v3222
      %v3675 = vpack.c.bf16 %v3223, %v3223
      %v3676 = vpack.c.bf16 %v3224, %v3224
      %v3677 = vpack.c.bf16 %v3225, %v3225
      %v3678 = vpack.c.bf16 %v3226, %v3226
      %v3679 = vpack.c.bf16 %v3227, %v3227
      %v3680 = vpack.c.bf16 %v3228, %v3228
      %v3681 = vpack.c.bf16 %v3229, %v3229
      %v3682 = vpack.c.bf16 %v3230, %v3230
      %v3683 = vpack.c.bf16 %v3231, %v3231
      %v3684 = vpack.c.bf16 %v3232, %v3232
      %v3685 = vpack.c.bf16 %v3233, %v3233
      %v3686 = vpack.c.bf16 %v3234, %v3234
      %v3687 = vpack.c.bf16 %v3235, %v3235
      %v3688 = vpack.c.bf16 %v3236, %v3236
      %v3689 = vpack.c.bf16 %v3237, %v3237
      %v3690 = vpack.c.bf16 %v3238, %v3238
      %v3691 = vpack.c.bf16 %v3239, %v3239
      %v3692 = vpack.c.bf16 %v3240, %v3240
      %v3693 = vpack.c.bf16 %v3241, %v3241
      %v3694 = vpack.c.bf16 %v3242, %v3242
      %v3695 = vpack.c.bf16 %v3243, %v3243
      %v3696 = vpack.c.bf16 %v3244, %v3244
      %v3697 = vpack.c.bf16 %v3245, %v3245
      %v3698 = vpack.c.bf16 %v3246, %v3246
      %v3699 = vpack.c.bf16 %v3247, %v3247
      %v3700 = vpack.c.bf16 %v3248, %v3248
      %v3701 = vpack.c.bf16 %v3249, %v3249
      %v3702 = vpack.c.bf16 %v3250, %v3250
      %v3703 = vpack.c.bf16 %v3251, %v3251
      %v3704 = vpack.c.bf16 %v3252, %v3252
      %v3705 = vpack.c.bf16 %v3253, %v3253
      %v3706 = vpack.c.bf16 %v3254, %v3254
      %v3707 = vpack.c.bf16 %v3255, %v3255
      %v3708 = vpack.c.bf16 %v3256, %v3256
      %v3709 = vpack.c.bf16 %v3257, %v3257
      %v3710 = vpack.c.bf16 %v3258, %v3258
      %v3711 = vpack.c.bf16 %v3259, %v3259
      %v3712 = vpack.c.bf16 %v3260, %v3260
      %v3713 = vpack.c.bf16 %v3261, %v3261
      %v3714 = vpack.c.bf16 %v3262, %v3262
      %v3715 = vpack.c.bf16 %v3263, %v3263
      %v3716 = vpack.c.bf16 %v3264, %v3264
      %v3717 = vpack.c.bf16 %v3265, %v3265
      %v3718 = vpack.c.bf16 %v3266, %v3266
      %v3719 = vpack.c.bf16 %v3267, %v3267
      %v3720 = vpack.c.bf16 %v3268, %v3268
      %v3721 = vpack.c.bf16 %v3269, %v3269
      %v3722 = vpack.c.bf16 %v3270, %v3270
      %v3723 = vpack.c.bf16 %v3271, %v3271
      %v3724 = vpack.c.bf16 %v3272, %v3272
      %v3725 = vpack.c.bf16 %v3273, %v3273
      %v3726 = vpack.c.bf16 %v3274, %v3274
      %v3727 = vpack.c.bf16 %v3275, %v3275
      %v3728 = vpack.c.bf16 %v3276, %v3276
      %v3729 = vpack.c.bf16 %v3277, %v3277
      %v3730 = vpack.c.bf16 %v3278, %v3278
      %v3731 = vpack.c.bf16 %v3279, %v3279
      %v3732 = vpack.c.bf16 %v3280, %v3280
      %v3733 = vpack.c.bf16 %v3281, %v3281
      %v3734 = vpack.c.bf16 %v3282, %v3282
      %v3735 = vpack.c.bf16 %v3283, %v3283
      %v3736 = vpack.c.bf16 %v3284, %v3284
      %v3737 = vpack.c.bf16 %v3285, %v3285
      %v3738 = vpack.c.bf16 %v3286, %v3286
      %v3739 = vpack.c.bf16 %v3287, %v3287
      %v3740 = vpack.c.bf16 %v3288, %v3288
      %v3741 = vpack.c.bf16 %v3289, %v3289
      %v3742 = vpack.c.bf16 %v3290, %v3290
      %v3743 = vpack.c.bf16 %v3291, %v3291
      %v3744 = vpack.c.bf16 %v3292, %v3292
      %v3745 = vpack.c.bf16 %v3293, %v3293
      %v3746 = vpack.c.bf16 %v3294, %v3294
      %v3747 = vpack.c.bf16 %v3295, %v3295
      %v3748 = vpack.c.bf16 %v3296, %v3296
      %v3749 = vpack.c.bf16 %v3297, %v3297
      %v3750 = vpack.c.bf16 %v3298, %v3298
      %v3751 = vpack.c.bf16 %v3299, %v3299
      %v3752 = vpack.c.bf16 %v3300, %v3300
      %v3753 = vpack.c.bf16 %v3301, %v3301
      %v3754 = vpack.c.bf16 %v3302, %v3302
      %v3755 = vpack.c.bf16 %v3303, %v3303
      %v3756 = vpack.c.bf16 %v3304, %v3304
      %v3757 = vpack.c.bf16 %v3305, %v3305
      %v3758 = vpack.c.bf16 %v3306, %v3306
      %v3759 = vpack.c.bf16 %v3307, %v3307
      %v3760 = vpack.c.bf16 %v3308, %v3308
      %v3761 = vpack.c.bf16 %v3309, %v3309
      %v3762 = vpack.c.bf16 %v3310, %v3310
      %v3763 = vpack.c.bf16 %v3311, %v3311
      %v3764 = vpack.c.bf16 %v3312, %v3312
      %v3765 = vpack.c.bf16 %v3313, %v3313
      %v3766 = vpack.c.bf16 %v3314, %v3314
      %v3767 = vpack.c.bf16 %v3315, %v3315
      %v3768 = vpack.c.bf16 %v3316, %v3316
      %v3769 = vpack.c.bf16 %v3317, %v3317
      %v3770 = vpack.c.bf16 %v3318, %v3318
      %v3771 = vpack.c.bf16 %v3319, %v3319
      %v3772 = vpack.c.bf16 %v3320, %v3320
      %v3773 = vpack.c.bf16 %v3321, %v3321
      %v3774 = vpack.c.bf16 %v3322, %v3322
      %v3775 = vpack.c.bf16 %v3323, %v3323
      %v3776 = vpack.c.bf16 %v3324, %v3324
      %v3777 = vpack.c.bf16 %v3325, %v3325
      %v3778 = vpack.c.bf16 %v3326, %v3326
      %v3779 = vpack.c.bf16 %v3327, %v3327
      %v3780 = vpack.c.bf16 %v3328, %v3328
      %v3781 = vpack.c.bf16 %v3329, %v3329
      %v3782 = vpack.c.bf16 %v3330, %v3330
      %v3783 = vpack.c.bf16 %v3331, %v3331
      %v3784 = vpack.c.bf16 %v3332, %v3332
      %v3785 = vpack.c.bf16 %v3333, %v3333
      %v3786 = vpack.c.bf16 %v3334, %v3334
      %v3787 = vpack.c.bf16 %v3335, %v3335
      %v3788 = vpack.c.bf16 %v3336, %v3336
      %v3789 = vpack.c.bf16 %v3337, %v3337
      %v3790 = vpack.c.bf16 %v3338, %v3338
      %v3791 = vpack.c.bf16 %v3339, %v3339
      %v3792 = vpack.c.bf16 %v3340, %v3340
      %v3793 = vpack.c.bf16 %v3341, %v3341
      %v3794 = vpack.c.bf16 %v3342, %v3342
      %v3795 = vpack.c.bf16 %v3343, %v3343
      %v3796 = vpack.c.bf16 %v3344, %v3344
      %v3797 = vpack.c.bf16 %v3345, %v3345
      %v3798 = vpack.c.bf16 %v3346, %v3346
      %v3799 = vpack.c.bf16 %v3347, %v3347
      %v3800 = vpack.c.bf16 %v3348, %v3348
      %v3801 = vpack.c.bf16 %v3349, %v3349
      %v3802 = vpack.c.bf16 %v3350, %v3350
      %v3803 = vpack.c.bf16 %v3351, %v3351
      %v3804 = vpack.c.bf16 %v3352, %v3352
      %v3805 = vpack.c.bf16 %v3353, %v3353
      %v3806 = vpack.c.bf16 %v3354, %v3354
      %v3807 = vpack.c.bf16 %v3355, %v3355
      %v3808 = vpack.c.bf16 %v3356, %v3356
      %v3809 = vpack.c.bf16 %v3357, %v3357
      %v3810 = vpack.c.bf16 %v3358, %v3358
      %v3811 = vpack.c.bf16 %v3359, %v3359
      %v3812 = vpack.c.bf16 %v3360, %v3360
      %v3813 = vpack.c.bf16 %v3361, %v3361
      %v3814 = vpack.c.bf16 %v3362, %v3362
      %v3815 = vpack.c.bf16 %v3363, %v3363
      %v3816 = vpack.c.bf16 %v3364, %v3364
      %v3817 = vpack.c.bf16 %v3365, %v3365
      %v3818 = vpack.c.bf16 %v3366, %v3366
      %v3819 = vpack.c.bf16 %v3367, %v3367
      %v3820 = vpack.c.bf16 %v3368, %v3368
      %v3821 = vpack.c.bf16 %v3369, %v3369
      %v3822 = vpack.c.bf16 %v3370, %v3370
      %v3823 = vpack.c.bf16 %v3371, %v3371
      %v3824 = vpack.c.bf16 %v3372, %v3372
      %v3825 = vpack.c.bf16 %v3373, %v3373
      %v3826 = vpack.c.bf16 %v3374, %v3374
      %v3827 = vpack.c.bf16 %v3375, %v3375
      %v3828 = vpack.c.bf16 %v3376, %v3376
      %v3829 = vpack.c.bf16 %v3377, %v3377
      %v3830 = vpack.c.bf16 %v3378, %v3378
      %v3831 = vpack.c.bf16 %v3379, %v3379
      %v3832 = vpack.c.bf16 %v3380, %v3380
      %v3833 = vpack.c.bf16 %v3381, %v3381
      %v3834 = vpack.c.bf16 %v3382, %v3382
      %v3835 = vpack.c.bf16 %v3383, %v3383
      %v3836 = vpack.c.bf16 %v3384, %v3384
      %v3837 = vpack.c.bf16 %v3385, %v3385
      %v3838 = vpack.c.bf16 %v3386, %v3386
      %v3839 = vpack.c.bf16 %v3387, %v3387
      %v3840 = vpack.c.bf16 %v3388, %v3388
      %v3841 = vpack.c.bf16 %v3389, %v3389
      %v3842 = vpack.c.bf16 %v3390, %v3390
      %v3843 = vpack.c.bf16 %v3391, %v3391
      %v3844 = vpack.c.bf16 %v3392, %v3392
      %v3845 = vpack.c.bf16 %v3393, %v3393
      %v3846 = vpack.c.bf16 %v3394, %v3394
      %v3847 = vpack.c.bf16 %v3395, %v3395
      %v3848 = vpack.c.bf16 %v3396, %v3396
      %v3849 = vpack.c.bf16 %v3397, %v3397
      %v3850 = vpack.c.bf16 %v3398, %v3398
      %v3851 = vpack.c.bf16 %v3399, %v3399
      %v3852 = vpack.c.bf16 %v3400, %v3400
      %v3853 = vpack.c.bf16 %v3401, %v3401
      %v3854 = vpack.c.bf16 %v3402, %v3402
      %v3855 = vpack.c.bf16 %v3403, %v3403
      %v3856 = vpack.c.bf16 %v3404, %v3404
      %v3857 = vpack.c.bf16 %v3405, %v3405
      %v3858 = vpack.c.bf16 %v3406, %v3406
      %v3859 = vpack.c.bf16 %v3407, %v3407
      %v3860 = vpack.c.bf16 %v3408, %v3408
      %v3861 = vpack.c.bf16 %v3409, %v3409
      %v3862 = vpack.c.bf16 %v3410, %v3410
      %v3863 = vpack.c.bf16 %v3411, %v3411
      %v3864 = vpack.c.bf16 %v3412, %v3412
      %v3865 = vpack.c.bf16 %v3413, %v3413
      %v3866 = vpack.c.bf16 %v3414, %v3414
      %v3867 = vpack.c.bf16 %v3415, %v3415
      %v3868 = vpack.c.bf16 %v3416, %v3416
      %v3869 = vpack.c.bf16 %v3417, %v3417
      %v3870 = vpack.c.bf16 %v3418, %v3418
      %v3871 = vpack.c.bf16 %v3419, %v3419
      %v3872 = vpack.c.bf16 %v3420, %v3420
      %v3873 = vpack.c.bf16 %v3421, %v3421
      %v3874 = vpack.c.bf16 %v3422, %v3422
      %v3875 = vpack.c.bf16 %v3423, %v3423
      %v3876 = vpack.c.bf16 %v3424, %v3424
      %v3877 = vpack.c.bf16 %v3425, %v3425
      %v3878 = vpack.c.bf16 %v3426, %v3426
      %v3879 = vpack.c.bf16 %v3427, %v3427
      %v3880 = vpack.c.bf16 %v3428, %v3428
      %v3881 = vpack.c.bf16 %v3429, %v3429
      %v3882 = vpack.c.bf16 %v3430, %v3430
      %v3883 = vpack.c.bf16 %v3431, %v3431
      %v3884 = vpack.c.bf16 %v3432, %v3432
      %v3885 = vpack.c.bf16 %v3433, %v3433
      %v3886 = vpack.c.bf16 %v3434, %v3434
      %v3887 = vpack.c.bf16 %v3435, %v3435
      %v3888 = vpack.c.bf16 %v3436, %v3436
      %v3889 = vpack.c.bf16 %v3437, %v3437
      %v3890 = vpack.c.bf16 %v3438, %v3438
      %v3891 = vpack.c.bf16 %v3439, %v3439
      %v3892 = vpack.c.bf16 %v3440, %v3440
      %v3893 = vpack.c.bf16 %v3441, %v3441
      %v3894 = vpack.c.bf16 %v3442, %v3442
      %v3895 = vpack.c.bf16 %v3443, %v3443
      %v3896 = vpack.c.bf16 %v3444, %v3444
      %v3897 = vpack.c.bf16 %v3445, %v3445
      %v3898 = vpack.c.bf16 %v3446, %v3446
      %v3899 = vpack.c.bf16 %v3447, %v3447
      %v3900 = vpack.c.bf16 %v3448, %v3448
      %v3901 = vpack.c.bf16 %v3449, %v3449
      %v3902 = vpack.c.bf16 %v3450, %v3450
      %v3903 = vpack.c.bf16 %v3451, %v3451
      %v3904 = vpack.c.bf16 %v3452, %v3452
      %v3905 = vpack.c.bf16 %v3453, %v3453
      %v3906 = vpack.c.bf16 %v3454, %v3454
      %v3907 = vpack.c.bf16 %v3455, %v3455
      %v3908 = vpack.c.bf16 %v3456, %v3456
      %v3909 = vpack.c.bf16 %v3457, %v3457
      %v3910 = vpack.c.bf16 %v3458, %v3458
      %v3911 = vpack.c.bf16 %v3459, %v3459
      %v3912 = vpack.c.bf16 %v3460, %v3460
      %v3913 = vpack.c.bf16 %v3461, %v3461
      %v3914 = vpack.c.bf16 %v3462, %v3462
      %v3915 = vpack.c.bf16 %v3463, %v3463
      %v3916 = vpack.c.bf16 %v3464, %v3464
      %v3917 = vpack.c.bf16 %v3465, %v3465
      %v3918 = vpack.c.bf16 %v3466, %v3466
      %v3919 = vpack.c.bf16 %v3467, %v3467
      %v3920 = vpack.c.bf16 %v3468, %v3468
      %v3921 = vpack.c.bf16 %v3469, %v3469
      %v3922 = vpack.c.bf16 %v3470, %v3470
      %v3923 = vpack.c.bf16 %v3471, %v3471
      %v3924 = vpack.c.bf16 %v3472, %v3472
      %v3925 = vpack.c.bf16 %v3473, %v3473
      %v3926 = vpack.c.bf16 %v3474, %v3474
      %v3927 = vpack.c.bf16 %v3475, %v3475
      %v3928 = vpack.c.bf16 %v3476, %v3476
      %v3929 = vpack.c.bf16 %v3477, %v3477
      %v3930 = vpack.c.bf16 %v3478, %v3478
      %v3931 = vpack.c.bf16 %v3479, %v3479
      %v3932 = vpack.c.bf16 %v3480, %v3480
      %v3933 = vpack.c.bf16 %v3481, %v3481
      %v3934 = vpack.c.bf16 %v3482, %v3482
      %v3935 = vpack.c.bf16 %v3483, %v3483
      %v3936 = vpack.c.bf16 %v3484, %v3484
      %v3937 = vpack.c.bf16 %v3485, %v3485
      %v3938 = vpack.c.bf16 %v3486, %v3486
      %v3939 = vpack.c.bf16 %v3487, %v3487
      %v3940 = vpack.c.bf16 %v3488, %v3488
      %v3941 = vpack.c.bf16 %v3489, %v3489
      %v3942 = vpack.c.bf16 %v3490, %v3490
      %v3943 = vpack.c.bf16 %v3491, %v3491
      %v3944 = vpack.c.bf16 %v3492, %v3492
      %v3945 = vpack.c.bf16 %v3493, %v3493
      %v3946 = vpack.c.bf16 %v3494, %v3494
      %v3947 = vpack.c.bf16 %v3495, %v3495
      %v3948 = vpack.c.bf16 %v3496, %v3496
      %v3949 = vpack.c.bf16 %v3497, %v3497
      %v3950 = vpack.c.bf16 %v3498, %v3498
      %v3951 = vpack.c.bf16 %v3499, %v3499
      %v3952 = vpack.c.bf16 %v3500, %v3500
      %v3953 = vpack.c.bf16 %v3501, %v3501
      %v3954 = vpack.c.bf16 %v3502, %v3502
      %v3955 = vpack.c.bf16 %v3503, %v3503
      %v3956 = vpack.c.bf16 %v3504, %v3504
      %v3957 = vpack.c.bf16 %v3505, %v3505
      %v3958 = vpack.c.bf16 %v3506, %v3506
      %v3959 = vpack.c.bf16 %v3507, %v3507
      %v3960 = vpack.c.bf16 %v3508, %v3508
      %v3961 = vpack.c.bf16 %v3509, %v3509
      %v3962 = vpack.c.bf16 %v3510, %v3510
      %v3963 = vpack.c.bf16 %v3511, %v3511
      %v3964 = vpack.c.bf16 %v3512, %v3512
      %v3965 = vpack.c.bf16 %v3513, %v3513
      %v3966 = vpack.c.bf16 %v3514, %v3514
      %v3967 = vpack.c.bf16 %v3515, %v3515
      %v3968 = vpack.c.bf16 %v3516, %v3516
      %v3969 = vpack.c.bf16 %v3517, %v3517
      %v3970 = vpack.c.bf16 %v3518, %v3518
      %v3971 = vpack.c.bf16 %v3519, %v3519
      %v3972 = vpack.c.bf16 %v3520, %v3520
      %v3973 = vpack.c.bf16 %v3521, %v3521
      %v3974 = vpack.c.bf16 %v3522, %v3522
      %v3975 = vpack.c.bf16 %v3523, %v3523
      %v3976 = vpack.c.bf16 %v3524, %v3524
      %v3977 = vpack.c.bf16 %v3525, %v3525
      %v3978 = vpack.c.bf16 %v3526, %v3526
      %v3979 = vpack.c.bf16 %v3527, %v3527
      %v3980 = vpack.c.bf16 %v3528, %v3528
      %v3981 = vpack.c.bf16 %v3529, %v3529
      %v3982 = vpack.c.bf16 %v3530, %v3530
      %v3983 = vpack.c.bf16 %v3531, %v3531
      %v3984 = vpack.c.bf16 %v3532, %v3532
      %v3985 = vpack.c.bf16 %v3533, %v3533
      %v3986 = vpack.c.bf16 %v3534, %v3534
      %v3987 = vpack.c.bf16 %v3535, %v3535
      %v3988 = vpack.c.bf16 %v3536, %v3536
      %v3989 = vpack.c.bf16 %v3537, %v3537
      %v3990 = vpack.c.bf16 %v3538, %v3538
      %v3991 = vpack.c.bf16 %v3539, %v3539
      %v3992 = vpack.c.bf16 %v3540, %v3540
      %v3993 = vpack.c.bf16 %v3541, %v3541
      %v3994 = vpack.c.bf16 %v3542, %v3542
      %v3995 = vpack.c.bf16 %v3543, %v3543
      %v3996 = vpack.c.bf16 %v3544, %v3544
      %v3997 = vpack.c.bf16 %v3545, %v3545
      %v3998 = vpack.c.bf16 %v3546, %v3546
      %v3999 = vpack.c.bf16 %v3547, %v3547
      %v4000 = vpack.c.bf16 %v3548, %v3548
      %v4001 = vpack.c.bf16 %v3549, %v3549
      %v4002 = vpack.c.bf16 %v3550, %v3550
      %v4003 = vpack.c.bf16 %v3551, %v3551
      %v4004 = vpack.c.bf16 %v3552, %v3552
      %v4005 = vpack.c.bf16 %v3553, %v3553
      %v4006 = vpack.c.bf16 %v3554, %v3554
      %v4007 = vpack.c.bf16 %v3555, %v3555
      %v4008 = vpack.c.bf16 %v3556, %v3556
      %v4009 = vpack.c.bf16 %v3557, %v3557
      %v4010 = vpack.c.bf16 %v3558, %v3558
      %v4011 = vpack.c.bf16 %v3559, %v3559
      %v4012 = vpack.c.bf16 %v3560, %v3560
      %v4013 = vpack.c.bf16 %v3561, %v3561
      %v4014 = vpack.c.bf16 %v3562, %v3562
      %v4015 = vpack.c.bf16 %v3563, %v3563
      %v4016 = vpack.c.bf16 %v3564, %v3564
      %v4017 = vpack.c.bf16 %v3565, %v3565
      %v4018 = vpack.c.bf16 %v3566, %v3566
      %v4019 = vpack.c.bf16 %v3567, %v3567
      %v4020 = vpack.c.bf16 %v3568, %v3568
      %v4021 = vpack.c.bf16 %v3569, %v3569
      %v4022 = vpack.c.bf16 %v3570, %v3570
      %v4023 = vpack.c.bf16 %v3571, %v3571
      %v4024 = vpack.c.bf16 %v3572, %v3572
      %v4025 = vpack.c.bf16 %v3573, %v3573
      %v4026 = vpack.c.bf16 %v3574, %v3574
      %v4027 = vpack.c.bf16 %v3575, %v3575
      %v4028 = vpack.c.bf16 %v3576, %v3576
      %v4029 = vpack.c.bf16 %v3577, %v3577
      %v4030 = vpack.c.bf16 %v3578, %v3578
      %v4031 = vpack.c.bf16 %v3579, %v3579
      %v4032 = vpack.c.bf16 %v3580, %v3580
      %v4033 = vpack.c.bf16 %v3581, %v3581
      %v4034 = vpack.c.bf16 %v3582, %v3582
      %v4035 = vpack.c.bf16 %v3583, %v3583
      %v4036 = vpack.c.bf16 %v3584, %v3584
      %v4037 = vpack.c.bf16 %v3585, %v3585
      %v4038 = vpack.c.bf16 %v3586, %v3586
      %v4039 = vpack.c.bf16 %v3587, %v3587
      %v4040 = vpack.c.bf16 %v3588, %v3588
      %v4041 = vpack.c.bf16 %v3589, %v3589
      %v4042 = vpack.c.bf16 %v3590, %v3590
      %v4043 = vpack.c.bf16 %v3591, %v3591
      %v4044 = vpack.c.bf16 %v3592, %v3592
      %v4045 = vpack.c.bf16 %v3593, %v3593
      %v4046 = vpack.c.bf16 %v3594, %v3594
      %v4047 = vpack.c.bf16 %v3595, %v3595
      %v4048 = vpack.c.bf16 %v3596, %v3596
      %v4049 = vpack.c.bf16 %v3597, %v3597
      %v4050 = vpack.c.bf16 %v3598, %v3598
      %v4051 = vpack.c.bf16 %v3599, %v3599
      %v4052 = vpack.c.bf16 %v3600, %v3600
      %v4053 = vpack.c.bf16 %v3601, %v3601
      %v4054 = vpack.c.bf16 %v3602, %v3602
      %v4055 = vpack.c.bf16 %v3603, %v3603
      %v4056 = vpack.c.bf16 %v3604, %v3604
      %v4057 = vpack.c.bf16 %v3605, %v3605
      %v4058 = vpack.c.bf16 %v3606, %v3606
      %v4059 = vpack.c.bf16 %v3607, %v3607
      %v4060 = vpack.c.bf16 %v3608, %v3608
      %v4061 = vpack.c.bf16 %v3609, %v3609
      %v4062 = vpack.c.bf16 %v3610, %v3610
      %v4063 = vpack.c.bf16 %v3611, %v3611
      %v4064 = vpack.c.bf16 %v3612, %v3612
      %v4065 = vpack.c.bf16 %v3613, %v3613
      %v4066 = vpack.c.bf16 %v3614, %v3614
      %v4067 = vpack.c.bf16 %v3615, %v3615
      %v4068 = vpack.c.bf16 %v3616, %v3616
      %v4069 = vpack.c.bf16 %v3617, %v3617
      %v4070 = vpack.c.bf16 %v3618, %v3618
      %v4071 = vpack.c.bf16 %v3619, %v3619
      %v4072 = vpack.c.bf16 %v3620, %v3620
      %v4073 = vpack.c.bf16 %v3621, %v3621
      %v4074 = vpack.c.bf16 %v3622, %v3622
      %v4075 = vpack.c.bf16 %v3623, %v3623
      %v4076 = vpack.c.bf16 %v3624, %v3624
      %v4077 = vpack.c.bf16 %v3625, %v3625
      %v4078 = vpack.c.bf16 %v3626, %v3626
      %v4079 = vpack.c.bf16 %v3627, %v3627
      %v4080 = vpack.c.bf16 %v3628, %v3628
      %v4081 = vpack.c.bf16 %v3629, %v3629
      %v4082 = vpack.c.bf16 %v3630, %v3630
      %v4083 = vpack.c.bf16 %v3631, %v3631
      %v4084 = vpack.c.bf16 %v3632, %v3632
      %v4085 = vpack.c.bf16 %v3633, %v3633
      %v4086 = vpack.c.bf16 %v3634, %v3634
      %v4087 = vpack.c.bf16 %v3635, %v3635
      %v4088 = vpack.c.bf16 %v3636, %v3636
      %v4089 = vpack.c.bf16 %v3637, %v3637
      %v4090 = vpack.c.bf16 %v3638, %v3638
      %v4091 = vpack.c.bf16 %v3639, %v3639
      %v4092 = vpack.c.bf16 %v3640, %v3640
      %4093 = vst [vmem:[%s172] sm:$0xf] %v3641
      %4094 = vst [vmem:[%s172 + $0x4] sm:$0xf] %v3642
      %4095 = vst [vmem:[%s172 + $0x8] sm:$0xf] %v3643
      %4096 = vst [vmem:[%s172 + $0xc] sm:$0xf] %v3644
      %4097 = vst [vmem:[%s172 + $0x10] sm:$0xf] %v3645
      %4098 = vst [vmem:[%s172 + $0x14] sm:$0xf] %v3646
      %4099 = vst [vmem:[%s172 + $0x18] sm:$0xf] %v3647
      %4100 = vst [vmem:[%s172 + $0x1c] sm:$0xf] %v3648
      %4101 = vst [vmem:[%s172 + $0x20] sm:$0xf] %v3649
      %4102 = vst [vmem:[%s172 + $0x24] sm:$0xf] %v3650
      %4103 = vst [vmem:[%s172 + $0x28] sm:$0xf] %v3651
      %4104 = vst [vmem:[%s172 + $0x2c] sm:$0xf] %v3652
      %4105 = vst [vmem:[%s172 + $0x30] sm:$0xf] %v3653
      %4106 = vst [vmem:[%s172 + $0x34] sm:$0xf] %v3654
      %4107 = vst [vmem:[%s172 + $0x38] sm:$0xf] %v3655
      %4108 = vst [vmem:[%s172 + $0x3c] sm:$0xf] %v3656
      %4109 = vst [vmem:[%s172 + $0x40] sm:$0xf] %v3657
      %4110 = vst [vmem:[%s172 + $0x44] sm:$0xf] %v3658
      %4111 = vst [vmem:[%s172 + $0x48] sm:$0xf] %v3659
      %4112 = vst [vmem:[%s172 + $0x4c] sm:$0xf] %v3660
      %4113 = vst [vmem:[%s172 + $0x50] sm:$0xf] %v3661
      %4114 = vst [vmem:[%s172 + $0x54] sm:$0xf] %v3662
      %4115 = vst [vmem:[%s172 + $0x58] sm:$0xf] %v3663
      %4116 = vst [vmem:[%s172 + $0x5c] sm:$0xf] %v3664
      %4117 = vst [vmem:[%s172 + $0x60] sm:$0xf] %v3665
      %4118 = vst [vmem:[%s172 + $0x64] sm:$0xf] %v3666
      %4119 = vst [vmem:[%s172 + $0x68] sm:$0xf] %v3667
      %4120 = vst [vmem:[%s172 + $0x6c] sm:$0xf] %v3668
      %4121 = vst [vmem:[%s172 + $0x70] sm:$0xf] %v3669
      %4122 = vst [vmem:[%s172 + $0x74] sm:$0xf] %v3670
      %4123 = vst [vmem:[%s172 + $0x78] sm:$0xf] %v3671
      %4124 = vst [vmem:[%s172 + $0x7c] sm:$0xf] %v3672
      %4125 = vst [vmem:[%s172 + $0x80] sm:$0xf] %v3673
      %4126 = vst [vmem:[%s172 + $0x84] sm:$0xf] %v3674
      %4127 = vst [vmem:[%s172 + $0x88] sm:$0xf] %v3675
      %4128 = vst [vmem:[%s172 + $0x8c] sm:$0xf] %v3676
      %4129 = vst [vmem:[%s172 + $0x90] sm:$0xf] %v3677
      %4130 = vst [vmem:[%s172 + $0x94] sm:$0xf] %v3678
      %4131 = vst [vmem:[%s172 + $0x98] sm:$0xf] %v3679
      %4132 = vst [vmem:[%s172 + $0x9c] sm:$0xf] %v3680
      %4133 = vst [vmem:[%s172 + $0xa0] sm:$0xf] %v3681
      %4134 = vst [vmem:[%s172 + $0xa4] sm:$0xf] %v3682
      %4135 = vst [vmem:[%s172 + $0xa8] sm:$0xf] %v3683
      %4136 = vst [vmem:[%s172 + $0xac] sm:$0xf] %v3684
      %4137 = vst [vmem:[%s172 + $0xb0] sm:$0xf] %v3685
      %4138 = vst [vmem:[%s172 + $0xb4] sm:$0xf] %v3686
      %4139 = vst [vmem:[%s172 + $0xb8] sm:$0xf] %v3687
      %4140 = vst [vmem:[%s172 + $0xbc] sm:$0xf] %v3688
      %4141 = vst [vmem:[%s172 + $0xc0] sm:$0xf] %v3689
      %4142 = vst [vmem:[%s172 + $0xc4] sm:$0xf] %v3690
      %4143 = vst [vmem:[%s172 + $0xc8] sm:$0xf] %v3691
      %4144 = vst [vmem:[%s172 + $0xcc] sm:$0xf] %v3692
      %4145 = vst [vmem:[%s172 + $0xd0] sm:$0xf] %v3693
      %4146 = vst [vmem:[%s172 + $0xd4] sm:$0xf] %v3694
      %4147 = vst [vmem:[%s172 + $0xd8] sm:$0xf] %v3695
      %4148 = vst [vmem:[%s172 + $0xdc] sm:$0xf] %v3696
      %4149 = vst [vmem:[%s172 + $0xe0] sm:$0xf] %v3697
      %4150 = vst [vmem:[%s172 + $0xe4] sm:$0xf] %v3698
      %4151 = vst [vmem:[%s172 + $0xe8] sm:$0xf] %v3699
      %4152 = vst [vmem:[%s172 + $0xec] sm:$0xf] %v3700
      %4153 = vst [vmem:[%s172 + $0xf0] sm:$0xf] %v3701
      %4154 = vst [vmem:[%s172 + $0xf4] sm:$0xf] %v3702
      %4155 = vst [vmem:[%s172 + $0xf8] sm:$0xf] %v3703
      %4156 = vst [vmem:[%s172 + $0xfc] sm:$0xf] %v3704
      %4157 = vst [vmem:[%s172 + $0x100] sm:$0xf] %v3705
      %4158 = vst [vmem:[%s172 + $0x104] sm:$0xf] %v3706
      %4159 = vst [vmem:[%s172 + $0x108] sm:$0xf] %v3707
      %4160 = vst [vmem:[%s172 + $0x10c] sm:$0xf] %v3708
      %4161 = vst [vmem:[%s172 + $0x110] sm:$0xf] %v3709
      %4162 = vst [vmem:[%s172 + $0x114] sm:$0xf] %v3710
      %4163 = vst [vmem:[%s172 + $0x118] sm:$0xf] %v3711
      %4164 = vst [vmem:[%s172 + $0x11c] sm:$0xf] %v3712
      %4165 = vst [vmem:[%s172 + $0x120] sm:$0xf] %v3713
      %4166 = vst [vmem:[%s172 + $0x124] sm:$0xf] %v3714
      %4167 = vst [vmem:[%s172 + $0x128] sm:$0xf] %v3715
      %4168 = vst [vmem:[%s172 + $0x12c] sm:$0xf] %v3716
      %4169 = vst [vmem:[%s172 + $0x130] sm:$0xf] %v3717
      %4170 = vst [vmem:[%s172 + $0x134] sm:$0xf] %v3718
      %4171 = vst [vmem:[%s172 + $0x138] sm:$0xf] %v3719
      %4172 = vst [vmem:[%s172 + $0x13c] sm:$0xf] %v3720
      %4173 = vst [vmem:[%s172 + $0x140] sm:$0xf] %v3721
      %4174 = vst [vmem:[%s172 + $0x144] sm:$0xf] %v3722
      %4175 = vst [vmem:[%s172 + $0x148] sm:$0xf] %v3723
      %4176 = vst [vmem:[%s172 + $0x14c] sm:$0xf] %v3724
      %4177 = vst [vmem:[%s172 + $0x150] sm:$0xf] %v3725
      %4178 = vst [vmem:[%s172 + $0x154] sm:$0xf] %v3726
      %4179 = vst [vmem:[%s172 + $0x158] sm:$0xf] %v3727
      %4180 = vst [vmem:[%s172 + $0x15c] sm:$0xf] %v3728
      %4181 = vst [vmem:[%s172 + $0x160] sm:$0xf] %v3729
      %4182 = vst [vmem:[%s172 + $0x164] sm:$0xf] %v3730
      %4183 = vst [vmem:[%s172 + $0x168] sm:$0xf] %v3731
      %4184 = vst [vmem:[%s172 + $0x16c] sm:$0xf] %v3732
      %4185 = vst [vmem:[%s172 + $0x170] sm:$0xf] %v3733
      %4186 = vst [vmem:[%s172 + $0x174] sm:$0xf] %v3734
      %4187 = vst [vmem:[%s172 + $0x178] sm:$0xf] %v3735
      %4188 = vst [vmem:[%s172 + $0x17c] sm:$0xf] %v3736
      %4189 = vst [vmem:[%s172 + $0x180] sm:$0xf] %v3737
      %4190 = vst [vmem:[%s172 + $0x184] sm:$0xf] %v3738
      %4191 = vst [vmem:[%s172 + $0x188] sm:$0xf] %v3739
      %4192 = vst [vmem:[%s172 + $0x18c] sm:$0xf] %v3740
      %4193 = vst [vmem:[%s172 + $0x190] sm:$0xf] %v3741
      %4194 = vst [vmem:[%s172 + $0x194] sm:$0xf] %v3742
      %4195 = vst [vmem:[%s172 + $0x198] sm:$0xf] %v3743
      %4196 = vst [vmem:[%s172 + $0x19c] sm:$0xf] %v3744
      %4197 = vst [vmem:[%s172 + $0x1a0] sm:$0xf] %v3745
      %4198 = vst [vmem:[%s172 + $0x1a4] sm:$0xf] %v3746
      %4199 = vst [vmem:[%s172 + $0x1a8] sm:$0xf] %v3747
      %4200 = vst [vmem:[%s172 + $0x1ac] sm:$0xf] %v3748
      %4201 = vst [vmem:[%s172 + $0x1b0] sm:$0xf] %v3749
      %4202 = vst [vmem:[%s172 + $0x1b4] sm:$0xf] %v3750
      %4203 = vst [vmem:[%s172 + $0x1b8] sm:$0xf] %v3751
      %4204 = vst [vmem:[%s172 + $0x1bc] sm:$0xf] %v3752
      %4205 = vst [vmem:[%s172 + $0x1c0] sm:$0xf] %v3753
      %4206 = vst [vmem:[%s172 + $0x1c4] sm:$0xf] %v3754
      %4207 = vst [vmem:[%s172 + $0x1c8] sm:$0xf] %v3755
      %4208 = vst [vmem:[%s172 + $0x1cc] sm:$0xf] %v3756
      %4209 = vst [vmem:[%s172 + $0x1d0] sm:$0xf] %v3757
      %4210 = vst [vmem:[%s172 + $0x1d4] sm:$0xf] %v3758
      %4211 = vst [vmem:[%s172 + $0x1d8] sm:$0xf] %v3759
      %4212 = vst [vmem:[%s172 + $0x1dc] sm:$0xf] %v3760
      %4213 = vst [vmem:[%s172 + $0x1e0] sm:$0xf] %v3761
      %4214 = vst [vmem:[%s172 + $0x1e4] sm:$0xf] %v3762
      %4215 = vst [vmem:[%s172 + $0x1e8] sm:$0xf] %v3763
      %4216 = vst [vmem:[%s172 + $0x1ec] sm:$0xf] %v3764
      %4217 = vst [vmem:[%s172 + $0x1f0] sm:$0xf] %v3765
      %4218 = vst [vmem:[%s172 + $0x1f4] sm:$0xf] %v3766
      %4219 = vst [vmem:[%s172 + $0x1f8] sm:$0xf] %v3767
      %4220 = vst [vmem:[%s172 + $0x1fc] sm:$0xf] %v3768
      %4221 = vst [vmem:[%s172 + $0x200] sm:$0xf] %v3769
      %4222 = vst [vmem:[%s172 + $0x204] sm:$0xf] %v3770
      %4223 = vst [vmem:[%s172 + $0x208] sm:$0xf] %v3771
      %4224 = vst [vmem:[%s172 + $0x20c] sm:$0xf] %v3772
      %4225 = vst [vmem:[%s172 + $0x210] sm:$0xf] %v3773
      %4226 = vst [vmem:[%s172 + $0x214] sm:$0xf] %v3774
      %4227 = vst [vmem:[%s172 + $0x218] sm:$0xf] %v3775
      %4228 = vst [vmem:[%s172 + $0x21c] sm:$0xf] %v3776
      %4229 = vst [vmem:[%s172 + $0x220] sm:$0xf] %v3777
      %4230 = vst [vmem:[%s172 + $0x224] sm:$0xf] %v3778
      %4231 = vst [vmem:[%s172 + $0x228] sm:$0xf] %v3779
      %4232 = vst [vmem:[%s172 + $0x22c] sm:$0xf] %v3780
      %4233 = vst [vmem:[%s172 + $0x230] sm:$0xf] %v3781
      %4234 = vst [vmem:[%s172 + $0x234] sm:$0xf] %v3782
      %4235 = vst [vmem:[%s172 + $0x238] sm:$0xf] %v3783
      %4236 = vst [vmem:[%s172 + $0x23c] sm:$0xf] %v3784
      %4237 = vst [vmem:[%s172 + $0x240] sm:$0xf] %v3785
      %4238 = vst [vmem:[%s172 + $0x244] sm:$0xf] %v3786
      %4239 = vst [vmem:[%s172 + $0x248] sm:$0xf] %v3787
      %4240 = vst [vmem:[%s172 + $0x24c] sm:$0xf] %v3788
      %4241 = vst [vmem:[%s172 + $0x250] sm:$0xf] %v3789
      %4242 = vst [vmem:[%s172 + $0x254] sm:$0xf] %v3790
      %4243 = vst [vmem:[%s172 + $0x258] sm:$0xf] %v3791
      %4244 = vst [vmem:[%s172 + $0x25c] sm:$0xf] %v3792
      %4245 = vst [vmem:[%s172 + $0x260] sm:$0xf] %v3793
      %4246 = vst [vmem:[%s172 + $0x264] sm:$0xf] %v3794
      %4247 = vst [vmem:[%s172 + $0x268] sm:$0xf] %v3795
      %4248 = vst [vmem:[%s172 + $0x26c] sm:$0xf] %v3796
      %4249 = vst [vmem:[%s172 + $0x270] sm:$0xf] %v3797
      %4250 = vst [vmem:[%s172 + $0x274] sm:$0xf] %v3798
      %4251 = vst [vmem:[%s172 + $0x278] sm:$0xf] %v3799
      %4252 = vst [vmem:[%s172 + $0x27c] sm:$0xf] %v3800
      %4253 = vst [vmem:[%s172 + $0x280] sm:$0xf] %v3801
      %4254 = vst [vmem:[%s172 + $0x284] sm:$0xf] %v3802
      %4255 = vst [vmem:[%s172 + $0x288] sm:$0xf] %v3803
      %4256 = vst [vmem:[%s172 + $0x28c] sm:$0xf] %v3804
      %4257 = vst [vmem:[%s172 + $0x290] sm:$0xf] %v3805
      %4258 = vst [vmem:[%s172 + $0x294] sm:$0xf] %v3806
      %4259 = vst [vmem:[%s172 + $0x298] sm:$0xf] %v3807
      %4260 = vst [vmem:[%s172 + $0x29c] sm:$0xf] %v3808
      %4261 = vst [vmem:[%s172 + $0x2a0] sm:$0xf] %v3809
      %4262 = vst [vmem:[%s172 + $0x2a4] sm:$0xf] %v3810
      %4263 = vst [vmem:[%s172 + $0x2a8] sm:$0xf] %v3811
      %4264 = vst [vmem:[%s172 + $0x2ac] sm:$0xf] %v3812
      %4265 = vst [vmem:[%s172 + $0x2b0] sm:$0xf] %v3813
      %4266 = vst [vmem:[%s172 + $0x2b4] sm:$0xf] %v3814
      %4267 = vst [vmem:[%s172 + $0x2b8] sm:$0xf] %v3815
      %4268 = vst [vmem:[%s172 + $0x2bc] sm:$0xf] %v3816
      %4269 = vst [vmem:[%s172 + $0x2c0] sm:$0xf] %v3817
      %4270 = vst [vmem:[%s172 + $0x2c4] sm:$0xf] %v3818
      %4271 = vst [vmem:[%s172 + $0x2c8] sm:$0xf] %v3819
      %4272 = vst [vmem:[%s172 + $0x2cc] sm:$0xf] %v3820
      %4273 = vst [vmem:[%s172 + $0x2d0] sm:$0xf] %v3821
      %4274 = vst [vmem:[%s172 + $0x2d4] sm:$0xf] %v3822
      %4275 = vst [vmem:[%s172 + $0x2d8] sm:$0xf] %v3823
      %4276 = vst [vmem:[%s172 + $0x2dc] sm:$0xf] %v3824
      %4277 = vst [vmem:[%s172 + $0x2e0] sm:$0xf] %v3825
      %4278 = vst [vmem:[%s172 + $0x2e4] sm:$0xf] %v3826
      %4279 = vst [vmem:[%s172 + $0x2e8] sm:$0xf] %v3827
      %4280 = vst [vmem:[%s172 + $0x2ec] sm:$0xf] %v3828
      %4281 = vst [vmem:[%s172 + $0x2f0] sm:$0xf] %v3829
      %4282 = vst [vmem:[%s172 + $0x2f4] sm:$0xf] %v3830
      %4283 = vst [vmem:[%s172 + $0x2f8] sm:$0xf] %v3831
      %4284 = vst [vmem:[%s172 + $0x2fc] sm:$0xf] %v3832
      %4285 = vst [vmem:[%s172 + $0x300] sm:$0xf] %v3833
      %4286 = vst [vmem:[%s172 + $0x304] sm:$0xf] %v3834
      %4287 = vst [vmem:[%s172 + $0x308] sm:$0xf] %v3835
      %4288 = vst [vmem:[%s172 + $0x30c] sm:$0xf] %v3836
      %4289 = vst [vmem:[%s172 + $0x310] sm:$0xf] %v3837
      %4290 = vst [vmem:[%s172 + $0x314] sm:$0xf] %v3838
      %4291 = vst [vmem:[%s172 + $0x318] sm:$0xf] %v3839
      %4292 = vst [vmem:[%s172 + $0x31c] sm:$0xf] %v3840
      %4293 = vst [vmem:[%s172 + $0x320] sm:$0xf] %v3841
      %4294 = vst [vmem:[%s172 + $0x324] sm:$0xf] %v3842
      %4295 = vst [vmem:[%s172 + $0x328] sm:$0xf] %v3843
      %4296 = vst [vmem:[%s172 + $0x32c] sm:$0xf] %v3844
      %4297 = vst [vmem:[%s172 + $0x330] sm:$0xf] %v3845
      %4298 = vst [vmem:[%s172 + $0x334] sm:$0xf] %v3846
      %4299 = vst [vmem:[%s172 + $0x338] sm:$0xf] %v3847
      %4300 = vst [vmem:[%s172 + $0x33c] sm:$0xf] %v3848
      %4301 = vst [vmem:[%s172 + $0x340] sm:$0xf] %v3849
      %4302 = vst [vmem:[%s172 + $0x344] sm:$0xf] %v3850
      %4303 = vst [vmem:[%s172 + $0x348] sm:$0xf] %v3851
      %4304 = vst [vmem:[%s172 + $0x34c] sm:$0xf] %v3852
      %4305 = vst [vmem:[%s172 + $0x350] sm:$0xf] %v3853
      %4306 = vst [vmem:[%s172 + $0x354] sm:$0xf] %v3854
      %4307 = vst [vmem:[%s172 + $0x358] sm:$0xf] %v3855
      %4308 = vst [vmem:[%s172 + $0x35c] sm:$0xf] %v3856
      %4309 = vst [vmem:[%s172 + $0x360] sm:$0xf] %v3857
      %4310 = vst [vmem:[%s172 + $0x364] sm:$0xf] %v3858
      %4311 = vst [vmem:[%s172 + $0x368] sm:$0xf] %v3859
      %4312 = vst [vmem:[%s172 + $0x36c] sm:$0xf] %v3860
      %4313 = vst [vmem:[%s172 + $0x370] sm:$0xf] %v3861
      %4314 = vst [vmem:[%s172 + $0x374] sm:$0xf] %v3862
      %4315 = vst [vmem:[%s172 + $0x378] sm:$0xf] %v3863
      %4316 = vst [vmem:[%s172 + $0x37c] sm:$0xf] %v3864
      %4317 = vst [vmem:[%s172 + $0x380] sm:$0xf] %v3865
      %4318 = vst [vmem:[%s172 + $0x384] sm:$0xf] %v3866
      %4319 = vst [vmem:[%s172 + $0x388] sm:$0xf] %v3867
      %4320 = vst [vmem:[%s172 + $0x38c] sm:$0xf] %v3868
      %4321 = vst [vmem:[%s172 + $0x390] sm:$0xf] %v3869
      %4322 = vst [vmem:[%s172 + $0x394] sm:$0xf] %v3870
      %4323 = vst [vmem:[%s172 + $0x398] sm:$0xf] %v3871
      %4324 = vst [vmem:[%s172 + $0x39c] sm:$0xf] %v3872
      %4325 = vst [vmem:[%s172 + $0x3a0] sm:$0xf] %v3873
      %4326 = vst [vmem:[%s172 + $0x3a4] sm:$0xf] %v3874
      %4327 = vst [vmem:[%s172 + $0x3a8] sm:$0xf] %v3875
      %4328 = vst [vmem:[%s172 + $0x3ac] sm:$0xf] %v3876
      %4329 = vst [vmem:[%s172 + $0x3b0] sm:$0xf] %v3877
      %4330 = vst [vmem:[%s172 + $0x3b4] sm:$0xf] %v3878
      %4331 = vst [vmem:[%s172 + $0x3b8] sm:$0xf] %v3879
      %4332 = vst [vmem:[%s172 + $0x3bc] sm:$0xf] %v3880
      %4333 = vst [vmem:[%s172 + $0x3c0] sm:$0xf] %v3881
      %4334 = vst [vmem:[%s172 + $0x3c4] sm:$0xf] %v3882
      %4335 = vst [vmem:[%s172 + $0x3c8] sm:$0xf] %v3883
      %4336 = vst [vmem:[%s172 + $0x3cc] sm:$0xf] %v3884
      %4337 = vst [vmem:[%s172 + $0x3d0] sm:$0xf] %v3885
      %4338 = vst [vmem:[%s172 + $0x3d4] sm:$0xf] %v3886
      %4339 = vst [vmem:[%s172 + $0x3d8] sm:$0xf] %v3887
      %4340 = vst [vmem:[%s172 + $0x3dc] sm:$0xf] %v3888
      %4341 = vst [vmem:[%s172 + $0x3e0] sm:$0xf] %v3889
      %4342 = vst [vmem:[%s172 + $0x3e4] sm:$0xf] %v3890
      %4343 = vst [vmem:[%s172 + $0x3e8] sm:$0xf] %v3891
      %4344 = vst [vmem:[%s172 + $0x3ec] sm:$0xf] %v3892
      %4345 = vst [vmem:[%s172 + $0x3f0] sm:$0xf] %v3893
      %4346 = vst [vmem:[%s172 + $0x3f4] sm:$0xf] %v3894
      %4347 = vst [vmem:[%s172 + $0x3f8] sm:$0xf] %v3895
      %4348 = vst [vmem:[%s172 + $0x3fc] sm:$0xf] %v3896
      %4349 = vst [vmem:[%s172 + $0x400] sm:$0xf] %v3897
      %4350 = vst [vmem:[%s172 + $0x404] sm:$0xf] %v3898
      %4351 = vst [vmem:[%s172 + $0x408] sm:$0xf] %v3899
      %4352 = vst [vmem:[%s172 + $0x40c] sm:$0xf] %v3900
      %4353 = vst [vmem:[%s172 + $0x410] sm:$0xf] %v3901
      %4354 = vst [vmem:[%s172 + $0x414] sm:$0xf] %v3902
      %4355 = vst [vmem:[%s172 + $0x418] sm:$0xf] %v3903
      %4356 = vst [vmem:[%s172 + $0x41c] sm:$0xf] %v3904
      %4357 = vst [vmem:[%s172 + $0x420] sm:$0xf] %v3905
      %4358 = vst [vmem:[%s172 + $0x424] sm:$0xf] %v3906
      %4359 = vst [vmem:[%s172 + $0x428] sm:$0xf] %v3907
      %4360 = vst [vmem:[%s172 + $0x42c] sm:$0xf] %v3908
      %4361 = vst [vmem:[%s172 + $0x430] sm:$0xf] %v3909
      %4362 = vst [vmem:[%s172 + $0x434] sm:$0xf] %v3910
      %4363 = vst [vmem:[%s172 + $0x438] sm:$0xf] %v3911
      %4364 = vst [vmem:[%s172 + $0x43c] sm:$0xf] %v3912
      %4365 = vst [vmem:[%s172 + $0x440] sm:$0xf] %v3913
      %4366 = vst [vmem:[%s172 + $0x444] sm:$0xf] %v3914
      %4367 = vst [vmem:[%s172 + $0x448] sm:$0xf] %v3915
      %4368 = vst [vmem:[%s172 + $0x44c] sm:$0xf] %v3916
      %4369 = vst [vmem:[%s172 + $0x450] sm:$0xf] %v3917
      %4370 = vst [vmem:[%s172 + $0x454] sm:$0xf] %v3918
      %4371 = vst [vmem:[%s172 + $0x458] sm:$0xf] %v3919
      %4372 = vst [vmem:[%s172 + $0x45c] sm:$0xf] %v3920
      %4373 = vst [vmem:[%s172 + $0x460] sm:$0xf] %v3921
      %4374 = vst [vmem:[%s172 + $0x464] sm:$0xf] %v3922
      %4375 = vst [vmem:[%s172 + $0x468] sm:$0xf] %v3923
      %4376 = vst [vmem:[%s172 + $0x46c] sm:$0xf] %v3924
      %4377 = vst [vmem:[%s172 + $0x470] sm:$0xf] %v3925
      %4378 = vst [vmem:[%s172 + $0x474] sm:$0xf] %v3926
      %4379 = vst [vmem:[%s172 + $0x478] sm:$0xf] %v3927
      %4380 = vst [vmem:[%s172 + $0x47c] sm:$0xf] %v3928
      %4381 = vst [vmem:[%s172 + $0x480] sm:$0xf] %v3929
      %4382 = vst [vmem:[%s172 + $0x484] sm:$0xf] %v3930
      %4383 = vst [vmem:[%s172 + $0x488] sm:$0xf] %v3931
      %4384 = vst [vmem:[%s172 + $0x48c] sm:$0xf] %v3932
      %4385 = vst [vmem:[%s172 + $0x490] sm:$0xf] %v3933
      %4386 = vst [vmem:[%s172 + $0x494] sm:$0xf] %v3934
      %4387 = vst [vmem:[%s172 + $0x498] sm:$0xf] %v3935
      %4388 = vst [vmem:[%s172 + $0x49c] sm:$0xf] %v3936
      %4389 = vst [vmem:[%s172 + $0x4a0] sm:$0xf] %v3937
      %4390 = vst [vmem:[%s172 + $0x4a4] sm:$0xf] %v3938
      %4391 = vst [vmem:[%s172 + $0x4a8] sm:$0xf] %v3939
      %4392 = vst [vmem:[%s172 + $0x4ac] sm:$0xf] %v3940
      %4393 = vst [vmem:[%s172 + $0x4b0] sm:$0xf] %v3941
      %4394 = vst [vmem:[%s172 + $0x4b4] sm:$0xf] %v3942
      %4395 = vst [vmem:[%s172 + $0x4b8] sm:$0xf] %v3943
      %4396 = vst [vmem:[%s172 + $0x4bc] sm:$0xf] %v3944
      %4397 = vst [vmem:[%s172 + $0x4c0] sm:$0xf] %v3945
      %4398 = vst [vmem:[%s172 + $0x4c4] sm:$0xf] %v3946
      %4399 = vst [vmem:[%s172 + $0x4c8] sm:$0xf] %v3947
      %4400 = vst [vmem:[%s172 + $0x4cc] sm:$0xf] %v3948
      %4401 = vst [vmem:[%s172 + $0x4d0] sm:$0xf] %v3949
      %4402 = vst [vmem:[%s172 + $0x4d4] sm:$0xf] %v3950
      %4403 = vst [vmem:[%s172 + $0x4d8] sm:$0xf] %v3951
      %4404 = vst [vmem:[%s172 + $0x4dc] sm:$0xf] %v3952
      %4405 = vst [vmem:[%s172 + $0x4e0] sm:$0xf] %v3953
      %4406 = vst [vmem:[%s172 + $0x4e4] sm:$0xf] %v3954
      %4407 = vst [vmem:[%s172 + $0x4e8] sm:$0xf] %v3955
      %4408 = vst [vmem:[%s172 + $0x4ec] sm:$0xf] %v3956
      %4409 = vst [vmem:[%s172 + $0x4f0] sm:$0xf] %v3957
      %4410 = vst [vmem:[%s172 + $0x4f4] sm:$0xf] %v3958
      %4411 = vst [vmem:[%s172 + $0x4f8] sm:$0xf] %v3959
      %4412 = vst [vmem:[%s172 + $0x4fc] sm:$0xf] %v3960
      %4413 = vst [vmem:[%s172 + $0x500] sm:$0xf] %v3961
      %4414 = vst [vmem:[%s172 + $0x504] sm:$0xf] %v3962
      %4415 = vst [vmem:[%s172 + $0x508] sm:$0xf] %v3963
      %4416 = vst [vmem:[%s172 + $0x50c] sm:$0xf] %v3964
      %4417 = vst [vmem:[%s172 + $0x510] sm:$0xf] %v3965
      %4418 = vst [vmem:[%s172 + $0x514] sm:$0xf] %v3966
      %4419 = vst [vmem:[%s172 + $0x518] sm:$0xf] %v3967
      %4420 = vst [vmem:[%s172 + $0x51c] sm:$0xf] %v3968
      %4421 = vst [vmem:[%s172 + $0x520] sm:$0xf] %v3969
      %4422 = vst [vmem:[%s172 + $0x524] sm:$0xf] %v3970
      %4423 = vst [vmem:[%s172 + $0x528] sm:$0xf] %v3971
      %4424 = vst [vmem:[%s172 + $0x52c] sm:$0xf] %v3972
      %4425 = vst [vmem:[%s172 + $0x530] sm:$0xf] %v3973
      %4426 = vst [vmem:[%s172 + $0x534] sm:$0xf] %v3974
      %4427 = vst [vmem:[%s172 + $0x538] sm:$0xf] %v3975
      %4428 = vst [vmem:[%s172 + $0x53c] sm:$0xf] %v3976
      %4429 = vst [vmem:[%s172 + $0x540] sm:$0xf] %v3977
      %4430 = vst [vmem:[%s172 + $0x544] sm:$0xf] %v3978
      %4431 = vst [vmem:[%s172 + $0x548] sm:$0xf] %v3979
      %4432 = vst [vmem:[%s172 + $0x54c] sm:$0xf] %v3980
      %4433 = vst [vmem:[%s172 + $0x550] sm:$0xf] %v3981
      %4434 = vst [vmem:[%s172 + $0x554] sm:$0xf] %v3982
      %4435 = vst [vmem:[%s172 + $0x558] sm:$0xf] %v3983
      %4436 = vst [vmem:[%s172 + $0x55c] sm:$0xf] %v3984
      %4437 = vst [vmem:[%s172 + $0x560] sm:$0xf] %v3985
      %4438 = vst [vmem:[%s172 + $0x564] sm:$0xf] %v3986
      %4439 = vst [vmem:[%s172 + $0x568] sm:$0xf] %v3987
      %4440 = vst [vmem:[%s172 + $0x56c] sm:$0xf] %v3988
      %4441 = vst [vmem:[%s172 + $0x570] sm:$0xf] %v3989
      %4442 = vst [vmem:[%s172 + $0x574] sm:$0xf] %v3990
      %4443 = vst [vmem:[%s172 + $0x578] sm:$0xf] %v3991
      %4444 = vst [vmem:[%s172 + $0x57c] sm:$0xf] %v3992
      %4445 = vst [vmem:[%s172 + $0x580] sm:$0xf] %v3993
      %4446 = vst [vmem:[%s172 + $0x584] sm:$0xf] %v3994
      %4447 = vst [vmem:[%s172 + $0x588] sm:$0xf] %v3995
      %4448 = vst [vmem:[%s172 + $0x58c] sm:$0xf] %v3996
      %4449 = vst [vmem:[%s172 + $0x590] sm:$0xf] %v3997
      %4450 = vst [vmem:[%s172 + $0x594] sm:$0xf] %v3998
      %4451 = vst [vmem:[%s172 + $0x598] sm:$0xf] %v3999
      %4452 = vst [vmem:[%s172 + $0x59c] sm:$0xf] %v4000
      %4453 = vst [vmem:[%s172 + $0x5a0] sm:$0xf] %v4001
      %4454 = vst [vmem:[%s172 + $0x5a4] sm:$0xf] %v4002
      %4455 = vst [vmem:[%s172 + $0x5a8] sm:$0xf] %v4003
      %4456 = vst [vmem:[%s172 + $0x5ac] sm:$0xf] %v4004
      %4457 = vst [vmem:[%s172 + $0x5b0] sm:$0xf] %v4005
      %4458 = vst [vmem:[%s172 + $0x5b4] sm:$0xf] %v4006
      %4459 = vst [vmem:[%s172 + $0x5b8] sm:$0xf] %v4007
      %4460 = vst [vmem:[%s172 + $0x5bc] sm:$0xf] %v4008
      %4461 = vst [vmem:[%s172 + $0x5c0] sm:$0xf] %v4009
      %4462 = vst [vmem:[%s172 + $0x5c4] sm:$0xf] %v4010
      %4463 = vst [vmem:[%s172 + $0x5c8] sm:$0xf] %v4011
      %4464 = vst [vmem:[%s172 + $0x5cc] sm:$0xf] %v4012
      %4465 = vst [vmem:[%s172 + $0x5d0] sm:$0xf] %v4013
      %4466 = vst [vmem:[%s172 + $0x5d4] sm:$0xf] %v4014
      %4467 = vst [vmem:[%s172 + $0x5d8] sm:$0xf] %v4015
      %4468 = vst [vmem:[%s172 + $0x5dc] sm:$0xf] %v4016
      %4469 = vst [vmem:[%s172 + $0x5e0] sm:$0xf] %v4017
      %4470 = vst [vmem:[%s172 + $0x5e4] sm:$0xf] %v4018
      %4471 = vst [vmem:[%s172 + $0x5e8] sm:$0xf] %v4019
      %4472 = vst [vmem:[%s172 + $0x5ec] sm:$0xf] %v4020
      %4473 = vst [vmem:[%s172 + $0x5f0] sm:$0xf] %v4021
      %4474 = vst [vmem:[%s172 + $0x5f4] sm:$0xf] %v4022
      %4475 = vst [vmem:[%s172 + $0x5f8] sm:$0xf] %v4023
      %4476 = vst [vmem:[%s172 + $0x5fc] sm:$0xf] %v4024
      %4477 = vst [vmem:[%s172 + $0x600] sm:$0xf] %v4025
      %4478 = vst [vmem:[%s172 + $0x604] sm:$0xf] %v4026
      %4479 = vst [vmem:[%s172 + $0x608] sm:$0xf] %v4027
      %4480 = vst [vmem:[%s172 + $0x60c] sm:$0xf] %v4028
      %4481 = vst [vmem:[%s172 + $0x610] sm:$0xf] %v4029
      %4482 = vst [vmem:[%s172 + $0x614] sm:$0xf] %v4030
      %4483 = vst [vmem:[%s172 + $0x618] sm:$0xf] %v4031
      %4484 = vst [vmem:[%s172 + $0x61c] sm:$0xf] %v4032
      %4485 = vst [vmem:[%s172 + $0x620] sm:$0xf] %v4033
      %4486 = vst [vmem:[%s172 + $0x624] sm:$0xf] %v4034
      %4487 = vst [vmem:[%s172 + $0x628] sm:$0xf] %v4035
      %4488 = vst [vmem:[%s172 + $0x62c] sm:$0xf] %v4036
      %4489 = vst [vmem:[%s172 + $0x630] sm:$0xf] %v4037
      %4490 = vst [vmem:[%s172 + $0x634] sm:$0xf] %v4038
      %4491 = vst [vmem:[%s172 + $0x638] sm:$0xf] %v4039
      %4492 = vst [vmem:[%s172 + $0x63c] sm:$0xf] %v4040
      %4493 = vst [vmem:[%s172 + $0x640] sm:$0xf] %v4041
      %4494 = vst [vmem:[%s172 + $0x644] sm:$0xf] %v4042
      %4495 = vst [vmem:[%s172 + $0x648] sm:$0xf] %v4043
      %4496 = vst [vmem:[%s172 + $0x64c] sm:$0xf] %v4044
      %4497 = vst [vmem:[%s172 + $0x650] sm:$0xf] %v4045
      %4498 = vst [vmem:[%s172 + $0x654] sm:$0xf] %v4046
      %4499 = vst [vmem:[%s172 + $0x658] sm:$0xf] %v4047
      %4500 = vst [vmem:[%s172 + $0x65c] sm:$0xf] %v4048
      %4501 = vst [vmem:[%s172 + $0x660] sm:$0xf] %v4049
      %4502 = vst [vmem:[%s172 + $0x664] sm:$0xf] %v4050
      %4503 = vst [vmem:[%s172 + $0x668] sm:$0xf] %v4051
      %4504 = vst [vmem:[%s172 + $0x66c] sm:$0xf] %v4052
      %4505 = vst [vmem:[%s172 + $0x670] sm:$0xf] %v4053
      %4506 = vst [vmem:[%s172 + $0x674] sm:$0xf] %v4054
      %4507 = vst [vmem:[%s172 + $0x678] sm:$0xf] %v4055
      %4508 = vst [vmem:[%s172 + $0x67c] sm:$0xf] %v4056
      %4509 = vst [vmem:[%s172 + $0x680] sm:$0xf] %v4057
      %4510 = vst [vmem:[%s172 + $0x684] sm:$0xf] %v4058
      %4511 = vst [vmem:[%s172 + $0x688] sm:$0xf] %v4059
      %4512 = vst [vmem:[%s172 + $0x68c] sm:$0xf] %v4060
      %4513 = vst [vmem:[%s172 + $0x690] sm:$0xf] %v4061
      %4514 = vst [vmem:[%s172 + $0x694] sm:$0xf] %v4062
      %4515 = vst [vmem:[%s172 + $0x698] sm:$0xf] %v4063
      %4516 = vst [vmem:[%s172 + $0x69c] sm:$0xf] %v4064
      %4517 = vst [vmem:[%s172 + $0x6a0] sm:$0xf] %v4065
      %4518 = vst [vmem:[%s172 + $0x6a4] sm:$0xf] %v4066
      %4519 = vst [vmem:[%s172 + $0x6a8] sm:$0xf] %v4067
      %4520 = vst [vmem:[%s172 + $0x6ac] sm:$0xf] %v4068
      %4521 = vst [vmem:[%s172 + $0x6b0] sm:$0xf] %v4069
      %4522 = vst [vmem:[%s172 + $0x6b4] sm:$0xf] %v4070
      %4523 = vst [vmem:[%s172 + $0x6b8] sm:$0xf] %v4071
      %4524 = vst [vmem:[%s172 + $0x6bc] sm:$0xf] %v4072
      %4525 = vst [vmem:[%s172 + $0x6c0] sm:$0xf] %v4073
      %4526 = vst [vmem:[%s172 + $0x6c4] sm:$0xf] %v4074
      %4527 = vst [vmem:[%s172 + $0x6c8] sm:$0xf] %v4075
      %4528 = vst [vmem:[%s172 + $0x6cc] sm:$0xf] %v4076
      %4529 = vst [vmem:[%s172 + $0x6d0] sm:$0xf] %v4077
      %4530 = vst [vmem:[%s172 + $0x6d4] sm:$0xf] %v4078
      %4531 = vst [vmem:[%s172 + $0x6d8] sm:$0xf] %v4079
      %4532 = vst [vmem:[%s172 + $0x6dc] sm:$0xf] %v4080
      %4533 = vst [vmem:[%s172 + $0x6e0] sm:$0xf] %v4081
      %4534 = vst [vmem:[%s172 + $0x6e4] sm:$0xf] %v4082
      %4535 = vst [vmem:[%s172 + $0x6e8] sm:$0xf] %v4083
      %4536 = vst [vmem:[%s172 + $0x6ec] sm:$0xf] %v4084
      %4537 = vst [vmem:[%s172 + $0x6f0] sm:$0xf] %v4085
      %4538 = vst [vmem:[%s172 + $0x6f4] sm:$0xf] %v4086
      %4539 = vst [vmem:[%s172 + $0x6f8] sm:$0xf] %v4087
      %4540 = vst [vmem:[%s172 + $0x6fc] sm:$0xf] %v4088
      %4541 = vst [vmem:[%s172 + $0x700] sm:$0xf] %v4089
      %4542 = vst [vmem:[%s172 + $0x704] sm:$0xf] %v4090
      %4543 = vst [vmem:[%s172 + $0x708] sm:$0xf] %v4091
      %4544 = vst [vmem:[%s172 + $0x70c] sm:$0xf] %v4092
      %s4545 = smul.u32 452, %s14
      %p4546 = scmp.lt.s32.totalorder %s4545, 903
      %s4547 = scalar_select %p4546, %s4545, 903
      %s4548 = smul.addr %s4547, 4
      %s4549 = scalar_lea.vmem %s3, %s4548
      // Predicated region
      $region33: #{steering_prediction_forward.3} parent=31 // pred_check
        %p4550 = pneg %p100
      $region34: #{steering_prediction_forward.3} parent=31 // pred_check_branch
        %4552 = sbr.rel (%p4550) target = $region36
      $region35: #{steering_prediction_forward.3} parent=31 // pred_region
        %s4553 = smul.u32 452, %s14
      $region36: #{steering_prediction_forward.3} parent=31 // pred_fallthru
        _
    $region32: #{steering_prediction_forward.3} parent=5 // pred_fallthru
      _
    %p4554 = scmp.le.s32.totalorder 2, %s9
    // Predicated region
    $region37: #{steering_prediction_forward.3} parent=5 // pred_check
      %p4555 = pneg %p4554
    $region38: #{steering_prediction_forward.3} parent=5 // pred_check_branch
      %4557 = sbr.rel (%p4555) target = $region40
    $region39: #{steering_prediction_forward.3} parent=5 // pred_region
      %s4558 = ssub.s32 %s9, 2
      // Predicated region
      $region41: #{steering_prediction_forward.3} parent=39 // pred_check
        %p4559 = pneg %p106
      $region42: #{steering_prediction_forward.3} parent=39 // pred_check_branch
        %4561 = sbr.rel (%p4559) target = $region44
      $region43: #{steering_prediction_forward.3} parent=39 // pred_region
        %s4562 = smul.u32 452, %s15
        %p4563 = scmp.lt.s32.totalorder %s4562, 903
        %s4564 = scalar_select %p4563, %s4562, 903
        %s4565 = smul.addr %s4564, 4
        %s4566 = scalar_lea.vmem %s3, %s4565
      $region44: #{steering_prediction_forward.3} parent=39 // pred_fallthru
        _
    $region40: #{steering_prediction_forward.3} parent=5 // pred_fallthru
      _
  $region6: #{steering_prediction_forward.3} parent=0 // loop_footer
    %s13 = sadd.s32 1, %s9
  $region7: #{steering_prediction_forward.3} parent=0 // loop_footer_branch
    %8 = sbr.rel target = $region3
  $region8: #{steering_prediction_forward.3} parent=0 // loop_exit
    _

// kernel: steering_prediction_forward.4
$region0: #{steering_prediction_forward.4}
  #allocation0 [shape = 'u32[]', space=smem, size = 0x4, offset = 0x4, fixed_abs, tag = 'smem constant byte address 0x4 - core index']
  #allocation1 [shape = 'u32[72,128]{1,0:T(1,128)}', space=vmem, size = 0x9000, scoped, tag = 'internal scratch']
  %s0 = inlined_call_operand.vmem [shape: bf16[1408,640], index: 0, kind: input, shape index: {}]
  %s1 = inlined_call_operand.vmem [shape: bf16[640,128], index: 1, kind: input, shape index: {}]
  %s2 = inlined_call_operand.vmem [shape: f32[1,128], index: 2, kind: input, shape index: {}]
  %s3 = inlined_call_operand.vmem [shape: bf16[1408,128], index: 3, kind: output, shape index: {}]
  %s4 = sld [smem:[#allocation0]]
  $region45: #{steering_prediction_forward.4} parent=0
    _
  %s6 = ssub.s32 1, %s4
  %s7 = scalar_select 0, %s6, %s4
  loop: start=0, step=1, limit=4
  $region2: #{steering_prediction_forward.4} parent=0 // loop_pre_header
    _
  $region3: #{steering_prediction_forward.4} parent=0 // loop_header
    %s9 = sphi 0, %s13
    %p10 = scmp.ge.s32.totalorder %s9, 4
    %s19 = sphi 0, %s21
    %s22 = sphi 0, %s19
    %s23 = sphi 0, %s22
    %s39 = sphi 0, %s23
    %s43 = sphi 0, %s43
    %s45 = sphi 0, %s43
    %s46 = sphi 0, %s45
    %s60 = sphi 0, %s46
    %s64 = sphi 0, %s64
    %s66 = sphi 0, %s64
    %s67 = sphi 0, %s66
    %s81 = sphi 0, %s67
    %s87 = sphi 0, %s89
    %s90 = sphi 0, %s87
    %s91 = sphi 0, %s90
    %s107 = sphi 0, %s91
  $region4: #{steering_prediction_forward.4} parent=0 // loop_header_branch
    %12 = sbr.rel (%p10) target = $region8
  $region5: #{steering_prediction_forward.4} parent=0 // loop_body
    %s14 = ssub.s32 %s9, 1
    %s15 = ssub.s32 %s9, 2
    %s16 = sadd.s32 %s9, 1
    %s17 = ssub.s32 %s9, %s16
    %p18 = scmp.eq.s32.totalorder %s17, 0
    %s20 = sadd.s32 %s19, 1
    %s21 = scalar_select %p18, %s19, %s20
    %p24 = pneg %p18
    %p25 = scmp.eq.s32.totalorder %s9, 1
    %p26 = por %p24, %p25
    %p27 = scmp.ne.s32.totalorder %s19, %s22
    %p28 = scmp.eq.s32.totalorder %s9, 0
    %p29 = por %p27, %p28
    %p30 = scmp.ne.s32.totalorder %s19, %s22
    %p31 = scmp.eq.s32.totalorder %s14, 1
    %p32 = por %p30, %p31
    %p33 = scmp.ne.s32.totalorder %s22, %s23
    %p34 = scmp.eq.s32.totalorder %s14, 0
    %p35 = por %p33, %p34
    %p36 = scmp.ne.s32.totalorder %s22, %s23
    %p37 = scmp.eq.s32.totalorder %s15, 1
    %p38 = por %p36, %p37
    %p40 = scmp.ne.s32.totalorder %s23, %s39
    %p41 = scmp.eq.s32.totalorder %s15, 0
    %p42 = por %p40, %p41
    %s44 = sadd.s32 %s43, 1
    %p47 = scmp.eq.s32.totalorder %s9, 1
    %p48 = scmp.ne.s32.totalorder %s43, %s45
    %p49 = scmp.eq.s32.totalorder %s9, 0
    %p50 = por %p48, %p49
    %p51 = scmp.ne.s32.totalorder %s43, %s45
    %p52 = scmp.eq.s32.totalorder %s14, 1
    %p53 = por %p51, %p52
    %p54 = scmp.ne.s32.totalorder %s45, %s46
    %p55 = scmp.eq.s32.totalorder %s14, 0
    %p56 = por %p54, %p55
    %p57 = scmp.ne.s32.totalorder %s45, %s46
    %p58 = scmp.eq.s32.totalorder %s15, 1
    %p59 = por %p57, %p58
    %p61 = scmp.ne.s32.totalorder %s46, %s60
    %p62 = scmp.eq.s32.totalorder %s15, 0
    %p63 = por %p61, %p62
    %s65 = sadd.s32 %s64, 1
    %p68 = scmp.eq.s32.totalorder %s9, 1
    %p69 = scmp.ne.s32.totalorder %s64, %s66
    %p70 = scmp.eq.s32.totalorder %s9, 0
    %p71 = por %p69, %p70
    %p72 = scmp.ne.s32.totalorder %s64, %s66
    %p73 = scmp.eq.s32.totalorder %s14, 1
    %p74 = por %p72, %p73
    %p75 = scmp.ne.s32.totalorder %s66, %s67
    %p76 = scmp.eq.s32.totalorder %s14, 0
    %p77 = por %p75, %p76
    %p78 = scmp.ne.s32.totalorder %s66, %s67
    %p79 = scmp.eq.s32.totalorder %s15, 1
    %p80 = por %p78, %p79
    %p82 = scmp.ne.s32.totalorder %s67, %s81
    %p83 = scmp.eq.s32.totalorder %s15, 0
    %p84 = por %p82, %p83
    %s85 = ssub.s32 %s9, %s16
    %p86 = scmp.eq.s32.totalorder %s85, 0
    %s88 = sadd.s32 %s87, 1
    %s89 = scalar_select %p86, %s87, %s88
    %p92 = pneg %p86
    %p93 = scmp.eq.s32.totalorder %s9, 1
    %p94 = por %p92, %p93
    %p95 = scmp.ne.s32.totalorder %s87, %s90
    %p96 = scmp.eq.s32.totalorder %s9, 0
    %p97 = por %p95, %p96
    %p98 = scmp.ne.s32.totalorder %s87, %s90
    %p99 = scmp.eq.s32.totalorder %s14, 1
    %p100 = por %p98, %p99
    %p101 = scmp.ne.s32.totalorder %s90, %s91
    %p102 = scmp.eq.s32.totalorder %s14, 0
    %p103 = por %p101, %p102
    %p104 = scmp.ne.s32.totalorder %s90, %s91
    %p105 = scmp.eq.s32.totalorder %s15, 1
    %p106 = por %p104, %p105
    %p108 = scmp.ne.s32.totalorder %s91, %s107
    %p109 = scmp.eq.s32.totalorder %s15, 0
    %p110 = por %p108, %p109
    %p111 = scmp.le.s32.totalorder 1, %s9
    %p112 = scmp.lt.s32.totalorder %s9, 3
    %p113 = pnand %p111, %p112
    %p114 = pneg %p113
    // Predicated region
    $region9: #{steering_prediction_forward.4} parent=5 // pred_check
      _
    $region10: #{steering_prediction_forward.4} parent=5 // pred_check_branch
      %116 = sbr.rel (%p113) target = $region12
    $region11: #{steering_prediction_forward.4} parent=5 // pred_region
      %s117 = ssub.s32 %s9, 1
      // Predicated region
      $region13: #{steering_prediction_forward.4} parent=11 // pred_check
        %p118 = pneg %p56
      $region14: #{steering_prediction_forward.4} parent=11 // pred_check_branch
        %120 = sbr.rel (%p118) target = $region16
      $region15: #{steering_prediction_forward.4} parent=11 // pred_region
        _
      $region16: #{steering_prediction_forward.4} parent=11 // pred_fallthru
        _
      // Predicated region
      $region17: #{steering_prediction_forward.4} parent=11 // pred_check
        %p121 = pneg %p77
      $region18: #{steering_prediction_forward.4} parent=11 // pred_check_branch
        %123 = sbr.rel (%p121) target = $region20
      $region19: #{steering_prediction_forward.4} parent=11 // pred_region
        _
      $region20: #{steering_prediction_forward.4} parent=11 // pred_fallthru
        _
    $region12: #{steering_prediction_forward.4} parent=5 // pred_fallthru
      _
    %p124 = scmp.lt.s32.totalorder %s9, 2
    // Predicated region
    $region21: #{steering_prediction_forward.4} parent=5 // pred_check
      %p125 = pneg %p124
    $region22: #{steering_prediction_forward.4} parent=5 // pred_check_branch
      %127 = sbr.rel (%p125) target = $region24
    $region23: #{steering_prediction_forward.4} parent=5 // pred_region
      // Predicated region
      $region25: #{steering_prediction_forward.4} parent=23 // pred_check
        %p128 = pneg %p29
      $region26: #{steering_prediction_forward.4} parent=23 // pred_check_branch
        %130 = sbr.rel (%p128) target = $region28
      $region27: #{steering_prediction_forward.4} parent=23 // pred_region
        %s131 = smul.u32 88, %s9
        %p132 = scmp.lt.s32.totalorder %s131, 175
        %s133 = scalar_select %p132, %s131, 175
        %s134 = smul.addr %s133, 5
        %s135 = smul.addr %s134, 4
        %s136 = scalar_lea.vmem %s0, %s135
        %s137 = smul.u32 88, %s9
      $region28: #{steering_prediction_forward.4} parent=23 // pred_fallthru
        _
    $region24: #{steering_prediction_forward.4} parent=5 // pred_fallthru
      _
    %p138 = scmp.le.s32.totalorder 1, %s9
    %p139 = scmp.lt.s32.totalorder %s9, 3
    %p140 = pnand %p138, %p139
    %p141 = pneg %p140
    // Predicated region
    $region29: #{steering_prediction_forward.4} parent=5 // pred_check
      _
    $region30: #{steering_prediction_forward.4} parent=5 // pred_check_branch
      %143 = sbr.rel (%p140) target = $region32
    $region31: #{steering_prediction_forward.4} parent=5 // pred_region
      %s144 = ssub.s32 %s9, 1
      %s145 = smul.u32 88, %s14
      %p146 = scmp.lt.s32.totalorder %s145, 175
      %s147 = scalar_select %p146, %s145, 175
      %s148 = smul.addr %s147, 5
      %s149 = smul.addr %s148, 4
      %s150 = scalar_lea.vmem %s0, %s149
      %p151 = pneg %p35
      %p152 = pneg %p32
      %p153 = pneg %p56
      %p154 = pneg %p53
      %p155 = pneg %p77
      %p156 = pneg %p74
      %p157 = pneg %p103
      %p158 = pneg %p100
      %s159 = smul.u32 88, %s14
      %p160 = scmp.lt.s32.totalorder %s159, 175
      %s161 = scalar_select %p160, %s159, 175
      %s162 = smul.addr %s161, 4
      %s163 = scalar_lea.vmem %s3, %s162
      %s164 = smul.u32 88, %s14
      %p165 = scmp.lt.s32.totalorder %s164, 175
      %s166 = scalar_select %p165, %s164, 175
      %s167 = smul.addr %s166, 5
      %s168 = smul.addr %s167, 4
      %s169 = scalar_lea.vmem %s0, %s168
      %s170 = smul.u32 88, %s14
      %s171 = smul.u32 88, %s14
      %p172 = scmp.lt.s32.totalorder %s171, 175
      %s173 = scalar_select %p172, %s171, 175
      %s174 = smul.addr %s173, 4
      %s175 = scalar_lea.vmem %s3, %s174
      %s176 = smul.u32 88, %s14
      %v177 = vld [vmem:[%s169] sm:$0xff]
      %v178 = vld [vmem:[%s169 + $0x8] sm:$0xff]
      %v179 = vld [vmem:[%s169 + $0x10] sm:$0xf]
      %v180 = vld [vmem:[%s169 + $0x14] sm:$0xff]
      %v181 = vld [vmem:[%s169 + $0x1c] sm:$0xff]
      %v182 = vld [vmem:[%s169 + $0x24] sm:$0xf]
      %v183 = vld [vmem:[%s169 + $0x28] sm:$0xff]
      %v184 = vld [vmem:[%s169 + $0x30] sm:$0xff]
      %v185 = vld [vmem:[%s169 + $0x38] sm:$0xf]
      %v186 = vld [vmem:[%s169 + $0x3c] sm:$0xff]
      %v187 = vld [vmem:[%s169 + $0x44] sm:$0xff]
      %v188 = vld [vmem:[%s169 + $0x4c] sm:$0xf]
      %v189 = vld [vmem:[%s169 + $0x50] sm:$0xff]
      %v190 = vld [vmem:[%s169 + $0x58] sm:$0xff]
      %v191 = vld [vmem:[%s169 + $0x60] sm:$0xf]
      %v192 = vld [vmem:[%s169 + $0x64] sm:$0xff]
      %v193 = vld [vmem:[%s169 + $0x6c] sm:$0xff]
      %v194 = vld [vmem:[%s169 + $0x74] sm:$0xf]
      %v195 = vld [vmem:[%s169 + $0x78] sm:$0xff]
      %v196 = vld [vmem:[%s169 + $0x80] sm:$0xff]
      %v197 = vld [vmem:[%s169 + $0x88] sm:$0xf]
      %v198 = vld [vmem:[%s169 + $0x8c] sm:$0xff]
      %v199 = vld [vmem:[%s169 + $0x94] sm:$0xff]
      %v200 = vld [vmem:[%s169 + $0x9c] sm:$0xf]
      %v201 = vld [vmem:[%s169 + $0xa0] sm:$0xff]
      %v202 = vld [vmem:[%s169 + $0xa8] sm:$0xff]
      %v203 = vld [vmem:[%s169 + $0xb0] sm:$0xf]
      %v204 = vld [vmem:[%s169 + $0xb4] sm:$0xff]
      %v205 = vld [vmem:[%s169 + $0xbc] sm:$0xff]
      %v206 = vld [vmem:[%s169 + $0xc4] sm:$0xf]
      %v207 = vld [vmem:[%s169 + $0xc8] sm:$0xff]
      %v208 = vld [vmem:[%s169 + $0xd0] sm:$0xff]
      %v209 = vld [vmem:[%s169 + $0xd8] sm:$0xf]
      %v210 = vld [vmem:[%s169 + $0xdc] sm:$0xff]
      %v211 = vld [vmem:[%s169 + $0xe4] sm:$0xff]
      %v212 = vld [vmem:[%s169 + $0xec] sm:$0xf]
      %v213 = vld [vmem:[%s169 + $0xf0] sm:$0xff]
      %v214 = vld [vmem:[%s169 + $0xf8] sm:$0xff]
      %v215 = vld [vmem:[%s169 + $0x100] sm:$0xf]
      %v216 = vld [vmem:[%s169 + $0x104] sm:$0xff]
      %v217 = vld [vmem:[%s169 + $0x10c] sm:$0xff]
      %v218 = vld [vmem:[%s169 + $0x114] sm:$0xf]
      %v219 = vld [vmem:[%s169 + $0x118] sm:$0xff]
      %v220 = vld [vmem:[%s169 + $0x120] sm:$0xff]
      %v221 = vld [vmem:[%s169 + $0x128] sm:$0xf]
      %v222 = vld [vmem:[%s169 + $0x12c] sm:$0xff]
      %v223 = vld [vmem:[%s169 + $0x134] sm:$0xff]
      %v224 = vld [vmem:[%s169 + $0x13c] sm:$0xf]
      %v225 = vld [vmem:[%s169 + $0x140] sm:$0xff]
      %v226 = vld [vmem:[%s169 + $0x148] sm:$0xff]
      %v227 = vld [vmem:[%s169 + $0x150] sm:$0xf]
      %v228 = vld [vmem:[%s169 + $0x154] sm:$0xff]
      %v229 = vld [vmem:[%s169 + $0x15c] sm:$0xff]
      %v230 = vld [vmem:[%s169 + $0x164] sm:$0xf]
      %v231 = vld [vmem:[%s169 + $0x168] sm:$0xff]
      %v232 = vld [vmem:[%s169 + $0x170] sm:$0xff]
      %v233 = vld [vmem:[%s169 + $0x178] sm:$0xf]
      %v234 = vld [vmem:[%s169 + $0x17c] sm:$0xff]
      %v235 = vld [vmem:[%s169 + $0x184] sm:$0xff]
      %v236 = vld [vmem:[%s169 + $0x18c] sm:$0xf]
      %v237 = vld [vmem:[%s169 + $0x190] sm:$0xff]
      %v238 = vld [vmem:[%s169 + $0x198] sm:$0xff]
      %v239 = vld [vmem:[%s169 + $0x1a0] sm:$0xf]
      %v240 = vld [vmem:[%s169 + $0x1a4] sm:$0xff]
      %v241 = vld [vmem:[%s169 + $0x1ac] sm:$0xff]
      %v242 = vld [vmem:[%s169 + $0x1b4] sm:$0xf]
      %v243 = vld [vmem:[%s169 + $0x1b8] sm:$0xff]
      %v244 = vld [vmem:[%s169 + $0x1c0] sm:$0xff]
      %v245 = vld [vmem:[%s169 + $0x1c8] sm:$0xf]
      %v246 = vld [vmem:[%s169 + $0x1cc] sm:$0xff]
      %v247 = vld [vmem:[%s169 + $0x1d4] sm:$0xff]
      %v248 = vld [vmem:[%s169 + $0x1dc] sm:$0xf]
      %v249 = vld [vmem:[%s169 + $0x1e0] sm:$0xff]
      %v250 = vld [vmem:[%s169 + $0x1e8] sm:$0xff]
      %v251 = vld [vmem:[%s169 + $0x1f0] sm:$0xf]
      %v252 = vld [vmem:[%s169 + $0x1f4] sm:$0xff]
      %v253 = vld [vmem:[%s169 + $0x1fc] sm:$0xff]
      %v254 = vld [vmem:[%s169 + $0x204] sm:$0xf]
      %v255 = vld [vmem:[%s169 + $0x208] sm:$0xff]
      %v256 = vld [vmem:[%s169 + $0x210] sm:$0xff]
      %v257 = vld [vmem:[%s169 + $0x218] sm:$0xf]
      %v258 = vld [vmem:[%s169 + $0x21c] sm:$0xff]
      %v259 = vld [vmem:[%s169 + $0x224] sm:$0xff]
      %v260 = vld [vmem:[%s169 + $0x22c] sm:$0xf]
      %v261 = vld [vmem:[%s169 + $0x230] sm:$0xff]
      %v262 = vld [vmem:[%s169 + $0x238] sm:$0xff]
      %v263 = vld [vmem:[%s169 + $0x240] sm:$0xf]
      %v264 = vld [vmem:[%s169 + $0x244] sm:$0xff]
      %v265 = vld [vmem:[%s169 + $0x24c] sm:$0xff]
      %v266 = vld [vmem:[%s169 + $0x254] sm:$0xf]
      %v267 = vld [vmem:[%s169 + $0x258] sm:$0xff]
      %v268 = vld [vmem:[%s169 + $0x260] sm:$0xff]
      %v269 = vld [vmem:[%s169 + $0x268] sm:$0xf]
      %v270 = vld [vmem:[%s169 + $0x26c] sm:$0xff]
      %v271 = vld [vmem:[%s169 + $0x274] sm:$0xff]
      %v272 = vld [vmem:[%s169 + $0x27c] sm:$0xf]
      %v273 = vld [vmem:[%s169 + $0x280] sm:$0xff]
      %v274 = vld [vmem:[%s169 + $0x288] sm:$0xff]
      %v275 = vld [vmem:[%s169 + $0x290] sm:$0xf]
      %v276 = vld [vmem:[%s169 + $0x294] sm:$0xff]
      %v277 = vld [vmem:[%s169 + $0x29c] sm:$0xff]
      %v278 = vld [vmem:[%s169 + $0x2a4] sm:$0xf]
      %v279 = vld [vmem:[%s169 + $0x2a8] sm:$0xff]
      %v280 = vld [vmem:[%s169 + $0x2b0] sm:$0xff]
      %v281 = vld [vmem:[%s169 + $0x2b8] sm:$0xf]
      %v282 = vld [vmem:[%s169 + $0x2bc] sm:$0xff]
      %v283 = vld [vmem:[%s169 + $0x2c4] sm:$0xff]
      %v284 = vld [vmem:[%s169 + $0x2cc] sm:$0xf]
      %v285 = vld [vmem:[%s169 + $0x2d0] sm:$0xff]
      %v286 = vld [vmem:[%s169 + $0x2d8] sm:$0xff]
      %v287 = vld [vmem:[%s169 + $0x2e0] sm:$0xf]
      %v288 = vld [vmem:[%s169 + $0x2e4] sm:$0xff]
      %v289 = vld [vmem:[%s169 + $0x2ec] sm:$0xff]
      %v290 = vld [vmem:[%s169 + $0x2f4] sm:$0xf]
      %v291 = vld [vmem:[%s169 + $0x2f8] sm:$0xff]
      %v292 = vld [vmem:[%s169 + $0x300] sm:$0xff]
      %v293 = vld [vmem:[%s169 + $0x308] sm:$0xf]
      %v294 = vld [vmem:[%s169 + $0x30c] sm:$0xff]
      %v295 = vld [vmem:[%s169 + $0x314] sm:$0xff]
      %v296 = vld [vmem:[%s169 + $0x31c] sm:$0xf]
      %v297 = vld [vmem:[%s169 + $0x320] sm:$0xff]
      %v298 = vld [vmem:[%s169 + $0x328] sm:$0xff]
      %v299 = vld [vmem:[%s169 + $0x330] sm:$0xf]
      %v300 = vld [vmem:[%s169 + $0x334] sm:$0xff]
      %v301 = vld [vmem:[%s169 + $0x33c] sm:$0xff]
      %v302 = vld [vmem:[%s169 + $0x344] sm:$0xf]
      %v303 = vld [vmem:[%s169 + $0x348] sm:$0xff]
      %v304 = vld [vmem:[%s169 + $0x350] sm:$0xff]
      %v305 = vld [vmem:[%s169 + $0x358] sm:$0xf]
      %v306 = vld [vmem:[%s169 + $0x35c] sm:$0xff]
      %v307 = vld [vmem:[%s169 + $0x364] sm:$0xff]
      %v308 = vld [vmem:[%s169 + $0x36c] sm:$0xf]
      %v309 = vld [vmem:[%s169 + $0x370] sm:$0xff]
      %v310 = vld [vmem:[%s169 + $0x378] sm:$0xff]
      %v311 = vld [vmem:[%s169 + $0x380] sm:$0xf]
      %v312 = vld [vmem:[%s169 + $0x384] sm:$0xff]
      %v313 = vld [vmem:[%s169 + $0x38c] sm:$0xff]
      %v314 = vld [vmem:[%s169 + $0x394] sm:$0xf]
      %v315 = vld [vmem:[%s169 + $0x398] sm:$0xff]
      %v316 = vld [vmem:[%s169 + $0x3a0] sm:$0xff]
      %v317 = vld [vmem:[%s169 + $0x3a8] sm:$0xf]
      %v318 = vld [vmem:[%s169 + $0x3ac] sm:$0xff]
      %v319 = vld [vmem:[%s169 + $0x3b4] sm:$0xff]
      %v320 = vld [vmem:[%s169 + $0x3bc] sm:$0xf]
      %v321 = vld [vmem:[%s169 + $0x3c0] sm:$0xff]
      %v322 = vld [vmem:[%s169 + $0x3c8] sm:$0xff]
      %v323 = vld [vmem:[%s169 + $0x3d0] sm:$0xf]
      %v324 = vld [vmem:[%s169 + $0x3d4] sm:$0xff]
      %v325 = vld [vmem:[%s169 + $0x3dc] sm:$0xff]
      %v326 = vld [vmem:[%s169 + $0x3e4] sm:$0xf]
      %v327 = vld [vmem:[%s169 + $0x3e8] sm:$0xff]
      %v328 = vld [vmem:[%s169 + $0x3f0] sm:$0xff]
      %v329 = vld [vmem:[%s169 + $0x3f8] sm:$0xf]
      %v330 = vld [vmem:[%s169 + $0x3fc] sm:$0xff]
      %v331 = vld [vmem:[%s169 + $0x404] sm:$0xff]
      %v332 = vld [vmem:[%s169 + $0x40c] sm:$0xf]
      %v333 = vld [vmem:[%s169 + $0x410] sm:$0xff]
      %v334 = vld [vmem:[%s169 + $0x418] sm:$0xff]
      %v335 = vld [vmem:[%s169 + $0x420] sm:$0xf]
      %v336 = vld [vmem:[%s169 + $0x424] sm:$0xff]
      %v337 = vld [vmem:[%s169 + $0x42c] sm:$0xff]
      %v338 = vld [vmem:[%s169 + $0x434] sm:$0xf]
      %v339 = vld [vmem:[%s169 + $0x438] sm:$0xff]
      %v340 = vld [vmem:[%s169 + $0x440] sm:$0xff]
      %v341 = vld [vmem:[%s169 + $0x448] sm:$0xf]
      %v342 = vld [vmem:[%s169 + $0x44c] sm:$0xff]
      %v343 = vld [vmem:[%s169 + $0x454] sm:$0xff]
      %v344 = vld [vmem:[%s169 + $0x45c] sm:$0xf]
      %v345 = vld [vmem:[%s169 + $0x460] sm:$0xff]
      %v346 = vld [vmem:[%s169 + $0x468] sm:$0xff]
      %v347 = vld [vmem:[%s169 + $0x470] sm:$0xf]
      %v348 = vld [vmem:[%s169 + $0x474] sm:$0xff]
      %v349 = vld [vmem:[%s169 + $0x47c] sm:$0xff]
      %v350 = vld [vmem:[%s169 + $0x484] sm:$0xf]
      %v351 = vld [vmem:[%s169 + $0x488] sm:$0xff]
      %v352 = vld [vmem:[%s169 + $0x490] sm:$0xff]
      %v353 = vld [vmem:[%s169 + $0x498] sm:$0xf]
      %v354 = vld [vmem:[%s169 + $0x49c] sm:$0xff]
      %v355 = vld [vmem:[%s169 + $0x4a4] sm:$0xff]
      %v356 = vld [vmem:[%s169 + $0x4ac] sm:$0xf]
      %v357 = vld [vmem:[%s169 + $0x4b0] sm:$0xff]
      %v358 = vld [vmem:[%s169 + $0x4b8] sm:$0xff]
      %v359 = vld [vmem:[%s169 + $0x4c0] sm:$0xf]
      %v360 = vld [vmem:[%s169 + $0x4c4] sm:$0xff]
      %v361 = vld [vmem:[%s169 + $0x4cc] sm:$0xff]
      %v362 = vld [vmem:[%s169 + $0x4d4] sm:$0xf]
      %v363 = vld [vmem:[%s169 + $0x4d8] sm:$0xff]
      %v364 = vld [vmem:[%s169 + $0x4e0] sm:$0xff]
      %v365 = vld [vmem:[%s169 + $0x4e8] sm:$0xf]
      %v366 = vld [vmem:[%s169 + $0x4ec] sm:$0xff]
      %v367 = vld [vmem:[%s169 + $0x4f4] sm:$0xff]
      %v368 = vld [vmem:[%s169 + $0x4fc] sm:$0xf]
      %v369 = vld [vmem:[%s169 + $0x500] sm:$0xff]
      %v370 = vld [vmem:[%s169 + $0x508] sm:$0xff]
      %v371 = vld [vmem:[%s169 + $0x510] sm:$0xf]
      %v372 = vld [vmem:[%s169 + $0x514] sm:$0xff]
      %v373 = vld [vmem:[%s169 + $0x51c] sm:$0xff]
      %v374 = vld [vmem:[%s169 + $0x524] sm:$0xf]
      %v375 = vld [vmem:[%s169 + $0x528] sm:$0xff]
      %v376 = vld [vmem:[%s169 + $0x530] sm:$0xff]
      %v377 = vld [vmem:[%s169 + $0x538] sm:$0xf]
      %v378 = vld [vmem:[%s169 + $0x53c] sm:$0xff]
      %v379 = vld [vmem:[%s169 + $0x544] sm:$0xff]
      %v380 = vld [vmem:[%s169 + $0x54c] sm:$0xf]
      %v381 = vld [vmem:[%s169 + $0x550] sm:$0xff]
      %v382 = vld [vmem:[%s169 + $0x558] sm:$0xff]
      %v383 = vld [vmem:[%s169 + $0x560] sm:$0xf]
      %v384 = vld [vmem:[%s169 + $0x564] sm:$0xff]
      %v385 = vld [vmem:[%s169 + $0x56c] sm:$0xff]
      %v386 = vld [vmem:[%s169 + $0x574] sm:$0xf]
      %v387 = vld [vmem:[%s169 + $0x578] sm:$0xff]
      %v388 = vld [vmem:[%s169 + $0x580] sm:$0xff]
      %v389 = vld [vmem:[%s169 + $0x588] sm:$0xf]
      %v390 = vld [vmem:[%s169 + $0x58c] sm:$0xff]
      %v391 = vld [vmem:[%s169 + $0x594] sm:$0xff]
      %v392 = vld [vmem:[%s169 + $0x59c] sm:$0xf]
      %v393 = vld [vmem:[%s169 + $0x5a0] sm:$0xff]
      %v394 = vld [vmem:[%s169 + $0x5a8] sm:$0xff]
      %v395 = vld [vmem:[%s169 + $0x5b0] sm:$0xf]
      %v396 = vld [vmem:[%s169 + $0x5b4] sm:$0xff]
      %v397 = vld [vmem:[%s169 + $0x5bc] sm:$0xff]
      %v398 = vld [vmem:[%s169 + $0x5c4] sm:$0xf]
      %v399 = vld [vmem:[%s169 + $0x5c8] sm:$0xff]
      %v400 = vld [vmem:[%s169 + $0x5d0] sm:$0xff]
      %v401 = vld [vmem:[%s169 + $0x5d8] sm:$0xf]
      %v402 = vld [vmem:[%s169 + $0x5dc] sm:$0xff]
      %v403 = vld [vmem:[%s169 + $0x5e4] sm:$0xff]
      %v404 = vld [vmem:[%s169 + $0x5ec] sm:$0xf]
      %v405 = vld [vmem:[%s169 + $0x5f0] sm:$0xff]
      %v406 = vld [vmem:[%s169 + $0x5f8] sm:$0xff]
      %v407 = vld [vmem:[%s169 + $0x600] sm:$0xf]
      %v408 = vld [vmem:[%s169 + $0x604] sm:$0xff]
      %v409 = vld [vmem:[%s169 + $0x60c] sm:$0xff]
      %v410 = vld [vmem:[%s169 + $0x614] sm:$0xf]
      %v411 = vld [vmem:[%s169 + $0x618] sm:$0xff]
      %v412 = vld [vmem:[%s169 + $0x620] sm:$0xff]
      %v413 = vld [vmem:[%s169 + $0x628] sm:$0xf]
      %v414 = vld [vmem:[%s169 + $0x62c] sm:$0xff]
      %v415 = vld [vmem:[%s169 + $0x634] sm:$0xff]
      %v416 = vld [vmem:[%s169 + $0x63c] sm:$0xf]
      %v417 = vld [vmem:[%s169 + $0x640] sm:$0xff]
      %v418 = vld [vmem:[%s169 + $0x648] sm:$0xff]
      %v419 = vld [vmem:[%s169 + $0x650] sm:$0xf]
      %v420 = vld [vmem:[%s169 + $0x654] sm:$0xff]
      %v421 = vld [vmem:[%s169 + $0x65c] sm:$0xff]
      %v422 = vld [vmem:[%s169 + $0x664] sm:$0xf]
      %v423 = vld [vmem:[%s169 + $0x668] sm:$0xff]
      %v424 = vld [vmem:[%s169 + $0x670] sm:$0xff]
      %v425 = vld [vmem:[%s169 + $0x678] sm:$0xf]
      %v426 = vld [vmem:[%s169 + $0x67c] sm:$0xff]
      %v427 = vld [vmem:[%s169 + $0x684] sm:$0xff]
      %v428 = vld [vmem:[%s169 + $0x68c] sm:$0xf]
      %v429 = vld [vmem:[%s169 + $0x690] sm:$0xff]
      %v430 = vld [vmem:[%s169 + $0x698] sm:$0xff]
      %v431 = vld [vmem:[%s169 + $0x6a0] sm:$0xf]
      %v432 = vld [vmem:[%s169 + $0x6a4] sm:$0xff]
      %v433 = vld [vmem:[%s169 + $0x6ac] sm:$0xff]
      %v434 = vld [vmem:[%s169 + $0x6b4] sm:$0xf]
      %v435 = vld [vmem:[%s169 + $0x6b8] sm:$0xff]
      %v436 = vld [vmem:[%s169 + $0x6c0] sm:$0xff]
      %v437 = vld [vmem:[%s169 + $0x6c8] sm:$0xf]
      %v438 = vld [vmem:[%s169 + $0x6cc] sm:$0xff]
      %v439 = vld [vmem:[%s169 + $0x6d4] sm:$0xff]
      %v440 = vld [vmem:[%s169 + $0x6dc] sm:$0xf]
      %v441 = vld [vmem:[%s1] sm:$0xf]
      %v442 = vld [vmem:[%s1 + $0x4] sm:$0xf]
      %v443 = vld [vmem:[%s1 + $0x8] sm:$0xf]
      %v444 = vld [vmem:[%s1 + $0xc] sm:$0xf]
      %v445 = vld [vmem:[%s1 + $0x10] sm:$0xf]
      %v446 = vld [vmem:[%s1 + $0x14] sm:$0xf]
      %v447 = vld [vmem:[%s1 + $0x18] sm:$0xf]
      %v448 = vld [vmem:[%s1 + $0x1c] sm:$0xf]
      %v449 = vld [vmem:[%s1 + $0x20] sm:$0xf]
      %v450 = vld [vmem:[%s1 + $0x24] sm:$0xf]
      %v451 = vld [vmem:[%s1 + $0x28] sm:$0xf]
      %v452 = vld [vmem:[%s1 + $0x2c] sm:$0xf]
      %v453 = vld [vmem:[%s1 + $0x30] sm:$0xf]
      %v454 = vld [vmem:[%s1 + $0x34] sm:$0xf]
      %v455 = vld [vmem:[%s1 + $0x38] sm:$0xf]
      %v456 = vld [vmem:[%s1 + $0x3c] sm:$0xf]
      %v457 = vld [vmem:[%s1 + $0x40] sm:$0xf]
      %v458 = vld [vmem:[%s1 + $0x44] sm:$0xf]
      %v459 = vld [vmem:[%s1 + $0x48] sm:$0xf]
      %v460 = vld [vmem:[%s1 + $0x4c] sm:$0xf]
      %v461 = vld [vmem:[%s1 + $0x50] sm:$0xf]
      %v462 = vld [vmem:[%s1 + $0x54] sm:$0xf]
      %v463 = vld [vmem:[%s1 + $0x58] sm:$0xf]
      %v464 = vld [vmem:[%s1 + $0x5c] sm:$0xf]
      %v465 = vld [vmem:[%s1 + $0x60] sm:$0xf]
      %v466 = vld [vmem:[%s1 + $0x64] sm:$0xf]
      %v467 = vld [vmem:[%s1 + $0x68] sm:$0xf]
      %v468 = vld [vmem:[%s1 + $0x6c] sm:$0xf]
      %v469 = vld [vmem:[%s1 + $0x70] sm:$0xf]
      %v470 = vld [vmem:[%s1 + $0x74] sm:$0xf]
      %v471 = vld [vmem:[%s1 + $0x78] sm:$0xf]
      %v472 = vld [vmem:[%s1 + $0x7c] sm:$0xf]
      %v473 = vld [vmem:[%s1 + $0x80] sm:$0xf]
      %v474 = vld [vmem:[%s1 + $0x84] sm:$0xf]
      %v475 = vld [vmem:[%s1 + $0x88] sm:$0xf]
      %v476 = vld [vmem:[%s1 + $0x8c] sm:$0xf]
      %v477 = vld [vmem:[%s1 + $0x90] sm:$0xf]
      %v478 = vld [vmem:[%s1 + $0x94] sm:$0xf]
      %v479 = vld [vmem:[%s1 + $0x98] sm:$0xf]
      %v480 = vld [vmem:[%s1 + $0x9c] sm:$0xf]
      %v481 = vld [vmem:[%s1 + $0xa0] sm:$0xf]
      %v482 = vld [vmem:[%s1 + $0xa4] sm:$0xf]
      %v483 = vld [vmem:[%s1 + $0xa8] sm:$0xf]
      %v484 = vld [vmem:[%s1 + $0xac] sm:$0xf]
      %v485 = vld [vmem:[%s1 + $0xb0] sm:$0xf]
      %v486 = vld [vmem:[%s1 + $0xb4] sm:$0xf]
      %v487 = vld [vmem:[%s1 + $0xb8] sm:$0xf]
      %v488 = vld [vmem:[%s1 + $0xbc] sm:$0xf]
      %v489 = vld [vmem:[%s1 + $0xc0] sm:$0xf]
      %v490 = vld [vmem:[%s1 + $0xc4] sm:$0xf]
      %v491 = vld [vmem:[%s1 + $0xc8] sm:$0xf]
      %v492 = vld [vmem:[%s1 + $0xcc] sm:$0xf]
      %v493 = vld [vmem:[%s1 + $0xd0] sm:$0xf]
      %v494 = vld [vmem:[%s1 + $0xd4] sm:$0xf]
      %v495 = vld [vmem:[%s1 + $0xd8] sm:$0xf]
      %v496 = vld [vmem:[%s1 + $0xdc] sm:$0xf]
      %v497 = vld [vmem:[%s1 + $0xe0] sm:$0xf]
      %v498 = vld [vmem:[%s1 + $0xe4] sm:$0xf]
      %v499 = vld [vmem:[%s1 + $0xe8] sm:$0xf]
      %v500 = vld [vmem:[%s1 + $0xec] sm:$0xf]
      %v501 = vld [vmem:[%s1 + $0xf0] sm:$0xf]
      %v502 = vld [vmem:[%s1 + $0xf4] sm:$0xf]
      %v503 = vld [vmem:[%s1 + $0xf8] sm:$0xf]
      %v504 = vld [vmem:[%s1 + $0xfc] sm:$0xf]
      %v505 = vld [vmem:[%s1 + $0x100] sm:$0xf]
      %v506 = vld [vmem:[%s1 + $0x104] sm:$0xf]
      %v507 = vld [vmem:[%s1 + $0x108] sm:$0xf]
      %v508 = vld [vmem:[%s1 + $0x10c] sm:$0xf]
      %v509 = vld [vmem:[%s1 + $0x110] sm:$0xf]
      %v510 = vld [vmem:[%s1 + $0x114] sm:$0xf]
      %v511 = vld [vmem:[%s1 + $0x118] sm:$0xf]
      %v512 = vld [vmem:[%s1 + $0x11c] sm:$0xf]
      %v513 = vld [vmem:[%s1 + $0x120] sm:$0xf]
      %v514 = vld [vmem:[%s1 + $0x124] sm:$0xf]
      %v515 = vld [vmem:[%s1 + $0x128] sm:$0xf]
      %v516 = vld [vmem:[%s1 + $0x12c] sm:$0xf]
      %v517 = vld [vmem:[%s1 + $0x130] sm:$0xf]
      %v518 = vld [vmem:[%s1 + $0x134] sm:$0xf]
      %v519 = vld [vmem:[%s1 + $0x138] sm:$0xf]
      %v520 = vld [vmem:[%s1 + $0x13c] sm:$0xf]
      %v521 = vld [vmem:[%s2] sm:$0x1]
      %v523 = vperm.slane %v521, 0
      %v789 = vunpack.c.l.b16 %v177
      %v790 = vunpack.c.h.b16 %v177
      %v791 = vunpack.c.l.b16 %v178
      %v792 = vunpack.c.h.b16 %v178
      %v793 = vunpack.c.l.b16 %v179
      %v794 = vunpack.c.l.b16 %v180
      %v795 = vunpack.c.h.b16 %v180
      %v796 = vunpack.c.l.b16 %v181
      %v797 = vunpack.c.h.b16 %v181
      %v798 = vunpack.c.l.b16 %v182
      %v799 = vunpack.c.l.b16 %v183
      %v800 = vunpack.c.h.b16 %v183
      %v801 = vunpack.c.l.b16 %v184
      %v802 = vunpack.c.h.b16 %v184
      %v803 = vunpack.c.l.b16 %v185
      %v804 = vunpack.c.l.b16 %v186
      %v805 = vunpack.c.h.b16 %v186
      %v806 = vunpack.c.l.b16 %v187
      %v807 = vunpack.c.h.b16 %v187
      %v808 = vunpack.c.l.b16 %v188
      %v809 = vunpack.c.l.b16 %v189
      %v810 = vunpack.c.h.b16 %v189
      %v811 = vunpack.c.l.b16 %v190
      %v812 = vunpack.c.h.b16 %v190
      %v813 = vunpack.c.l.b16 %v191
      %v814 = vunpack.c.l.b16 %v192
      %v815 = vunpack.c.h.b16 %v192
      %v816 = vunpack.c.l.b16 %v193
      %v817 = vunpack.c.h.b16 %v193
      %v818 = vunpack.c.l.b16 %v194
      %v819 = vunpack.c.l.b16 %v195
      %v820 = vunpack.c.h.b16 %v195
      %v821 = vunpack.c.l.b16 %v196
      %v822 = vunpack.c.h.b16 %v196
      %v823 = vunpack.c.l.b16 %v197
      %v824 = vunpack.c.l.b16 %v198
      %v825 = vunpack.c.h.b16 %v198
      %v826 = vunpack.c.l.b16 %v199
      %v827 = vunpack.c.h.b16 %v199
      %v828 = vunpack.c.l.b16 %v200
      %v829 = vunpack.c.l.b16 %v201
      %v830 = vunpack.c.h.b16 %v201
      %v831 = vunpack.c.l.b16 %v202
      %v832 = vunpack.c.h.b16 %v202
      %v833 = vunpack.c.l.b16 %v203
      %v834 = vunpack.c.l.b16 %v204
      %v835 = vunpack.c.h.b16 %v204
      %v836 = vunpack.c.l.b16 %v205
      %v837 = vunpack.c.h.b16 %v205
      %v838 = vunpack.c.l.b16 %v206
      %v839 = vunpack.c.l.b16 %v207
      %v840 = vunpack.c.h.b16 %v207
      %v841 = vunpack.c.l.b16 %v208
      %v842 = vunpack.c.h.b16 %v208
      %v843 = vunpack.c.l.b16 %v209
      %v844 = vunpack.c.l.b16 %v210
      %v845 = vunpack.c.h.b16 %v210
      %v846 = vunpack.c.l.b16 %v211
      %v847 = vunpack.c.h.b16 %v211
      %v848 = vunpack.c.l.b16 %v212
      %v849 = vunpack.c.l.b16 %v213
      %v850 = vunpack.c.h.b16 %v213
      %v851 = vunpack.c.l.b16 %v214
      %v852 = vunpack.c.h.b16 %v214
      %v853 = vunpack.c.l.b16 %v215
      %v854 = vunpack.c.l.b16 %v216
      %v855 = vunpack.c.h.b16 %v216
      %v856 = vunpack.c.l.b16 %v217
      %v857 = vunpack.c.h.b16 %v217
      %v858 = vunpack.c.l.b16 %v218
      %v859 = vunpack.c.l.b16 %v219
      %v860 = vunpack.c.h.b16 %v219
      %v861 = vunpack.c.l.b16 %v220
      %v862 = vunpack.c.h.b16 %v220
      %v863 = vunpack.c.l.b16 %v221
      %v864 = vunpack.c.l.b16 %v222
      %v865 = vunpack.c.h.b16 %v222
      %v866 = vunpack.c.l.b16 %v223
      %v867 = vunpack.c.h.b16 %v223
      %v868 = vunpack.c.l.b16 %v224
      %v869 = vunpack.c.l.b16 %v225
      %v870 = vunpack.c.h.b16 %v225
      %v871 = vunpack.c.l.b16 %v226
      %v872 = vunpack.c.h.b16 %v226
      %v873 = vunpack.c.l.b16 %v227
      %v874 = vunpack.c.l.b16 %v228
      %v875 = vunpack.c.h.b16 %v228
      %v876 = vunpack.c.l.b16 %v229
      %v877 = vunpack.c.h.b16 %v229
      %v878 = vunpack.c.l.b16 %v230
      %v879 = vunpack.c.l.b16 %v231
      %v880 = vunpack.c.h.b16 %v231
      %v881 = vunpack.c.l.b16 %v232
      %v882 = vunpack.c.h.b16 %v232
      %v883 = vunpack.c.l.b16 %v233
      %v884 = vunpack.c.l.b16 %v234
      %v885 = vunpack.c.h.b16 %v234
      %v886 = vunpack.c.l.b16 %v235
      %v887 = vunpack.c.h.b16 %v235
      %v888 = vunpack.c.l.b16 %v236
      %v889 = vunpack.c.l.b16 %v237
      %v890 = vunpack.c.h.b16 %v237
      %v891 = vunpack.c.l.b16 %v238
      %v892 = vunpack.c.h.b16 %v238
      %v893 = vunpack.c.l.b16 %v239
      %v894 = vunpack.c.l.b16 %v240
      %v895 = vunpack.c.h.b16 %v240
      %v896 = vunpack.c.l.b16 %v241
      %v897 = vunpack.c.h.b16 %v241
      %v898 = vunpack.c.l.b16 %v242
      %v899 = vunpack.c.l.b16 %v243
      %v900 = vunpack.c.h.b16 %v243
      %v901 = vunpack.c.l.b16 %v244
      %v902 = vunpack.c.h.b16 %v244
      %v903 = vunpack.c.l.b16 %v245
      %v904 = vunpack.c.l.b16 %v246
      %v905 = vunpack.c.h.b16 %v246
      %v906 = vunpack.c.l.b16 %v247
      %v907 = vunpack.c.h.b16 %v247
      %v908 = vunpack.c.l.b16 %v248
      %v909 = vunpack.c.l.b16 %v249
      %v910 = vunpack.c.h.b16 %v249
      %v911 = vunpack.c.l.b16 %v250
      %v912 = vunpack.c.h.b16 %v250
      %v913 = vunpack.c.l.b16 %v251
      %v914 = vunpack.c.l.b16 %v252
      %v915 = vunpack.c.h.b16 %v252
      %v916 = vunpack.c.l.b16 %v253
      %v917 = vunpack.c.h.b16 %v253
      %v918 = vunpack.c.l.b16 %v254
      %v919 = vunpack.c.l.b16 %v255
      %v920 = vunpack.c.h.b16 %v255
      %v921 = vunpack.c.l.b16 %v256
      %v922 = vunpack.c.h.b16 %v256
      %v923 = vunpack.c.l.b16 %v257
      %v924 = vunpack.c.l.b16 %v258
      %v925 = vunpack.c.h.b16 %v258
      %v926 = vunpack.c.l.b16 %v259
      %v927 = vunpack.c.h.b16 %v259
      %v928 = vunpack.c.l.b16 %v260
      %v929 = vunpack.c.l.b16 %v261
      %v930 = vunpack.c.h.b16 %v261
      %v931 = vunpack.c.l.b16 %v262
      %v932 = vunpack.c.h.b16 %v262
      %v933 = vunpack.c.l.b16 %v263
      %v934 = vunpack.c.l.b16 %v264
      %v935 = vunpack.c.h.b16 %v264
      %v936 = vunpack.c.l.b16 %v265
      %v937 = vunpack.c.h.b16 %v265
      %v938 = vunpack.c.l.b16 %v266
      %v939 = vunpack.c.l.b16 %v267
      %v940 = vunpack.c.h.b16 %v267
      %v941 = vunpack.c.l.b16 %v268
      %v942 = vunpack.c.h.b16 %v268
      %v943 = vunpack.c.l.b16 %v269
      %v944 = vunpack.c.l.b16 %v270
      %v945 = vunpack.c.h.b16 %v270
      %v946 = vunpack.c.l.b16 %v271
      %v947 = vunpack.c.h.b16 %v271
      %v948 = vunpack.c.l.b16 %v272
      %v949 = vunpack.c.l.b16 %v273
      %v950 = vunpack.c.h.b16 %v273
      %v951 = vunpack.c.l.b16 %v274
      %v952 = vunpack.c.h.b16 %v274
      %v953 = vunpack.c.l.b16 %v275
      %v954 = vunpack.c.l.b16 %v276
      %v955 = vunpack.c.h.b16 %v276
      %v956 = vunpack.c.l.b16 %v277
      %v957 = vunpack.c.h.b16 %v277
      %v958 = vunpack.c.l.b16 %v278
      %v959 = vunpack.c.l.b16 %v279
      %v960 = vunpack.c.h.b16 %v279
      %v961 = vunpack.c.l.b16 %v280
      %v962 = vunpack.c.h.b16 %v280
      %v963 = vunpack.c.l.b16 %v281
      %v964 = vunpack.c.l.b16 %v282
      %v965 = vunpack.c.h.b16 %v282
      %v966 = vunpack.c.l.b16 %v283
      %v967 = vunpack.c.h.b16 %v283
      %v968 = vunpack.c.l.b16 %v284
      %v969 = vunpack.c.l.b16 %v285
      %v970 = vunpack.c.h.b16 %v285
      %v971 = vunpack.c.l.b16 %v286
      %v972 = vunpack.c.h.b16 %v286
      %v973 = vunpack.c.l.b16 %v287
      %v974 = vunpack.c.l.b16 %v288
      %v975 = vunpack.c.h.b16 %v288
      %v976 = vunpack.c.l.b16 %v289
      %v977 = vunpack.c.h.b16 %v289
      %v978 = vunpack.c.l.b16 %v290
      %v979 = vunpack.c.l.b16 %v291
      %v980 = vunpack.c.h.b16 %v291
      %v981 = vunpack.c.l.b16 %v292
      %v982 = vunpack.c.h.b16 %v292
      %v983 = vunpack.c.l.b16 %v293
      %v984 = vunpack.c.l.b16 %v294
      %v985 = vunpack.c.h.b16 %v294
      %v986 = vunpack.c.l.b16 %v295
      %v987 = vunpack.c.h.b16 %v295
      %v988 = vunpack.c.l.b16 %v296
      %v989 = vunpack.c.l.b16 %v297
      %v990 = vunpack.c.h.b16 %v297
      %v991 = vunpack.c.l.b16 %v298
      %v992 = vunpack.c.h.b16 %v298
      %v993 = vunpack.c.l.b16 %v299
      %v994 = vunpack.c.l.b16 %v300
      %v995 = vunpack.c.h.b16 %v300
      %v996 = vunpack.c.l.b16 %v301
      %v997 = vunpack.c.h.b16 %v301
      %v998 = vunpack.c.l.b16 %v302
      %v999 = vunpack.c.l.b16 %v303
      %v1000 = vunpack.c.h.b16 %v303
      %v1001 = vunpack.c.l.b16 %v304
      %v1002 = vunpack.c.h.b16 %v304
      %v1003 = vunpack.c.l.b16 %v305
      %v1004 = vunpack.c.l.b16 %v306
      %v1005 = vunpack.c.h.b16 %v306
      %v1006 = vunpack.c.l.b16 %v307
      %v1007 = vunpack.c.h.b16 %v307
      %v1008 = vunpack.c.l.b16 %v308
      %v1009 = vunpack.c.l.b16 %v309
      %v1010 = vunpack.c.h.b16 %v309
      %v1011 = vunpack.c.l.b16 %v310
      %v1012 = vunpack.c.h.b16 %v310
      %v1013 = vunpack.c.l.b16 %v311
      %v1014 = vunpack.c.l.b16 %v312
      %v1015 = vunpack.c.h.b16 %v312
      %v1016 = vunpack.c.l.b16 %v313
      %v1017 = vunpack.c.h.b16 %v313
      %v1018 = vunpack.c.l.b16 %v314
      %v1019 = vunpack.c.l.b16 %v315
      %v1020 = vunpack.c.h.b16 %v315
      %v1021 = vunpack.c.l.b16 %v316
      %v1022 = vunpack.c.h.b16 %v316
      %v1023 = vunpack.c.l.b16 %v317
      %v1024 = vunpack.c.l.b16 %v318
      %v1025 = vunpack.c.h.b16 %v318
      %v1026 = vunpack.c.l.b16 %v319
      %v1027 = vunpack.c.h.b16 %v319
      %v1028 = vunpack.c.l.b16 %v320
      %v1029 = vunpack.c.l.b16 %v321
      %v1030 = vunpack.c.h.b16 %v321
      %v1031 = vunpack.c.l.b16 %v322
      %v1032 = vunpack.c.h.b16 %v322
      %v1033 = vunpack.c.l.b16 %v323
      %v1034 = vunpack.c.l.b16 %v324
      %v1035 = vunpack.c.h.b16 %v324
      %v1036 = vunpack.c.l.b16 %v325
      %v1037 = vunpack.c.h.b16 %v325
      %v1038 = vunpack.c.l.b16 %v326
      %v1039 = vunpack.c.l.b16 %v327
      %v1040 = vunpack.c.h.b16 %v327
      %v1041 = vunpack.c.l.b16 %v328
      %v1042 = vunpack.c.h.b16 %v328
      %v1043 = vunpack.c.l.b16 %v329
      %v1044 = vunpack.c.l.b16 %v330
      %v1045 = vunpack.c.h.b16 %v330
      %v1046 = vunpack.c.l.b16 %v331
      %v1047 = vunpack.c.h.b16 %v331
      %v1048 = vunpack.c.l.b16 %v332
      %v1049 = vunpack.c.l.b16 %v333
      %v1050 = vunpack.c.h.b16 %v333
      %v1051 = vunpack.c.l.b16 %v334
      %v1052 = vunpack.c.h.b16 %v334
      %v1053 = vunpack.c.l.b16 %v335
      %v1054 = vunpack.c.l.b16 %v336
      %v1055 = vunpack.c.h.b16 %v336
      %v1056 = vunpack.c.l.b16 %v337
      %v1057 = vunpack.c.h.b16 %v337
      %v1058 = vunpack.c.l.b16 %v338
      %v1059 = vunpack.c.l.b16 %v339
      %v1060 = vunpack.c.h.b16 %v339
      %v1061 = vunpack.c.l.b16 %v340
      %v1062 = vunpack.c.h.b16 %v340
      %v1063 = vunpack.c.l.b16 %v341
      %v1064 = vunpack.c.l.b16 %v342
      %v1065 = vunpack.c.h.b16 %v342
      %v1066 = vunpack.c.l.b16 %v343
      %v1067 = vunpack.c.h.b16 %v343
      %v1068 = vunpack.c.l.b16 %v344
      %v1069 = vunpack.c.l.b16 %v345
      %v1070 = vunpack.c.h.b16 %v345
      %v1071 = vunpack.c.l.b16 %v346
      %v1072 = vunpack.c.h.b16 %v346
      %v1073 = vunpack.c.l.b16 %v347
      %v1074 = vunpack.c.l.b16 %v348
      %v1075 = vunpack.c.h.b16 %v348
      %v1076 = vunpack.c.l.b16 %v349
      %v1077 = vunpack.c.h.b16 %v349
      %v1078 = vunpack.c.l.b16 %v350
      %v1079 = vunpack.c.l.b16 %v351
      %v1080 = vunpack.c.h.b16 %v351
      %v1081 = vunpack.c.l.b16 %v352
      %v1082 = vunpack.c.h.b16 %v352
      %v1083 = vunpack.c.l.b16 %v353
      %v1084 = vunpack.c.l.b16 %v354
      %v1085 = vunpack.c.h.b16 %v354
      %v1086 = vunpack.c.l.b16 %v355
      %v1087 = vunpack.c.h.b16 %v355
      %v1088 = vunpack.c.l.b16 %v356
      %v1089 = vunpack.c.l.b16 %v357
      %v1090 = vunpack.c.h.b16 %v357
      %v1091 = vunpack.c.l.b16 %v358
      %v1092 = vunpack.c.h.b16 %v358
      %v1093 = vunpack.c.l.b16 %v359
      %v1094 = vunpack.c.l.b16 %v360
      %v1095 = vunpack.c.h.b16 %v360
      %v1096 = vunpack.c.l.b16 %v361
      %v1097 = vunpack.c.h.b16 %v361
      %v1098 = vunpack.c.l.b16 %v362
      %v1099 = vunpack.c.l.b16 %v363
      %v1100 = vunpack.c.h.b16 %v363
      %v1101 = vunpack.c.l.b16 %v364
      %v1102 = vunpack.c.h.b16 %v364
      %v1103 = vunpack.c.l.b16 %v365
      %v1104 = vunpack.c.l.b16 %v366
      %v1105 = vunpack.c.h.b16 %v366
      %v1106 = vunpack.c.l.b16 %v367
      %v1107 = vunpack.c.h.b16 %v367
      %v1108 = vunpack.c.l.b16 %v368
      %v1109 = vunpack.c.l.b16 %v369
      %v1110 = vunpack.c.h.b16 %v369
      %v1111 = vunpack.c.l.b16 %v370
      %v1112 = vunpack.c.h.b16 %v370
      %v1113 = vunpack.c.l.b16 %v371
      %v1114 = vunpack.c.l.b16 %v372
      %v1115 = vunpack.c.h.b16 %v372
      %v1116 = vunpack.c.l.b16 %v373
      %v1117 = vunpack.c.h.b16 %v373
      %v1118 = vunpack.c.l.b16 %v374
      %v1119 = vunpack.c.l.b16 %v375
      %v1120 = vunpack.c.h.b16 %v375
      %v1121 = vunpack.c.l.b16 %v376
      %v1122 = vunpack.c.h.b16 %v376
      %v1123 = vunpack.c.l.b16 %v377
      %v1124 = vunpack.c.l.b16 %v378
      %v1125 = vunpack.c.h.b16 %v378
      %v1126 = vunpack.c.l.b16 %v379
      %v1127 = vunpack.c.h.b16 %v379
      %v1128 = vunpack.c.l.b16 %v380
      %v1129 = vunpack.c.l.b16 %v381
      %v1130 = vunpack.c.h.b16 %v381
      %v1131 = vunpack.c.l.b16 %v382
      %v1132 = vunpack.c.h.b16 %v382
      %v1133 = vunpack.c.l.b16 %v383
      %v1134 = vunpack.c.l.b16 %v384
      %v1135 = vunpack.c.h.b16 %v384
      %v1136 = vunpack.c.l.b16 %v385
      %v1137 = vunpack.c.h.b16 %v385
      %v1138 = vunpack.c.l.b16 %v386
      %v1139 = vunpack.c.l.b16 %v387
      %v1140 = vunpack.c.h.b16 %v387
      %v1141 = vunpack.c.l.b16 %v388
      %v1142 = vunpack.c.h.b16 %v388
      %v1143 = vunpack.c.l.b16 %v389
      %v1144 = vunpack.c.l.b16 %v390
      %v1145 = vunpack.c.h.b16 %v390
      %v1146 = vunpack.c.l.b16 %v391
      %v1147 = vunpack.c.h.b16 %v391
      %v1148 = vunpack.c.l.b16 %v392
      %v1149 = vunpack.c.l.b16 %v393
      %v1150 = vunpack.c.h.b16 %v393
      %v1151 = vunpack.c.l.b16 %v394
      %v1152 = vunpack.c.h.b16 %v394
      %v1153 = vunpack.c.l.b16 %v395
      %v1154 = vunpack.c.l.b16 %v396
      %v1155 = vunpack.c.h.b16 %v396
      %v1156 = vunpack.c.l.b16 %v397
      %v1157 = vunpack.c.h.b16 %v397
      %v1158 = vunpack.c.l.b16 %v398
      %v1159 = vunpack.c.l.b16 %v399
      %v1160 = vunpack.c.h.b16 %v399
      %v1161 = vunpack.c.l.b16 %v400
      %v1162 = vunpack.c.h.b16 %v400
      %v1163 = vunpack.c.l.b16 %v401
      %v1164 = vunpack.c.l.b16 %v402
      %v1165 = vunpack.c.h.b16 %v402
      %v1166 = vunpack.c.l.b16 %v403
      %v1167 = vunpack.c.h.b16 %v403
      %v1168 = vunpack.c.l.b16 %v404
      %v1169 = vunpack.c.l.b16 %v405
      %v1170 = vunpack.c.h.b16 %v405
      %v1171 = vunpack.c.l.b16 %v406
      %v1172 = vunpack.c.h.b16 %v406
      %v1173 = vunpack.c.l.b16 %v407
      %v1174 = vunpack.c.l.b16 %v408
      %v1175 = vunpack.c.h.b16 %v408
      %v1176 = vunpack.c.l.b16 %v409
      %v1177 = vunpack.c.h.b16 %v409
      %v1178 = vunpack.c.l.b16 %v410
      %v1179 = vunpack.c.l.b16 %v411
      %v1180 = vunpack.c.h.b16 %v411
      %v1181 = vunpack.c.l.b16 %v412
      %v1182 = vunpack.c.h.b16 %v412
      %v1183 = vunpack.c.l.b16 %v413
      %v1184 = vunpack.c.l.b16 %v414
      %v1185 = vunpack.c.h.b16 %v414
      %v1186 = vunpack.c.l.b16 %v415
      %v1187 = vunpack.c.h.b16 %v415
      %v1188 = vunpack.c.l.b16 %v416
      %v1189 = vunpack.c.l.b16 %v417
      %v1190 = vunpack.c.h.b16 %v417
      %v1191 = vunpack.c.l.b16 %v418
      %v1192 = vunpack.c.h.b16 %v418
      %v1193 = vunpack.c.l.b16 %v419
      %v1194 = vunpack.c.l.b16 %v420
      %v1195 = vunpack.c.h.b16 %v420
      %v1196 = vunpack.c.l.b16 %v421
      %v1197 = vunpack.c.h.b16 %v421
      %v1198 = vunpack.c.l.b16 %v422
      %v1199 = vunpack.c.l.b16 %v423
      %v1200 = vunpack.c.h.b16 %v423
      %v1201 = vunpack.c.l.b16 %v424
      %v1202 = vunpack.c.h.b16 %v424
      %v1203 = vunpack.c.l.b16 %v425
      %v1204 = vunpack.c.l.b16 %v426
      %v1205 = vunpack.c.h.b16 %v426
      %v1206 = vunpack.c.l.b16 %v427
      %v1207 = vunpack.c.h.b16 %v427
      %v1208 = vunpack.c.l.b16 %v428
      %v1209 = vunpack.c.l.b16 %v429
      %v1210 = vunpack.c.h.b16 %v429
      %v1211 = vunpack.c.l.b16 %v430
      %v1212 = vunpack.c.h.b16 %v430
      %v1213 = vunpack.c.l.b16 %v431
      %v1214 = vunpack.c.l.b16 %v432
      %v1215 = vunpack.c.h.b16 %v432
      %v1216 = vunpack.c.l.b16 %v433
      %v1217 = vunpack.c.h.b16 %v433
      %v1218 = vunpack.c.l.b16 %v434
      %v1219 = vunpack.c.l.b16 %v435
      %v1220 = vunpack.c.h.b16 %v435
      %v1221 = vunpack.c.l.b16 %v436
      %v1222 = vunpack.c.h.b16 %v436
      %v1223 = vunpack.c.l.b16 %v437
      %v1224 = vunpack.c.l.b16 %v438
      %v1225 = vunpack.c.h.b16 %v438
      %v1226 = vunpack.c.l.b16 %v439
      %v1227 = vunpack.c.h.b16 %v439
      %v1228 = vunpack.c.l.b16 %v440
      %v1229 = vpack.c.b16 %v794, %v789
      %v1230 = vpack.c.b16 %v795, %v790
      %v1231 = vpack.c.b16 %v796, %v791
      %v1232 = vpack.c.b16 %v797, %v792
      %v1233 = vpack.c.b16 %v798, %v793
      %v1234 = vpack.c.b16 %v804, %v799
      %v1235 = vpack.c.b16 %v805, %v800
      %v1236 = vpack.c.b16 %v806, %v801
      %v1237 = vpack.c.b16 %v807, %v802
      %v1238 = vpack.c.b16 %v808, %v803
      %v1239 = vpack.c.b16 %v814, %v809
      %v1240 = vpack.c.b16 %v815, %v810
      %v1241 = vpack.c.b16 %v816, %v811
      %v1242 = vpack.c.b16 %v817, %v812
      %v1243 = vpack.c.b16 %v818, %v813
      %v1244 = vpack.c.b16 %v824, %v819
      %v1245 = vpack.c.b16 %v825, %v820
      %v1246 = vpack.c.b16 %v826, %v821
      %v1247 = vpack.c.b16 %v827, %v822
      %v1248 = vpack.c.b16 %v828, %v823
      %v1249 = vpack.c.b16 %v834, %v829
      %v1250 = vpack.c.b16 %v835, %v830
      %v1251 = vpack.c.b16 %v836, %v831
      %v1252 = vpack.c.b16 %v837, %v832
      %v1253 = vpack.c.b16 %v838, %v833
      %v1254 = vpack.c.b16 %v844, %v839
      %v1255 = vpack.c.b16 %v845, %v840
      %v1256 = vpack.c.b16 %v846, %v841
      %v1257 = vpack.c.b16 %v847, %v842
      %v1258 = vpack.c.b16 %v848, %v843
      %v1259 = vpack.c.b16 %v854, %v849
      %v1260 = vpack.c.b16 %v855, %v850
      %v1261 = vpack.c.b16 %v856, %v851
      %v1262 = vpack.c.b16 %v857, %v852
      %v1263 = vpack.c.b16 %v858, %v853
      %v1264 = vpack.c.b16 %v864, %v859
      %v1265 = vpack.c.b16 %v865, %v860
      %v1266 = vpack.c.b16 %v866, %v861
      %v1267 = vpack.c.b16 %v867, %v862
      %v1268 = vpack.c.b16 %v868, %v863
      %v1269 = vpack.c.b16 %v874, %v869
      %v1270 = vpack.c.b16 %v875, %v870
      %v1271 = vpack.c.b16 %v876, %v871
      %v1272 = vpack.c.b16 %v877, %v872
      %v1273 = vpack.c.b16 %v878, %v873
      %v1274 = vpack.c.b16 %v884, %v879
      %v1275 = vpack.c.b16 %v885, %v880
      %v1276 = vpack.c.b16 %v886, %v881
      %v1277 = vpack.c.b16 %v887, %v882
      %v1278 = vpack.c.b16 %v888, %v883
      %v1279 = vpack.c.b16 %v894, %v889
      %v1280 = vpack.c.b16 %v895, %v890
      %v1281 = vpack.c.b16 %v896, %v891
      %v1282 = vpack.c.b16 %v897, %v892
      %v1283 = vpack.c.b16 %v898, %v893
      %v1284 = vpack.c.b16 %v904, %v899
      %v1285 = vpack.c.b16 %v905, %v900
      %v1286 = vpack.c.b16 %v906, %v901
      %v1287 = vpack.c.b16 %v907, %v902
      %v1288 = vpack.c.b16 %v908, %v903
      %v1289 = vpack.c.b16 %v914, %v909
      %v1290 = vpack.c.b16 %v915, %v910
      %v1291 = vpack.c.b16 %v916, %v911
      %v1292 = vpack.c.b16 %v917, %v912
      %v1293 = vpack.c.b16 %v918, %v913
      %v1294 = vpack.c.b16 %v924, %v919
      %v1295 = vpack.c.b16 %v925, %v920
      %v1296 = vpack.c.b16 %v926, %v921
      %v1297 = vpack.c.b16 %v927, %v922
      %v1298 = vpack.c.b16 %v928, %v923
      %v1299 = vpack.c.b16 %v934, %v929
      %v1300 = vpack.c.b16 %v935, %v930
      %v1301 = vpack.c.b16 %v936, %v931
      %v1302 = vpack.c.b16 %v937, %v932
      %v1303 = vpack.c.b16 %v938, %v933
      %v1304 = vpack.c.b16 %v944, %v939
      %v1305 = vpack.c.b16 %v945, %v940
      %v1306 = vpack.c.b16 %v946, %v941
      %v1307 = vpack.c.b16 %v947, %v942
      %v1308 = vpack.c.b16 %v948, %v943
      %v1309 = vpack.c.b16 %v954, %v949
      %v1310 = vpack.c.b16 %v955, %v950
      %v1311 = vpack.c.b16 %v956, %v951
      %v1312 = vpack.c.b16 %v957, %v952
      %v1313 = vpack.c.b16 %v958, %v953
      %v1314 = vpack.c.b16 %v964, %v959
      %v1315 = vpack.c.b16 %v965, %v960
      %v1316 = vpack.c.b16 %v966, %v961
      %v1317 = vpack.c.b16 %v967, %v962
      %v1318 = vpack.c.b16 %v968, %v963
      %v1319 = vpack.c.b16 %v974, %v969
      %v1320 = vpack.c.b16 %v975, %v970
      %v1321 = vpack.c.b16 %v976, %v971
      %v1322 = vpack.c.b16 %v977, %v972
      %v1323 = vpack.c.b16 %v978, %v973
      %v1324 = vpack.c.b16 %v984, %v979
      %v1325 = vpack.c.b16 %v985, %v980
      %v1326 = vpack.c.b16 %v986, %v981
      %v1327 = vpack.c.b16 %v987, %v982
      %v1328 = vpack.c.b16 %v988, %v983
      %v1329 = vpack.c.b16 %v994, %v989
      %v1330 = vpack.c.b16 %v995, %v990
      %v1331 = vpack.c.b16 %v996, %v991
      %v1332 = vpack.c.b16 %v997, %v992
      %v1333 = vpack.c.b16 %v998, %v993
      %v1334 = vpack.c.b16 %v1004, %v999
      %v1335 = vpack.c.b16 %v1005, %v1000
      %v1336 = vpack.c.b16 %v1006, %v1001
      %v1337 = vpack.c.b16 %v1007, %v1002
      %v1338 = vpack.c.b16 %v1008, %v1003
      %v1339 = vpack.c.b16 %v1014, %v1009
      %v1340 = vpack.c.b16 %v1015, %v1010
      %v1341 = vpack.c.b16 %v1016, %v1011
      %v1342 = vpack.c.b16 %v1017, %v1012
      %v1343 = vpack.c.b16 %v1018, %v1013
      %v1344 = vpack.c.b16 %v1024, %v1019
      %v1345 = vpack.c.b16 %v1025, %v1020
      %v1346 = vpack.c.b16 %v1026, %v1021
      %v1347 = vpack.c.b16 %v1027, %v1022
      %v1348 = vpack.c.b16 %v1028, %v1023
      %v1349 = vpack.c.b16 %v1034, %v1029
      %v1350 = vpack.c.b16 %v1035, %v1030
      %v1351 = vpack.c.b16 %v1036, %v1031
      %v1352 = vpack.c.b16 %v1037, %v1032
      %v1353 = vpack.c.b16 %v1038, %v1033
      %v1354 = vpack.c.b16 %v1044, %v1039
      %v1355 = vpack.c.b16 %v1045, %v1040
      %v1356 = vpack.c.b16 %v1046, %v1041
      %v1357 = vpack.c.b16 %v1047, %v1042
      %v1358 = vpack.c.b16 %v1048, %v1043
      %v1359 = vpack.c.b16 %v1054, %v1049
      %v1360 = vpack.c.b16 %v1055, %v1050
      %v1361 = vpack.c.b16 %v1056, %v1051
      %v1362 = vpack.c.b16 %v1057, %v1052
      %v1363 = vpack.c.b16 %v1058, %v1053
      %v1364 = vpack.c.b16 %v1064, %v1059
      %v1365 = vpack.c.b16 %v1065, %v1060
      %v1366 = vpack.c.b16 %v1066, %v1061
      %v1367 = vpack.c.b16 %v1067, %v1062
      %v1368 = vpack.c.b16 %v1068, %v1063
      %v1369 = vpack.c.b16 %v1074, %v1069
      %v1370 = vpack.c.b16 %v1075, %v1070
      %v1371 = vpack.c.b16 %v1076, %v1071
      %v1372 = vpack.c.b16 %v1077, %v1072
      %v1373 = vpack.c.b16 %v1078, %v1073
      %v1374 = vpack.c.b16 %v1084, %v1079
      %v1375 = vpack.c.b16 %v1085, %v1080
      %v1376 = vpack.c.b16 %v1086, %v1081
      %v1377 = vpack.c.b16 %v1087, %v1082
      %v1378 = vpack.c.b16 %v1088, %v1083
      %v1379 = vpack.c.b16 %v1094, %v1089
      %v1380 = vpack.c.b16 %v1095, %v1090
      %v1381 = vpack.c.b16 %v1096, %v1091
      %v1382 = vpack.c.b16 %v1097, %v1092
      %v1383 = vpack.c.b16 %v1098, %v1093
      %v1384 = vpack.c.b16 %v1104, %v1099
      %v1385 = vpack.c.b16 %v1105, %v1100
      %v1386 = vpack.c.b16 %v1106, %v1101
      %v1387 = vpack.c.b16 %v1107, %v1102
      %v1388 = vpack.c.b16 %v1108, %v1103
      %v1389 = vpack.c.b16 %v1114, %v1109
      %v1390 = vpack.c.b16 %v1115, %v1110
      %v1391 = vpack.c.b16 %v1116, %v1111
      %v1392 = vpack.c.b16 %v1117, %v1112
      %v1393 = vpack.c.b16 %v1118, %v1113
      %v1394 = vpack.c.b16 %v1124, %v1119
      %v1395 = vpack.c.b16 %v1125, %v1120
      %v1396 = vpack.c.b16 %v1126, %v1121
      %v1397 = vpack.c.b16 %v1127, %v1122
      %v1398 = vpack.c.b16 %v1128, %v1123
      %v1399 = vpack.c.b16 %v1134, %v1129
      %v1400 = vpack.c.b16 %v1135, %v1130
      %v1401 = vpack.c.b16 %v1136, %v1131
      %v1402 = vpack.c.b16 %v1137, %v1132
      %v1403 = vpack.c.b16 %v1138, %v1133
      %v1404 = vpack.c.b16 %v1144, %v1139
      %v1405 = vpack.c.b16 %v1145, %v1140
      %v1406 = vpack.c.b16 %v1146, %v1141
      %v1407 = vpack.c.b16 %v1147, %v1142
      %v1408 = vpack.c.b16 %v1148, %v1143
      %v1409 = vpack.c.b16 %v1154, %v1149
      %v1410 = vpack.c.b16 %v1155, %v1150
      %v1411 = vpack.c.b16 %v1156, %v1151
      %v1412 = vpack.c.b16 %v1157, %v1152
      %v1413 = vpack.c.b16 %v1158, %v1153
      %v1414 = vpack.c.b16 %v1164, %v1159
      %v1415 = vpack.c.b16 %v1165, %v1160
      %v1416 = vpack.c.b16 %v1166, %v1161
      %v1417 = vpack.c.b16 %v1167, %v1162
      %v1418 = vpack.c.b16 %v1168, %v1163
      %v1419 = vpack.c.b16 %v1174, %v1169
      %v1420 = vpack.c.b16 %v1175, %v1170
      %v1421 = vpack.c.b16 %v1176, %v1171
      %v1422 = vpack.c.b16 %v1177, %v1172
      %v1423 = vpack.c.b16 %v1178, %v1173
      %v1424 = vpack.c.b16 %v1184, %v1179
      %v1425 = vpack.c.b16 %v1185, %v1180
      %v1426 = vpack.c.b16 %v1186, %v1181
      %v1427 = vpack.c.b16 %v1187, %v1182
      %v1428 = vpack.c.b16 %v1188, %v1183
      %v1429 = vpack.c.b16 %v1194, %v1189
      %v1430 = vpack.c.b16 %v1195, %v1190
      %v1431 = vpack.c.b16 %v1196, %v1191
      %v1432 = vpack.c.b16 %v1197, %v1192
      %v1433 = vpack.c.b16 %v1198, %v1193
      %v1434 = vpack.c.b16 %v1204, %v1199
      %v1435 = vpack.c.b16 %v1205, %v1200
      %v1436 = vpack.c.b16 %v1206, %v1201
      %v1437 = vpack.c.b16 %v1207, %v1202
      %v1438 = vpack.c.b16 %v1208, %v1203
      %v1439 = vpack.c.b16 %v1214, %v1209
      %v1440 = vpack.c.b16 %v1215, %v1210
      %v1441 = vpack.c.b16 %v1216, %v1211
      %v1442 = vpack.c.b16 %v1217, %v1212
      %v1443 = vpack.c.b16 %v1218, %v1213
      %v1444 = vpack.c.b16 %v1224, %v1219
      %v1445 = vpack.c.b16 %v1225, %v1220
      %v1446 = vpack.c.b16 %v1226, %v1221
      %v1447 = vpack.c.b16 %v1227, %v1222
      %v1448 = vpack.c.b16 %v1228, %v1223
      %v1749 = vunpack.c.l.b16 %v441
      %v1750 = vunpack.c.l.b16 %v442
      %v1751 = vunpack.c.l.b16 %v443
      %v1752 = vunpack.c.l.b16 %v444
      %v1753 = vunpack.c.l.b16 %v445
      %v1754 = vunpack.c.l.b16 %v446
      %v1755 = vunpack.c.l.b16 %v447
      %v1756 = vunpack.c.l.b16 %v448
      %v1757 = vunpack.c.l.b16 %v449
      %v1758 = vunpack.c.l.b16 %v450
      %v1759 = vunpack.c.l.b16 %v451
      %v1760 = vunpack.c.l.b16 %v452
      %v1761 = vunpack.c.l.b16 %v453
      %v1762 = vunpack.c.l.b16 %v454
      %v1763 = vunpack.c.l.b16 %v455
      %v1764 = vunpack.c.l.b16 %v456
      %v1765 = vunpack.c.l.b16 %v457
      %v1766 = vunpack.c.l.b16 %v458
      %v1767 = vunpack.c.l.b16 %v459
      %v1768 = vunpack.c.l.b16 %v460
      %v1769 = vunpack.c.l.b16 %v461
      %v1770 = vunpack.c.l.b16 %v462
      %v1771 = vunpack.c.l.b16 %v463
      %v1772 = vunpack.c.l.b16 %v464
      %v1773 = vunpack.c.l.b16 %v465
      %v1774 = vunpack.c.l.b16 %v466
      %v1775 = vunpack.c.l.b16 %v467
      %v1776 = vunpack.c.l.b16 %v468
      %v1777 = vunpack.c.l.b16 %v469
      %v1778 = vunpack.c.l.b16 %v470
      %v1779 = vunpack.c.l.b16 %v471
      %v1780 = vunpack.c.l.b16 %v472
      %v1781 = vunpack.c.l.b16 %v473
      %v1782 = vunpack.c.l.b16 %v474
      %v1783 = vunpack.c.l.b16 %v475
      %v1784 = vunpack.c.l.b16 %v476
      %v1785 = vunpack.c.l.b16 %v477
      %v1786 = vunpack.c.l.b16 %v478
      %v1787 = vunpack.c.l.b16 %v479
      %v1788 = vunpack.c.l.b16 %v480
      %v1789 = vunpack.c.l.b16 %v481
      %v1790 = vunpack.c.l.b16 %v482
      %v1791 = vunpack.c.l.b16 %v483
      %v1792 = vunpack.c.l.b16 %v484
      %v1793 = vunpack.c.l.b16 %v485
      %v1794 = vunpack.c.l.b16 %v486
      %v1795 = vunpack.c.l.b16 %v487
      %v1796 = vunpack.c.l.b16 %v488
      %v1797 = vunpack.c.l.b16 %v489
      %v1798 = vunpack.c.l.b16 %v490
      %v1799 = vunpack.c.l.b16 %v491
      %v1800 = vunpack.c.l.b16 %v492
      %v1801 = vunpack.c.l.b16 %v493
      %v1802 = vunpack.c.l.b16 %v494
      %v1803 = vunpack.c.l.b16 %v495
      %v1804 = vunpack.c.l.b16 %v496
      %v1805 = vunpack.c.l.b16 %v497
      %v1806 = vunpack.c.l.b16 %v498
      %v1807 = vunpack.c.l.b16 %v499
      %v1808 = vunpack.c.l.b16 %v500
      %v1809 = vunpack.c.l.b16 %v501
      %v1810 = vunpack.c.l.b16 %v502
      %v1811 = vunpack.c.l.b16 %v503
      %v1812 = vunpack.c.l.b16 %v504
      %v1813 = vunpack.c.l.b16 %v505
      %v1814 = vunpack.c.l.b16 %v506
      %v1815 = vunpack.c.l.b16 %v507
      %v1816 = vunpack.c.l.b16 %v508
      %v1817 = vunpack.c.l.b16 %v509
      %v1818 = vunpack.c.l.b16 %v510
      %v1819 = vunpack.c.l.b16 %v511
      %v1820 = vunpack.c.l.b16 %v512
      %v1821 = vunpack.c.l.b16 %v513
      %v1822 = vunpack.c.l.b16 %v514
      %v1823 = vunpack.c.l.b16 %v515
      %v1824 = vunpack.c.l.b16 %v516
      %v1825 = vunpack.c.l.b16 %v517
      %v1826 = vunpack.c.l.b16 %v518
      %v1827 = vunpack.c.l.b16 %v519
      %v1828 = vunpack.c.l.b16 %v520
      %v1829 = vpack.c.b16 %v1750, %v1749
      %v1830 = vpack.c.b16 %v1752, %v1751
      %v1831 = vpack.c.b16 %v1754, %v1753
      %v1832 = vpack.c.b16 %v1756, %v1755
      %v1833 = vpack.c.b16 %v1758, %v1757
      %v1834 = vpack.c.b16 %v1760, %v1759
      %v1835 = vpack.c.b16 %v1762, %v1761
      %v1836 = vpack.c.b16 %v1764, %v1763
      %v1837 = vpack.c.b16 %v1766, %v1765
      %v1838 = vpack.c.b16 %v1768, %v1767
      %v1839 = vpack.c.b16 %v1770, %v1769
      %v1840 = vpack.c.b16 %v1772, %v1771
      %v1841 = vpack.c.b16 %v1774, %v1773
      %v1842 = vpack.c.b16 %v1776, %v1775
      %v1843 = vpack.c.b16 %v1778, %v1777
      %v1844 = vpack.c.b16 %v1780, %v1779
      %v1845 = vpack.c.b16 %v1782, %v1781
      %v1846 = vpack.c.b16 %v1784, %v1783
      %v1847 = vpack.c.b16 %v1786, %v1785
      %v1848 = vpack.c.b16 %v1788, %v1787
      %v1849 = vpack.c.b16 %v1790, %v1789
      %v1850 = vpack.c.b16 %v1792, %v1791
      %v1851 = vpack.c.b16 %v1794, %v1793
      %v1852 = vpack.c.b16 %v1796, %v1795
      %v1853 = vpack.c.b16 %v1798, %v1797
      %v1854 = vpack.c.b16 %v1800, %v1799
      %v1855 = vpack.c.b16 %v1802, %v1801
      %v1856 = vpack.c.b16 %v1804, %v1803
      %v1857 = vpack.c.b16 %v1806, %v1805
      %v1858 = vpack.c.b16 %v1808, %v1807
      %v1859 = vpack.c.b16 %v1810, %v1809
      %v1860 = vpack.c.b16 %v1812, %v1811
      %v1861 = vpack.c.b16 %v1814, %v1813
      %v1862 = vpack.c.b16 %v1816, %v1815
      %v1863 = vpack.c.b16 %v1818, %v1817
      %v1864 = vpack.c.b16 %v1820, %v1819
      %v1865 = vpack.c.b16 %v1822, %v1821
      %v1866 = vpack.c.b16 %v1824, %v1823
      %v1867 = vpack.c.b16 %v1826, %v1825
      %v1868 = vpack.c.b16 %v1828, %v1827
      %1909 = vmatpush.bf16.msra.mxu0 %v1836
      %1910 = vmatpush.bf16.msra.mxu0 %v1835
      %1911 = vmatpush.bf16.msra.mxu0 %v1834
      %1912 = vmatpush.bf16.msra.mxu0 %v1833
      %1913 = vmatpush.bf16.msra.mxu0 %v1832
      %1914 = vmatpush.bf16.msra.mxu0 %v1831
      %1915 = vmatpush.bf16.msra.mxu0 %v1830
      %1916 = vmatpush.bf16.msra.mxu0 %v1829
      %1917 = vmatmul.bf16.gmra.mxu0 %v1229
      %v1918 = vpop.f32.mrf.mxu0
      %v1919 = vadd.f32 %v523, %v1918
      %v1920 = vpop.f32.mrf.mxu0
      %v1921 = vadd.f32 %v523, %v1920
      %1922 = vmatmul.bf16.gmra.mxu0 %v1234
      %v1923 = vpop.f32.mrf.mxu0
      %v1924 = vadd.f32 %v523, %v1923
      %v1925 = vpop.f32.mrf.mxu0
      %v1926 = vadd.f32 %v523, %v1925
      %1927 = vmatmul.bf16.gmra.mxu0 %v1239
      %v1928 = vpop.f32.mrf.mxu0
      %v1929 = vadd.f32 %v523, %v1928
      %v1930 = vpop.f32.mrf.mxu0
      %v1931 = vadd.f32 %v523, %v1930
      %1932 = vmatmul.bf16.gmra.mxu0 %v1244
      %v1933 = vpop.f32.mrf.mxu0
      %v1934 = vadd.f32 %v523, %v1933
      %v1935 = vpop.f32.mrf.mxu0
      %v1936 = vadd.f32 %v523, %v1935
      %1937 = vmatmul.bf16.gmra.mxu0 %v1249
      %v1938 = vpop.f32.mrf.mxu0
      %v1939 = vadd.f32 %v523, %v1938
      %v1940 = vpop.f32.mrf.mxu0
      %v1941 = vadd.f32 %v523, %v1940
      %1942 = vmatmul.bf16.gmra.mxu0 %v1254
      %v1943 = vpop.f32.mrf.mxu0
      %v1944 = vadd.f32 %v523, %v1943
      %v1945 = vpop.f32.mrf.mxu0
      %v1946 = vadd.f32 %v523, %v1945
      %1947 = vmatmul.bf16.gmra.mxu0 %v1259
      %v1948 = vpop.f32.mrf.mxu0
      %v1949 = vadd.f32 %v523, %v1948
      %v1950 = vpop.f32.mrf.mxu0
      %v1951 = vadd.f32 %v523, %v1950
      %1952 = vmatmul.bf16.gmra.mxu0 %v1264
      %v1953 = vpop.f32.mrf.mxu0
      %v1954 = vadd.f32 %v523, %v1953
      %v1955 = vpop.f32.mrf.mxu0
      %v1956 = vadd.f32 %v523, %v1955
      %1957 = vmatmul.bf16.gmra.mxu0 %v1269
      %v1958 = vpop.f32.mrf.mxu0
      %v1959 = vadd.f32 %v523, %v1958
      %v1960 = vpop.f32.mrf.mxu0
      %v1961 = vadd.f32 %v523, %v1960
      %1962 = vmatmul.bf16.gmra.mxu0 %v1274
      %v1963 = vpop.f32.mrf.mxu0
      %v1964 = vadd.f32 %v523, %v1963
      %v1965 = vpop.f32.mrf.mxu0
      %v1966 = vadd.f32 %v523, %v1965
      %1967 = vmatmul.bf16.gmra.mxu0 %v1279
      %v1968 = vpop.f32.mrf.mxu0
      %v1969 = vadd.f32 %v523, %v1968
      %v1970 = vpop.f32.mrf.mxu0
      %v1971 = vadd.f32 %v523, %v1970
      %1972 = vmatmul.bf16.gmra.mxu0 %v1284
      %v1973 = vpop.f32.mrf.mxu0
      %v1974 = vadd.f32 %v523, %v1973
      %v1975 = vpop.f32.mrf.mxu0
      %v1976 = vadd.f32 %v523, %v1975
      %1977 = vmatmul.bf16.gmra.mxu0 %v1289
      %v1978 = vpop.f32.mrf.mxu0
      %v1979 = vadd.f32 %v523, %v1978
      %v1980 = vpop.f32.mrf.mxu0
      %v1981 = vadd.f32 %v523, %v1980
      %1982 = vmatmul.bf16.gmra.mxu0 %v1294
      %v1983 = vpop.f32.mrf.mxu0
      %v1984 = vadd.f32 %v523, %v1983
      %v1985 = vpop.f32.mrf.mxu0
      %v1986 = vadd.f32 %v523, %v1985
      %1987 = vmatmul.bf16.gmra.mxu0 %v1299
      %v1988 = vpop.f32.mrf.mxu0
      %v1989 = vadd.f32 %v523, %v1988
      %v1990 = vpop.f32.mrf.mxu0
      %v1991 = vadd.f32 %v523, %v1990
      %1992 = vmatmul.bf16.gmra.mxu0 %v1304
      %v1993 = vpop.f32.mrf.mxu0
      %v1994 = vadd.f32 %v523, %v1993
      %v1995 = vpop.f32.mrf.mxu0
      %v1996 = vadd.f32 %v523, %v1995
      %1997 = vmatmul.bf16.gmra.mxu0 %v1309
      %v1998 = vpop.f32.mrf.mxu0
      %v1999 = vadd.f32 %v523, %v1998
      %v2000 = vpop.f32.mrf.mxu0
      %v2001 = vadd.f32 %v523, %v2000
      %2002 = vmatmul.bf16.gmra.mxu0 %v1314
      %v2003 = vpop.f32.mrf.mxu0
      %v2004 = vadd.f32 %v523, %v2003
      %v2005 = vpop.f32.mrf.mxu0
      %v2006 = vadd.f32 %v523, %v2005
      %2007 = vmatmul.bf16.gmra.mxu0 %v1319
      %v2008 = vpop.f32.mrf.mxu0
      %v2009 = vadd.f32 %v523, %v2008
      %v2010 = vpop.f32.mrf.mxu0
      %v2011 = vadd.f32 %v523, %v2010
      %2012 = vmatmul.bf16.gmra.mxu0 %v1324
      %v2013 = vpop.f32.mrf.mxu0
      %v2014 = vadd.f32 %v523, %v2013
      %v2015 = vpop.f32.mrf.mxu0
      %v2016 = vadd.f32 %v523, %v2015
      %2017 = vmatmul.bf16.gmra.mxu0 %v1329
      %v2018 = vpop.f32.mrf.mxu0
      %v2019 = vadd.f32 %v523, %v2018
      %v2020 = vpop.f32.mrf.mxu0
      %v2021 = vadd.f32 %v523, %v2020
      %2022 = vmatmul.bf16.gmra.mxu0 %v1334
      %v2023 = vpop.f32.mrf.mxu0
      %v2024 = vadd.f32 %v523, %v2023
      %v2025 = vpop.f32.mrf.mxu0
      %v2026 = vadd.f32 %v523, %v2025
      %2027 = vmatmul.bf16.gmra.mxu0 %v1339
      %v2028 = vpop.f32.mrf.mxu0
      %v2029 = vadd.f32 %v523, %v2028
      %v2030 = vpop.f32.mrf.mxu0
      %v2031 = vadd.f32 %v523, %v2030
      %2032 = vmatmul.bf16.gmra.mxu0 %v1344
      %v2033 = vpop.f32.mrf.mxu0
      %v2034 = vadd.f32 %v523, %v2033
      %v2035 = vpop.f32.mrf.mxu0
      %v2036 = vadd.f32 %v523, %v2035
      %2037 = vmatmul.bf16.gmra.mxu0 %v1349
      %v2038 = vpop.f32.mrf.mxu0
      %v2039 = vadd.f32 %v523, %v2038
      %v2040 = vpop.f32.mrf.mxu0
      %v2041 = vadd.f32 %v523, %v2040
      %2042 = vmatmul.bf16.gmra.mxu0 %v1354
      %v2043 = vpop.f32.mrf.mxu0
      %v2044 = vadd.f32 %v523, %v2043
      %v2045 = vpop.f32.mrf.mxu0
      %v2046 = vadd.f32 %v523, %v2045
      %2047 = vmatmul.bf16.gmra.mxu0 %v1359
      %v2048 = vpop.f32.mrf.mxu0
      %v2049 = vadd.f32 %v523, %v2048
      %v2050 = vpop.f32.mrf.mxu0
      %v2051 = vadd.f32 %v523, %v2050
      %2052 = vmatmul.bf16.gmra.mxu0 %v1364
      %v2053 = vpop.f32.mrf.mxu0
      %v2054 = vadd.f32 %v523, %v2053
      %v2055 = vpop.f32.mrf.mxu0
      %v2056 = vadd.f32 %v523, %v2055
      %2057 = vmatmul.bf16.gmra.mxu0 %v1369
      %v2058 = vpop.f32.mrf.mxu0
      %v2059 = vadd.f32 %v523, %v2058
      %v2060 = vpop.f32.mrf.mxu0
      %v2061 = vadd.f32 %v523, %v2060
      %2062 = vmatmul.bf16.gmra.mxu0 %v1374
      %v2063 = vpop.f32.mrf.mxu0
      %v2064 = vadd.f32 %v523, %v2063
      %v2065 = vpop.f32.mrf.mxu0
      %v2066 = vadd.f32 %v523, %v2065
      %2067 = vmatmul.bf16.gmra.mxu0 %v1379
      %v2068 = vpop.f32.mrf.mxu0
      %v2069 = vadd.f32 %v523, %v2068
      %v2070 = vpop.f32.mrf.mxu0
      %v2071 = vadd.f32 %v523, %v2070
      %2072 = vmatmul.bf16.gmra.mxu0 %v1384
      %v2073 = vpop.f32.mrf.mxu0
      %v2074 = vadd.f32 %v523, %v2073
      %v2075 = vpop.f32.mrf.mxu0
      %v2076 = vadd.f32 %v523, %v2075
      %2077 = vmatmul.bf16.gmra.mxu0 %v1389
      %v2078 = vpop.f32.mrf.mxu0
      %v2079 = vadd.f32 %v523, %v2078
      %v2080 = vpop.f32.mrf.mxu0
      %v2081 = vadd.f32 %v523, %v2080
      %2082 = vmatmul.bf16.gmra.mxu0 %v1394
      %v2083 = vpop.f32.mrf.mxu0
      %v2084 = vadd.f32 %v523, %v2083
      %v2085 = vpop.f32.mrf.mxu0
      %v2086 = vadd.f32 %v523, %v2085
      %2087 = vmatmul.bf16.gmra.mxu0 %v1399
      %v2088 = vpop.f32.mrf.mxu0
      %v2089 = vadd.f32 %v523, %v2088
      %v2090 = vpop.f32.mrf.mxu0
      %v2091 = vadd.f32 %v523, %v2090
      %2092 = vmatmul.bf16.gmra.mxu0 %v1404
      %v2093 = vpop.f32.mrf.mxu0
      %v2094 = vadd.f32 %v523, %v2093
      %v2095 = vpop.f32.mrf.mxu0
      %v2096 = vadd.f32 %v523, %v2095
      %2097 = vmatmul.bf16.gmra.mxu0 %v1409
      %v2098 = vpop.f32.mrf.mxu0
      %v2099 = vadd.f32 %v523, %v2098
      %v2100 = vpop.f32.mrf.mxu0
      %v2101 = vadd.f32 %v523, %v2100
      %2102 = vmatmul.bf16.gmra.mxu0 %v1414
      %v2103 = vpop.f32.mrf.mxu0
      %v2104 = vadd.f32 %v523, %v2103
      %v2105 = vpop.f32.mrf.mxu0
      %v2106 = vadd.f32 %v523, %v2105
      %2107 = vmatmul.bf16.gmra.mxu0 %v1419
      %v2108 = vpop.f32.mrf.mxu0
      %v2109 = vadd.f32 %v523, %v2108
      %v2110 = vpop.f32.mrf.mxu0
      %v2111 = vadd.f32 %v523, %v2110
      %2112 = vmatmul.bf16.gmra.mxu0 %v1424
      %v2113 = vpop.f32.mrf.mxu0
      %v2114 = vadd.f32 %v523, %v2113
      %v2115 = vpop.f32.mrf.mxu0
      %v2116 = vadd.f32 %v523, %v2115
      %2117 = vmatmul.bf16.gmra.mxu0 %v1429
      %v2118 = vpop.f32.mrf.mxu0
      %v2119 = vadd.f32 %v523, %v2118
      %v2120 = vpop.f32.mrf.mxu0
      %v2121 = vadd.f32 %v523, %v2120
      %2122 = vmatmul.bf16.gmra.mxu0 %v1434
      %v2123 = vpop.f32.mrf.mxu0
      %v2124 = vadd.f32 %v523, %v2123
      %v2125 = vpop.f32.mrf.mxu0
      %v2126 = vadd.f32 %v523, %v2125
      %2127 = vmatmul.bf16.gmra.mxu0 %v1439
      %v2128 = vpop.f32.mrf.mxu0
      %v2129 = vadd.f32 %v523, %v2128
      %v2130 = vpop.f32.mrf.mxu0
      %v2131 = vadd.f32 %v523, %v2130
      %2132 = vmatmul.bf16.gmra.mxu0 %v1444
      %v2133 = vpop.f32.mrf.mxu0
      %v2134 = vadd.f32 %v523, %v2133
      %v2135 = vpop.f32.mrf.mxu0
      %v2136 = vadd.f32 %v523, %v2135
      %2137 = vdwg.mxu0
      %2138 = vmatpush.bf16.msra.mxu0 %v1844
      %2139 = vmatpush.bf16.msra.mxu0 %v1843
      %2140 = vmatpush.bf16.msra.mxu0 %v1842
      %2141 = vmatpush.bf16.msra.mxu0 %v1841
      %2142 = vmatpush.bf16.msra.mxu0 %v1840
      %2143 = vmatpush.bf16.msra.mxu0 %v1839
      %2144 = vmatpush.bf16.msra.mxu0 %v1838
      %2145 = vmatpush.bf16.msra.mxu0 %v1837
      %2146 = vmatmul.bf16.gmra.mxu0 %v1230
      %v2147 = vpop.f32.mrf.mxu0
      %v2148 = vadd.f32 %v1919, %v2147
      %v2149 = vpop.f32.mrf.mxu0
      %v2150 = vadd.f32 %v1921, %v2149
      %2151 = vmatmul.bf16.gmra.mxu0 %v1235
      %v2152 = vpop.f32.mrf.mxu0
      %v2153 = vadd.f32 %v1924, %v2152
      %v2154 = vpop.f32.mrf.mxu0
      %v2155 = vadd.f32 %v1926, %v2154
      %2156 = vmatmul.bf16.gmra.mxu0 %v1240
      %v2157 = vpop.f32.mrf.mxu0
      %v2158 = vadd.f32 %v1929, %v2157
      %v2159 = vpop.f32.mrf.mxu0
      %v2160 = vadd.f32 %v1931, %v2159
      %2161 = vmatmul.bf16.gmra.mxu0 %v1245
      %v2162 = vpop.f32.mrf.mxu0
      %v2163 = vadd.f32 %v1934, %v2162
      %v2164 = vpop.f32.mrf.mxu0
      %v2165 = vadd.f32 %v1936, %v2164
      %2166 = vmatmul.bf16.gmra.mxu0 %v1250
      %v2167 = vpop.f32.mrf.mxu0
      %v2168 = vadd.f32 %v1939, %v2167
      %v2169 = vpop.f32.mrf.mxu0
      %v2170 = vadd.f32 %v1941, %v2169
      %2171 = vmatmul.bf16.gmra.mxu0 %v1255
      %v2172 = vpop.f32.mrf.mxu0
      %v2173 = vadd.f32 %v1944, %v2172
      %v2174 = vpop.f32.mrf.mxu0
      %v2175 = vadd.f32 %v1946, %v2174
      %2176 = vmatmul.bf16.gmra.mxu0 %v1260
      %v2177 = vpop.f32.mrf.mxu0
      %v2178 = vadd.f32 %v1949, %v2177
      %v2179 = vpop.f32.mrf.mxu0
      %v2180 = vadd.f32 %v1951, %v2179
      %2181 = vmatmul.bf16.gmra.mxu0 %v1265
      %v2182 = vpop.f32.mrf.mxu0
      %v2183 = vadd.f32 %v1954, %v2182
      %v2184 = vpop.f32.mrf.mxu0
      %v2185 = vadd.f32 %v1956, %v2184
      %2186 = vmatmul.bf16.gmra.mxu0 %v1270
      %v2187 = vpop.f32.mrf.mxu0
      %v2188 = vadd.f32 %v1959, %v2187
      %v2189 = vpop.f32.mrf.mxu0
      %v2190 = vadd.f32 %v1961, %v2189
      %2191 = vmatmul.bf16.gmra.mxu0 %v1275
      %v2192 = vpop.f32.mrf.mxu0
      %v2193 = vadd.f32 %v1964, %v2192
      %v2194 = vpop.f32.mrf.mxu0
      %v2195 = vadd.f32 %v1966, %v2194
      %2196 = vmatmul.bf16.gmra.mxu0 %v1280
      %v2197 = vpop.f32.mrf.mxu0
      %v2198 = vadd.f32 %v1969, %v2197
      %v2199 = vpop.f32.mrf.mxu0
      %v2200 = vadd.f32 %v1971, %v2199
      %2201 = vmatmul.bf16.gmra.mxu0 %v1285
      %v2202 = vpop.f32.mrf.mxu0
      %v2203 = vadd.f32 %v1974, %v2202
      %v2204 = vpop.f32.mrf.mxu0
      %v2205 = vadd.f32 %v1976, %v2204
      %2206 = vmatmul.bf16.gmra.mxu0 %v1290
      %v2207 = vpop.f32.mrf.mxu0
      %v2208 = vadd.f32 %v1979, %v2207
      %v2209 = vpop.f32.mrf.mxu0
      %v2210 = vadd.f32 %v1981, %v2209
      %2211 = vmatmul.bf16.gmra.mxu0 %v1295
      %v2212 = vpop.f32.mrf.mxu0
      %v2213 = vadd.f32 %v1984, %v2212
      %v2214 = vpop.f32.mrf.mxu0
      %v2215 = vadd.f32 %v1986, %v2214
      %2216 = vmatmul.bf16.gmra.mxu0 %v1300
      %v2217 = vpop.f32.mrf.mxu0
      %v2218 = vadd.f32 %v1989, %v2217
      %v2219 = vpop.f32.mrf.mxu0
      %v2220 = vadd.f32 %v1991, %v2219
      %2221 = vmatmul.bf16.gmra.mxu0 %v1305
      %v2222 = vpop.f32.mrf.mxu0
      %v2223 = vadd.f32 %v1994, %v2222
      %v2224 = vpop.f32.mrf.mxu0
      %v2225 = vadd.f32 %v1996, %v2224
      %2226 = vmatmul.bf16.gmra.mxu0 %v1310
      %v2227 = vpop.f32.mrf.mxu0
      %v2228 = vadd.f32 %v1999, %v2227
      %v2229 = vpop.f32.mrf.mxu0
      %v2230 = vadd.f32 %v2001, %v2229
      %2231 = vmatmul.bf16.gmra.mxu0 %v1315
      %v2232 = vpop.f32.mrf.mxu0
      %v2233 = vadd.f32 %v2004, %v2232
      %v2234 = vpop.f32.mrf.mxu0
      %v2235 = vadd.f32 %v2006, %v2234
      %2236 = vmatmul.bf16.gmra.mxu0 %v1320
      %v2237 = vpop.f32.mrf.mxu0
      %v2238 = vadd.f32 %v2009, %v2237
      %v2239 = vpop.f32.mrf.mxu0
      %v2240 = vadd.f32 %v2011, %v2239
      %2241 = vmatmul.bf16.gmra.mxu0 %v1325
      %v2242 = vpop.f32.mrf.mxu0
      %v2243 = vadd.f32 %v2014, %v2242
      %v2244 = vpop.f32.mrf.mxu0
      %v2245 = vadd.f32 %v2016, %v2244
      %2246 = vmatmul.bf16.gmra.mxu0 %v1330
      %v2247 = vpop.f32.mrf.mxu0
      %v2248 = vadd.f32 %v2019, %v2247
      %v2249 = vpop.f32.mrf.mxu0
      %v2250 = vadd.f32 %v2021, %v2249
      %2251 = vmatmul.bf16.gmra.mxu0 %v1335
      %v2252 = vpop.f32.mrf.mxu0
      %v2253 = vadd.f32 %v2024, %v2252
      %v2254 = vpop.f32.mrf.mxu0
      %v2255 = vadd.f32 %v2026, %v2254
      %2256 = vmatmul.bf16.gmra.mxu0 %v1340
      %v2257 = vpop.f32.mrf.mxu0
      %v2258 = vadd.f32 %v2029, %v2257
      %v2259 = vpop.f32.mrf.mxu0
      %v2260 = vadd.f32 %v2031, %v2259
      %2261 = vmatmul.bf16.gmra.mxu0 %v1345
      %v2262 = vpop.f32.mrf.mxu0
      %v2263 = vadd.f32 %v2034, %v2262
      %v2264 = vpop.f32.mrf.mxu0
      %v2265 = vadd.f32 %v2036, %v2264
      %2266 = vmatmul.bf16.gmra.mxu0 %v1350
      %v2267 = vpop.f32.mrf.mxu0
      %v2268 = vadd.f32 %v2039, %v2267
      %v2269 = vpop.f32.mrf.mxu0
      %v2270 = vadd.f32 %v2041, %v2269
      %2271 = vmatmul.bf16.gmra.mxu0 %v1355
      %v2272 = vpop.f32.mrf.mxu0
      %v2273 = vadd.f32 %v2044, %v2272
      %v2274 = vpop.f32.mrf.mxu0
      %v2275 = vadd.f32 %v2046, %v2274
      %2276 = vmatmul.bf16.gmra.mxu0 %v1360
      %v2277 = vpop.f32.mrf.mxu0
      %v2278 = vadd.f32 %v2049, %v2277
      %v2279 = vpop.f32.mrf.mxu0
      %v2280 = vadd.f32 %v2051, %v2279
      %2281 = vmatmul.bf16.gmra.mxu0 %v1365
      %v2282 = vpop.f32.mrf.mxu0
      %v2283 = vadd.f32 %v2054, %v2282
      %v2284 = vpop.f32.mrf.mxu0
      %v2285 = vadd.f32 %v2056, %v2284
      %2286 = vmatmul.bf16.gmra.mxu0 %v1370
      %v2287 = vpop.f32.mrf.mxu0
      %v2288 = vadd.f32 %v2059, %v2287
      %v2289 = vpop.f32.mrf.mxu0
      %v2290 = vadd.f32 %v2061, %v2289
      %2291 = vmatmul.bf16.gmra.mxu0 %v1375
      %v2292 = vpop.f32.mrf.mxu0
      %v2293 = vadd.f32 %v2064, %v2292
      %v2294 = vpop.f32.mrf.mxu0
      %v2295 = vadd.f32 %v2066, %v2294
      %2296 = vmatmul.bf16.gmra.mxu0 %v1380
      %v2297 = vpop.f32.mrf.mxu0
      %v2298 = vadd.f32 %v2069, %v2297
      %v2299 = vpop.f32.mrf.mxu0
      %v2300 = vadd.f32 %v2071, %v2299
      %2301 = vmatmul.bf16.gmra.mxu0 %v1385
      %v2302 = vpop.f32.mrf.mxu0
      %v2303 = vadd.f32 %v2074, %v2302
      %v2304 = vpop.f32.mrf.mxu0
      %v2305 = vadd.f32 %v2076, %v2304
      %2306 = vmatmul.bf16.gmra.mxu0 %v1390
      %v2307 = vpop.f32.mrf.mxu0
      %v2308 = vadd.f32 %v2079, %v2307
      %v2309 = vpop.f32.mrf.mxu0
      %v2310 = vadd.f32 %v2081, %v2309
      %2311 = vmatmul.bf16.gmra.mxu0 %v1395
      %v2312 = vpop.f32.mrf.mxu0
      %v2313 = vadd.f32 %v2084, %v2312
      %v2314 = vpop.f32.mrf.mxu0
      %v2315 = vadd.f32 %v2086, %v2314
      %2316 = vmatmul.bf16.gmra.mxu0 %v1400
      %v2317 = vpop.f32.mrf.mxu0
      %v2318 = vadd.f32 %v2089, %v2317
      %v2319 = vpop.f32.mrf.mxu0
      %v2320 = vadd.f32 %v2091, %v2319
      %2321 = vmatmul.bf16.gmra.mxu0 %v1405
      %v2322 = vpop.f32.mrf.mxu0
      %v2323 = vadd.f32 %v2094, %v2322
      %v2324 = vpop.f32.mrf.mxu0
      %v2325 = vadd.f32 %v2096, %v2324
      %2326 = vmatmul.bf16.gmra.mxu0 %v1410
      %v2327 = vpop.f32.mrf.mxu0
      %v2328 = vadd.f32 %v2099, %v2327
      %v2329 = vpop.f32.mrf.mxu0
      %v2330 = vadd.f32 %v2101, %v2329
      %2331 = vmatmul.bf16.gmra.mxu0 %v1415
      %v2332 = vpop.f32.mrf.mxu0
      %v2333 = vadd.f32 %v2104, %v2332
      %v2334 = vpop.f32.mrf.mxu0
      %v2335 = vadd.f32 %v2106, %v2334
      %2336 = vmatmul.bf16.gmra.mxu0 %v1420
      %v2337 = vpop.f32.mrf.mxu0
      %v2338 = vadd.f32 %v2109, %v2337
      %v2339 = vpop.f32.mrf.mxu0
      %v2340 = vadd.f32 %v2111, %v2339
      %2341 = vmatmul.bf16.gmra.mxu0 %v1425
      %v2342 = vpop.f32.mrf.mxu0
      %v2343 = vadd.f32 %v2114, %v2342
      %v2344 = vpop.f32.mrf.mxu0
      %v2345 = vadd.f32 %v2116, %v2344
      %2346 = vmatmul.bf16.gmra.mxu0 %v1430
      %v2347 = vpop.f32.mrf.mxu0
      %v2348 = vadd.f32 %v2119, %v2347
      %v2349 = vpop.f32.mrf.mxu0
      %v2350 = vadd.f32 %v2121, %v2349
      %2351 = vmatmul.bf16.gmra.mxu0 %v1435
      %v2352 = vpop.f32.mrf.mxu0
      %v2353 = vadd.f32 %v2124, %v2352
      %v2354 = vpop.f32.mrf.mxu0
      %v2355 = vadd.f32 %v2126, %v2354
      %2356 = vmatmul.bf16.gmra.mxu0 %v1440
      %v2357 = vpop.f32.mrf.mxu0
      %v2358 = vadd.f32 %v2129, %v2357
      %v2359 = vpop.f32.mrf.mxu0
      %v2360 = vadd.f32 %v2131, %v2359
      %2361 = vmatmul.bf16.gmra.mxu0 %v1445
      %v2362 = vpop.f32.mrf.mxu0
      %v2363 = vadd.f32 %v2134, %v2362
      %v2364 = vpop.f32.mrf.mxu0
      %v2365 = vadd.f32 %v2136, %v2364
      %2366 = vdwg.mxu0
      %2367 = vmatpush.bf16.msra.mxu0 %v1852
      %2368 = vmatpush.bf16.msra.mxu0 %v1851
      %2369 = vmatpush.bf16.msra.mxu0 %v1850
      %2370 = vmatpush.bf16.msra.mxu0 %v1849
      %2371 = vmatpush.bf16.msra.mxu0 %v1848
      %2372 = vmatpush.bf16.msra.mxu0 %v1847
      %2373 = vmatpush.bf16.msra.mxu0 %v1846
      %2374 = vmatpush.bf16.msra.mxu0 %v1845
      %2375 = vmatmul.bf16.gmra.mxu0 %v1231
      %v2376 = vpop.f32.mrf.mxu0
      %v2377 = vadd.f32 %v2148, %v2376
      %v2378 = vpop.f32.mrf.mxu0
      %v2379 = vadd.f32 %v2150, %v2378
      %2380 = vmatmul.bf16.gmra.mxu0 %v1236
      %v2381 = vpop.f32.mrf.mxu0
      %v2382 = vadd.f32 %v2153, %v2381
      %v2383 = vpop.f32.mrf.mxu0
      %v2384 = vadd.f32 %v2155, %v2383
      %2385 = vmatmul.bf16.gmra.mxu0 %v1241
      %v2386 = vpop.f32.mrf.mxu0
      %v2387 = vadd.f32 %v2158, %v2386
      %v2388 = vpop.f32.mrf.mxu0
      %v2389 = vadd.f32 %v2160, %v2388
      %2390 = vmatmul.bf16.gmra.mxu0 %v1246
      %v2391 = vpop.f32.mrf.mxu0
      %v2392 = vadd.f32 %v2163, %v2391
      %v2393 = vpop.f32.mrf.mxu0
      %v2394 = vadd.f32 %v2165, %v2393
      %2395 = vmatmul.bf16.gmra.mxu0 %v1251
      %v2396 = vpop.f32.mrf.mxu0
      %v2397 = vadd.f32 %v2168, %v2396
      %v2398 = vpop.f32.mrf.mxu0
      %v2399 = vadd.f32 %v2170, %v2398
      %2400 = vmatmul.bf16.gmra.mxu0 %v1256
      %v2401 = vpop.f32.mrf.mxu0
      %v2402 = vadd.f32 %v2173, %v2401
      %v2403 = vpop.f32.mrf.mxu0
      %v2404 = vadd.f32 %v2175, %v2403
      %2405 = vmatmul.bf16.gmra.mxu0 %v1261
      %v2406 = vpop.f32.mrf.mxu0
      %v2407 = vadd.f32 %v2178, %v2406
      %v2408 = vpop.f32.mrf.mxu0
      %v2409 = vadd.f32 %v2180, %v2408
      %2410 = vmatmul.bf16.gmra.mxu0 %v1266
      %v2411 = vpop.f32.mrf.mxu0
      %v2412 = vadd.f32 %v2183, %v2411
      %v2413 = vpop.f32.mrf.mxu0
      %v2414 = vadd.f32 %v2185, %v2413
      %2415 = vmatmul.bf16.gmra.mxu0 %v1271
      %v2416 = vpop.f32.mrf.mxu0
      %v2417 = vadd.f32 %v2188, %v2416
      %v2418 = vpop.f32.mrf.mxu0
      %v2419 = vadd.f32 %v2190, %v2418
      %2420 = vmatmul.bf16.gmra.mxu0 %v1276
      %v2421 = vpop.f32.mrf.mxu0
      %v2422 = vadd.f32 %v2193, %v2421
      %v2423 = vpop.f32.mrf.mxu0
      %v2424 = vadd.f32 %v2195, %v2423
      %2425 = vmatmul.bf16.gmra.mxu0 %v1281
      %v2426 = vpop.f32.mrf.mxu0
      %v2427 = vadd.f32 %v2198, %v2426
      %v2428 = vpop.f32.mrf.mxu0
      %v2429 = vadd.f32 %v2200, %v2428
      %2430 = vmatmul.bf16.gmra.mxu0 %v1286
      %v2431 = vpop.f32.mrf.mxu0
      %v2432 = vadd.f32 %v2203, %v2431
      %v2433 = vpop.f32.mrf.mxu0
      %v2434 = vadd.f32 %v2205, %v2433
      %2435 = vmatmul.bf16.gmra.mxu0 %v1291
      %v2436 = vpop.f32.mrf.mxu0
      %v2437 = vadd.f32 %v2208, %v2436
      %v2438 = vpop.f32.mrf.mxu0
      %v2439 = vadd.f32 %v2210, %v2438
      %2440 = vmatmul.bf16.gmra.mxu0 %v1296
      %v2441 = vpop.f32.mrf.mxu0
      %v2442 = vadd.f32 %v2213, %v2441
      %v2443 = vpop.f32.mrf.mxu0
      %v2444 = vadd.f32 %v2215, %v2443
      %2445 = vmatmul.bf16.gmra.mxu0 %v1301
      %v2446 = vpop.f32.mrf.mxu0
      %v2447 = vadd.f32 %v2218, %v2446
      %v2448 = vpop.f32.mrf.mxu0
      %v2449 = vadd.f32 %v2220, %v2448
      %2450 = vmatmul.bf16.gmra.mxu0 %v1306
      %v2451 = vpop.f32.mrf.mxu0
      %v2452 = vadd.f32 %v2223, %v2451
      %v2453 = vpop.f32.mrf.mxu0
      %v2454 = vadd.f32 %v2225, %v2453
      %2455 = vmatmul.bf16.gmra.mxu0 %v1311
      %v2456 = vpop.f32.mrf.mxu0
      %v2457 = vadd.f32 %v2228, %v2456
      %v2458 = vpop.f32.mrf.mxu0
      %v2459 = vadd.f32 %v2230, %v2458
      %2460 = vmatmul.bf16.gmra.mxu0 %v1316
      %v2461 = vpop.f32.mrf.mxu0
      %v2462 = vadd.f32 %v2233, %v2461
      %v2463 = vpop.f32.mrf.mxu0
      %v2464 = vadd.f32 %v2235, %v2463
      %2465 = vmatmul.bf16.gmra.mxu0 %v1321
      %v2466 = vpop.f32.mrf.mxu0
      %v2467 = vadd.f32 %v2238, %v2466
      %v2468 = vpop.f32.mrf.mxu0
      %v2469 = vadd.f32 %v2240, %v2468
      %2470 = vmatmul.bf16.gmra.mxu0 %v1326
      %v2471 = vpop.f32.mrf.mxu0
      %v2472 = vadd.f32 %v2243, %v2471
      %v2473 = vpop.f32.mrf.mxu0
      %v2474 = vadd.f32 %v2245, %v2473
      %2475 = vmatmul.bf16.gmra.mxu0 %v1331
      %v2476 = vpop.f32.mrf.mxu0
      %v2477 = vadd.f32 %v2248, %v2476
      %v2478 = vpop.f32.mrf.mxu0
      %v2479 = vadd.f32 %v2250, %v2478
      %2480 = vmatmul.bf16.gmra.mxu0 %v1336
      %v2481 = vpop.f32.mrf.mxu0
      %v2482 = vadd.f32 %v2253, %v2481
      %v2483 = vpop.f32.mrf.mxu0
      %v2484 = vadd.f32 %v2255, %v2483
      %2485 = vmatmul.bf16.gmra.mxu0 %v1341
      %v2486 = vpop.f32.mrf.mxu0
      %v2487 = vadd.f32 %v2258, %v2486
      %v2488 = vpop.f32.mrf.mxu0
      %v2489 = vadd.f32 %v2260, %v2488
      %2490 = vmatmul.bf16.gmra.mxu0 %v1346
      %v2491 = vpop.f32.mrf.mxu0
      %v2492 = vadd.f32 %v2263, %v2491
      %v2493 = vpop.f32.mrf.mxu0
      %v2494 = vadd.f32 %v2265, %v2493
      %2495 = vmatmul.bf16.gmra.mxu0 %v1351
      %v2496 = vpop.f32.mrf.mxu0
      %v2497 = vadd.f32 %v2268, %v2496
      %v2498 = vpop.f32.mrf.mxu0
      %v2499 = vadd.f32 %v2270, %v2498
      %2500 = vmatmul.bf16.gmra.mxu0 %v1356
      %v2501 = vpop.f32.mrf.mxu0
      %v2502 = vadd.f32 %v2273, %v2501
      %v2503 = vpop.f32.mrf.mxu0
      %v2504 = vadd.f32 %v2275, %v2503
      %2505 = vmatmul.bf16.gmra.mxu0 %v1361
      %v2506 = vpop.f32.mrf.mxu0
      %v2507 = vadd.f32 %v2278, %v2506
      %v2508 = vpop.f32.mrf.mxu0
      %v2509 = vadd.f32 %v2280, %v2508
      %2510 = vmatmul.bf16.gmra.mxu0 %v1366
      %v2511 = vpop.f32.mrf.mxu0
      %v2512 = vadd.f32 %v2283, %v2511
      %v2513 = vpop.f32.mrf.mxu0
      %v2514 = vadd.f32 %v2285, %v2513
      %2515 = vmatmul.bf16.gmra.mxu0 %v1371
      %v2516 = vpop.f32.mrf.mxu0
      %v2517 = vadd.f32 %v2288, %v2516
      %v2518 = vpop.f32.mrf.mxu0
      %v2519 = vadd.f32 %v2290, %v2518
      %2520 = vmatmul.bf16.gmra.mxu0 %v1376
      %v2521 = vpop.f32.mrf.mxu0
      %v2522 = vadd.f32 %v2293, %v2521
      %v2523 = vpop.f32.mrf.mxu0
      %v2524 = vadd.f32 %v2295, %v2523
      %2525 = vmatmul.bf16.gmra.mxu0 %v1381
      %v2526 = vpop.f32.mrf.mxu0
      %v2527 = vadd.f32 %v2298, %v2526
      %v2528 = vpop.f32.mrf.mxu0
      %v2529 = vadd.f32 %v2300, %v2528
      %2530 = vmatmul.bf16.gmra.mxu0 %v1386
      %v2531 = vpop.f32.mrf.mxu0
      %v2532 = vadd.f32 %v2303, %v2531
      %v2533 = vpop.f32.mrf.mxu0
      %v2534 = vadd.f32 %v2305, %v2533
      %2535 = vmatmul.bf16.gmra.mxu0 %v1391
      %v2536 = vpop.f32.mrf.mxu0
      %v2537 = vadd.f32 %v2308, %v2536
      %v2538 = vpop.f32.mrf.mxu0
      %v2539 = vadd.f32 %v2310, %v2538
      %2540 = vmatmul.bf16.gmra.mxu0 %v1396
      %v2541 = vpop.f32.mrf.mxu0
      %v2542 = vadd.f32 %v2313, %v2541
      %v2543 = vpop.f32.mrf.mxu0
      %v2544 = vadd.f32 %v2315, %v2543
      %2545 = vmatmul.bf16.gmra.mxu0 %v1401
      %v2546 = vpop.f32.mrf.mxu0
      %v2547 = vadd.f32 %v2318, %v2546
      %v2548 = vpop.f32.mrf.mxu0
      %v2549 = vadd.f32 %v2320, %v2548
      %2550 = vmatmul.bf16.gmra.mxu0 %v1406
      %v2551 = vpop.f32.mrf.mxu0
      %v2552 = vadd.f32 %v2323, %v2551
      %v2553 = vpop.f32.mrf.mxu0
      %v2554 = vadd.f32 %v2325, %v2553
      %2555 = vmatmul.bf16.gmra.mxu0 %v1411
      %v2556 = vpop.f32.mrf.mxu0
      %v2557 = vadd.f32 %v2328, %v2556
      %v2558 = vpop.f32.mrf.mxu0
      %v2559 = vadd.f32 %v2330, %v2558
      %2560 = vmatmul.bf16.gmra.mxu0 %v1416
      %v2561 = vpop.f32.mrf.mxu0
      %v2562 = vadd.f32 %v2333, %v2561
      %v2563 = vpop.f32.mrf.mxu0
      %v2564 = vadd.f32 %v2335, %v2563
      %2565 = vmatmul.bf16.gmra.mxu0 %v1421
      %v2566 = vpop.f32.mrf.mxu0
      %v2567 = vadd.f32 %v2338, %v2566
      %v2568 = vpop.f32.mrf.mxu0
      %v2569 = vadd.f32 %v2340, %v2568
      %2570 = vmatmul.bf16.gmra.mxu0 %v1426
      %v2571 = vpop.f32.mrf.mxu0
      %v2572 = vadd.f32 %v2343, %v2571
      %v2573 = vpop.f32.mrf.mxu0
      %v2574 = vadd.f32 %v2345, %v2573
      %2575 = vmatmul.bf16.gmra.mxu0 %v1431
      %v2576 = vpop.f32.mrf.mxu0
      %v2577 = vadd.f32 %v2348, %v2576
      %v2578 = vpop.f32.mrf.mxu0
      %v2579 = vadd.f32 %v2350, %v2578
      %2580 = vmatmul.bf16.gmra.mxu0 %v1436
      %v2581 = vpop.f32.mrf.mxu0
      %v2582 = vadd.f32 %v2353, %v2581
      %v2583 = vpop.f32.mrf.mxu0
      %v2584 = vadd.f32 %v2355, %v2583
      %2585 = vmatmul.bf16.gmra.mxu0 %v1441
      %v2586 = vpop.f32.mrf.mxu0
      %v2587 = vadd.f32 %v2358, %v2586
      %v2588 = vpop.f32.mrf.mxu0
      %v2589 = vadd.f32 %v2360, %v2588
      %2590 = vmatmul.bf16.gmra.mxu0 %v1446
      %v2591 = vpop.f32.mrf.mxu0
      %v2592 = vadd.f32 %v2363, %v2591
      %v2593 = vpop.f32.mrf.mxu0
      %v2594 = vadd.f32 %v2365, %v2593
      %2595 = vdwg.mxu0
      %2596 = vmatpush.bf16.msra.mxu0 %v1860
      %2597 = vmatpush.bf16.msra.mxu0 %v1859
      %2598 = vmatpush.bf16.msra.mxu0 %v1858
      %2599 = vmatpush.bf16.msra.mxu0 %v1857
      %2600 = vmatpush.bf16.msra.mxu0 %v1856
      %2601 = vmatpush.bf16.msra.mxu0 %v1855
      %2602 = vmatpush.bf16.msra.mxu0 %v1854
      %2603 = vmatpush.bf16.msra.mxu0 %v1853
      %2604 = vmatmul.bf16.gmra.mxu0 %v1232
      %v2605 = vpop.f32.mrf.mxu0
      %v2606 = vadd.f32 %v2377, %v2605
      %v2607 = vpop.f32.mrf.mxu0
      %v2608 = vadd.f32 %v2379, %v2607
      %2609 = vmatmul.bf16.gmra.mxu0 %v1237
      %v2610 = vpop.f32.mrf.mxu0
      %v2611 = vadd.f32 %v2382, %v2610
      %v2612 = vpop.f32.mrf.mxu0
      %v2613 = vadd.f32 %v2384, %v2612
      %2614 = vmatmul.bf16.gmra.mxu0 %v1242
      %v2615 = vpop.f32.mrf.mxu0
      %v2616 = vadd.f32 %v2387, %v2615
      %v2617 = vpop.f32.mrf.mxu0
      %v2618 = vadd.f32 %v2389, %v2617
      %2619 = vmatmul.bf16.gmra.mxu0 %v1247
      %v2620 = vpop.f32.mrf.mxu0
      %v2621 = vadd.f32 %v2392, %v2620
      %v2622 = vpop.f32.mrf.mxu0
      %v2623 = vadd.f32 %v2394, %v2622
      %2624 = vmatmul.bf16.gmra.mxu0 %v1252
      %v2625 = vpop.f32.mrf.mxu0
      %v2626 = vadd.f32 %v2397, %v2625
      %v2627 = vpop.f32.mrf.mxu0
      %v2628 = vadd.f32 %v2399, %v2627
      %2629 = vmatmul.bf16.gmra.mxu0 %v1257
      %v2630 = vpop.f32.mrf.mxu0
      %v2631 = vadd.f32 %v2402, %v2630
      %v2632 = vpop.f32.mrf.mxu0
      %v2633 = vadd.f32 %v2404, %v2632
      %2634 = vmatmul.bf16.gmra.mxu0 %v1262
      %v2635 = vpop.f32.mrf.mxu0
      %v2636 = vadd.f32 %v2407, %v2635
      %v2637 = vpop.f32.mrf.mxu0
      %v2638 = vadd.f32 %v2409, %v2637
      %2639 = vmatmul.bf16.gmra.mxu0 %v1267
      %v2640 = vpop.f32.mrf.mxu0
      %v2641 = vadd.f32 %v2412, %v2640
      %v2642 = vpop.f32.mrf.mxu0
      %v2643 = vadd.f32 %v2414, %v2642
      %2644 = vmatmul.bf16.gmra.mxu0 %v1272
      %v2645 = vpop.f32.mrf.mxu0
      %v2646 = vadd.f32 %v2417, %v2645
      %v2647 = vpop.f32.mrf.mxu0
      %v2648 = vadd.f32 %v2419, %v2647
      %2649 = vmatmul.bf16.gmra.mxu0 %v1277
      %v2650 = vpop.f32.mrf.mxu0
      %v2651 = vadd.f32 %v2422, %v2650
      %v2652 = vpop.f32.mrf.mxu0
      %v2653 = vadd.f32 %v2424, %v2652
      %2654 = vmatmul.bf16.gmra.mxu0 %v1282
      %v2655 = vpop.f32.mrf.mxu0
      %v2656 = vadd.f32 %v2427, %v2655
      %v2657 = vpop.f32.mrf.mxu0
      %v2658 = vadd.f32 %v2429, %v2657
      %2659 = vmatmul.bf16.gmra.mxu0 %v1287
      %v2660 = vpop.f32.mrf.mxu0
      %v2661 = vadd.f32 %v2432, %v2660
      %v2662 = vpop.f32.mrf.mxu0
      %v2663 = vadd.f32 %v2434, %v2662
      %2664 = vmatmul.bf16.gmra.mxu0 %v1292
      %v2665 = vpop.f32.mrf.mxu0
      %v2666 = vadd.f32 %v2437, %v2665
      %v2667 = vpop.f32.mrf.mxu0
      %v2668 = vadd.f32 %v2439, %v2667
      %2669 = vmatmul.bf16.gmra.mxu0 %v1297
      %v2670 = vpop.f32.mrf.mxu0
      %v2671 = vadd.f32 %v2442, %v2670
      %v2672 = vpop.f32.mrf.mxu0
      %v2673 = vadd.f32 %v2444, %v2672
      %2674 = vmatmul.bf16.gmra.mxu0 %v1302
      %v2675 = vpop.f32.mrf.mxu0
      %v2676 = vadd.f32 %v2447, %v2675
      %v2677 = vpop.f32.mrf.mxu0
      %v2678 = vadd.f32 %v2449, %v2677
      %2679 = vmatmul.bf16.gmra.mxu0 %v1307
      %v2680 = vpop.f32.mrf.mxu0
      %v2681 = vadd.f32 %v2452, %v2680
      %v2682 = vpop.f32.mrf.mxu0
      %v2683 = vadd.f32 %v2454, %v2682
      %2684 = vmatmul.bf16.gmra.mxu0 %v1312
      %v2685 = vpop.f32.mrf.mxu0
      %v2686 = vadd.f32 %v2457, %v2685
      %v2687 = vpop.f32.mrf.mxu0
      %v2688 = vadd.f32 %v2459, %v2687
      %2689 = vmatmul.bf16.gmra.mxu0 %v1317
      %v2690 = vpop.f32.mrf.mxu0
      %v2691 = vadd.f32 %v2462, %v2690
      %v2692 = vpop.f32.mrf.mxu0
      %v2693 = vadd.f32 %v2464, %v2692
      %2694 = vmatmul.bf16.gmra.mxu0 %v1322
      %v2695 = vpop.f32.mrf.mxu0
      %v2696 = vadd.f32 %v2467, %v2695
      %v2697 = vpop.f32.mrf.mxu0
      %v2698 = vadd.f32 %v2469, %v2697
      %2699 = vmatmul.bf16.gmra.mxu0 %v1327
      %v2700 = vpop.f32.mrf.mxu0
      %v2701 = vadd.f32 %v2472, %v2700
      %v2702 = vpop.f32.mrf.mxu0
      %v2703 = vadd.f32 %v2474, %v2702
      %2704 = vmatmul.bf16.gmra.mxu0 %v1332
      %v2705 = vpop.f32.mrf.mxu0
      %v2706 = vadd.f32 %v2477, %v2705
      %v2707 = vpop.f32.mrf.mxu0
      %v2708 = vadd.f32 %v2479, %v2707
      %2709 = vmatmul.bf16.gmra.mxu0 %v1337
      %v2710 = vpop.f32.mrf.mxu0
      %v2711 = vadd.f32 %v2482, %v2710
      %v2712 = vpop.f32.mrf.mxu0
      %v2713 = vadd.f32 %v2484, %v2712
      %2714 = vmatmul.bf16.gmra.mxu0 %v1342
      %v2715 = vpop.f32.mrf.mxu0
      %v2716 = vadd.f32 %v2487, %v2715
      %v2717 = vpop.f32.mrf.mxu0
      %v2718 = vadd.f32 %v2489, %v2717
      %2719 = vmatmul.bf16.gmra.mxu0 %v1347
      %v2720 = vpop.f32.mrf.mxu0
      %v2721 = vadd.f32 %v2492, %v2720
      %v2722 = vpop.f32.mrf.mxu0
      %v2723 = vadd.f32 %v2494, %v2722
      %2724 = vmatmul.bf16.gmra.mxu0 %v1352
      %v2725 = vpop.f32.mrf.mxu0
      %v2726 = vadd.f32 %v2497, %v2725
      %v2727 = vpop.f32.mrf.mxu0
      %v2728 = vadd.f32 %v2499, %v2727
      %2729 = vmatmul.bf16.gmra.mxu0 %v1357
      %v2730 = vpop.f32.mrf.mxu0
      %v2731 = vadd.f32 %v2502, %v2730
      %v2732 = vpop.f32.mrf.mxu0
      %v2733 = vadd.f32 %v2504, %v2732
      %2734 = vmatmul.bf16.gmra.mxu0 %v1362
      %v2735 = vpop.f32.mrf.mxu0
      %v2736 = vadd.f32 %v2507, %v2735
      %v2737 = vpop.f32.mrf.mxu0
      %v2738 = vadd.f32 %v2509, %v2737
      %2739 = vmatmul.bf16.gmra.mxu0 %v1367
      %v2740 = vpop.f32.mrf.mxu0
      %v2741 = vadd.f32 %v2512, %v2740
      %v2742 = vpop.f32.mrf.mxu0
      %v2743 = vadd.f32 %v2514, %v2742
      %2744 = vmatmul.bf16.gmra.mxu0 %v1372
      %v2745 = vpop.f32.mrf.mxu0
      %v2746 = vadd.f32 %v2517, %v2745
      %v2747 = vpop.f32.mrf.mxu0
      %v2748 = vadd.f32 %v2519, %v2747
      %2749 = vmatmul.bf16.gmra.mxu0 %v1377
      %v2750 = vpop.f32.mrf.mxu0
      %v2751 = vadd.f32 %v2522, %v2750
      %v2752 = vpop.f32.mrf.mxu0
      %v2753 = vadd.f32 %v2524, %v2752
      %2754 = vmatmul.bf16.gmra.mxu0 %v1382
      %v2755 = vpop.f32.mrf.mxu0
      %v2756 = vadd.f32 %v2527, %v2755
      %v2757 = vpop.f32.mrf.mxu0
      %v2758 = vadd.f32 %v2529, %v2757
      %2759 = vmatmul.bf16.gmra.mxu0 %v1387
      %v2760 = vpop.f32.mrf.mxu0
      %v2761 = vadd.f32 %v2532, %v2760
      %v2762 = vpop.f32.mrf.mxu0
      %v2763 = vadd.f32 %v2534, %v2762
      %2764 = vmatmul.bf16.gmra.mxu0 %v1392
      %v2765 = vpop.f32.mrf.mxu0
      %v2766 = vadd.f32 %v2537, %v2765
      %v2767 = vpop.f32.mrf.mxu0
      %v2768 = vadd.f32 %v2539, %v2767
      %2769 = vmatmul.bf16.gmra.mxu0 %v1397
      %v2770 = vpop.f32.mrf.mxu0
      %v2771 = vadd.f32 %v2542, %v2770
      %v2772 = vpop.f32.mrf.mxu0
      %v2773 = vadd.f32 %v2544, %v2772
      %2774 = vmatmul.bf16.gmra.mxu0 %v1402
      %v2775 = vpop.f32.mrf.mxu0
      %v2776 = vadd.f32 %v2547, %v2775
      %v2777 = vpop.f32.mrf.mxu0
      %v2778 = vadd.f32 %v2549, %v2777
      %2779 = vmatmul.bf16.gmra.mxu0 %v1407
      %v2780 = vpop.f32.mrf.mxu0
      %v2781 = vadd.f32 %v2552, %v2780
      %v2782 = vpop.f32.mrf.mxu0
      %v2783 = vadd.f32 %v2554, %v2782
      %2784 = vmatmul.bf16.gmra.mxu0 %v1412
      %v2785 = vpop.f32.mrf.mxu0
      %v2786 = vadd.f32 %v2557, %v2785
      %v2787 = vpop.f32.mrf.mxu0
      %v2788 = vadd.f32 %v2559, %v2787
      %2789 = vmatmul.bf16.gmra.mxu0 %v1417
      %v2790 = vpop.f32.mrf.mxu0
      %v2791 = vadd.f32 %v2562, %v2790
      %v2792 = vpop.f32.mrf.mxu0
      %v2793 = vadd.f32 %v2564, %v2792
      %2794 = vmatmul.bf16.gmra.mxu0 %v1422
      %v2795 = vpop.f32.mrf.mxu0
      %v2796 = vadd.f32 %v2567, %v2795
      %v2797 = vpop.f32.mrf.mxu0
      %v2798 = vadd.f32 %v2569, %v2797
      %2799 = vmatmul.bf16.gmra.mxu0 %v1427
      %v2800 = vpop.f32.mrf.mxu0
      %v2801 = vadd.f32 %v2572, %v2800
      %v2802 = vpop.f32.mrf.mxu0
      %v2803 = vadd.f32 %v2574, %v2802
      %2804 = vmatmul.bf16.gmra.mxu0 %v1432
      %v2805 = vpop.f32.mrf.mxu0
      %v2806 = vadd.f32 %v2577, %v2805
      %v2807 = vpop.f32.mrf.mxu0
      %v2808 = vadd.f32 %v2579, %v2807
      %2809 = vmatmul.bf16.gmra.mxu0 %v1437
      %v2810 = vpop.f32.mrf.mxu0
      %v2811 = vadd.f32 %v2582, %v2810
      %v2812 = vpop.f32.mrf.mxu0
      %v2813 = vadd.f32 %v2584, %v2812
      %2814 = vmatmul.bf16.gmra.mxu0 %v1442
      %v2815 = vpop.f32.mrf.mxu0
      %v2816 = vadd.f32 %v2587, %v2815
      %v2817 = vpop.f32.mrf.mxu0
      %v2818 = vadd.f32 %v2589, %v2817
      %2819 = vmatmul.bf16.gmra.mxu0 %v1447
      %v2820 = vpop.f32.mrf.mxu0
      %v2821 = vadd.f32 %v2592, %v2820
      %v2822 = vpop.f32.mrf.mxu0
      %v2823 = vadd.f32 %v2594, %v2822
      %2824 = vdwg.mxu0
      %2825 = vmatpush.bf16.msra.mxu0 %v1868
      %2826 = vmatpush.bf16.msra.mxu0 %v1867
      %2827 = vmatpush.bf16.msra.mxu0 %v1866
      %2828 = vmatpush.bf16.msra.mxu0 %v1865
      %2829 = vmatpush.bf16.msra.mxu0 %v1864
      %2830 = vmatpush.bf16.msra.mxu0 %v1863
      %2831 = vmatpush.bf16.msra.mxu0 %v1862
      %2832 = vmatpush.bf16.msra.mxu0 %v1861
      %2833 = vmatmul.bf16.gmra.mxu0 %v1233
      %v2834 = vpop.f32.mrf.mxu0
      %v2835 = vadd.f32 %v2606, %v2834
      %v2836 = vpop.f32.mrf.mxu0
      %v2837 = vadd.f32 %v2608, %v2836
      %2838 = vmatmul.bf16.gmra.mxu0 %v1238
      %v2839 = vpop.f32.mrf.mxu0
      %v2840 = vadd.f32 %v2611, %v2839
      %v2841 = vpop.f32.mrf.mxu0
      %v2842 = vadd.f32 %v2613, %v2841
      %2843 = vmatmul.bf16.gmra.mxu0 %v1243
      %v2844 = vpop.f32.mrf.mxu0
      %v2845 = vadd.f32 %v2616, %v2844
      %v2846 = vpop.f32.mrf.mxu0
      %v2847 = vadd.f32 %v2618, %v2846
      %2848 = vmatmul.bf16.gmra.mxu0 %v1248
      %v2849 = vpop.f32.mrf.mxu0
      %v2850 = vadd.f32 %v2621, %v2849
      %v2851 = vpop.f32.mrf.mxu0
      %v2852 = vadd.f32 %v2623, %v2851
      %2853 = vmatmul.bf16.gmra.mxu0 %v1253
      %v2854 = vpop.f32.mrf.mxu0
      %v2855 = vadd.f32 %v2626, %v2854
      %v2856 = vpop.f32.mrf.mxu0
      %v2857 = vadd.f32 %v2628, %v2856
      %2858 = vmatmul.bf16.gmra.mxu0 %v1258
      %v2859 = vpop.f32.mrf.mxu0
      %v2860 = vadd.f32 %v2631, %v2859
      %v2861 = vpop.f32.mrf.mxu0
      %v2862 = vadd.f32 %v2633, %v2861
      %2863 = vmatmul.bf16.gmra.mxu0 %v1263
      %v2864 = vpop.f32.mrf.mxu0
      %v2865 = vadd.f32 %v2636, %v2864
      %v2866 = vpop.f32.mrf.mxu0
      %v2867 = vadd.f32 %v2638, %v2866
      %2868 = vmatmul.bf16.gmra.mxu0 %v1268
      %v2869 = vpop.f32.mrf.mxu0
      %v2870 = vadd.f32 %v2641, %v2869
      %v2871 = vpop.f32.mrf.mxu0
      %v2872 = vadd.f32 %v2643, %v2871
      %2873 = vmatmul.bf16.gmra.mxu0 %v1273
      %v2874 = vpop.f32.mrf.mxu0
      %v2875 = vadd.f32 %v2646, %v2874
      %v2876 = vpop.f32.mrf.mxu0
      %v2877 = vadd.f32 %v2648, %v2876
      %2878 = vmatmul.bf16.gmra.mxu0 %v1278
      %v2879 = vpop.f32.mrf.mxu0
      %v2880 = vadd.f32 %v2651, %v2879
      %v2881 = vpop.f32.mrf.mxu0
      %v2882 = vadd.f32 %v2653, %v2881
      %2883 = vmatmul.bf16.gmra.mxu0 %v1283
      %v2884 = vpop.f32.mrf.mxu0
      %v2885 = vadd.f32 %v2656, %v2884
      %v2886 = vpop.f32.mrf.mxu0
      %v2887 = vadd.f32 %v2658, %v2886
      %2888 = vmatmul.bf16.gmra.mxu0 %v1288
      %v2889 = vpop.f32.mrf.mxu0
      %v2890 = vadd.f32 %v2661, %v2889
      %v2891 = vpop.f32.mrf.mxu0
      %v2892 = vadd.f32 %v2663, %v2891
      %2893 = vmatmul.bf16.gmra.mxu0 %v1293
      %v2894 = vpop.f32.mrf.mxu0
      %v2895 = vadd.f32 %v2666, %v2894
      %v2896 = vpop.f32.mrf.mxu0
      %v2897 = vadd.f32 %v2668, %v2896
      %2898 = vmatmul.bf16.gmra.mxu0 %v1298
      %v2899 = vpop.f32.mrf.mxu0
      %v2900 = vadd.f32 %v2671, %v2899
      %v2901 = vpop.f32.mrf.mxu0
      %v2902 = vadd.f32 %v2673, %v2901
      %2903 = vmatmul.bf16.gmra.mxu0 %v1303
      %v2904 = vpop.f32.mrf.mxu0
      %v2905 = vadd.f32 %v2676, %v2904
      %v2906 = vpop.f32.mrf.mxu0
      %v2907 = vadd.f32 %v2678, %v2906
      %2908 = vmatmul.bf16.gmra.mxu0 %v1308
      %v2909 = vpop.f32.mrf.mxu0
      %v2910 = vadd.f32 %v2681, %v2909
      %v2911 = vpop.f32.mrf.mxu0
      %v2912 = vadd.f32 %v2683, %v2911
      %2913 = vmatmul.bf16.gmra.mxu0 %v1313
      %v2914 = vpop.f32.mrf.mxu0
      %v2915 = vadd.f32 %v2686, %v2914
      %v2916 = vpop.f32.mrf.mxu0
      %v2917 = vadd.f32 %v2688, %v2916
      %2918 = vmatmul.bf16.gmra.mxu0 %v1318
      %v2919 = vpop.f32.mrf.mxu0
      %v2920 = vadd.f32 %v2691, %v2919
      %v2921 = vpop.f32.mrf.mxu0
      %v2922 = vadd.f32 %v2693, %v2921
      %2923 = vmatmul.bf16.gmra.mxu0 %v1323
      %v2924 = vpop.f32.mrf.mxu0
      %v2925 = vadd.f32 %v2696, %v2924
      %v2926 = vpop.f32.mrf.mxu0
      %v2927 = vadd.f32 %v2698, %v2926
      %2928 = vmatmul.bf16.gmra.mxu0 %v1328
      %v2929 = vpop.f32.mrf.mxu0
      %v2930 = vadd.f32 %v2701, %v2929
      %v2931 = vpop.f32.mrf.mxu0
      %v2932 = vadd.f32 %v2703, %v2931
      %2933 = vmatmul.bf16.gmra.mxu0 %v1333
      %v2934 = vpop.f32.mrf.mxu0
      %v2935 = vadd.f32 %v2706, %v2934
      %v2936 = vpop.f32.mrf.mxu0
      %v2937 = vadd.f32 %v2708, %v2936
      %2938 = vmatmul.bf16.gmra.mxu0 %v1338
      %v2939 = vpop.f32.mrf.mxu0
      %v2940 = vadd.f32 %v2711, %v2939
      %v2941 = vpop.f32.mrf.mxu0
      %v2942 = vadd.f32 %v2713, %v2941
      %2943 = vmatmul.bf16.gmra.mxu0 %v1343
      %v2944 = vpop.f32.mrf.mxu0
      %v2945 = vadd.f32 %v2716, %v2944
      %v2946 = vpop.f32.mrf.mxu0
      %v2947 = vadd.f32 %v2718, %v2946
      %2948 = vmatmul.bf16.gmra.mxu0 %v1348
      %v2949 = vpop.f32.mrf.mxu0
      %v2950 = vadd.f32 %v2721, %v2949
      %v2951 = vpop.f32.mrf.mxu0
      %v2952 = vadd.f32 %v2723, %v2951
      %2953 = vmatmul.bf16.gmra.mxu0 %v1353
      %v2954 = vpop.f32.mrf.mxu0
      %v2955 = vadd.f32 %v2726, %v2954
      %v2956 = vpop.f32.mrf.mxu0
      %v2957 = vadd.f32 %v2728, %v2956
      %2958 = vmatmul.bf16.gmra.mxu0 %v1358
      %v2959 = vpop.f32.mrf.mxu0
      %v2960 = vadd.f32 %v2731, %v2959
      %v2961 = vpop.f32.mrf.mxu0
      %v2962 = vadd.f32 %v2733, %v2961
      %2963 = vmatmul.bf16.gmra.mxu0 %v1363
      %v2964 = vpop.f32.mrf.mxu0
      %v2965 = vadd.f32 %v2736, %v2964
      %v2966 = vpop.f32.mrf.mxu0
      %v2967 = vadd.f32 %v2738, %v2966
      %2968 = vmatmul.bf16.gmra.mxu0 %v1368
      %v2969 = vpop.f32.mrf.mxu0
      %v2970 = vadd.f32 %v2741, %v2969
      %v2971 = vpop.f32.mrf.mxu0
      %v2972 = vadd.f32 %v2743, %v2971
      %2973 = vmatmul.bf16.gmra.mxu0 %v1373
      %v2974 = vpop.f32.mrf.mxu0
      %v2975 = vadd.f32 %v2746, %v2974
      %v2976 = vpop.f32.mrf.mxu0
      %v2977 = vadd.f32 %v2748, %v2976
      %2978 = vmatmul.bf16.gmra.mxu0 %v1378
      %v2979 = vpop.f32.mrf.mxu0
      %v2980 = vadd.f32 %v2751, %v2979
      %v2981 = vpop.f32.mrf.mxu0
      %v2982 = vadd.f32 %v2753, %v2981
      %2983 = vmatmul.bf16.gmra.mxu0 %v1383
      %v2984 = vpop.f32.mrf.mxu0
      %v2985 = vadd.f32 %v2756, %v2984
      %v2986 = vpop.f32.mrf.mxu0
      %v2987 = vadd.f32 %v2758, %v2986
      %2988 = vmatmul.bf16.gmra.mxu0 %v1388
      %v2989 = vpop.f32.mrf.mxu0
      %v2990 = vadd.f32 %v2761, %v2989
      %v2991 = vpop.f32.mrf.mxu0
      %v2992 = vadd.f32 %v2763, %v2991
      %2993 = vmatmul.bf16.gmra.mxu0 %v1393
      %v2994 = vpop.f32.mrf.mxu0
      %v2995 = vadd.f32 %v2766, %v2994
      %v2996 = vpop.f32.mrf.mxu0
      %v2997 = vadd.f32 %v2768, %v2996
      %2998 = vmatmul.bf16.gmra.mxu0 %v1398
      %v2999 = vpop.f32.mrf.mxu0
      %v3000 = vadd.f32 %v2771, %v2999
      %v3001 = vpop.f32.mrf.mxu0
      %v3002 = vadd.f32 %v2773, %v3001
      %3003 = vmatmul.bf16.gmra.mxu0 %v1403
      %v3004 = vpop.f32.mrf.mxu0
      %v3005 = vadd.f32 %v2776, %v3004
      %v3006 = vpop.f32.mrf.mxu0
      %v3007 = vadd.f32 %v2778, %v3006
      %3008 = vmatmul.bf16.gmra.mxu0 %v1408
      %v3009 = vpop.f32.mrf.mxu0
      %v3010 = vadd.f32 %v2781, %v3009
      %v3011 = vpop.f32.mrf.mxu0
      %v3012 = vadd.f32 %v2783, %v3011
      %3013 = vmatmul.bf16.gmra.mxu0 %v1413
      %v3014 = vpop.f32.mrf.mxu0
      %v3015 = vadd.f32 %v2786, %v3014
      %v3016 = vpop.f32.mrf.mxu0
      %v3017 = vadd.f32 %v2788, %v3016
      %3018 = vmatmul.bf16.gmra.mxu0 %v1418
      %v3019 = vpop.f32.mrf.mxu0
      %v3020 = vadd.f32 %v2791, %v3019
      %v3021 = vpop.f32.mrf.mxu0
      %v3022 = vadd.f32 %v2793, %v3021
      %3023 = vmatmul.bf16.gmra.mxu0 %v1423
      %v3024 = vpop.f32.mrf.mxu0
      %v3025 = vadd.f32 %v2796, %v3024
      %v3026 = vpop.f32.mrf.mxu0
      %v3027 = vadd.f32 %v2798, %v3026
      %3028 = vmatmul.bf16.gmra.mxu0 %v1428
      %v3029 = vpop.f32.mrf.mxu0
      %v3030 = vadd.f32 %v2801, %v3029
      %v3031 = vpop.f32.mrf.mxu0
      %v3032 = vadd.f32 %v2803, %v3031
      %3033 = vmatmul.bf16.gmra.mxu0 %v1433
      %v3034 = vpop.f32.mrf.mxu0
      %v3035 = vadd.f32 %v2806, %v3034
      %v3036 = vpop.f32.mrf.mxu0
      %v3037 = vadd.f32 %v2808, %v3036
      %3038 = vmatmul.bf16.gmra.mxu0 %v1438
      %v3039 = vpop.f32.mrf.mxu0
      %v3040 = vadd.f32 %v2811, %v3039
      %v3041 = vpop.f32.mrf.mxu0
      %v3042 = vadd.f32 %v2813, %v3041
      %3043 = vmatmul.bf16.gmra.mxu0 %v1443
      %v3044 = vpop.f32.mrf.mxu0
      %v3045 = vadd.f32 %v2816, %v3044
      %v3046 = vpop.f32.mrf.mxu0
      %v3047 = vadd.f32 %v2818, %v3046
      %3048 = vmatmul.bf16.gmra.mxu0 %v1448
      %v3049 = vpop.f32.mrf.mxu0
      %v3050 = vadd.f32 %v2821, %v3049
      %v3051 = vpop.f32.mrf.mxu0
      %v3052 = vadd.f32 %v2823, %v3051
      %3053 = vdwg.mxu0
      %v3054 = vmax.f32 %v2835, 0.0
      %v3055 = vmax.f32 %v2837, 0.0
      %v3056 = vmax.f32 %v2840, 0.0
      %v3057 = vmax.f32 %v2842, 0.0
      %v3058 = vmax.f32 %v2845, 0.0
      %v3059 = vmax.f32 %v2847, 0.0
      %v3060 = vmax.f32 %v2850, 0.0
      %v3061 = vmax.f32 %v2852, 0.0
      %v3062 = vmax.f32 %v2855, 0.0
      %v3063 = vmax.f32 %v2857, 0.0
      %v3064 = vmax.f32 %v2860, 0.0
      %v3065 = vmax.f32 %v2862, 0.0
      %v3066 = vmax.f32 %v2865, 0.0
      %v3067 = vmax.f32 %v2867, 0.0
      %v3068 = vmax.f32 %v2870, 0.0
      %v3069 = vmax.f32 %v2872, 0.0
      %v3070 = vmax.f32 %v2875, 0.0
      %v3071 = vmax.f32 %v2877, 0.0
      %v3072 = vmax.f32 %v2880, 0.0
      %v3073 = vmax.f32 %v2882, 0.0
      %v3074 = vmax.f32 %v2885, 0.0
      %v3075 = vmax.f32 %v2887, 0.0
      %v3076 = vmax.f32 %v2890, 0.0
      %v3077 = vmax.f32 %v2892, 0.0
      %v3078 = vmax.f32 %v2895, 0.0
      %v3079 = vmax.f32 %v2897, 0.0
      %v3080 = vmax.f32 %v2900, 0.0
      %v3081 = vmax.f32 %v2902, 0.0
      %v3082 = vmax.f32 %v2905, 0.0
      %v3083 = vmax.f32 %v2907, 0.0
      %v3084 = vmax.f32 %v2910, 0.0
      %v3085 = vmax.f32 %v2912, 0.0
      %v3086 = vmax.f32 %v2915, 0.0
      %v3087 = vmax.f32 %v2917, 0.0
      %v3088 = vmax.f32 %v2920, 0.0
      %v3089 = vmax.f32 %v2922, 0.0
      %v3090 = vmax.f32 %v2925, 0.0
      %v3091 = vmax.f32 %v2927, 0.0
      %v3092 = vmax.f32 %v2930, 0.0
      %v3093 = vmax.f32 %v2932, 0.0
      %v3094 = vmax.f32 %v2935, 0.0
      %v3095 = vmax.f32 %v2937, 0.0
      %v3096 = vmax.f32 %v2940, 0.0
      %v3097 = vmax.f32 %v2942, 0.0
      %v3098 = vmax.f32 %v2945, 0.0
      %v3099 = vmax.f32 %v2947, 0.0
      %v3100 = vmax.f32 %v2950, 0.0
      %v3101 = vmax.f32 %v2952, 0.0
      %v3102 = vmax.f32 %v2955, 0.0
      %v3103 = vmax.f32 %v2957, 0.0
      %v3104 = vmax.f32 %v2960, 0.0
      %v3105 = vmax.f32 %v2962, 0.0
      %v3106 = vmax.f32 %v2965, 0.0
      %v3107 = vmax.f32 %v2967, 0.0
      %v3108 = vmax.f32 %v2970, 0.0
      %v3109 = vmax.f32 %v2972, 0.0
      %v3110 = vmax.f32 %v2975, 0.0
      %v3111 = vmax.f32 %v2977, 0.0
      %v3112 = vmax.f32 %v2980, 0.0
      %v3113 = vmax.f32 %v2982, 0.0
      %v3114 = vmax.f32 %v2985, 0.0
      %v3115 = vmax.f32 %v2987, 0.0
      %v3116 = vmax.f32 %v2990, 0.0
      %v3117 = vmax.f32 %v2992, 0.0
      %v3118 = vmax.f32 %v2995, 0.0
      %v3119 = vmax.f32 %v2997, 0.0
      %v3120 = vmax.f32 %v3000, 0.0
      %v3121 = vmax.f32 %v3002, 0.0
      %v3122 = vmax.f32 %v3005, 0.0
      %v3123 = vmax.f32 %v3007, 0.0
      %v3124 = vmax.f32 %v3010, 0.0
      %v3125 = vmax.f32 %v3012, 0.0
      %v3126 = vmax.f32 %v3015, 0.0
      %v3127 = vmax.f32 %v3017, 0.0
      %v3128 = vmax.f32 %v3020, 0.0
      %v3129 = vmax.f32 %v3022, 0.0
      %v3130 = vmax.f32 %v3025, 0.0
      %v3131 = vmax.f32 %v3027, 0.0
      %v3132 = vmax.f32 %v3030, 0.0
      %v3133 = vmax.f32 %v3032, 0.0
      %v3134 = vmax.f32 %v3035, 0.0
      %v3135 = vmax.f32 %v3037, 0.0
      %v3136 = vmax.f32 %v3040, 0.0
      %v3137 = vmax.f32 %v3042, 0.0
      %v3138 = vmax.f32 %v3045, 0.0
      %v3139 = vmax.f32 %v3047, 0.0
      %v3140 = vmax.f32 %v3050, 0.0
      %v3141 = vmax.f32 %v3052, 0.0
      %v3142 = vpack.c.bf16 %v3054, %v3054
      %v3143 = vpack.c.bf16 %v3055, %v3055
      %v3144 = vpack.c.bf16 %v3056, %v3056
      %v3145 = vpack.c.bf16 %v3057, %v3057
      %v3146 = vpack.c.bf16 %v3058, %v3058
      %v3147 = vpack.c.bf16 %v3059, %v3059
      %v3148 = vpack.c.bf16 %v3060, %v3060
      %v3149 = vpack.c.bf16 %v3061, %v3061
      %v3150 = vpack.c.bf16 %v3062, %v3062
      %v3151 = vpack.c.bf16 %v3063, %v3063
      %v3152 = vpack.c.bf16 %v3064, %v3064
      %v3153 = vpack.c.bf16 %v3065, %v3065
      %v3154 = vpack.c.bf16 %v3066, %v3066
      %v3155 = vpack.c.bf16 %v3067, %v3067
      %v3156 = vpack.c.bf16 %v3068, %v3068
      %v3157 = vpack.c.bf16 %v3069, %v3069
      %v3158 = vpack.c.bf16 %v3070, %v3070
      %v3159 = vpack.c.bf16 %v3071, %v3071
      %v3160 = vpack.c.bf16 %v3072, %v3072
      %v3161 = vpack.c.bf16 %v3073, %v3073
      %v3162 = vpack.c.bf16 %v3074, %v3074
      %v3163 = vpack.c.bf16 %v3075, %v3075
      %v3164 = vpack.c.bf16 %v3076, %v3076
      %v3165 = vpack.c.bf16 %v3077, %v3077
      %v3166 = vpack.c.bf16 %v3078, %v3078
      %v3167 = vpack.c.bf16 %v3079, %v3079
      %v3168 = vpack.c.bf16 %v3080, %v3080
      %v3169 = vpack.c.bf16 %v3081, %v3081
      %v3170 = vpack.c.bf16 %v3082, %v3082
      %v3171 = vpack.c.bf16 %v3083, %v3083
      %v3172 = vpack.c.bf16 %v3084, %v3084
      %v3173 = vpack.c.bf16 %v3085, %v3085
      %v3174 = vpack.c.bf16 %v3086, %v3086
      %v3175 = vpack.c.bf16 %v3087, %v3087
      %v3176 = vpack.c.bf16 %v3088, %v3088
      %v3177 = vpack.c.bf16 %v3089, %v3089
      %v3178 = vpack.c.bf16 %v3090, %v3090
      %v3179 = vpack.c.bf16 %v3091, %v3091
      %v3180 = vpack.c.bf16 %v3092, %v3092
      %v3181 = vpack.c.bf16 %v3093, %v3093
      %v3182 = vpack.c.bf16 %v3094, %v3094
      %v3183 = vpack.c.bf16 %v3095, %v3095
      %v3184 = vpack.c.bf16 %v3096, %v3096
      %v3185 = vpack.c.bf16 %v3097, %v3097
      %v3186 = vpack.c.bf16 %v3098, %v3098
      %v3187 = vpack.c.bf16 %v3099, %v3099
      %v3188 = vpack.c.bf16 %v3100, %v3100
      %v3189 = vpack.c.bf16 %v3101, %v3101
      %v3190 = vpack.c.bf16 %v3102, %v3102
      %v3191 = vpack.c.bf16 %v3103, %v3103
      %v3192 = vpack.c.bf16 %v3104, %v3104
      %v3193 = vpack.c.bf16 %v3105, %v3105
      %v3194 = vpack.c.bf16 %v3106, %v3106
      %v3195 = vpack.c.bf16 %v3107, %v3107
      %v3196 = vpack.c.bf16 %v3108, %v3108
      %v3197 = vpack.c.bf16 %v3109, %v3109
      %v3198 = vpack.c.bf16 %v3110, %v3110
      %v3199 = vpack.c.bf16 %v3111, %v3111
      %v3200 = vpack.c.bf16 %v3112, %v3112
      %v3201 = vpack.c.bf16 %v3113, %v3113
      %v3202 = vpack.c.bf16 %v3114, %v3114
      %v3203 = vpack.c.bf16 %v3115, %v3115
      %v3204 = vpack.c.bf16 %v3116, %v3116
      %v3205 = vpack.c.bf16 %v3117, %v3117
      %v3206 = vpack.c.bf16 %v3118, %v3118
      %v3207 = vpack.c.bf16 %v3119, %v3119
      %v3208 = vpack.c.bf16 %v3120, %v3120
      %v3209 = vpack.c.bf16 %v3121, %v3121
      %v3210 = vpack.c.bf16 %v3122, %v3122
      %v3211 = vpack.c.bf16 %v3123, %v3123
      %v3212 = vpack.c.bf16 %v3124, %v3124
      %v3213 = vpack.c.bf16 %v3125, %v3125
      %v3214 = vpack.c.bf16 %v3126, %v3126
      %v3215 = vpack.c.bf16 %v3127, %v3127
      %v3216 = vpack.c.bf16 %v3128, %v3128
      %v3217 = vpack.c.bf16 %v3129, %v3129
      %v3218 = vpack.c.bf16 %v3130, %v3130
      %v3219 = vpack.c.bf16 %v3131, %v3131
      %v3220 = vpack.c.bf16 %v3132, %v3132
      %v3221 = vpack.c.bf16 %v3133, %v3133
      %v3222 = vpack.c.bf16 %v3134, %v3134
      %v3223 = vpack.c.bf16 %v3135, %v3135
      %v3224 = vpack.c.bf16 %v3136, %v3136
      %v3225 = vpack.c.bf16 %v3137, %v3137
      %v3226 = vpack.c.bf16 %v3138, %v3138
      %v3227 = vpack.c.bf16 %v3139, %v3139
      %v3228 = vpack.c.bf16 %v3140, %v3140
      %v3229 = vpack.c.bf16 %v3141, %v3141
      %3230 = vst [vmem:[%s175] sm:$0xf] %v3142
      %3231 = vst [vmem:[%s175 + $0x4] sm:$0xf] %v3143
      %3232 = vst [vmem:[%s175 + $0x8] sm:$0xf] %v3144
      %3233 = vst [vmem:[%s175 + $0xc] sm:$0xf] %v3145
      %3234 = vst [vmem:[%s175 + $0x10] sm:$0xf] %v3146
      %3235 = vst [vmem:[%s175 + $0x14] sm:$0xf] %v3147
      %3236 = vst [vmem:[%s175 + $0x18] sm:$0xf] %v3148
      %3237 = vst [vmem:[%s175 + $0x1c] sm:$0xf] %v3149
      %3238 = vst [vmem:[%s175 + $0x20] sm:$0xf] %v3150
      %3239 = vst [vmem:[%s175 + $0x24] sm:$0xf] %v3151
      %3240 = vst [vmem:[%s175 + $0x28] sm:$0xf] %v3152
      %3241 = vst [vmem:[%s175 + $0x2c] sm:$0xf] %v3153
      %3242 = vst [vmem:[%s175 + $0x30] sm:$0xf] %v3154
      %3243 = vst [vmem:[%s175 + $0x34] sm:$0xf] %v3155
      %3244 = vst [vmem:[%s175 + $0x38] sm:$0xf] %v3156
      %3245 = vst [vmem:[%s175 + $0x3c] sm:$0xf] %v3157
      %3246 = vst [vmem:[%s175 + $0x40] sm:$0xf] %v3158
      %3247 = vst [vmem:[%s175 + $0x44] sm:$0xf] %v3159
      %3248 = vst [vmem:[%s175 + $0x48] sm:$0xf] %v3160
      %3249 = vst [vmem:[%s175 + $0x4c] sm:$0xf] %v3161
      %3250 = vst [vmem:[%s175 + $0x50] sm:$0xf] %v3162
      %3251 = vst [vmem:[%s175 + $0x54] sm:$0xf] %v3163
      %3252 = vst [vmem:[%s175 + $0x58] sm:$0xf] %v3164
      %3253 = vst [vmem:[%s175 + $0x5c] sm:$0xf] %v3165
      %3254 = vst [vmem:[%s175 + $0x60] sm:$0xf] %v3166
      %3255 = vst [vmem:[%s175 + $0x64] sm:$0xf] %v3167
      %3256 = vst [vmem:[%s175 + $0x68] sm:$0xf] %v3168
      %3257 = vst [vmem:[%s175 + $0x6c] sm:$0xf] %v3169
      %3258 = vst [vmem:[%s175 + $0x70] sm:$0xf] %v3170
      %3259 = vst [vmem:[%s175 + $0x74] sm:$0xf] %v3171
      %3260 = vst [vmem:[%s175 + $0x78] sm:$0xf] %v3172
      %3261 = vst [vmem:[%s175 + $0x7c] sm:$0xf] %v3173
      %3262 = vst [vmem:[%s175 + $0x80] sm:$0xf] %v3174
      %3263 = vst [vmem:[%s175 + $0x84] sm:$0xf] %v3175
      %3264 = vst [vmem:[%s175 + $0x88] sm:$0xf] %v3176
      %3265 = vst [vmem:[%s175 + $0x8c] sm:$0xf] %v3177
      %3266 = vst [vmem:[%s175 + $0x90] sm:$0xf] %v3178
      %3267 = vst [vmem:[%s175 + $0x94] sm:$0xf] %v3179
      %3268 = vst [vmem:[%s175 + $0x98] sm:$0xf] %v3180
      %3269 = vst [vmem:[%s175 + $0x9c] sm:$0xf] %v3181
      %3270 = vst [vmem:[%s175 + $0xa0] sm:$0xf] %v3182
      %3271 = vst [vmem:[%s175 + $0xa4] sm:$0xf] %v3183
      %3272 = vst [vmem:[%s175 + $0xa8] sm:$0xf] %v3184
      %3273 = vst [vmem:[%s175 + $0xac] sm:$0xf] %v3185
      %3274 = vst [vmem:[%s175 + $0xb0] sm:$0xf] %v3186
      %3275 = vst [vmem:[%s175 + $0xb4] sm:$0xf] %v3187
      %3276 = vst [vmem:[%s175 + $0xb8] sm:$0xf] %v3188
      %3277 = vst [vmem:[%s175 + $0xbc] sm:$0xf] %v3189
      %3278 = vst [vmem:[%s175 + $0xc0] sm:$0xf] %v3190
      %3279 = vst [vmem:[%s175 + $0xc4] sm:$0xf] %v3191
      %3280 = vst [vmem:[%s175 + $0xc8] sm:$0xf] %v3192
      %3281 = vst [vmem:[%s175 + $0xcc] sm:$0xf] %v3193
      %3282 = vst [vmem:[%s175 + $0xd0] sm:$0xf] %v3194
      %3283 = vst [vmem:[%s175 + $0xd4] sm:$0xf] %v3195
      %3284 = vst [vmem:[%s175 + $0xd8] sm:$0xf] %v3196
      %3285 = vst [vmem:[%s175 + $0xdc] sm:$0xf] %v3197
      %3286 = vst [vmem:[%s175 + $0xe0] sm:$0xf] %v3198
      %3287 = vst [vmem:[%s175 + $0xe4] sm:$0xf] %v3199
      %3288 = vst [vmem:[%s175 + $0xe8] sm:$0xf] %v3200
      %3289 = vst [vmem:[%s175 + $0xec] sm:$0xf] %v3201
      %3290 = vst [vmem:[%s175 + $0xf0] sm:$0xf] %v3202
      %3291 = vst [vmem:[%s175 + $0xf4] sm:$0xf] %v3203
      %3292 = vst [vmem:[%s175 + $0xf8] sm:$0xf] %v3204
      %3293 = vst [vmem:[%s175 + $0xfc] sm:$0xf] %v3205
      %3294 = vst [vmem:[%s175 + $0x100] sm:$0xf] %v3206
      %3295 = vst [vmem:[%s175 + $0x104] sm:$0xf] %v3207
      %3296 = vst [vmem:[%s175 + $0x108] sm:$0xf] %v3208
      %3297 = vst [vmem:[%s175 + $0x10c] sm:$0xf] %v3209
      %3298 = vst [vmem:[%s175 + $0x110] sm:$0xf] %v3210
      %3299 = vst [vmem:[%s175 + $0x114] sm:$0xf] %v3211
      %3300 = vst [vmem:[%s175 + $0x118] sm:$0xf] %v3212
      %3301 = vst [vmem:[%s175 + $0x11c] sm:$0xf] %v3213
      %3302 = vst [vmem:[%s175 + $0x120] sm:$0xf] %v3214
      %3303 = vst [vmem:[%s175 + $0x124] sm:$0xf] %v3215
      %3304 = vst [vmem:[%s175 + $0x128] sm:$0xf] %v3216
      %3305 = vst [vmem:[%s175 + $0x12c] sm:$0xf] %v3217
      %3306 = vst [vmem:[%s175 + $0x130] sm:$0xf] %v3218
      %3307 = vst [vmem:[%s175 + $0x134] sm:$0xf] %v3219
      %3308 = vst [vmem:[%s175 + $0x138] sm:$0xf] %v3220
      %3309 = vst [vmem:[%s175 + $0x13c] sm:$0xf] %v3221
      %3310 = vst [vmem:[%s175 + $0x140] sm:$0xf] %v3222
      %3311 = vst [vmem:[%s175 + $0x144] sm:$0xf] %v3223
      %3312 = vst [vmem:[%s175 + $0x148] sm:$0xf] %v3224
      %3313 = vst [vmem:[%s175 + $0x14c] sm:$0xf] %v3225
      %3314 = vst [vmem:[%s175 + $0x150] sm:$0xf] %v3226
      %3315 = vst [vmem:[%s175 + $0x154] sm:$0xf] %v3227
      %3316 = vst [vmem:[%s175 + $0x158] sm:$0xf] %v3228
      %3317 = vst [vmem:[%s175 + $0x15c] sm:$0xf] %v3229
      %s3318 = smul.u32 88, %s14
      %p3319 = scmp.lt.s32.totalorder %s3318, 175
      %s3320 = scalar_select %p3319, %s3318, 175
      %s3321 = smul.addr %s3320, 4
      %s3322 = scalar_lea.vmem %s3, %s3321
      // Predicated region
      $region33: #{steering_prediction_forward.4} parent=31 // pred_check
        %p3323 = pneg %p100
      $region34: #{steering_prediction_forward.4} parent=31 // pred_check_branch
        %3325 = sbr.rel (%p3323) target = $region36
      $region35: #{steering_prediction_forward.4} parent=31 // pred_region
        %s3326 = smul.u32 88, %s14
      $region36: #{steering_prediction_forward.4} parent=31 // pred_fallthru
        _
    $region32: #{steering_prediction_forward.4} parent=5 // pred_fallthru
      _
    %p3327 = scmp.le.s32.totalorder 2, %s9
    // Predicated region
    $region37: #{steering_prediction_forward.4} parent=5 // pred_check
      %p3328 = pneg %p3327
    $region38: #{steering_prediction_forward.4} parent=5 // pred_check_branch
      %3330 = sbr.rel (%p3328) target = $region40
    $region39: #{steering_prediction_forward.4} parent=5 // pred_region
      %s3331 = ssub.s32 %s9, 2
      // Predicated region
      $region41: #{steering_prediction_forward.4} parent=39 // pred_check
        %p3332 = pneg %p106
      $region42: #{steering_prediction_forward.4} parent=39 // pred_check_branch
        %3334 = sbr.rel (%p3332) target = $region44
      $region43: #{steering_prediction_forward.4} parent=39 // pred_region
        %s3335 = smul.u32 88, %s15
        %p3336 = scmp.lt.s32.totalorder %s3335, 175
        %s3337 = scalar_select %p3336, %s3335, 175
        %s3338 = smul.addr %s3337, 4
        %s3339 = scalar_lea.vmem %s3, %s3338
      $region44: #{steering_prediction_forward.4} parent=39 // pred_fallthru
        _
    $region40: #{steering_prediction_forward.4} parent=5 // pred_fallthru
      _
  $region6: #{steering_prediction_forward.4} parent=0 // loop_footer
    %s13 = sadd.s32 1, %s9
  $region7: #{steering_prediction_forward.4} parent=0 // loop_footer_branch
    %8 = sbr.rel target = $region3
  $region8: #{steering_prediction_forward.4} parent=0 // loop_exit
    _

// kernel: steering_prediction_forward.5
$region0: #{steering_prediction_forward.5}
  #allocation0 [shape = 'u32[]', space=smem, size = 0x4, offset = 0x4, fixed_abs, tag = 'smem constant byte address 0x4 - core index']
  #allocation1 [shape = 'u32[72,128]{1,0:T(1,128)}', space=vmem, size = 0x9000, scoped, tag = 'internal scratch']
  %s0 = inlined_call_operand.vmem [shape: bf16[1,200,1024], index: 0, kind: input, shape index: {}]
  %s1 = inlined_call_operand.vmem [shape: bf16[1024,128], index: 1, kind: input, shape index: {}]
  %s2 = inlined_call_operand.vmem [shape: f32[1,128], index: 2, kind: input, shape index: {}]
  %s3 = inlined_call_operand.vmem [shape: bf16[1152,128], index: 3, kind: input, shape index: {}]
  %s4 = inlined_call_operand.vmem [shape: f32[1,128], index: 4, kind: input, shape index: {}]
  %s5 = inlined_call_operand.vmem [shape: bf16[1152,128], index: 5, kind: input, shape index: {}]
  %s6 = inlined_call_operand.vmem [shape: f32[1,128], index: 6, kind: input, shape index: {}]
  %s7 = inlined_call_operand.vmem [shape: bf16[128,1280], index: 7, kind: input, shape index: {}]
  %s8 = inlined_call_operand.vmem [shape: f32[1,1280], index: 8, kind: input, shape index: {}]
  %s9 = inlined_call_operand.vmem [shape: bf16[1280,128], index: 9, kind: input, shape index: {}]
  %s10 = inlined_call_operand.vmem [shape: f32[1,128], index: 10, kind: input, shape index: {}]
  %s11 = inlined_call_operand.vmem [shape: bf16[128,128], index: 11, kind: input, shape index: {}]
  %s12 = inlined_call_operand.vmem [shape: f32[1,128], index: 12, kind: input, shape index: {}]
  %s13 = inlined_call_operand.vmem [shape: bf16[128,128], index: 13, kind: input, shape index: {}]
  %s14 = inlined_call_operand.vmem [shape: f32[1,128], index: 14, kind: input, shape index: {}]
  %s15 = inlined_call_operand.vmem [shape: bf16[128,128], index: 15, kind: input, shape index: {}]
  %s16 = inlined_call_operand.vmem [shape: f32[1,128], index: 16, kind: input, shape index: {}]
  %s17 = inlined_call_operand.vmem [shape: f32[8,128], index: 17, kind: output, shape index: {}]
  %s18 = sld [smem:[#allocation0]]
  $region78: #{steering_prediction_forward.5} parent=0
    _
  %s20 = ssub.s32 1, %s18
  %s21 = scalar_select 0, %s20, %s18
  // Predicated region
  $region2: #{steering_prediction_forward.5} parent=0 // pred_check
    _
  $region3: #{steering_prediction_forward.5} parent=0 // pred_check_branch
    %23 = sbr.rel (0) target = $region5
  $region4: #{steering_prediction_forward.5} parent=0 // pred_region
    _
  $region5: #{steering_prediction_forward.5} parent=0 // pred_fallthru
    _
  // Predicated region
  $region6: #{steering_prediction_forward.5} parent=0 // pred_check
    _
  $region7: #{steering_prediction_forward.5} parent=0 // pred_check_branch
    %25 = sbr.rel (0) target = $region9
  $region8: #{steering_prediction_forward.5} parent=0 // pred_region
    _
  $region9: #{steering_prediction_forward.5} parent=0 // pred_fallthru
    _
  // Predicated region
  $region10: #{steering_prediction_forward.5} parent=0 // pred_check
    _
  $region11: #{steering_prediction_forward.5} parent=0 // pred_check_branch
    %27 = sbr.rel (0) target = $region13
  $region12: #{steering_prediction_forward.5} parent=0 // pred_region
    _
  $region13: #{steering_prediction_forward.5} parent=0 // pred_fallthru
    _
  // Predicated region
  $region14: #{steering_prediction_forward.5} parent=0 // pred_check
    _
  $region15: #{steering_prediction_forward.5} parent=0 // pred_check_branch
    %29 = sbr.rel (0) target = $region17
  $region16: #{steering_prediction_forward.5} parent=0 // pred_region
    _
  $region17: #{steering_prediction_forward.5} parent=0 // pred_fallthru
    _
  // Predicated region
  $region18: #{steering_prediction_forward.5} parent=0 // pred_check
    _
  $region19: #{steering_prediction_forward.5} parent=0 // pred_check_branch
    %31 = sbr.rel (0) target = $region21
  $region20: #{steering_prediction_forward.5} parent=0 // pred_region
    _
  $region21: #{steering_prediction_forward.5} parent=0 // pred_fallthru
    _
  // Predicated region
  $region22: #{steering_prediction_forward.5} parent=0 // pred_check
    _
  $region23: #{steering_prediction_forward.5} parent=0 // pred_check_branch
    %33 = sbr.rel (0) target = $region25
  $region24: #{steering_prediction_forward.5} parent=0 // pred_region
    _
  $region25: #{steering_prediction_forward.5} parent=0 // pred_fallthru
    _
  // Predicated region
  $region26: #{steering_prediction_forward.5} parent=0 // pred_check
    _
  $region27: #{steering_prediction_forward.5} parent=0 // pred_check_branch
    %35 = sbr.rel (0) target = $region29
  $region28: #{steering_prediction_forward.5} parent=0 // pred_region
    _
  $region29: #{steering_prediction_forward.5} parent=0 // pred_fallthru
    _
  // Predicated region
  $region30: #{steering_prediction_forward.5} parent=0 // pred_check
    _
  $region31: #{steering_prediction_forward.5} parent=0 // pred_check_branch
    %37 = sbr.rel (0) target = $region33
  $region32: #{steering_prediction_forward.5} parent=0 // pred_region
    _
  $region33: #{steering_prediction_forward.5} parent=0 // pred_fallthru
    _
  // Predicated region
  $region34: #{steering_prediction_forward.5} parent=0 // pred_check
    _
  $region35: #{steering_prediction_forward.5} parent=0 // pred_check_branch
    %39 = sbr.rel (0) target = $region37
  $region36: #{steering_prediction_forward.5} parent=0 // pred_region
    _
  $region37: #{steering_prediction_forward.5} parent=0 // pred_fallthru
    _
  // Predicated region
  $region38: #{steering_prediction_forward.5} parent=0 // pred_check
    _
  $region39: #{steering_prediction_forward.5} parent=0 // pred_check_branch
    %41 = sbr.rel (0) target = $region41
  $region40: #{steering_prediction_forward.5} parent=0 // pred_region
    _
  $region41: #{steering_prediction_forward.5} parent=0 // pred_fallthru
    _
  // Predicated region
  $region42: #{steering_prediction_forward.5} parent=0 // pred_check
    _
  $region43: #{steering_prediction_forward.5} parent=0 // pred_check_branch
    %43 = sbr.rel (0) target = $region45
  $region44: #{steering_prediction_forward.5} parent=0 // pred_region
    _
  $region45: #{steering_prediction_forward.5} parent=0 // pred_fallthru
    _
  // Predicated region
  $region46: #{steering_prediction_forward.5} parent=0 // pred_check
    _
  $region47: #{steering_prediction_forward.5} parent=0 // pred_check_branch
    %45 = sbr.rel (0) target = $region49
  $region48: #{steering_prediction_forward.5} parent=0 // pred_region
    _
  $region49: #{steering_prediction_forward.5} parent=0 // pred_fallthru
    _
  // Predicated region
  $region50: #{steering_prediction_forward.5} parent=0 // pred_check
    _
  $region51: #{steering_prediction_forward.5} parent=0 // pred_check_branch
    %47 = sbr.rel (0) target = $region53
  $region52: #{steering_prediction_forward.5} parent=0 // pred_region
    _
  $region53: #{steering_prediction_forward.5} parent=0 // pred_fallthru
    _
  // Predicated region
  $region54: #{steering_prediction_forward.5} parent=0 // pred_check
    _
  $region55: #{steering_prediction_forward.5} parent=0 // pred_check_branch
    %49 = sbr.rel (0) target = $region57
  $region56: #{steering_prediction_forward.5} parent=0 // pred_region
    _
  $region57: #{steering_prediction_forward.5} parent=0 // pred_fallthru
    _
  // Predicated region
  $region58: #{steering_prediction_forward.5} parent=0 // pred_check
    _
  $region59: #{steering_prediction_forward.5} parent=0 // pred_check_branch
    %51 = sbr.rel (0) target = $region61
  $region60: #{steering_prediction_forward.5} parent=0 // pred_region
    _
  $region61: #{steering_prediction_forward.5} parent=0 // pred_fallthru
    _
  // Predicated region
  $region62: #{steering_prediction_forward.5} parent=0 // pred_check
    _
  $region63: #{steering_prediction_forward.5} parent=0 // pred_check_branch
    %53 = sbr.rel (0) target = $region65
  $region64: #{steering_prediction_forward.5} parent=0 // pred_region
    _
  $region65: #{steering_prediction_forward.5} parent=0 // pred_fallthru
    _
  // Predicated region
  $region66: #{steering_prediction_forward.5} parent=0 // pred_check
    _
  $region67: #{steering_prediction_forward.5} parent=0 // pred_check_branch
    %55 = sbr.rel (0) target = $region69
  $region68: #{steering_prediction_forward.5} parent=0 // pred_region
    _
  $region69: #{steering_prediction_forward.5} parent=0 // pred_fallthru
    _
  %v56 = vld [vmem:[%s0] sm:$0xff]
  %v57 = vld [vmem:[%s0 + $0x8] sm:$0xff]
  %v58 = vld [vmem:[%s0 + $0x10] sm:$0xff]
  %v59 = vld [vmem:[%s0 + $0x18] sm:$0xff]
  %v60 = vld [vmem:[%s0 + $0x20] sm:$0xff]
  %v61 = vld [vmem:[%s0 + $0x28] sm:$0xff]
  %v62 = vld [vmem:[%s0 + $0x30] sm:$0xff]
  %v63 = vld [vmem:[%s0 + $0x38] sm:$0xff]
  %v64 = vld [vmem:[%s0 + $0x40] sm:$0xff]
  %v65 = vld [vmem:[%s0 + $0x48] sm:$0xff]
  %v66 = vld [vmem:[%s0 + $0x50] sm:$0xff]
  %v67 = vld [vmem:[%s0 + $0x58] sm:$0xff]
  %v68 = vld [vmem:[%s0 + $0x60] sm:$0xff]
  %v69 = vld [vmem:[%s0 + $0x68] sm:$0xff]
  %v70 = vld [vmem:[%s0 + $0x70] sm:$0xff]
  %v71 = vld [vmem:[%s0 + $0x78] sm:$0xff]
  %v72 = vld [vmem:[%s0 + $0x80] sm:$0xff]
  %v73 = vld [vmem:[%s0 + $0x88] sm:$0xff]
  %v74 = vld [vmem:[%s0 + $0x90] sm:$0xff]
  %v75 = vld [vmem:[%s0 + $0x98] sm:$0xff]
  %v76 = vld [vmem:[%s0 + $0xa0] sm:$0xff]
  %v77 = vld [vmem:[%s0 + $0xa8] sm:$0xff]
  %v78 = vld [vmem:[%s0 + $0xb0] sm:$0xff]
  %v79 = vld [vmem:[%s0 + $0xb8] sm:$0xff]
  %v80 = vld [vmem:[%s0 + $0xc0] sm:$0xff]
  %v81 = vld [vmem:[%s0 + $0xc8] sm:$0xff]
  %v82 = vld [vmem:[%s0 + $0xd0] sm:$0xff]
  %v83 = vld [vmem:[%s0 + $0xd8] sm:$0xff]
  %v84 = vld [vmem:[%s0 + $0xe0] sm:$0xff]
  %v85 = vld [vmem:[%s0 + $0xe8] sm:$0xff]
  %v86 = vld [vmem:[%s0 + $0xf0] sm:$0xff]
  %v87 = vld [vmem:[%s0 + $0xf8] sm:$0xff]
  %v88 = vld [vmem:[%s0 + $0x100] sm:$0xff]
  %v89 = vld [vmem:[%s0 + $0x108] sm:$0xff]
  %v90 = vld [vmem:[%s0 + $0x110] sm:$0xff]
  %v91 = vld [vmem:[%s0 + $0x118] sm:$0xff]
  %v92 = vld [vmem:[%s0 + $0x120] sm:$0xff]
  %v93 = vld [vmem:[%s0 + $0x128] sm:$0xff]
  %v94 = vld [vmem:[%s0 + $0x130] sm:$0xff]
  %v95 = vld [vmem:[%s0 + $0x138] sm:$0xff]
  %v96 = vld [vmem:[%s0 + $0x140] sm:$0xff]
  %v97 = vld [vmem:[%s0 + $0x148] sm:$0xff]
  %v98 = vld [vmem:[%s0 + $0x150] sm:$0xff]
  %v99 = vld [vmem:[%s0 + $0x158] sm:$0xff]
  %v100 = vld [vmem:[%s0 + $0x160] sm:$0xff]
  %v101 = vld [vmem:[%s0 + $0x168] sm:$0xff]
  %v102 = vld [vmem:[%s0 + $0x170] sm:$0xff]
  %v103 = vld [vmem:[%s0 + $0x178] sm:$0xff]
  %v104 = vld [vmem:[%s0 + $0x180] sm:$0xff]
  %v105 = vld [vmem:[%s0 + $0x188] sm:$0xff]
  %v106 = vld [vmem:[%s0 + $0x190] sm:$0xff]
  %v107 = vld [vmem:[%s0 + $0x198] sm:$0xff]
  %v108 = vld [vmem:[%s0 + $0x1a0] sm:$0xff]
  %v109 = vld [vmem:[%s0 + $0x1a8] sm:$0xff]
  %v110 = vld [vmem:[%s0 + $0x1b0] sm:$0xff]
  %v111 = vld [vmem:[%s0 + $0x1b8] sm:$0xff]
  %v112 = vld [vmem:[%s0 + $0x1c0] sm:$0xff]
  %v113 = vld [vmem:[%s0 + $0x1c8] sm:$0xff]
  %v114 = vld [vmem:[%s0 + $0x1d0] sm:$0xff]
  %v115 = vld [vmem:[%s0 + $0x1d8] sm:$0xff]
  %v116 = vld [vmem:[%s0 + $0x1e0] sm:$0xff]
  %v117 = vld [vmem:[%s0 + $0x1e8] sm:$0xff]
  %v118 = vld [vmem:[%s0 + $0x1f0] sm:$0xff]
  %v119 = vld [vmem:[%s0 + $0x1f8] sm:$0xff]
  %v120 = vld [vmem:[%s0 + $0x200] sm:$0xff]
  %v121 = vld [vmem:[%s0 + $0x208] sm:$0xff]
  %v122 = vld [vmem:[%s0 + $0x210] sm:$0xff]
  %v123 = vld [vmem:[%s0 + $0x218] sm:$0xff]
  %v124 = vld [vmem:[%s0 + $0x220] sm:$0xff]
  %v125 = vld [vmem:[%s0 + $0x228] sm:$0xff]
  %v126 = vld [vmem:[%s0 + $0x230] sm:$0xff]
  %v127 = vld [vmem:[%s0 + $0x238] sm:$0xff]
  %v128 = vld [vmem:[%s0 + $0x240] sm:$0xff]
  %v129 = vld [vmem:[%s0 + $0x248] sm:$0xff]
  %v130 = vld [vmem:[%s0 + $0x250] sm:$0xff]
  %v131 = vld [vmem:[%s0 + $0x258] sm:$0xff]
  %v132 = vld [vmem:[%s0 + $0x260] sm:$0xff]
  %v133 = vld [vmem:[%s0 + $0x268] sm:$0xff]
  %v134 = vld [vmem:[%s0 + $0x270] sm:$0xff]
  %v135 = vld [vmem:[%s0 + $0x278] sm:$0xff]
  %v136 = vld [vmem:[%s0 + $0x280] sm:$0xff]
  %v137 = vld [vmem:[%s0 + $0x288] sm:$0xff]
  %v138 = vld [vmem:[%s0 + $0x290] sm:$0xff]
  %v139 = vld [vmem:[%s0 + $0x298] sm:$0xff]
  %v140 = vld [vmem:[%s0 + $0x2a0] sm:$0xff]
  %v141 = vld [vmem:[%s0 + $0x2a8] sm:$0xff]
  %v142 = vld [vmem:[%s0 + $0x2b0] sm:$0xff]
  %v143 = vld [vmem:[%s0 + $0x2b8] sm:$0xff]
  %v144 = vld [vmem:[%s0 + $0x2c0] sm:$0xff]
  %v145 = vld [vmem:[%s0 + $0x2c8] sm:$0xff]
  %v146 = vld [vmem:[%s0 + $0x2d0] sm:$0xff]
  %v147 = vld [vmem:[%s0 + $0x2d8] sm:$0xff]
  %v148 = vld [vmem:[%s0 + $0x2e0] sm:$0xff]
  %v149 = vld [vmem:[%s0 + $0x2e8] sm:$0xff]
  %v150 = vld [vmem:[%s0 + $0x2f0] sm:$0xff]
  %v151 = vld [vmem:[%s0 + $0x2f8] sm:$0xff]
  %v152 = vld [vmem:[%s0 + $0x300] sm:$0xff]
  %v153 = vld [vmem:[%s0 + $0x308] sm:$0xff]
  %v154 = vld [vmem:[%s0 + $0x310] sm:$0xff]
  %v155 = vld [vmem:[%s0 + $0x318] sm:$0xff]
  %v156 = vld [vmem:[%s1] sm:$0xf]
  %v157 = vld [vmem:[%s1 + $0x4] sm:$0xf]
  %v158 = vld [vmem:[%s1 + $0x8] sm:$0xf]
  %v159 = vld [vmem:[%s1 + $0xc] sm:$0xf]
  %v160 = vld [vmem:[%s1 + $0x10] sm:$0xf]
  %v161 = vld [vmem:[%s1 + $0x14] sm:$0xf]
  %v162 = vld [vmem:[%s1 + $0x18] sm:$0xf]
  %v163 = vld [vmem:[%s1 + $0x1c] sm:$0xf]
  %v164 = vld [vmem:[%s1 + $0x20] sm:$0xf]
  %v165 = vld [vmem:[%s1 + $0x24] sm:$0xf]
  %v166 = vld [vmem:[%s1 + $0x28] sm:$0xf]
  %v167 = vld [vmem:[%s1 + $0x2c] sm:$0xf]
  %v168 = vld [vmem:[%s1 + $0x30] sm:$0xf]
  %v169 = vld [vmem:[%s1 + $0x34] sm:$0xf]
  %v170 = vld [vmem:[%s1 + $0x38] sm:$0xf]
  %v171 = vld [vmem:[%s1 + $0x3c] sm:$0xf]
  %v172 = vld [vmem:[%s1 + $0x40] sm:$0xf]
  %v173 = vld [vmem:[%s1 + $0x44] sm:$0xf]
  %v174 = vld [vmem:[%s1 + $0x48] sm:$0xf]
  %v175 = vld [vmem:[%s1 + $0x4c] sm:$0xf]
  %v176 = vld [vmem:[%s1 + $0x50] sm:$0xf]
  %v177 = vld [vmem:[%s1 + $0x54] sm:$0xf]
  %v178 = vld [vmem:[%s1 + $0x58] sm:$0xf]
  %v179 = vld [vmem:[%s1 + $0x5c] sm:$0xf]
  %v180 = vld [vmem:[%s1 + $0x60] sm:$0xf]
  %v181 = vld [vmem:[%s1 + $0x64] sm:$0xf]
  %v182 = vld [vmem:[%s1 + $0x68] sm:$0xf]
  %v183 = vld [vmem:[%s1 + $0x6c] sm:$0xf]
  %v184 = vld [vmem:[%s1 + $0x70] sm:$0xf]
  %v185 = vld [vmem:[%s1 + $0x74] sm:$0xf]
  %v186 = vld [vmem:[%s1 + $0x78] sm:$0xf]
  %v187 = vld [vmem:[%s1 + $0x7c] sm:$0xf]
  %v188 = vld [vmem:[%s1 + $0x80] sm:$0xf]
  %v189 = vld [vmem:[%s1 + $0x84] sm:$0xf]
  %v190 = vld [vmem:[%s1 + $0x88] sm:$0xf]
  %v191 = vld [vmem:[%s1 + $0x8c] sm:$0xf]
  %v192 = vld [vmem:[%s1 + $0x90] sm:$0xf]
  %v193 = vld [vmem:[%s1 + $0x94] sm:$0xf]
  %v194 = vld [vmem:[%s1 + $0x98] sm:$0xf]
  %v195 = vld [vmem:[%s1 + $0x9c] sm:$0xf]
  %v196 = vld [vmem:[%s1 + $0xa0] sm:$0xf]
  %v197 = vld [vmem:[%s1 + $0xa4] sm:$0xf]
  %v198 = vld [vmem:[%s1 + $0xa8] sm:$0xf]
  %v199 = vld [vmem:[%s1 + $0xac] sm:$0xf]
  %v200 = vld [vmem:[%s1 + $0xb0] sm:$0xf]
  %v201 = vld [vmem:[%s1 + $0xb4] sm:$0xf]
  %v202 = vld [vmem:[%s1 + $0xb8] sm:$0xf]
  %v203 = vld [vmem:[%s1 + $0xbc] sm:$0xf]
  %v204 = vld [vmem:[%s1 + $0xc0] sm:$0xf]
  %v205 = vld [vmem:[%s1 + $0xc4] sm:$0xf]
  %v206 = vld [vmem:[%s1 + $0xc8] sm:$0xf]
  %v207 = vld [vmem:[%s1 + $0xcc] sm:$0xf]
  %v208 = vld [vmem:[%s1 + $0xd0] sm:$0xf]
  %v209 = vld [vmem:[%s1 + $0xd4] sm:$0xf]
  %v210 = vld [vmem:[%s1 + $0xd8] sm:$0xf]
  %v211 = vld [vmem:[%s1 + $0xdc] sm:$0xf]
  %v212 = vld [vmem:[%s1 + $0xe0] sm:$0xf]
  %v213 = vld [vmem:[%s1 + $0xe4] sm:$0xf]
  %v214 = vld [vmem:[%s1 + $0xe8] sm:$0xf]
  %v215 = vld [vmem:[%s1 + $0xec] sm:$0xf]
  %v216 = vld [vmem:[%s1 + $0xf0] sm:$0xf]
  %v217 = vld [vmem:[%s1 + $0xf4] sm:$0xf]
  %v218 = vld [vmem:[%s1 + $0xf8] sm:$0xf]
  %v219 = vld [vmem:[%s1 + $0xfc] sm:$0xf]
  %v220 = vld [vmem:[%s1 + $0x100] sm:$0xf]
  %v221 = vld [vmem:[%s1 + $0x104] sm:$0xf]
  %v222 = vld [vmem:[%s1 + $0x108] sm:$0xf]
  %v223 = vld [vmem:[%s1 + $0x10c] sm:$0xf]
  %v224 = vld [vmem:[%s1 + $0x110] sm:$0xf]
  %v225 = vld [vmem:[%s1 + $0x114] sm:$0xf]
  %v226 = vld [vmem:[%s1 + $0x118] sm:$0xf]
  %v227 = vld [vmem:[%s1 + $0x11c] sm:$0xf]
  %v228 = vld [vmem:[%s1 + $0x120] sm:$0xf]
  %v229 = vld [vmem:[%s1 + $0x124] sm:$0xf]
  %v230 = vld [vmem:[%s1 + $0x128] sm:$0xf]
  %v231 = vld [vmem:[%s1 + $0x12c] sm:$0xf]
  %v232 = vld [vmem:[%s1 + $0x130] sm:$0xf]
  %v233 = vld [vmem:[%s1 + $0x134] sm:$0xf]
  %v234 = vld [vmem:[%s1 + $0x138] sm:$0xf]
  %v235 = vld [vmem:[%s1 + $0x13c] sm:$0xf]
  %v236 = vld [vmem:[%s1 + $0x140] sm:$0xf]
  %v237 = vld [vmem:[%s1 + $0x144] sm:$0xf]
  %v238 = vld [vmem:[%s1 + $0x148] sm:$0xf]
  %v239 = vld [vmem:[%s1 + $0x14c] sm:$0xf]
  %v240 = vld [vmem:[%s1 + $0x150] sm:$0xf]
  %v241 = vld [vmem:[%s1 + $0x154] sm:$0xf]
  %v242 = vld [vmem:[%s1 + $0x158] sm:$0xf]
  %v243 = vld [vmem:[%s1 + $0x15c] sm:$0xf]
  %v244 = vld [vmem:[%s1 + $0x160] sm:$0xf]
  %v245 = vld [vmem:[%s1 + $0x164] sm:$0xf]
  %v246 = vld [vmem:[%s1 + $0x168] sm:$0xf]
  %v247 = vld [vmem:[%s1 + $0x16c] sm:$0xf]
  %v248 = vld [vmem:[%s1 + $0x170] sm:$0xf]
  %v249 = vld [vmem:[%s1 + $0x174] sm:$0xf]
  %v250 = vld [vmem:[%s1 + $0x178] sm:$0xf]
  %v251 = vld [vmem:[%s1 + $0x17c] sm:$0xf]
  %v252 = vld [vmem:[%s1 + $0x180] sm:$0xf]
  %v253 = vld [vmem:[%s1 + $0x184] sm:$0xf]
  %v254 = vld [vmem:[%s1 + $0x188] sm:$0xf]
  %v255 = vld [vmem:[%s1 + $0x18c] sm:$0xf]
  %v256 = vld [vmem:[%s1 + $0x190] sm:$0xf]
  %v257 = vld [vmem:[%s1 + $0x194] sm:$0xf]
  %v258 = vld [vmem:[%s1 + $0x198] sm:$0xf]
  %v259 = vld [vmem:[%s1 + $0x19c] sm:$0xf]
  %v260 = vld [vmem:[%s1 + $0x1a0] sm:$0xf]
  %v261 = vld [vmem:[%s1 + $0x1a4] sm:$0xf]
  %v262 = vld [vmem:[%s1 + $0x1a8] sm:$0xf]
  %v263 = vld [vmem:[%s1 + $0x1ac] sm:$0xf]
  %v264 = vld [vmem:[%s1 + $0x1b0] sm:$0xf]
  %v265 = vld [vmem:[%s1 + $0x1b4] sm:$0xf]
  %v266 = vld [vmem:[%s1 + $0x1b8] sm:$0xf]
  %v267 = vld [vmem:[%s1 + $0x1bc] sm:$0xf]
  %v268 = vld [vmem:[%s1 + $0x1c0] sm:$0xf]
  %v269 = vld [vmem:[%s1 + $0x1c4] sm:$0xf]
  %v270 = vld [vmem:[%s1 + $0x1c8] sm:$0xf]
  %v271 = vld [vmem:[%s1 + $0x1cc] sm:$0xf]
  %v272 = vld [vmem:[%s1 + $0x1d0] sm:$0xf]
  %v273 = vld [vmem:[%s1 + $0x1d4] sm:$0xf]
  %v274 = vld [vmem:[%s1 + $0x1d8] sm:$0xf]
  %v275 = vld [vmem:[%s1 + $0x1dc] sm:$0xf]
  %v276 = vld [vmem:[%s1 + $0x1e0] sm:$0xf]
  %v277 = vld [vmem:[%s1 + $0x1e4] sm:$0xf]
  %v278 = vld [vmem:[%s1 + $0x1e8] sm:$0xf]
  %v279 = vld [vmem:[%s1 + $0x1ec] sm:$0xf]
  %v280 = vld [vmem:[%s1 + $0x1f0] sm:$0xf]
  %v281 = vld [vmem:[%s1 + $0x1f4] sm:$0xf]
  %v282 = vld [vmem:[%s1 + $0x1f8] sm:$0xf]
  %v283 = vld [vmem:[%s1 + $0x1fc] sm:$0xf]
  %v284 = vld [vmem:[%s2] sm:$0x1]
  %v286 = vperm.slane %v284, 0
  %v388 = vunpack.c.l.b16 %v56
  %v389 = vunpack.c.h.b16 %v56
  %v390 = vunpack.c.l.b16 %v57
  %v391 = vunpack.c.h.b16 %v57
  %v392 = vunpack.c.l.b16 %v58
  %v393 = vunpack.c.h.b16 %v58
  %v394 = vunpack.c.l.b16 %v59
  %v395 = vunpack.c.h.b16 %v59
  %v396 = vunpack.c.l.b16 %v60
  %v397 = vunpack.c.h.b16 %v60
  %v398 = vunpack.c.l.b16 %v61
  %v399 = vunpack.c.h.b16 %v61
  %v400 = vunpack.c.l.b16 %v62
  %v401 = vunpack.c.h.b16 %v62
  %v402 = vunpack.c.l.b16 %v63
  %v403 = vunpack.c.h.b16 %v63
  %v404 = vunpack.c.l.b16 %v64
  %v405 = vunpack.c.h.b16 %v64
  %v406 = vunpack.c.l.b16 %v65
  %v407 = vunpack.c.h.b16 %v65
  %v408 = vunpack.c.l.b16 %v66
  %v409 = vunpack.c.h.b16 %v66
  %v410 = vunpack.c.l.b16 %v67
  %v411 = vunpack.c.h.b16 %v67
  %v412 = vunpack.c.l.b16 %v68
  %v413 = vunpack.c.h.b16 %v68
  %v414 = vunpack.c.l.b16 %v69
  %v415 = vunpack.c.h.b16 %v69
  %v416 = vunpack.c.l.b16 %v70
  %v417 = vunpack.c.h.b16 %v70
  %v418 = vunpack.c.l.b16 %v71
  %v419 = vunpack.c.h.b16 %v71
  %v420 = vunpack.c.l.b16 %v72
  %v421 = vunpack.c.h.b16 %v72
  %v422 = vunpack.c.l.b16 %v73
  %v423 = vunpack.c.h.b16 %v73
  %v424 = vunpack.c.l.b16 %v74
  %v425 = vunpack.c.h.b16 %v74
  %v426 = vunpack.c.l.b16 %v75
  %v427 = vunpack.c.h.b16 %v75
  %v428 = vunpack.c.l.b16 %v76
  %v429 = vunpack.c.h.b16 %v76
  %v430 = vunpack.c.l.b16 %v77
  %v431 = vunpack.c.h.b16 %v77
  %v432 = vunpack.c.l.b16 %v78
  %v433 = vunpack.c.h.b16 %v78
  %v434 = vunpack.c.l.b16 %v79
  %v435 = vunpack.c.h.b16 %v79
  %v436 = vunpack.c.l.b16 %v80
  %v437 = vunpack.c.h.b16 %v80
  %v438 = vunpack.c.l.b16 %v81
  %v439 = vunpack.c.h.b16 %v81
  %v440 = vunpack.c.l.b16 %v82
  %v441 = vunpack.c.h.b16 %v82
  %v442 = vunpack.c.l.b16 %v83
  %v443 = vunpack.c.h.b16 %v83
  %v444 = vunpack.c.l.b16 %v84
  %v445 = vunpack.c.h.b16 %v84
  %v446 = vunpack.c.l.b16 %v85
  %v447 = vunpack.c.h.b16 %v85
  %v448 = vunpack.c.l.b16 %v86
  %v449 = vunpack.c.h.b16 %v86
  %v450 = vunpack.c.l.b16 %v87
  %v451 = vunpack.c.h.b16 %v87
  %v452 = vunpack.c.l.b16 %v88
  %v453 = vunpack.c.h.b16 %v88
  %v454 = vunpack.c.l.b16 %v89
  %v455 = vunpack.c.h.b16 %v89
  %v456 = vunpack.c.l.b16 %v90
  %v457 = vunpack.c.h.b16 %v90
  %v458 = vunpack.c.l.b16 %v91
  %v459 = vunpack.c.h.b16 %v91
  %v460 = vunpack.c.l.b16 %v92
  %v461 = vunpack.c.h.b16 %v92
  %v462 = vunpack.c.l.b16 %v93
  %v463 = vunpack.c.h.b16 %v93
  %v464 = vunpack.c.l.b16 %v94
  %v465 = vunpack.c.h.b16 %v94
  %v466 = vunpack.c.l.b16 %v95
  %v467 = vunpack.c.h.b16 %v95
  %v468 = vunpack.c.l.b16 %v96
  %v469 = vunpack.c.h.b16 %v96
  %v470 = vunpack.c.l.b16 %v97
  %v471 = vunpack.c.h.b16 %v97
  %v472 = vunpack.c.l.b16 %v98
  %v473 = vunpack.c.h.b16 %v98
  %v474 = vunpack.c.l.b16 %v99
  %v475 = vunpack.c.h.b16 %v99
  %v476 = vunpack.c.l.b16 %v100
  %v477 = vunpack.c.h.b16 %v100
  %v478 = vunpack.c.l.b16 %v101
  %v479 = vunpack.c.h.b16 %v101
  %v480 = vunpack.c.l.b16 %v102
  %v481 = vunpack.c.h.b16 %v102
  %v482 = vunpack.c.l.b16 %v103
  %v483 = vunpack.c.h.b16 %v103
  %v484 = vunpack.c.l.b16 %v104
  %v485 = vunpack.c.h.b16 %v104
  %v486 = vunpack.c.l.b16 %v105
  %v487 = vunpack.c.h.b16 %v105
  %v488 = vunpack.c.l.b16 %v106
  %v489 = vunpack.c.h.b16 %v106
  %v490 = vunpack.c.l.b16 %v107
  %v491 = vunpack.c.h.b16 %v107
  %v492 = vunpack.c.l.b16 %v108
  %v493 = vunpack.c.h.b16 %v108
  %v494 = vunpack.c.l.b16 %v109
  %v495 = vunpack.c.h.b16 %v109
  %v496 = vunpack.c.l.b16 %v110
  %v497 = vunpack.c.h.b16 %v110
  %v498 = vunpack.c.l.b16 %v111
  %v499 = vunpack.c.h.b16 %v111
  %v500 = vunpack.c.l.b16 %v112
  %v501 = vunpack.c.h.b16 %v112
  %v502 = vunpack.c.l.b16 %v113
  %v503 = vunpack.c.h.b16 %v113
  %v504 = vunpack.c.l.b16 %v114
  %v505 = vunpack.c.h.b16 %v114
  %v506 = vunpack.c.l.b16 %v115
  %v507 = vunpack.c.h.b16 %v115
  %v508 = vunpack.c.l.b16 %v116
  %v509 = vunpack.c.h.b16 %v116
  %v510 = vunpack.c.l.b16 %v117
  %v511 = vunpack.c.h.b16 %v117
  %v512 = vunpack.c.l.b16 %v118
  %v513 = vunpack.c.h.b16 %v118
  %v514 = vunpack.c.l.b16 %v119
  %v515 = vunpack.c.h.b16 %v119
  %v516 = vunpack.c.l.b16 %v120
  %v517 = vunpack.c.h.b16 %v120
  %v518 = vunpack.c.l.b16 %v121
  %v519 = vunpack.c.h.b16 %v121
  %v520 = vunpack.c.l.b16 %v122
  %v521 = vunpack.c.h.b16 %v122
  %v522 = vunpack.c.l.b16 %v123
  %v523 = vunpack.c.h.b16 %v123
  %v524 = vunpack.c.l.b16 %v124
  %v525 = vunpack.c.h.b16 %v124
  %v526 = vunpack.c.l.b16 %v125
  %v527 = vunpack.c.h.b16 %v125
  %v528 = vunpack.c.l.b16 %v126
  %v529 = vunpack.c.h.b16 %v126
  %v530 = vunpack.c.l.b16 %v127
  %v531 = vunpack.c.h.b16 %v127
  %v532 = vunpack.c.l.b16 %v128
  %v533 = vunpack.c.h.b16 %v128
  %v534 = vunpack.c.l.b16 %v129
  %v535 = vunpack.c.h.b16 %v129
  %v536 = vunpack.c.l.b16 %v130
  %v537 = vunpack.c.h.b16 %v130
  %v538 = vunpack.c.l.b16 %v131
  %v539 = vunpack.c.h.b16 %v131
  %v540 = vunpack.c.l.b16 %v132
  %v541 = vunpack.c.h.b16 %v132
  %v542 = vunpack.c.l.b16 %v133
  %v543 = vunpack.c.h.b16 %v133
  %v544 = vunpack.c.l.b16 %v134
  %v545 = vunpack.c.h.b16 %v134
  %v546 = vunpack.c.l.b16 %v135
  %v547 = vunpack.c.h.b16 %v135
  %v548 = vunpack.c.l.b16 %v136
  %v549 = vunpack.c.h.b16 %v136
  %v550 = vunpack.c.l.b16 %v137
  %v551 = vunpack.c.h.b16 %v137
  %v552 = vunpack.c.l.b16 %v138
  %v553 = vunpack.c.h.b16 %v138
  %v554 = vunpack.c.l.b16 %v139
  %v555 = vunpack.c.h.b16 %v139
  %v556 = vunpack.c.l.b16 %v140
  %v557 = vunpack.c.h.b16 %v140
  %v558 = vunpack.c.l.b16 %v141
  %v559 = vunpack.c.h.b16 %v141
  %v560 = vunpack.c.l.b16 %v142
  %v561 = vunpack.c.h.b16 %v142
  %v562 = vunpack.c.l.b16 %v143
  %v563 = vunpack.c.h.b16 %v143
  %v564 = vunpack.c.l.b16 %v144
  %v565 = vunpack.c.h.b16 %v144
  %v566 = vunpack.c.l.b16 %v145
  %v567 = vunpack.c.h.b16 %v145
  %v568 = vunpack.c.l.b16 %v146
  %v569 = vunpack.c.h.b16 %v146
  %v570 = vunpack.c.l.b16 %v147
  %v571 = vunpack.c.h.b16 %v147
  %v572 = vunpack.c.l.b16 %v148
  %v573 = vunpack.c.h.b16 %v148
  %v574 = vunpack.c.l.b16 %v149
  %v575 = vunpack.c.h.b16 %v149
  %v576 = vunpack.c.l.b16 %v150
  %v577 = vunpack.c.h.b16 %v150
  %v578 = vunpack.c.l.b16 %v151
  %v579 = vunpack.c.h.b16 %v151
  %v580 = vunpack.c.l.b16 %v152
  %v581 = vunpack.c.h.b16 %v152
  %v582 = vunpack.c.l.b16 %v153
  %v583 = vunpack.c.h.b16 %v153
  %v584 = vunpack.c.l.b16 %v154
  %v585 = vunpack.c.h.b16 %v154
  %v586 = vunpack.c.l.b16 %v155
  %v587 = vunpack.c.h.b16 %v155
  %v588 = vpack.c.b16 %v396, %v388
  %v589 = vpack.c.b16 %v397, %v389
  %v590 = vpack.c.b16 %v398, %v390
  %v591 = vpack.c.b16 %v399, %v391
  %v592 = vpack.c.b16 %v400, %v392
  %v593 = vpack.c.b16 %v401, %v393
  %v594 = vpack.c.b16 %v402, %v394
  %v595 = vpack.c.b16 %v403, %v395
  %v596 = vpack.c.b16 %v412, %v404
  %v597 = vpack.c.b16 %v413, %v405
  %v598 = vpack.c.b16 %v414, %v406
  %v599 = vpack.c.b16 %v415, %v407
  %v600 = vpack.c.b16 %v416, %v408
  %v601 = vpack.c.b16 %v417, %v409
  %v602 = vpack.c.b16 %v418, %v410
  %v603 = vpack.c.b16 %v419, %v411
  %v604 = vpack.c.b16 %v428, %v420
  %v605 = vpack.c.b16 %v429, %v421
  %v606 = vpack.c.b16 %v430, %v422
  %v607 = vpack.c.b16 %v431, %v423
  %v608 = vpack.c.b16 %v432, %v424
  %v609 = vpack.c.b16 %v433, %v425
  %v610 = vpack.c.b16 %v434, %v426
  %v611 = vpack.c.b16 %v435, %v427
  %v612 = vpack.c.b16 %v444, %v436
  %v613 = vpack.c.b16 %v445, %v437
  %v614 = vpack.c.b16 %v446, %v438
  %v615 = vpack.c.b16 %v447, %v439
  %v616 = vpack.c.b16 %v448, %v440
  %v617 = vpack.c.b16 %v449, %v441
  %v618 = vpack.c.b16 %v450, %v442
  %v619 = vpack.c.b16 %v451, %v443
  %v620 = vpack.c.b16 %v460, %v452
  %v621 = vpack.c.b16 %v461, %v453
  %v622 = vpack.c.b16 %v462, %v454
  %v623 = vpack.c.b16 %v463, %v455
  %v624 = vpack.c.b16 %v464, %v456
  %v625 = vpack.c.b16 %v465, %v457
  %v626 = vpack.c.b16 %v466, %v458
  %v627 = vpack.c.b16 %v467, %v459
  %v628 = vpack.c.b16 %v476, %v468
  %v629 = vpack.c.b16 %v477, %v469
  %v630 = vpack.c.b16 %v478, %v470
  %v631 = vpack.c.b16 %v479, %v471
  %v632 = vpack.c.b16 %v480, %v472
  %v633 = vpack.c.b16 %v481, %v473
  %v634 = vpack.c.b16 %v482, %v474
  %v635 = vpack.c.b16 %v483, %v475
  %v636 = vpack.c.b16 %v492, %v484
  %v637 = vpack.c.b16 %v493, %v485
  %v638 = vpack.c.b16 %v494, %v486
  %v639 = vpack.c.b16 %v495, %v487
  %v640 = vpack.c.b16 %v496, %v488
  %v641 = vpack.c.b16 %v497, %v489
  %v642 = vpack.c.b16 %v498, %v490
  %v643 = vpack.c.b16 %v499, %v491
  %v644 = vpack.c.b16 %v508, %v500
  %v645 = vpack.c.b16 %v509, %v501
  %v646 = vpack.c.b16 %v510, %v502
  %v647 = vpack.c.b16 %v511, %v503
  %v648 = vpack.c.b16 %v512, %v504
  %v649 = vpack.c.b16 %v513, %v505
  %v650 = vpack.c.b16 %v514, %v506
  %v651 = vpack.c.b16 %v515, %v507
  %v652 = vpack.c.b16 %v524, %v516
  %v653 = vpack.c.b16 %v525, %v517
  %v654 = vpack.c.b16 %v526, %v518
  %v655 = vpack.c.b16 %v527, %v519
  %v656 = vpack.c.b16 %v528, %v520
  %v657 = vpack.c.b16 %v529, %v521
  %v658 = vpack.c.b16 %v530, %v522
  %v659 = vpack.c.b16 %v531, %v523
  %v660 = vpack.c.b16 %v540, %v532
  %v661 = vpack.c.b16 %v541, %v533
  %v662 = vpack.c.b16 %v542, %v534
  %v663 = vpack.c.b16 %v543, %v535
  %v664 = vpack.c.b16 %v544, %v536
  %v665 = vpack.c.b16 %v545, %v537
  %v666 = vpack.c.b16 %v546, %v538
  %v667 = vpack.c.b16 %v547, %v539
  %v668 = vpack.c.b16 %v556, %v548
  %v669 = vpack.c.b16 %v557, %v549
  %v670 = vpack.c.b16 %v558, %v550
  %v671 = vpack.c.b16 %v559, %v551
  %v672 = vpack.c.b16 %v560, %v552
  %v673 = vpack.c.b16 %v561, %v553
  %v674 = vpack.c.b16 %v562, %v554
  %v675 = vpack.c.b16 %v563, %v555
  %v676 = vpack.c.b16 %v572, %v564
  %v677 = vpack.c.b16 %v573, %v565
  %v678 = vpack.c.b16 %v574, %v566
  %v679 = vpack.c.b16 %v575, %v567
  %v680 = vpack.c.b16 %v576, %v568
  %v681 = vpack.c.b16 %v577, %v569
  %v682 = vpack.c.b16 %v578, %v570
  %v683 = vpack.c.b16 %v579, %v571
  %v684 = vpack.c.b16 %v580, %v580
  %v685 = vpack.c.b16 %v581, %v581
  %v686 = vpack.c.b16 %v582, %v582
  %v687 = vpack.c.b16 %v583, %v583
  %v688 = vpack.c.b16 %v584, %v584
  %v689 = vpack.c.b16 %v585, %v585
  %v690 = vpack.c.b16 %v586, %v586
  %v691 = vpack.c.b16 %v587, %v587
  %v924 = vunpack.c.l.b16 %v156
  %v925 = vunpack.c.l.b16 %v157
  %v926 = vunpack.c.l.b16 %v158
  %v927 = vunpack.c.l.b16 %v159
  %v928 = vunpack.c.l.b16 %v160
  %v929 = vunpack.c.l.b16 %v161
  %v930 = vunpack.c.l.b16 %v162
  %v931 = vunpack.c.l.b16 %v163
  %v932 = vunpack.c.l.b16 %v164
  %v933 = vunpack.c.l.b16 %v165
  %v934 = vunpack.c.l.b16 %v166
  %v935 = vunpack.c.l.b16 %v167
  %v936 = vunpack.c.l.b16 %v168
  %v937 = vunpack.c.l.b16 %v169
  %v938 = vunpack.c.l.b16 %v170
  %v939 = vunpack.c.l.b16 %v171
  %v940 = vunpack.c.l.b16 %v172
  %v941 = vunpack.c.l.b16 %v173
  %v942 = vunpack.c.l.b16 %v174
  %v943 = vunpack.c.l.b16 %v175
  %v944 = vunpack.c.l.b16 %v176
  %v945 = vunpack.c.l.b16 %v177
  %v946 = vunpack.c.l.b16 %v178
  %v947 = vunpack.c.l.b16 %v179
  %v948 = vunpack.c.l.b16 %v180
  %v949 = vunpack.c.l.b16 %v181
  %v950 = vunpack.c.l.b16 %v182
  %v951 = vunpack.c.l.b16 %v183
  %v952 = vunpack.c.l.b16 %v184
  %v953 = vunpack.c.l.b16 %v185
  %v954 = vunpack.c.l.b16 %v186
  %v955 = vunpack.c.l.b16 %v187
  %v956 = vunpack.c.l.b16 %v188
  %v957 = vunpack.c.l.b16 %v189
  %v958 = vunpack.c.l.b16 %v190
  %v959 = vunpack.c.l.b16 %v191
  %v960 = vunpack.c.l.b16 %v192
  %v961 = vunpack.c.l.b16 %v193
  %v962 = vunpack.c.l.b16 %v194
  %v963 = vunpack.c.l.b16 %v195
  %v964 = vunpack.c.l.b16 %v196
  %v965 = vunpack.c.l.b16 %v197
  %v966 = vunpack.c.l.b16 %v198
  %v967 = vunpack.c.l.b16 %v199
  %v968 = vunpack.c.l.b16 %v200
  %v969 = vunpack.c.l.b16 %v201
  %v970 = vunpack.c.l.b16 %v202
  %v971 = vunpack.c.l.b16 %v203
  %v972 = vunpack.c.l.b16 %v204
  %v973 = vunpack.c.l.b16 %v205
  %v974 = vunpack.c.l.b16 %v206
  %v975 = vunpack.c.l.b16 %v207
  %v976 = vunpack.c.l.b16 %v208
  %v977 = vunpack.c.l.b16 %v209
  %v978 = vunpack.c.l.b16 %v210
  %v979 = vunpack.c.l.b16 %v211
  %v980 = vunpack.c.l.b16 %v212
  %v981 = vunpack.c.l.b16 %v213
  %v982 = vunpack.c.l.b16 %v214
  %v983 = vunpack.c.l.b16 %v215
  %v984 = vunpack.c.l.b16 %v216
  %v985 = vunpack.c.l.b16 %v217
  %v986 = vunpack.c.l.b16 %v218
  %v987 = vunpack.c.l.b16 %v219
  %v988 = vunpack.c.l.b16 %v220
  %v989 = vunpack.c.l.b16 %v221
  %v990 = vunpack.c.l.b16 %v222
  %v991 = vunpack.c.l.b16 %v223
  %v992 = vunpack.c.l.b16 %v224
  %v993 = vunpack.c.l.b16 %v225
  %v994 = vunpack.c.l.b16 %v226
  %v995 = vunpack.c.l.b16 %v227
  %v996 = vunpack.c.l.b16 %v228
  %v997 = vunpack.c.l.b16 %v229
  %v998 = vunpack.c.l.b16 %v230
  %v999 = vunpack.c.l.b16 %v231
  %v1000 = vunpack.c.l.b16 %v232
  %v1001 = vunpack.c.l.b16 %v233
  %v1002 = vunpack.c.l.b16 %v234
  %v1003 = vunpack.c.l.b16 %v235
  %v1004 = vunpack.c.l.b16 %v236
  %v1005 = vunpack.c.l.b16 %v237
  %v1006 = vunpack.c.l.b16 %v238
  %v1007 = vunpack.c.l.b16 %v239
  %v1008 = vunpack.c.l.b16 %v240
  %v1009 = vunpack.c.l.b16 %v241
  %v1010 = vunpack.c.l.b16 %v242
  %v1011 = vunpack.c.l.b16 %v243
  %v1012 = vunpack.c.l.b16 %v244
  %v1013 = vunpack.c.l.b16 %v245
  %v1014 = vunpack.c.l.b16 %v246
  %v1015 = vunpack.c.l.b16 %v247
  %v1016 = vunpack.c.l.b16 %v248
  %v1017 = vunpack.c.l.b16 %v249
  %v1018 = vunpack.c.l.b16 %v250
  %v1019 = vunpack.c.l.b16 %v251
  %v1020 = vunpack.c.l.b16 %v252
  %v1021 = vunpack.c.l.b16 %v253
  %v1022 = vunpack.c.l.b16 %v254
  %v1023 = vunpack.c.l.b16 %v255
  %v1024 = vunpack.c.l.b16 %v256
  %v1025 = vunpack.c.l.b16 %v257
  %v1026 = vunpack.c.l.b16 %v258
  %v1027 = vunpack.c.l.b16 %v259
  %v1028 = vunpack.c.l.b16 %v260
  %v1029 = vunpack.c.l.b16 %v261
  %v1030 = vunpack.c.l.b16 %v262
  %v1031 = vunpack.c.l.b16 %v263
  %v1032 = vunpack.c.l.b16 %v264
  %v1033 = vunpack.c.l.b16 %v265
  %v1034 = vunpack.c.l.b16 %v266
  %v1035 = vunpack.c.l.b16 %v267
  %v1036 = vunpack.c.l.b16 %v268
  %v1037 = vunpack.c.l.b16 %v269
  %v1038 = vunpack.c.l.b16 %v270
  %v1039 = vunpack.c.l.b16 %v271
  %v1040 = vunpack.c.l.b16 %v272
  %v1041 = vunpack.c.l.b16 %v273
  %v1042 = vunpack.c.l.b16 %v274
  %v1043 = vunpack.c.l.b16 %v275
  %v1044 = vunpack.c.l.b16 %v276
  %v1045 = vunpack.c.l.b16 %v277
  %v1046 = vunpack.c.l.b16 %v278
  %v1047 = vunpack.c.l.b16 %v279
  %v1048 = vunpack.c.l.b16 %v280
  %v1049 = vunpack.c.l.b16 %v281
  %v1050 = vunpack.c.l.b16 %v282
  %v1051 = vunpack.c.l.b16 %v283
  %v1052 = vpack.c.b16 %v925, %v924
  %v1053 = vpack.c.b16 %v927, %v926
  %v1054 = vpack.c.b16 %v929, %v928
  %v1055 = vpack.c.b16 %v931, %v930
  %v1056 = vpack.c.b16 %v933, %v932
  %v1057 = vpack.c.b16 %v935, %v934
  %v1058 = vpack.c.b16 %v937, %v936
  %v1059 = vpack.c.b16 %v939, %v938
  %v1060 = vpack.c.b16 %v941, %v940
  %v1061 = vpack.c.b16 %v943, %v942
  %v1062 = vpack.c.b16 %v945, %v944
  %v1063 = vpack.c.b16 %v947, %v946
  %v1064 = vpack.c.b16 %v949, %v948
  %v1065 = vpack.c.b16 %v951, %v950
  %v1066 = vpack.c.b16 %v953, %v952
  %v1067 = vpack.c.b16 %v955, %v954
  %v1068 = vpack.c.b16 %v957, %v956
  %v1069 = vpack.c.b16 %v959, %v958
  %v1070 = vpack.c.b16 %v961, %v960
  %v1071 = vpack.c.b16 %v963, %v962
  %v1072 = vpack.c.b16 %v965, %v964
  %v1073 = vpack.c.b16 %v967, %v966
  %v1074 = vpack.c.b16 %v969, %v968
  %v1075 = vpack.c.b16 %v971, %v970
  %v1076 = vpack.c.b16 %v973, %v972
  %v1077 = vpack.c.b16 %v975, %v974
  %v1078 = vpack.c.b16 %v977, %v976
  %v1079 = vpack.c.b16 %v979, %v978
  %v1080 = vpack.c.b16 %v981, %v980
  %v1081 = vpack.c.b16 %v983, %v982
  %v1082 = vpack.c.b16 %v985, %v984
  %v1083 = vpack.c.b16 %v987, %v986
  %v1084 = vpack.c.b16 %v989, %v988
  %v1085 = vpack.c.b16 %v991, %v990
  %v1086 = vpack.c.b16 %v993, %v992
  %v1087 = vpack.c.b16 %v995, %v994
  %v1088 = vpack.c.b16 %v997, %v996
  %v1089 = vpack.c.b16 %v999, %v998
  %v1090 = vpack.c.b16 %v1001, %v1000
  %v1091 = vpack.c.b16 %v1003, %v1002
  %v1092 = vpack.c.b16 %v1005, %v1004
  %v1093 = vpack.c.b16 %v1007, %v1006
  %v1094 = vpack.c.b16 %v1009, %v1008
  %v1095 = vpack.c.b16 %v1011, %v1010
  %v1096 = vpack.c.b16 %v1013, %v1012
  %v1097 = vpack.c.b16 %v1015, %v1014
  %v1098 = vpack.c.b16 %v1017, %v1016
  %v1099 = vpack.c.b16 %v1019, %v1018
  %v1100 = vpack.c.b16 %v1021, %v1020
  %v1101 = vpack.c.b16 %v1023, %v1022
  %v1102 = vpack.c.b16 %v1025, %v1024
  %v1103 = vpack.c.b16 %v1027, %v1026
  %v1104 = vpack.c.b16 %v1029, %v1028
  %v1105 = vpack.c.b16 %v1031, %v1030
  %v1106 = vpack.c.b16 %v1033, %v1032
  %v1107 = vpack.c.b16 %v1035, %v1034
  %v1108 = vpack.c.b16 %v1037, %v1036
  %v1109 = vpack.c.b16 %v1039, %v1038
  %v1110 = vpack.c.b16 %v1041, %v1040
  %v1111 = vpack.c.b16 %v1043, %v1042
  %v1112 = vpack.c.b16 %v1045, %v1044
  %v1113 = vpack.c.b16 %v1047, %v1046
  %v1114 = vpack.c.b16 %v1049, %v1048
  %v1115 = vpack.c.b16 %v1051, %v1050
  %1180 = vmatpush.bf16.msra.mxu0 %v1059
  %1181 = vmatpush.bf16.msra.mxu0 %v1058
  %1182 = vmatpush.bf16.msra.mxu0 %v1057
  %1183 = vmatpush.bf16.msra.mxu0 %v1056
  %1184 = vmatpush.bf16.msra.mxu0 %v1055
  %1185 = vmatpush.bf16.msra.mxu0 %v1054
  %1186 = vmatpush.bf16.msra.mxu0 %v1053
  %1187 = vmatpush.bf16.msra.mxu0 %v1052
  %1188 = vmatmul.bf16.gmra.mxu0 %v588
  %v1189 = vpop.f32.mrf.mxu0
  %v1190 = vadd.f32 %v286, %v1189
  %v1191 = vpop.f32.mrf.mxu0
  %v1192 = vadd.f32 %v286, %v1191
  %1193 = vmatmul.bf16.gmra.mxu0 %v596
  %v1194 = vpop.f32.mrf.mxu0
  %v1195 = vadd.f32 %v286, %v1194
  %v1196 = vpop.f32.mrf.mxu0
  %v1197 = vadd.f32 %v286, %v1196
  %1198 = vmatmul.bf16.gmra.mxu0 %v604
  %v1199 = vpop.f32.mrf.mxu0
  %v1200 = vadd.f32 %v286, %v1199
  %v1201 = vpop.f32.mrf.mxu0
  %v1202 = vadd.f32 %v286, %v1201
  %1203 = vmatmul.bf16.gmra.mxu0 %v612
  %v1204 = vpop.f32.mrf.mxu0
  %v1205 = vadd.f32 %v286, %v1204
  %v1206 = vpop.f32.mrf.mxu0
  %v1207 = vadd.f32 %v286, %v1206
  %1208 = vmatmul.bf16.gmra.mxu0 %v620
  %v1209 = vpop.f32.mrf.mxu0
  %v1210 = vadd.f32 %v286, %v1209
  %v1211 = vpop.f32.mrf.mxu0
  %v1212 = vadd.f32 %v286, %v1211
  %1213 = vmatmul.bf16.gmra.mxu0 %v628
  %v1214 = vpop.f32.mrf.mxu0
  %v1215 = vadd.f32 %v286, %v1214
  %v1216 = vpop.f32.mrf.mxu0
  %v1217 = vadd.f32 %v286, %v1216
  %1218 = vmatmul.bf16.gmra.mxu0 %v636
  %v1219 = vpop.f32.mrf.mxu0
  %v1220 = vadd.f32 %v286, %v1219
  %v1221 = vpop.f32.mrf.mxu0
  %v1222 = vadd.f32 %v286, %v1221
  %1223 = vmatmul.bf16.gmra.mxu0 %v644
  %v1224 = vpop.f32.mrf.mxu0
  %v1225 = vadd.f32 %v286, %v1224
  %v1226 = vpop.f32.mrf.mxu0
  %v1227 = vadd.f32 %v286, %v1226
  %1228 = vmatmul.bf16.gmra.mxu0 %v652
  %v1229 = vpop.f32.mrf.mxu0
  %v1230 = vadd.f32 %v286, %v1229
  %v1231 = vpop.f32.mrf.mxu0
  %v1232 = vadd.f32 %v286, %v1231
  %1233 = vmatmul.bf16.gmra.mxu0 %v660
  %v1234 = vpop.f32.mrf.mxu0
  %v1235 = vadd.f32 %v286, %v1234
  %v1236 = vpop.f32.mrf.mxu0
  %v1237 = vadd.f32 %v286, %v1236
  %1238 = vmatmul.bf16.gmra.mxu0 %v668
  %v1239 = vpop.f32.mrf.mxu0
  %v1240 = vadd.f32 %v286, %v1239
  %v1241 = vpop.f32.mrf.mxu0
  %v1242 = vadd.f32 %v286, %v1241
  %1243 = vmatmul.bf16.gmra.mxu0 %v676
  %v1244 = vpop.f32.mrf.mxu0
  %v1245 = vadd.f32 %v286, %v1244
  %v1246 = vpop.f32.mrf.mxu0
  %v1247 = vadd.f32 %v286, %v1246
  %1248 = vmatmul.bf16.gmra.mxu0 %v684
  %v1249 = vpop.f32.mrf.mxu0
  %v1250 = vadd.f32 %v286, %v1249
  %v1251 = vpop.f32.mrf.mxu0
  %1252 = vdwg.mxu0
  %1253 = vmatpush.bf16.msra.mxu0 %v1067
  %1254 = vmatpush.bf16.msra.mxu0 %v1066
  %1255 = vmatpush.bf16.msra.mxu0 %v1065
  %1256 = vmatpush.bf16.msra.mxu0 %v1064
  %1257 = vmatpush.bf16.msra.mxu0 %v1063
  %1258 = vmatpush.bf16.msra.mxu0 %v1062
  %1259 = vmatpush.bf16.msra.mxu0 %v1061
  %1260 = vmatpush.bf16.msra.mxu0 %v1060
  %1261 = vmatmul.bf16.gmra.mxu0 %v589
  %v1262 = vpop.f32.mrf.mxu0
  %v1263 = vadd.f32 %v1190, %v1262
  %v1264 = vpop.f32.mrf.mxu0
  %v1265 = vadd.f32 %v1192, %v1264
  %1266 = vmatmul.bf16.gmra.mxu0 %v597
  %v1267 = vpop.f32.mrf.mxu0
  %v1268 = vadd.f32 %v1195, %v1267
  %v1269 = vpop.f32.mrf.mxu0
  %v1270 = vadd.f32 %v1197, %v1269
  %1271 = vmatmul.bf16.gmra.mxu0 %v605
  %v1272 = vpop.f32.mrf.mxu0
  %v1273 = vadd.f32 %v1200, %v1272
  %v1274 = vpop.f32.mrf.mxu0
  %v1275 = vadd.f32 %v1202, %v1274
  %1276 = vmatmul.bf16.gmra.mxu0 %v613
  %v1277 = vpop.f32.mrf.mxu0
  %v1278 = vadd.f32 %v1205, %v1277
  %v1279 = vpop.f32.mrf.mxu0
  %v1280 = vadd.f32 %v1207, %v1279
  %1281 = vmatmul.bf16.gmra.mxu0 %v621
  %v1282 = vpop.f32.mrf.mxu0
  %v1283 = vadd.f32 %v1210, %v1282
  %v1284 = vpop.f32.mrf.mxu0
  %v1285 = vadd.f32 %v1212, %v1284
  %1286 = vmatmul.bf16.gmra.mxu0 %v629
  %v1287 = vpop.f32.mrf.mxu0
  %v1288 = vadd.f32 %v1215, %v1287
  %v1289 = vpop.f32.mrf.mxu0
  %v1290 = vadd.f32 %v1217, %v1289
  %1291 = vmatmul.bf16.gmra.mxu0 %v637
  %v1292 = vpop.f32.mrf.mxu0
  %v1293 = vadd.f32 %v1220, %v1292
  %v1294 = vpop.f32.mrf.mxu0
  %v1295 = vadd.f32 %v1222, %v1294
  %1296 = vmatmul.bf16.gmra.mxu0 %v645
  %v1297 = vpop.f32.mrf.mxu0
  %v1298 = vadd.f32 %v1225, %v1297
  %v1299 = vpop.f32.mrf.mxu0
  %v1300 = vadd.f32 %v1227, %v1299
  %1301 = vmatmul.bf16.gmra.mxu0 %v653
  %v1302 = vpop.f32.mrf.mxu0
  %v1303 = vadd.f32 %v1230, %v1302
  %v1304 = vpop.f32.mrf.mxu0
  %v1305 = vadd.f32 %v1232, %v1304
  %1306 = vmatmul.bf16.gmra.mxu0 %v661
  %v1307 = vpop.f32.mrf.mxu0
  %v1308 = vadd.f32 %v1235, %v1307
  %v1309 = vpop.f32.mrf.mxu0
  %v1310 = vadd.f32 %v1237, %v1309
  %1311 = vmatmul.bf16.gmra.mxu0 %v669
  %v1312 = vpop.f32.mrf.mxu0
  %v1313 = vadd.f32 %v1240, %v1312
  %v1314 = vpop.f32.mrf.mxu0
  %v1315 = vadd.f32 %v1242, %v1314
  %1316 = vmatmul.bf16.gmra.mxu0 %v677
  %v1317 = vpop.f32.mrf.mxu0
  %v1318 = vadd.f32 %v1245, %v1317
  %v1319 = vpop.f32.mrf.mxu0
  %v1320 = vadd.f32 %v1247, %v1319
  %1321 = vmatmul.bf16.gmra.mxu0 %v685
  %v1322 = vpop.f32.mrf.mxu0
  %v1323 = vadd.f32 %v1250, %v1322
  %v1324 = vpop.f32.mrf.mxu0
  %1325 = vdwg.mxu0
  %1326 = vmatpush.bf16.msra.mxu0 %v1075
  %1327 = vmatpush.bf16.msra.mxu0 %v1074
  %1328 = vmatpush.bf16.msra.mxu0 %v1073
  %1329 = vmatpush.bf16.msra.mxu0 %v1072
  %1330 = vmatpush.bf16.msra.mxu0 %v1071
  %1331 = vmatpush.bf16.msra.mxu0 %v1070
  %1332 = vmatpush.bf16.msra.mxu0 %v1069
  %1333 = vmatpush.bf16.msra.mxu0 %v1068
  %1334 = vmatmul.bf16.gmra.mxu0 %v590
  %v1335 = vpop.f32.mrf.mxu0
  %v1336 = vadd.f32 %v1263, %v1335
  %v1337 = vpop.f32.mrf.mxu0
  %v1338 = vadd.f32 %v1265, %v1337
  %1339 = vmatmul.bf16.gmra.mxu0 %v598
  %v1340 = vpop.f32.mrf.mxu0
  %v1341 = vadd.f32 %v1268, %v1340
  %v1342 = vpop.f32.mrf.mxu0
  %v1343 = vadd.f32 %v1270, %v1342
  %1344 = vmatmul.bf16.gmra.mxu0 %v606
  %v1345 = vpop.f32.mrf.mxu0
  %v1346 = vadd.f32 %v1273, %v1345
  %v1347 = vpop.f32.mrf.mxu0
  %v1348 = vadd.f32 %v1275, %v1347
  %1349 = vmatmul.bf16.gmra.mxu0 %v614
  %v1350 = vpop.f32.mrf.mxu0
  %v1351 = vadd.f32 %v1278, %v1350
  %v1352 = vpop.f32.mrf.mxu0
  %v1353 = vadd.f32 %v1280, %v1352
  %1354 = vmatmul.bf16.gmra.mxu0 %v622
  %v1355 = vpop.f32.mrf.mxu0
  %v1356 = vadd.f32 %v1283, %v1355
  %v1357 = vpop.f32.mrf.mxu0
  %v1358 = vadd.f32 %v1285, %v1357
  %1359 = vmatmul.bf16.gmra.mxu0 %v630
  %v1360 = vpop.f32.mrf.mxu0
  %v1361 = vadd.f32 %v1288, %v1360
  %v1362 = vpop.f32.mrf.mxu0
  %v1363 = vadd.f32 %v1290, %v1362
  %1364 = vmatmul.bf16.gmra.mxu0 %v638
  %v1365 = vpop.f32.mrf.mxu0
  %v1366 = vadd.f32 %v1293, %v1365
  %v1367 = vpop.f32.mrf.mxu0
  %v1368 = vadd.f32 %v1295, %v1367
  %1369 = vmatmul.bf16.gmra.mxu0 %v646
  %v1370 = vpop.f32.mrf.mxu0
  %v1371 = vadd.f32 %v1298, %v1370
  %v1372 = vpop.f32.mrf.mxu0
  %v1373 = vadd.f32 %v1300, %v1372
  %1374 = vmatmul.bf16.gmra.mxu0 %v654
  %v1375 = vpop.f32.mrf.mxu0
  %v1376 = vadd.f32 %v1303, %v1375
  %v1377 = vpop.f32.mrf.mxu0
  %v1378 = vadd.f32 %v1305, %v1377
  %1379 = vmatmul.bf16.gmra.mxu0 %v662
  %v1380 = vpop.f32.mrf.mxu0
  %v1381 = vadd.f32 %v1308, %v1380
  %v1382 = vpop.f32.mrf.mxu0
  %v1383 = vadd.f32 %v1310, %v1382
  %1384 = vmatmul.bf16.gmra.mxu0 %v670
  %v1385 = vpop.f32.mrf.mxu0
  %v1386 = vadd.f32 %v1313, %v1385
  %v1387 = vpop.f32.mrf.mxu0
  %v1388 = vadd.f32 %v1315, %v1387
  %1389 = vmatmul.bf16.gmra.mxu0 %v678
  %v1390 = vpop.f32.mrf.mxu0
  %v1391 = vadd.f32 %v1318, %v1390
  %v1392 = vpop.f32.mrf.mxu0
  %v1393 = vadd.f32 %v1320, %v1392
  %1394 = vmatmul.bf16.gmra.mxu0 %v686
  %v1395 = vpop.f32.mrf.mxu0
  %v1396 = vadd.f32 %v1323, %v1395
  %v1397 = vpop.f32.mrf.mxu0
  %1398 = vdwg.mxu0
  %1399 = vmatpush.bf16.msra.mxu0 %v1083
  %1400 = vmatpush.bf16.msra.mxu0 %v1082
  %1401 = vmatpush.bf16.msra.mxu0 %v1081
  %1402 = vmatpush.bf16.msra.mxu0 %v1080
  %1403 = vmatpush.bf16.msra.mxu0 %v1079
  %1404 = vmatpush.bf16.msra.mxu0 %v1078
  %1405 = vmatpush.bf16.msra.mxu0 %v1077
  %1406 = vmatpush.bf16.msra.mxu0 %v1076
  %1407 = vmatmul.bf16.gmra.mxu0 %v591
  %v1408 = vpop.f32.mrf.mxu0
  %v1409 = vadd.f32 %v1336, %v1408
  %v1410 = vpop.f32.mrf.mxu0
  %v1411 = vadd.f32 %v1338, %v1410
  %1412 = vmatmul.bf16.gmra.mxu0 %v599
  %v1413 = vpop.f32.mrf.mxu0
  %v1414 = vadd.f32 %v1341, %v1413
  %v1415 = vpop.f32.mrf.mxu0
  %v1416 = vadd.f32 %v1343, %v1415
  %1417 = vmatmul.bf16.gmra.mxu0 %v607
  %v1418 = vpop.f32.mrf.mxu0
  %v1419 = vadd.f32 %v1346, %v1418
  %v1420 = vpop.f32.mrf.mxu0
  %v1421 = vadd.f32 %v1348, %v1420
  %1422 = vmatmul.bf16.gmra.mxu0 %v615
  %v1423 = vpop.f32.mrf.mxu0
  %v1424 = vadd.f32 %v1351, %v1423
  %v1425 = vpop.f32.mrf.mxu0
  %v1426 = vadd.f32 %v1353, %v1425
  %1427 = vmatmul.bf16.gmra.mxu0 %v623
  %v1428 = vpop.f32.mrf.mxu0
  %v1429 = vadd.f32 %v1356, %v1428
  %v1430 = vpop.f32.mrf.mxu0
  %v1431 = vadd.f32 %v1358, %v1430
  %1432 = vmatmul.bf16.gmra.mxu0 %v631
  %v1433 = vpop.f32.mrf.mxu0
  %v1434 = vadd.f32 %v1361, %v1433
  %v1435 = vpop.f32.mrf.mxu0
  %v1436 = vadd.f32 %v1363, %v1435
  %1437 = vmatmul.bf16.gmra.mxu0 %v639
  %v1438 = vpop.f32.mrf.mxu0
  %v1439 = vadd.f32 %v1366, %v1438
  %v1440 = vpop.f32.mrf.mxu0
  %v1441 = vadd.f32 %v1368, %v1440
  %1442 = vmatmul.bf16.gmra.mxu0 %v647
  %v1443 = vpop.f32.mrf.mxu0
  %v1444 = vadd.f32 %v1371, %v1443
  %v1445 = vpop.f32.mrf.mxu0
  %v1446 = vadd.f32 %v1373, %v1445
  %1447 = vmatmul.bf16.gmra.mxu0 %v655
  %v1448 = vpop.f32.mrf.mxu0
  %v1449 = vadd.f32 %v1376, %v1448
  %v1450 = vpop.f32.mrf.mxu0
  %v1451 = vadd.f32 %v1378, %v1450
  %1452 = vmatmul.bf16.gmra.mxu0 %v663
  %v1453 = vpop.f32.mrf.mxu0
  %v1454 = vadd.f32 %v1381, %v1453
  %v1455 = vpop.f32.mrf.mxu0
  %v1456 = vadd.f32 %v1383, %v1455
  %1457 = vmatmul.bf16.gmra.mxu0 %v671
  %v1458 = vpop.f32.mrf.mxu0
  %v1459 = vadd.f32 %v1386, %v1458
  %v1460 = vpop.f32.mrf.mxu0
  %v1461 = vadd.f32 %v1388, %v1460
  %1462 = vmatmul.bf16.gmra.mxu0 %v679
  %v1463 = vpop.f32.mrf.mxu0
  %v1464 = vadd.f32 %v1391, %v1463
  %v1465 = vpop.f32.mrf.mxu0
  %v1466 = vadd.f32 %v1393, %v1465
  %1467 = vmatmul.bf16.gmra.mxu0 %v687
  %v1468 = vpop.f32.mrf.mxu0
  %v1469 = vadd.f32 %v1396, %v1468
  %v1470 = vpop.f32.mrf.mxu0
  %1471 = vdwg.mxu0
  %1472 = vmatpush.bf16.msra.mxu0 %v1091
  %1473 = vmatpush.bf16.msra.mxu0 %v1090
  %1474 = vmatpush.bf16.msra.mxu0 %v1089
  %1475 = vmatpush.bf16.msra.mxu0 %v1088
  %1476 = vmatpush.bf16.msra.mxu0 %v1087
  %1477 = vmatpush.bf16.msra.mxu0 %v1086
  %1478 = vmatpush.bf16.msra.mxu0 %v1085
  %1479 = vmatpush.bf16.msra.mxu0 %v1084
  %1480 = vmatmul.bf16.gmra.mxu0 %v592
  %v1481 = vpop.f32.mrf.mxu0
  %v1482 = vadd.f32 %v1409, %v1481
  %v1483 = vpop.f32.mrf.mxu0
  %v1484 = vadd.f32 %v1411, %v1483
  %1485 = vmatmul.bf16.gmra.mxu0 %v600
  %v1486 = vpop.f32.mrf.mxu0
  %v1487 = vadd.f32 %v1414, %v1486
  %v1488 = vpop.f32.mrf.mxu0
  %v1489 = vadd.f32 %v1416, %v1488
  %1490 = vmatmul.bf16.gmra.mxu0 %v608
  %v1491 = vpop.f32.mrf.mxu0
  %v1492 = vadd.f32 %v1419, %v1491
  %v1493 = vpop.f32.mrf.mxu0
  %v1494 = vadd.f32 %v1421, %v1493
  %1495 = vmatmul.bf16.gmra.mxu0 %v616
  %v1496 = vpop.f32.mrf.mxu0
  %v1497 = vadd.f32 %v1424, %v1496
  %v1498 = vpop.f32.mrf.mxu0
  %v1499 = vadd.f32 %v1426, %v1498
  %1500 = vmatmul.bf16.gmra.mxu0 %v624
  %v1501 = vpop.f32.mrf.mxu0
  %v1502 = vadd.f32 %v1429, %v1501
  %v1503 = vpop.f32.mrf.mxu0
  %v1504 = vadd.f32 %v1431, %v1503
  %1505 = vmatmul.bf16.gmra.mxu0 %v632
  %v1506 = vpop.f32.mrf.mxu0
  %v1507 = vadd.f32 %v1434, %v1506
  %v1508 = vpop.f32.mrf.mxu0
  %v1509 = vadd.f32 %v1436, %v1508
  %1510 = vmatmul.bf16.gmra.mxu0 %v640
  %v1511 = vpop.f32.mrf.mxu0
  %v1512 = vadd.f32 %v1439, %v1511
  %v1513 = vpop.f32.mrf.mxu0
  %v1514 = vadd.f32 %v1441, %v1513
  %1515 = vmatmul.bf16.gmra.mxu0 %v648
  %v1516 = vpop.f32.mrf.mxu0
  %v1517 = vadd.f32 %v1444, %v1516
  %v1518 = vpop.f32.mrf.mxu0
  %v1519 = vadd.f32 %v1446, %v1518
  %1520 = vmatmul.bf16.gmra.mxu0 %v656
  %v1521 = vpop.f32.mrf.mxu0
  %v1522 = vadd.f32 %v1449, %v1521
  %v1523 = vpop.f32.mrf.mxu0
  %v1524 = vadd.f32 %v1451, %v1523
  %1525 = vmatmul.bf16.gmra.mxu0 %v664
  %v1526 = vpop.f32.mrf.mxu0
  %v1527 = vadd.f32 %v1454, %v1526
  %v1528 = vpop.f32.mrf.mxu0
  %v1529 = vadd.f32 %v1456, %v1528
  %1530 = vmatmul.bf16.gmra.mxu0 %v672
  %v1531 = vpop.f32.mrf.mxu0
  %v1532 = vadd.f32 %v1459, %v1531
  %v1533 = vpop.f32.mrf.mxu0
  %v1534 = vadd.f32 %v1461, %v1533
  %1535 = vmatmul.bf16.gmra.mxu0 %v680
  %v1536 = vpop.f32.mrf.mxu0
  %v1537 = vadd.f32 %v1464, %v1536
  %v1538 = vpop.f32.mrf.mxu0
  %v1539 = vadd.f32 %v1466, %v1538
  %1540 = vmatmul.bf16.gmra.mxu0 %v688
  %v1541 = vpop.f32.mrf.mxu0
  %v1542 = vadd.f32 %v1469, %v1541
  %v1543 = vpop.f32.mrf.mxu0
  %1544 = vdwg.mxu0
  %1545 = vmatpush.bf16.msra.mxu0 %v1099
  %1546 = vmatpush.bf16.msra.mxu0 %v1098
  %1547 = vmatpush.bf16.msra.mxu0 %v1097
  %1548 = vmatpush.bf16.msra.mxu0 %v1096
  %1549 = vmatpush.bf16.msra.mxu0 %v1095
  %1550 = vmatpush.bf16.msra.mxu0 %v1094
  %1551 = vmatpush.bf16.msra.mxu0 %v1093
  %1552 = vmatpush.bf16.msra.mxu0 %v1092
  %1553 = vmatmul.bf16.gmra.mxu0 %v593
  %v1554 = vpop.f32.mrf.mxu0
  %v1555 = vadd.f32 %v1482, %v1554
  %v1556 = vpop.f32.mrf.mxu0
  %v1557 = vadd.f32 %v1484, %v1556
  %1558 = vmatmul.bf16.gmra.mxu0 %v601
  %v1559 = vpop.f32.mrf.mxu0
  %v1560 = vadd.f32 %v1487, %v1559
  %v1561 = vpop.f32.mrf.mxu0
  %v1562 = vadd.f32 %v1489, %v1561
  %1563 = vmatmul.bf16.gmra.mxu0 %v609
  %v1564 = vpop.f32.mrf.mxu0
  %v1565 = vadd.f32 %v1492, %v1564
  %v1566 = vpop.f32.mrf.mxu0
  %v1567 = vadd.f32 %v1494, %v1566
  %1568 = vmatmul.bf16.gmra.mxu0 %v617
  %v1569 = vpop.f32.mrf.mxu0
  %v1570 = vadd.f32 %v1497, %v1569
  %v1571 = vpop.f32.mrf.mxu0
  %v1572 = vadd.f32 %v1499, %v1571
  %1573 = vmatmul.bf16.gmra.mxu0 %v625
  %v1574 = vpop.f32.mrf.mxu0
  %v1575 = vadd.f32 %v1502, %v1574
  %v1576 = vpop.f32.mrf.mxu0
  %v1577 = vadd.f32 %v1504, %v1576
  %1578 = vmatmul.bf16.gmra.mxu0 %v633
  %v1579 = vpop.f32.mrf.mxu0
  %v1580 = vadd.f32 %v1507, %v1579
  %v1581 = vpop.f32.mrf.mxu0
  %v1582 = vadd.f32 %v1509, %v1581
  %1583 = vmatmul.bf16.gmra.mxu0 %v641
  %v1584 = vpop.f32.mrf.mxu0
  %v1585 = vadd.f32 %v1512, %v1584
  %v1586 = vpop.f32.mrf.mxu0
  %v1587 = vadd.f32 %v1514, %v1586
  %1588 = vmatmul.bf16.gmra.mxu0 %v649
  %v1589 = vpop.f32.mrf.mxu0
  %v1590 = vadd.f32 %v1517, %v1589
  %v1591 = vpop.f32.mrf.mxu0
  %v1592 = vadd.f32 %v1519, %v1591
  %1593 = vmatmul.bf16.gmra.mxu0 %v657
  %v1594 = vpop.f32.mrf.mxu0
  %v1595 = vadd.f32 %v1522, %v1594
  %v1596 = vpop.f32.mrf.mxu0
  %v1597 = vadd.f32 %v1524, %v1596
  %1598 = vmatmul.bf16.gmra.mxu0 %v665
  %v1599 = vpop.f32.mrf.mxu0
  %v1600 = vadd.f32 %v1527, %v1599
  %v1601 = vpop.f32.mrf.mxu0
  %v1602 = vadd.f32 %v1529, %v1601
  %1603 = vmatmul.bf16.gmra.mxu0 %v673
  %v1604 = vpop.f32.mrf.mxu0
  %v1605 = vadd.f32 %v1532, %v1604
  %v1606 = vpop.f32.mrf.mxu0
  %v1607 = vadd.f32 %v1534, %v1606
  %1608 = vmatmul.bf16.gmra.mxu0 %v681
  %v1609 = vpop.f32.mrf.mxu0
  %v1610 = vadd.f32 %v1537, %v1609
  %v1611 = vpop.f32.mrf.mxu0
  %v1612 = vadd.f32 %v1539, %v1611
  %1613 = vmatmul.bf16.gmra.mxu0 %v689
  %v1614 = vpop.f32.mrf.mxu0
  %v1615 = vadd.f32 %v1542, %v1614
  %v1616 = vpop.f32.mrf.mxu0
  %1617 = vdwg.mxu0
  %1618 = vmatpush.bf16.msra.mxu0 %v1107
  %1619 = vmatpush.bf16.msra.mxu0 %v1106
  %1620 = vmatpush.bf16.msra.mxu0 %v1105
  %1621 = vmatpush.bf16.msra.mxu0 %v1104
  %1622 = vmatpush.bf16.msra.mxu0 %v1103
  %1623 = vmatpush.bf16.msra.mxu0 %v1102
  %1624 = vmatpush.bf16.msra.mxu0 %v1101
  %1625 = vmatpush.bf16.msra.mxu0 %v1100
  %1626 = vmatmul.bf16.gmra.mxu0 %v594
  %v1627 = vpop.f32.mrf.mxu0
  %v1628 = vadd.f32 %v1555, %v1627
  %v1629 = vpop.f32.mrf.mxu0
  %v1630 = vadd.f32 %v1557, %v1629
  %1631 = vmatmul.bf16.gmra.mxu0 %v602
  %v1632 = vpop.f32.mrf.mxu0
  %v1633 = vadd.f32 %v1560, %v1632
  %v1634 = vpop.f32.mrf.mxu0
  %v1635 = vadd.f32 %v1562, %v1634
  %1636 = vmatmul.bf16.gmra.mxu0 %v610
  %v1637 = vpop.f32.mrf.mxu0
  %v1638 = vadd.f32 %v1565, %v1637
  %v1639 = vpop.f32.mrf.mxu0
  %v1640 = vadd.f32 %v1567, %v1639
  %1641 = vmatmul.bf16.gmra.mxu0 %v618
  %v1642 = vpop.f32.mrf.mxu0
  %v1643 = vadd.f32 %v1570, %v1642
  %v1644 = vpop.f32.mrf.mxu0
  %v1645 = vadd.f32 %v1572, %v1644
  %1646 = vmatmul.bf16.gmra.mxu0 %v626
  %v1647 = vpop.f32.mrf.mxu0
  %v1648 = vadd.f32 %v1575, %v1647
  %v1649 = vpop.f32.mrf.mxu0
  %v1650 = vadd.f32 %v1577, %v1649
  %1651 = vmatmul.bf16.gmra.mxu0 %v634
  %v1652 = vpop.f32.mrf.mxu0
  %v1653 = vadd.f32 %v1580, %v1652
  %v1654 = vpop.f32.mrf.mxu0
  %v1655 = vadd.f32 %v1582, %v1654
  %1656 = vmatmul.bf16.gmra.mxu0 %v642
  %v1657 = vpop.f32.mrf.mxu0
  %v1658 = vadd.f32 %v1585, %v1657
  %v1659 = vpop.f32.mrf.mxu0
  %v1660 = vadd.f32 %v1587, %v1659
  %1661 = vmatmul.bf16.gmra.mxu0 %v650
  %v1662 = vpop.f32.mrf.mxu0
  %v1663 = vadd.f32 %v1590, %v1662
  %v1664 = vpop.f32.mrf.mxu0
  %v1665 = vadd.f32 %v1592, %v1664
  %1666 = vmatmul.bf16.gmra.mxu0 %v658
  %v1667 = vpop.f32.mrf.mxu0
  %v1668 = vadd.f32 %v1595, %v1667
  %v1669 = vpop.f32.mrf.mxu0
  %v1670 = vadd.f32 %v1597, %v1669
  %1671 = vmatmul.bf16.gmra.mxu0 %v666
  %v1672 = vpop.f32.mrf.mxu0
  %v1673 = vadd.f32 %v1600, %v1672
  %v1674 = vpop.f32.mrf.mxu0
  %v1675 = vadd.f32 %v1602, %v1674
  %1676 = vmatmul.bf16.gmra.mxu0 %v674
  %v1677 = vpop.f32.mrf.mxu0
  %v1678 = vadd.f32 %v1605, %v1677
  %v1679 = vpop.f32.mrf.mxu0
  %v1680 = vadd.f32 %v1607, %v1679
  %1681 = vmatmul.bf16.gmra.mxu0 %v682
  %v1682 = vpop.f32.mrf.mxu0
  %v1683 = vadd.f32 %v1610, %v1682
  %v1684 = vpop.f32.mrf.mxu0
  %v1685 = vadd.f32 %v1612, %v1684
  %1686 = vmatmul.bf16.gmra.mxu0 %v690
  %v1687 = vpop.f32.mrf.mxu0
  %v1688 = vadd.f32 %v1615, %v1687
  %v1689 = vpop.f32.mrf.mxu0
  %1690 = vdwg.mxu0
  %1691 = vmatpush.bf16.msra.mxu0 %v1115
  %1692 = vmatpush.bf16.msra.mxu0 %v1114
  %1693 = vmatpush.bf16.msra.mxu0 %v1113
  %1694 = vmatpush.bf16.msra.mxu0 %v1112
  %1695 = vmatpush.bf16.msra.mxu0 %v1111
  %1696 = vmatpush.bf16.msra.mxu0 %v1110
  %1697 = vmatpush.bf16.msra.mxu0 %v1109
  %1698 = vmatpush.bf16.msra.mxu0 %v1108
  %1699 = vmatmul.bf16.gmra.mxu0 %v595
  %v1700 = vpop.f32.mrf.mxu0
  %v1701 = vadd.f32 %v1628, %v1700
  %v1702 = vpop.f32.mrf.mxu0
  %v1703 = vadd.f32 %v1630, %v1702
  %1704 = vmatmul.bf16.gmra.mxu0 %v603
  %v1705 = vpop.f32.mrf.mxu0
  %v1706 = vadd.f32 %v1633, %v1705
  %v1707 = vpop.f32.mrf.mxu0
  %v1708 = vadd.f32 %v1635, %v1707
  %1709 = vmatmul.bf16.gmra.mxu0 %v611
  %v1710 = vpop.f32.mrf.mxu0
  %v1711 = vadd.f32 %v1638, %v1710
  %v1712 = vpop.f32.mrf.mxu0
  %v1713 = vadd.f32 %v1640, %v1712
  %1714 = vmatmul.bf16.gmra.mxu0 %v619
  %v1715 = vpop.f32.mrf.mxu0
  %v1716 = vadd.f32 %v1643, %v1715
  %v1717 = vpop.f32.mrf.mxu0
  %v1718 = vadd.f32 %v1645, %v1717
  %1719 = vmatmul.bf16.gmra.mxu0 %v627
  %v1720 = vpop.f32.mrf.mxu0
  %v1721 = vadd.f32 %v1648, %v1720
  %v1722 = vpop.f32.mrf.mxu0
  %v1723 = vadd.f32 %v1650, %v1722
  %1724 = vmatmul.bf16.gmra.mxu0 %v635
  %v1725 = vpop.f32.mrf.mxu0
  %v1726 = vadd.f32 %v1653, %v1725
  %v1727 = vpop.f32.mrf.mxu0
  %v1728 = vadd.f32 %v1655, %v1727
  %1729 = vmatmul.bf16.gmra.mxu0 %v643
  %v1730 = vpop.f32.mrf.mxu0
  %v1731 = vadd.f32 %v1658, %v1730
  %v1732 = vpop.f32.mrf.mxu0
  %v1733 = vadd.f32 %v1660, %v1732
  %1734 = vmatmul.bf16.gmra.mxu0 %v651
  %v1735 = vpop.f32.mrf.mxu0
  %v1736 = vadd.f32 %v1663, %v1735
  %v1737 = vpop.f32.mrf.mxu0
  %v1738 = vadd.f32 %v1665, %v1737
  %1739 = vmatmul.bf16.gmra.mxu0 %v659
  %v1740 = vpop.f32.mrf.mxu0
  %v1741 = vadd.f32 %v1668, %v1740
  %v1742 = vpop.f32.mrf.mxu0
  %v1743 = vadd.f32 %v1670, %v1742
  %1744 = vmatmul.bf16.gmra.mxu0 %v667
  %v1745 = vpop.f32.mrf.mxu0
  %v1746 = vadd.f32 %v1673, %v1745
  %v1747 = vpop.f32.mrf.mxu0
  %v1748 = vadd.f32 %v1675, %v1747
  %1749 = vmatmul.bf16.gmra.mxu0 %v675
  %v1750 = vpop.f32.mrf.mxu0
  %v1751 = vadd.f32 %v1678, %v1750
  %v1752 = vpop.f32.mrf.mxu0
  %v1753 = vadd.f32 %v1680, %v1752
  %1754 = vmatmul.bf16.gmra.mxu0 %v683
  %v1755 = vpop.f32.mrf.mxu0
  %v1756 = vadd.f32 %v1683, %v1755
  %v1757 = vpop.f32.mrf.mxu0
  %v1758 = vadd.f32 %v1685, %v1757
  %1759 = vmatmul.bf16.gmra.mxu0 %v691
  %v1760 = vpop.f32.mrf.mxu0
  %v1761 = vadd.f32 %v1688, %v1760
  %v1762 = vpop.f32.mrf.mxu0
  %1763 = vdwg.mxu0
  %v1764 = vmax.f32 %v1701, 0.0
  %v1765 = vmax.f32 %v1703, 0.0
  %v1766 = vmax.f32 %v1706, 0.0
  %v1767 = vmax.f32 %v1708, 0.0
  %v1768 = vmax.f32 %v1711, 0.0
  %v1769 = vmax.f32 %v1713, 0.0
  %v1770 = vmax.f32 %v1716, 0.0
  %v1771 = vmax.f32 %v1718, 0.0
  %v1772 = vmax.f32 %v1721, 0.0
  %v1773 = vmax.f32 %v1723, 0.0
  %v1774 = vmax.f32 %v1726, 0.0
  %v1775 = vmax.f32 %v1728, 0.0
  %v1776 = vmax.f32 %v1731, 0.0
  %v1777 = vmax.f32 %v1733, 0.0
  %v1778 = vmax.f32 %v1736, 0.0
  %v1779 = vmax.f32 %v1738, 0.0
  %v1780 = vmax.f32 %v1741, 0.0
  %v1781 = vmax.f32 %v1743, 0.0
  %v1782 = vmax.f32 %v1746, 0.0
  %v1783 = vmax.f32 %v1748, 0.0
  %v1784 = vmax.f32 %v1751, 0.0
  %v1785 = vmax.f32 %v1753, 0.0
  %v1786 = vmax.f32 %v1756, 0.0
  %v1787 = vmax.f32 %v1758, 0.0
  %v1788 = vmax.f32 %v1761, 0.0
  %v1789 = vpack.c.bf16 %v1765, %v1764
  %v1790 = vpack.c.bf16 %v1766, %v1765
  %v1791 = vpack.c.bf16 %v1767, %v1766
  %v1792 = vpack.c.bf16 %v1770, %v1769
  %v1793 = vpack.c.bf16 %v1771, %v1770
  %v1794 = vpack.c.bf16 %v1772, %v1771
  %v1795 = vpack.c.bf16 %v1775, %v1774
  %v1796 = vpack.c.bf16 %v1776, %v1775
  %v1797 = vpack.c.bf16 %v1777, %v1776
  %v1798 = vpack.c.bf16 %v1769, %v1766
  %v1799 = vpack.c.bf16 %v1770, %v1767
  %v1800 = vpack.c.bf16 %v1771, %v1768
  %v1801 = vpack.c.bf16 %v1774, %v1771
  %v1802 = vpack.c.bf16 %v1775, %v1772
  %v1803 = vpack.c.bf16 %v1776, %v1773
  %v1804 = vpack.c.bf16 %v1779, %v1776
  %v1805 = vpack.c.bf16 %v1780, %v1777
  %v1806 = vpack.c.bf16 %v1781, %v1778
  %v1807 = vpack.c.bf16 %v1773, %v1772
  %v1808 = vpack.c.bf16 %v1778, %v1777
  %v1809 = vpack.c.bf16 %v1781, %v1780
  %v1810 = vpack.c.bf16 %v1782, %v1781
  %v1811 = vpack.c.bf16 %v1783, %v1782
  %v1812 = vpack.c.bf16 %v1780, %v1779
  %v1813 = vpack.c.bf16 %v1785, %v1784
  %v1814 = vpack.c.bf16 %v1786, %v1785
  %v1815 = vpack.c.bf16 %v1787, %v1786
  %v1816 = vpack.c.bf16 %v1776, %v1776
  %v1817 = vpack.c.bf16 %v1777, %v1777
  %v1818 = vpack.c.bf16 %v1778, %v1778
  %v1819 = vpack.c.bf16 %v1781, %v1781
  %v1820 = vpack.c.bf16 %v1782, %v1782
  %v1821 = vpack.c.bf16 %v1783, %v1783
  %v1822 = vpack.c.bf16 %v1786, %v1786
  %v1823 = vpack.c.bf16 %v1787, %v1787
  %v1824 = vpack.c.bf16 %v1788, %v1788
  %v1825 = vld [vmem:[%s3] sm:$0xf]
  %v1826 = vld [vmem:[%s3 + $0x4] sm:$0xf]
  %v1827 = vld [vmem:[%s3 + $0x8] sm:$0xf]
  %v1828 = vld [vmem:[%s3 + $0xc] sm:$0xf]
  %v1829 = vld [vmem:[%s3 + $0x10] sm:$0xf]
  %v1830 = vld [vmem:[%s3 + $0x14] sm:$0xf]
  %v1831 = vld [vmem:[%s3 + $0x18] sm:$0xf]
  %v1832 = vld [vmem:[%s3 + $0x1c] sm:$0xf]
  %v1833 = vld [vmem:[%s3 + $0x20] sm:$0xf]
  %v1834 = vld [vmem:[%s3 + $0x24] sm:$0xf]
  %v1835 = vld [vmem:[%s3 + $0x28] sm:$0xf]
  %v1836 = vld [vmem:[%s3 + $0x2c] sm:$0xf]
  %v1837 = vld [vmem:[%s3 + $0x30] sm:$0xf]
  %v1838 = vld [vmem:[%s3 + $0x34] sm:$0xf]
  %v1839 = vld [vmem:[%s3 + $0x38] sm:$0xf]
  %v1840 = vld [vmem:[%s3 + $0x3c] sm:$0xf]
  %v1841 = vld [vmem:[%s3 + $0x40] sm:$0xf]
  %v1842 = vld [vmem:[%s3 + $0x44] sm:$0xf]
  %v1843 = vld [vmem:[%s3 + $0x48] sm:$0xf]
  %v1844 = vld [vmem:[%s3 + $0x4c] sm:$0xf]
  %v1845 = vld [vmem:[%s3 + $0x50] sm:$0xf]
  %v1846 = vld [vmem:[%s3 + $0x54] sm:$0xf]
  %v1847 = vld [vmem:[%s3 + $0x58] sm:$0xf]
  %v1848 = vld [vmem:[%s3 + $0x5c] sm:$0xf]
  %v1849 = vld [vmem:[%s3 + $0x60] sm:$0xf]
  %v1850 = vld [vmem:[%s3 + $0x64] sm:$0xf]
  %v1851 = vld [vmem:[%s3 + $0x68] sm:$0xf]
  %v1852 = vld [vmem:[%s3 + $0x6c] sm:$0xf]
  %v1853 = vld [vmem:[%s3 + $0x70] sm:$0xf]
  %v1854 = vld [vmem:[%s3 + $0x74] sm:$0xf]
  %v1855 = vld [vmem:[%s3 + $0x78] sm:$0xf]
  %v1856 = vld [vmem:[%s3 + $0x7c] sm:$0xf]
  %v1857 = vld [vmem:[%s3 + $0x80] sm:$0xf]
  %v1858 = vld [vmem:[%s3 + $0x84] sm:$0xf]
  %v1859 = vld [vmem:[%s3 + $0x88] sm:$0xf]
  %v1860 = vld [vmem:[%s3 + $0x8c] sm:$0xf]
  %v1861 = vld [vmem:[%s3 + $0x90] sm:$0xf]
  %v1862 = vld [vmem:[%s3 + $0x94] sm:$0xf]
  %v1863 = vld [vmem:[%s3 + $0x98] sm:$0xf]
  %v1864 = vld [vmem:[%s3 + $0x9c] sm:$0xf]
  %v1865 = vld [vmem:[%s3 + $0xa0] sm:$0xf]
  %v1866 = vld [vmem:[%s3 + $0xa4] sm:$0xf]
  %v1867 = vld [vmem:[%s3 + $0xa8] sm:$0xf]
  %v1868 = vld [vmem:[%s3 + $0xac] sm:$0xf]
  %v1869 = vld [vmem:[%s3 + $0xb0] sm:$0xf]
  %v1870 = vld [vmem:[%s3 + $0xb4] sm:$0xf]
  %v1871 = vld [vmem:[%s3 + $0xb8] sm:$0xf]
  %v1872 = vld [vmem:[%s3 + $0xbc] sm:$0xf]
  %v1873 = vld [vmem:[%s3 + $0xc0] sm:$0xf]
  %v1874 = vld [vmem:[%s3 + $0xc4] sm:$0xf]
  %v1875 = vld [vmem:[%s3 + $0xc8] sm:$0xf]
  %v1876 = vld [vmem:[%s3 + $0xcc] sm:$0xf]
  %v1877 = vld [vmem:[%s3 + $0xd0] sm:$0xf]
  %v1878 = vld [vmem:[%s3 + $0xd4] sm:$0xf]
  %v1879 = vld [vmem:[%s3 + $0xd8] sm:$0xf]
  %v1880 = vld [vmem:[%s3 + $0xdc] sm:$0xf]
  %v1881 = vld [vmem:[%s3 + $0xe0] sm:$0xf]
  %v1882 = vld [vmem:[%s3 + $0xe4] sm:$0xf]
  %v1883 = vld [vmem:[%s3 + $0xe8] sm:$0xf]
  %v1884 = vld [vmem:[%s3 + $0xec] sm:$0xf]
  %v1885 = vld [vmem:[%s3 + $0xf0] sm:$0xf]
  %v1886 = vld [vmem:[%s3 + $0xf4] sm:$0xf]
  %v1887 = vld [vmem:[%s3 + $0xf8] sm:$0xf]
  %v1888 = vld [vmem:[%s3 + $0xfc] sm:$0xf]
  %v1889 = vld [vmem:[%s3 + $0x100] sm:$0xf]
  %v1890 = vld [vmem:[%s3 + $0x104] sm:$0xf]
  %v1891 = vld [vmem:[%s3 + $0x108] sm:$0xf]
  %v1892 = vld [vmem:[%s3 + $0x10c] sm:$0xf]
  %v1893 = vld [vmem:[%s3 + $0x110] sm:$0xf]
  %v1894 = vld [vmem:[%s3 + $0x114] sm:$0xf]
  %v1895 = vld [vmem:[%s3 + $0x118] sm:$0xf]
  %v1896 = vld [vmem:[%s3 + $0x11c] sm:$0xf]
  %v1897 = vld [vmem:[%s3 + $0x120] sm:$0xf]
  %v1898 = vld [vmem:[%s3 + $0x124] sm:$0xf]
  %v1899 = vld [vmem:[%s3 + $0x128] sm:$0xf]
  %v1900 = vld [vmem:[%s3 + $0x12c] sm:$0xf]
  %v1901 = vld [vmem:[%s3 + $0x130] sm:$0xf]
  %v1902 = vld [vmem:[%s3 + $0x134] sm:$0xf]
  %v1903 = vld [vmem:[%s3 + $0x138] sm:$0xf]
  %v1904 = vld [vmem:[%s3 + $0x13c] sm:$0xf]
  %v1905 = vld [vmem:[%s3 + $0x140] sm:$0xf]
  %v1906 = vld [vmem:[%s3 + $0x144] sm:$0xf]
  %v1907 = vld [vmem:[%s3 + $0x148] sm:$0xf]
  %v1908 = vld [vmem:[%s3 + $0x14c] sm:$0xf]
  %v1909 = vld [vmem:[%s3 + $0x150] sm:$0xf]
  %v1910 = vld [vmem:[%s3 + $0x154] sm:$0xf]
  %v1911 = vld [vmem:[%s3 + $0x158] sm:$0xf]
  %v1912 = vld [vmem:[%s3 + $0x15c] sm:$0xf]
  %v1913 = vld [vmem:[%s3 + $0x160] sm:$0xf]
  %v1914 = vld [vmem:[%s3 + $0x164] sm:$0xf]
  %v1915 = vld [vmem:[%s3 + $0x168] sm:$0xf]
  %v1916 = vld [vmem:[%s3 + $0x16c] sm:$0xf]
  %v1917 = vld [vmem:[%s3 + $0x170] sm:$0xf]
  %v1918 = vld [vmem:[%s3 + $0x174] sm:$0xf]
  %v1919 = vld [vmem:[%s3 + $0x178] sm:$0xf]
  %v1920 = vld [vmem:[%s3 + $0x17c] sm:$0xf]
  %v1921 = vld [vmem:[%s3 + $0x180] sm:$0xf]
  %v1922 = vld [vmem:[%s3 + $0x184] sm:$0xf]
  %v1923 = vld [vmem:[%s3 + $0x188] sm:$0xf]
  %v1924 = vld [vmem:[%s3 + $0x18c] sm:$0xf]
  %v1925 = vld [vmem:[%s3 + $0x190] sm:$0xf]
  %v1926 = vld [vmem:[%s3 + $0x194] sm:$0xf]
  %v1927 = vld [vmem:[%s3 + $0x198] sm:$0xf]
  %v1928 = vld [vmem:[%s3 + $0x19c] sm:$0xf]
  %v1929 = vld [vmem:[%s3 + $0x1a0] sm:$0xf]
  %v1930 = vld [vmem:[%s3 + $0x1a4] sm:$0xf]
  %v1931 = vld [vmem:[%s3 + $0x1a8] sm:$0xf]
  %v1932 = vld [vmem:[%s3 + $0x1ac] sm:$0xf]
  %v1933 = vld [vmem:[%s3 + $0x1b0] sm:$0xf]
  %v1934 = vld [vmem:[%s3 + $0x1b4] sm:$0xf]
  %v1935 = vld [vmem:[%s3 + $0x1b8] sm:$0xf]
  %v1936 = vld [vmem:[%s3 + $0x1bc] sm:$0xf]
  %v1937 = vld [vmem:[%s3 + $0x1c0] sm:$0xf]
  %v1938 = vld [vmem:[%s3 + $0x1c4] sm:$0xf]
  %v1939 = vld [vmem:[%s3 + $0x1c8] sm:$0xf]
  %v1940 = vld [vmem:[%s3 + $0x1cc] sm:$0xf]
  %v1941 = vld [vmem:[%s3 + $0x1d0] sm:$0xf]
  %v1942 = vld [vmem:[%s3 + $0x1d4] sm:$0xf]
  %v1943 = vld [vmem:[%s3 + $0x1d8] sm:$0xf]
  %v1944 = vld [vmem:[%s3 + $0x1dc] sm:$0xf]
  %v1945 = vld [vmem:[%s3 + $0x1e0] sm:$0xf]
  %v1946 = vld [vmem:[%s3 + $0x1e4] sm:$0xf]
  %v1947 = vld [vmem:[%s3 + $0x1e8] sm:$0xf]
  %v1948 = vld [vmem:[%s3 + $0x1ec] sm:$0xf]
  %v1949 = vld [vmem:[%s3 + $0x1f0] sm:$0xf]
  %v1950 = vld [vmem:[%s3 + $0x1f4] sm:$0xf]
  %v1951 = vld [vmem:[%s3 + $0x1f8] sm:$0xf]
  %v1952 = vld [vmem:[%s3 + $0x1fc] sm:$0xf]
  %v1953 = vld [vmem:[%s3 + $0x200] sm:$0xf]
  %v1954 = vld [vmem:[%s3 + $0x204] sm:$0xf]
  %v1955 = vld [vmem:[%s3 + $0x208] sm:$0xf]
  %v1956 = vld [vmem:[%s3 + $0x20c] sm:$0xf]
  %v1957 = vld [vmem:[%s3 + $0x210] sm:$0xf]
  %v1958 = vld [vmem:[%s3 + $0x214] sm:$0xf]
  %v1959 = vld [vmem:[%s3 + $0x218] sm:$0xf]
  %v1960 = vld [vmem:[%s3 + $0x21c] sm:$0xf]
  %v1961 = vld [vmem:[%s3 + $0x220] sm:$0xf]
  %v1962 = vld [vmem:[%s3 + $0x224] sm:$0xf]
  %v1963 = vld [vmem:[%s3 + $0x228] sm:$0xf]
  %v1964 = vld [vmem:[%s3 + $0x22c] sm:$0xf]
  %v1965 = vld [vmem:[%s3 + $0x230] sm:$0xf]
  %v1966 = vld [vmem:[%s3 + $0x234] sm:$0xf]
  %v1967 = vld [vmem:[%s3 + $0x238] sm:$0xf]
  %v1968 = vld [vmem:[%s3 + $0x23c] sm:$0xf]
  %v1969 = vld [vmem:[%s4] sm:$0x1]
  %v1971 = vperm.slane %v1969, 0
  %v2117 = vunpack.c.l.b16 %v1825
  %v2118 = vunpack.c.l.b16 %v1826
  %v2119 = vunpack.c.l.b16 %v1827
  %v2120 = vunpack.c.l.b16 %v1828
  %v2121 = vunpack.c.l.b16 %v1829
  %v2122 = vunpack.c.l.b16 %v1830
  %v2123 = vunpack.c.l.b16 %v1831
  %v2124 = vunpack.c.l.b16 %v1832
  %v2125 = vunpack.c.l.b16 %v1833
  %v2126 = vunpack.c.l.b16 %v1834
  %v2127 = vunpack.c.l.b16 %v1835
  %v2128 = vunpack.c.l.b16 %v1836
  %v2129 = vunpack.c.l.b16 %v1837
  %v2130 = vunpack.c.l.b16 %v1838
  %v2131 = vunpack.c.l.b16 %v1839
  %v2132 = vunpack.c.l.b16 %v1840
  %v2133 = vunpack.c.l.b16 %v1841
  %v2134 = vunpack.c.l.b16 %v1842
  %v2135 = vunpack.c.l.b16 %v1843
  %v2136 = vunpack.c.l.b16 %v1844
  %v2137 = vunpack.c.l.b16 %v1845
  %v2138 = vunpack.c.l.b16 %v1846
  %v2139 = vunpack.c.l.b16 %v1847
  %v2140 = vunpack.c.l.b16 %v1848
  %v2141 = vunpack.c.l.b16 %v1849
  %v2142 = vunpack.c.l.b16 %v1850
  %v2143 = vunpack.c.l.b16 %v1851
  %v2144 = vunpack.c.l.b16 %v1852
  %v2145 = vunpack.c.l.b16 %v1853
  %v2146 = vunpack.c.l.b16 %v1854
  %v2147 = vunpack.c.l.b16 %v1855
  %v2148 = vunpack.c.l.b16 %v1856
  %v2149 = vunpack.c.l.b16 %v1857
  %v2150 = vunpack.c.l.b16 %v1858
  %v2151 = vunpack.c.l.b16 %v1859
  %v2152 = vunpack.c.l.b16 %v1860
  %v2153 = vunpack.c.l.b16 %v1861
  %v2154 = vunpack.c.l.b16 %v1862
  %v2155 = vunpack.c.l.b16 %v1863
  %v2156 = vunpack.c.l.b16 %v1864
  %v2157 = vunpack.c.l.b16 %v1865
  %v2158 = vunpack.c.l.b16 %v1866
  %v2159 = vunpack.c.l.b16 %v1867
  %v2160 = vunpack.c.l.b16 %v1868
  %v2161 = vunpack.c.l.b16 %v1869
  %v2162 = vunpack.c.l.b16 %v1870
  %v2163 = vunpack.c.l.b16 %v1871
  %v2164 = vunpack.c.l.b16 %v1872
  %v2165 = vunpack.c.l.b16 %v1873
  %v2166 = vunpack.c.l.b16 %v1874
  %v2167 = vunpack.c.l.b16 %v1875
  %v2168 = vunpack.c.l.b16 %v1876
  %v2169 = vunpack.c.l.b16 %v1877
  %v2170 = vunpack.c.l.b16 %v1878
  %v2171 = vunpack.c.l.b16 %v1879
  %v2172 = vunpack.c.l.b16 %v1880
  %v2173 = vunpack.c.l.b16 %v1881
  %v2174 = vunpack.c.l.b16 %v1882
  %v2175 = vunpack.c.l.b16 %v1883
  %v2176 = vunpack.c.l.b16 %v1884
  %v2177 = vunpack.c.l.b16 %v1885
  %v2178 = vunpack.c.l.b16 %v1886
  %v2179 = vunpack.c.l.b16 %v1887
  %v2180 = vunpack.c.l.b16 %v1888
  %v2181 = vunpack.c.l.b16 %v1889
  %v2182 = vunpack.c.l.b16 %v1890
  %v2183 = vunpack.c.l.b16 %v1891
  %v2184 = vunpack.c.l.b16 %v1892
  %v2185 = vunpack.c.l.b16 %v1893
  %v2186 = vunpack.c.l.b16 %v1894
  %v2187 = vunpack.c.l.b16 %v1895
  %v2188 = vunpack.c.l.b16 %v1896
  %v2189 = vunpack.c.l.b16 %v1897
  %v2190 = vunpack.c.l.b16 %v1898
  %v2191 = vunpack.c.l.b16 %v1899
  %v2192 = vunpack.c.l.b16 %v1900
  %v2193 = vunpack.c.l.b16 %v1901
  %v2194 = vunpack.c.l.b16 %v1902
  %v2195 = vunpack.c.l.b16 %v1903
  %v2196 = vunpack.c.l.b16 %v1904
  %v2197 = vunpack.c.l.b16 %v1905
  %v2198 = vunpack.c.l.b16 %v1906
  %v2199 = vunpack.c.l.b16 %v1907
  %v2200 = vunpack.c.l.b16 %v1908
  %v2201 = vunpack.c.l.b16 %v1909
  %v2202 = vunpack.c.l.b16 %v1910
  %v2203 = vunpack.c.l.b16 %v1911
  %v2204 = vunpack.c.l.b16 %v1912
  %v2205 = vunpack.c.l.b16 %v1913
  %v2206 = vunpack.c.l.b16 %v1914
  %v2207 = vunpack.c.l.b16 %v1915
  %v2208 = vunpack.c.l.b16 %v1916
  %v2209 = vunpack.c.l.b16 %v1917
  %v2210 = vunpack.c.l.b16 %v1918
  %v2211 = vunpack.c.l.b16 %v1919
  %v2212 = vunpack.c.l.b16 %v1920
  %v2213 = vunpack.c.l.b16 %v1921
  %v2214 = vunpack.c.l.b16 %v1922
  %v2215 = vunpack.c.l.b16 %v1923
  %v2216 = vunpack.c.l.b16 %v1924
  %v2217 = vunpack.c.l.b16 %v1925
  %v2218 = vunpack.c.l.b16 %v1926
  %v2219 = vunpack.c.l.b16 %v1927
  %v2220 = vunpack.c.l.b16 %v1928
  %v2221 = vunpack.c.l.b16 %v1929
  %v2222 = vunpack.c.l.b16 %v1930
  %v2223 = vunpack.c.l.b16 %v1931
  %v2224 = vunpack.c.l.b16 %v1932
  %v2225 = vunpack.c.l.b16 %v1933
  %v2226 = vunpack.c.l.b16 %v1934
  %v2227 = vunpack.c.l.b16 %v1935
  %v2228 = vunpack.c.l.b16 %v1936
  %v2229 = vunpack.c.l.b16 %v1937
  %v2230 = vunpack.c.l.b16 %v1938
  %v2231 = vunpack.c.l.b16 %v1939
  %v2232 = vunpack.c.l.b16 %v1940
  %v2233 = vunpack.c.l.b16 %v1941
  %v2234 = vunpack.c.l.b16 %v1942
  %v2235 = vunpack.c.l.b16 %v1943
  %v2236 = vunpack.c.l.b16 %v1944
  %v2237 = vunpack.c.l.b16 %v1945
  %v2238 = vunpack.c.l.b16 %v1946
  %v2239 = vunpack.c.l.b16 %v1947
  %v2240 = vunpack.c.l.b16 %v1948
  %v2241 = vunpack.c.l.b16 %v1949
  %v2242 = vunpack.c.l.b16 %v1950
  %v2243 = vunpack.c.l.b16 %v1951
  %v2244 = vunpack.c.l.b16 %v1952
  %v2245 = vunpack.c.l.b16 %v1953
  %v2246 = vunpack.c.l.b16 %v1954
  %v2247 = vunpack.c.l.b16 %v1955
  %v2248 = vunpack.c.l.b16 %v1956
  %v2249 = vunpack.c.l.b16 %v1957
  %v2250 = vunpack.c.l.b16 %v1958
  %v2251 = vunpack.c.l.b16 %v1959
  %v2252 = vunpack.c.l.b16 %v1960
  %v2253 = vunpack.c.l.b16 %v1961
  %v2254 = vunpack.c.l.b16 %v1962
  %v2255 = vunpack.c.l.b16 %v1963
  %v2256 = vunpack.c.l.b16 %v1964
  %v2257 = vunpack.c.l.b16 %v1965
  %v2258 = vunpack.c.l.b16 %v1966
  %v2259 = vunpack.c.l.b16 %v1967
  %v2260 = vunpack.c.l.b16 %v1968
  %v2261 = vpack.c.b16 %v2118, %v2117
  %v2262 = vpack.c.b16 %v2120, %v2119
  %v2263 = vpack.c.b16 %v2122, %v2121
  %v2264 = vpack.c.b16 %v2124, %v2123
  %v2265 = vpack.c.b16 %v2126, %v2125
  %v2266 = vpack.c.b16 %v2128, %v2127
  %v2267 = vpack.c.b16 %v2130, %v2129
  %v2268 = vpack.c.b16 %v2132, %v2131
  %v2269 = vpack.c.b16 %v2134, %v2133
  %v2270 = vpack.c.b16 %v2136, %v2135
  %v2271 = vpack.c.b16 %v2138, %v2137
  %v2272 = vpack.c.b16 %v2140, %v2139
  %v2273 = vpack.c.b16 %v2142, %v2141
  %v2274 = vpack.c.b16 %v2144, %v2143
  %v2275 = vpack.c.b16 %v2146, %v2145
  %v2276 = vpack.c.b16 %v2148, %v2147
  %v2277 = vpack.c.b16 %v2150, %v2149
  %v2278 = vpack.c.b16 %v2152, %v2151
  %v2279 = vpack.c.b16 %v2154, %v2153
  %v2280 = vpack.c.b16 %v2156, %v2155
  %v2281 = vpack.c.b16 %v2158, %v2157
  %v2282 = vpack.c.b16 %v2160, %v2159
  %v2283 = vpack.c.b16 %v2162, %v2161
  %v2284 = vpack.c.b16 %v2164, %v2163
  %v2285 = vpack.c.b16 %v2166, %v2165
  %v2286 = vpack.c.b16 %v2168, %v2167
  %v2287 = vpack.c.b16 %v2170, %v2169
  %v2288 = vpack.c.b16 %v2172, %v2171
  %v2289 = vpack.c.b16 %v2174, %v2173
  %v2290 = vpack.c.b16 %v2176, %v2175
  %v2291 = vpack.c.b16 %v2178, %v2177
  %v2292 = vpack.c.b16 %v2180, %v2179
  %v2293 = vpack.c.b16 %v2182, %v2181
  %v2294 = vpack.c.b16 %v2184, %v2183
  %v2295 = vpack.c.b16 %v2186, %v2185
  %v2296 = vpack.c.b16 %v2188, %v2187
  %v2297 = vpack.c.b16 %v2190, %v2189
  %v2298 = vpack.c.b16 %v2192, %v2191
  %v2299 = vpack.c.b16 %v2194, %v2193
  %v2300 = vpack.c.b16 %v2196, %v2195
  %v2301 = vpack.c.b16 %v2198, %v2197
  %v2302 = vpack.c.b16 %v2200, %v2199
  %v2303 = vpack.c.b16 %v2202, %v2201
  %v2304 = vpack.c.b16 %v2204, %v2203
  %v2305 = vpack.c.b16 %v2206, %v2205
  %v2306 = vpack.c.b16 %v2208, %v2207
  %v2307 = vpack.c.b16 %v2210, %v2209
  %v2308 = vpack.c.b16 %v2212, %v2211
  %v2309 = vpack.c.b16 %v2214, %v2213
  %v2310 = vpack.c.b16 %v2216, %v2215
  %v2311 = vpack.c.b16 %v2218, %v2217
  %v2312 = vpack.c.b16 %v2220, %v2219
  %v2313 = vpack.c.b16 %v2222, %v2221
  %v2314 = vpack.c.b16 %v2224, %v2223
  %v2315 = vpack.c.b16 %v2226, %v2225
  %v2316 = vpack.c.b16 %v2228, %v2227
  %v2317 = vpack.c.b16 %v2230, %v2229
  %v2318 = vpack.c.b16 %v2232, %v2231
  %v2319 = vpack.c.b16 %v2234, %v2233
  %v2320 = vpack.c.b16 %v2236, %v2235
  %v2321 = vpack.c.b16 %v2238, %v2237
  %v2322 = vpack.c.b16 %v2240, %v2239
  %v2323 = vpack.c.b16 %v2242, %v2241
  %v2324 = vpack.c.b16 %v2244, %v2243
  %v2325 = vpack.c.b16 %v2246, %v2245
  %v2326 = vpack.c.b16 %v2248, %v2247
  %v2327 = vpack.c.b16 %v2250, %v2249
  %v2328 = vpack.c.b16 %v2252, %v2251
  %v2329 = vpack.c.b16 %v2254, %v2253
  %v2330 = vpack.c.b16 %v2256, %v2255
  %v2331 = vpack.c.b16 %v2258, %v2257
  %v2332 = vpack.c.b16 %v2260, %v2259
  %2405 = vmatpush.bf16.msra.mxu0 %v2268
  %2406 = vmatpush.bf16.msra.mxu0 %v2267
  %2407 = vmatpush.bf16.msra.mxu0 %v2266
  %2408 = vmatpush.bf16.msra.mxu0 %v2265
  %2409 = vmatpush.bf16.msra.mxu0 %v2264
  %2410 = vmatpush.bf16.msra.mxu0 %v2263
  %2411 = vmatpush.bf16.msra.mxu0 %v2262
  %2412 = vmatpush.bf16.msra.mxu0 %v2261
  %2413 = vmatmul.bf16.gmra.mxu0 %v1789
  %v2414 = vpop.f32.mrf.mxu0
  %v2415 = vadd.f32 %v1971, %v2414
  %v2416 = vpop.f32.mrf.mxu0
  %v2417 = vadd.f32 %v1971, %v2416
  %2418 = vmatmul.bf16.gmra.mxu0 %v1798
  %v2419 = vpop.f32.mrf.mxu0
  %v2420 = vadd.f32 %v1971, %v2419
  %v2421 = vpop.f32.mrf.mxu0
  %v2422 = vadd.f32 %v1971, %v2421
  %2423 = vmatmul.bf16.gmra.mxu0 %v1793
  %v2424 = vpop.f32.mrf.mxu0
  %v2425 = vadd.f32 %v1971, %v2424
  %v2426 = vpop.f32.mrf.mxu0
  %v2427 = vadd.f32 %v1971, %v2426
  %2428 = vmatmul.bf16.gmra.mxu0 %v1795
  %v2429 = vpop.f32.mrf.mxu0
  %v2430 = vadd.f32 %v1971, %v2429
  %v2431 = vpop.f32.mrf.mxu0
  %v2432 = vadd.f32 %v1971, %v2431
  %2433 = vmatmul.bf16.gmra.mxu0 %v1816
  %v2434 = vpop.f32.mrf.mxu0
  %v2435 = vadd.f32 %v1971, %v2434
  %v2436 = vpop.f32.mrf.mxu0
  %2437 = vdwg.mxu0
  %2438 = vmatpush.bf16.msra.mxu0 %v2276
  %2439 = vmatpush.bf16.msra.mxu0 %v2275
  %2440 = vmatpush.bf16.msra.mxu0 %v2274
  %2441 = vmatpush.bf16.msra.mxu0 %v2273
  %2442 = vmatpush.bf16.msra.mxu0 %v2272
  %2443 = vmatpush.bf16.msra.mxu0 %v2271
  %2444 = vmatpush.bf16.msra.mxu0 %v2270
  %2445 = vmatpush.bf16.msra.mxu0 %v2269
  %2446 = vmatmul.bf16.gmra.mxu0 %v1790
  %v2447 = vpop.f32.mrf.mxu0
  %v2448 = vadd.f32 %v2415, %v2447
  %v2449 = vpop.f32.mrf.mxu0
  %v2450 = vadd.f32 %v2417, %v2449
  %2451 = vmatmul.bf16.gmra.mxu0 %v1799
  %v2452 = vpop.f32.mrf.mxu0
  %v2453 = vadd.f32 %v2420, %v2452
  %v2454 = vpop.f32.mrf.mxu0
  %v2455 = vadd.f32 %v2422, %v2454
  %2456 = vmatmul.bf16.gmra.mxu0 %v1794
  %v2457 = vpop.f32.mrf.mxu0
  %v2458 = vadd.f32 %v2425, %v2457
  %v2459 = vpop.f32.mrf.mxu0
  %v2460 = vadd.f32 %v2427, %v2459
  %2461 = vmatmul.bf16.gmra.mxu0 %v1796
  %v2462 = vpop.f32.mrf.mxu0
  %v2463 = vadd.f32 %v2430, %v2462
  %v2464 = vpop.f32.mrf.mxu0
  %v2465 = vadd.f32 %v2432, %v2464
  %2466 = vmatmul.bf16.gmra.mxu0 %v1817
  %v2467 = vpop.f32.mrf.mxu0
  %v2468 = vadd.f32 %v2435, %v2467
  %v2469 = vpop.f32.mrf.mxu0
  %2470 = vdwg.mxu0
  %2471 = vmatpush.bf16.msra.mxu0 %v2284
  %2472 = vmatpush.bf16.msra.mxu0 %v2283
  %2473 = vmatpush.bf16.msra.mxu0 %v2282
  %2474 = vmatpush.bf16.msra.mxu0 %v2281
  %2475 = vmatpush.bf16.msra.mxu0 %v2280
  %2476 = vmatpush.bf16.msra.mxu0 %v2279
  %2477 = vmatpush.bf16.msra.mxu0 %v2278
  %2478 = vmatpush.bf16.msra.mxu0 %v2277
  %2479 = vmatmul.bf16.gmra.mxu0 %v1791
  %v2480 = vpop.f32.mrf.mxu0
  %v2481 = vadd.f32 %v2448, %v2480
  %v2482 = vpop.f32.mrf.mxu0
  %v2483 = vadd.f32 %v2450, %v2482
  %2484 = vmatmul.bf16.gmra.mxu0 %v1800
  %v2485 = vpop.f32.mrf.mxu0
  %v2486 = vadd.f32 %v2453, %v2485
  %v2487 = vpop.f32.mrf.mxu0
  %v2488 = vadd.f32 %v2455, %v2487
  %2489 = vmatmul.bf16.gmra.mxu0 %v1807
  %v2490 = vpop.f32.mrf.mxu0
  %v2491 = vadd.f32 %v2458, %v2490
  %v2492 = vpop.f32.mrf.mxu0
  %v2493 = vadd.f32 %v2460, %v2492
  %2494 = vmatmul.bf16.gmra.mxu0 %v1797
  %v2495 = vpop.f32.mrf.mxu0
  %v2496 = vadd.f32 %v2463, %v2495
  %v2497 = vpop.f32.mrf.mxu0
  %v2498 = vadd.f32 %v2465, %v2497
  %2499 = vmatmul.bf16.gmra.mxu0 %v1818
  %v2500 = vpop.f32.mrf.mxu0
  %v2501 = vadd.f32 %v2468, %v2500
  %v2502 = vpop.f32.mrf.mxu0
  %2503 = vdwg.mxu0
  %2504 = vmatpush.bf16.msra.mxu0 %v2292
  %2505 = vmatpush.bf16.msra.mxu0 %v2291
  %2506 = vmatpush.bf16.msra.mxu0 %v2290
  %2507 = vmatpush.bf16.msra.mxu0 %v2289
  %2508 = vmatpush.bf16.msra.mxu0 %v2288
  %2509 = vmatpush.bf16.msra.mxu0 %v2287
  %2510 = vmatpush.bf16.msra.mxu0 %v2286
  %2511 = vmatpush.bf16.msra.mxu0 %v2285
  %2512 = vmatmul.bf16.gmra.mxu0 %v1792
  %v2513 = vpop.f32.mrf.mxu0
  %v2514 = vadd.f32 %v2481, %v2513
  %v2515 = vpop.f32.mrf.mxu0
  %v2516 = vadd.f32 %v2483, %v2515
  %2517 = vmatmul.bf16.gmra.mxu0 %v1801
  %v2518 = vpop.f32.mrf.mxu0
  %v2519 = vadd.f32 %v2486, %v2518
  %v2520 = vpop.f32.mrf.mxu0
  %v2521 = vadd.f32 %v2488, %v2520
  %2522 = vmatmul.bf16.gmra.mxu0 %v1796
  %v2523 = vpop.f32.mrf.mxu0
  %v2524 = vadd.f32 %v2491, %v2523
  %v2525 = vpop.f32.mrf.mxu0
  %v2526 = vadd.f32 %v2493, %v2525
  %2527 = vmatmul.bf16.gmra.mxu0 %v1812
  %v2528 = vpop.f32.mrf.mxu0
  %v2529 = vadd.f32 %v2496, %v2528
  %v2530 = vpop.f32.mrf.mxu0
  %v2531 = vadd.f32 %v2498, %v2530
  %2532 = vmatmul.bf16.gmra.mxu0 %v1819
  %v2533 = vpop.f32.mrf.mxu0
  %v2534 = vadd.f32 %v2501, %v2533
  %v2535 = vpop.f32.mrf.mxu0
  %2536 = vdwg.mxu0
  %2537 = vmatpush.bf16.msra.mxu0 %v2300
  %2538 = vmatpush.bf16.msra.mxu0 %v2299
  %2539 = vmatpush.bf16.msra.mxu0 %v2298
  %2540 = vmatpush.bf16.msra.mxu0 %v2297
  %2541 = vmatpush.bf16.msra.mxu0 %v2296
  %2542 = vmatpush.bf16.msra.mxu0 %v2295
  %2543 = vmatpush.bf16.msra.mxu0 %v2294
  %2544 = vmatpush.bf16.msra.mxu0 %v2293
  %2545 = vmatmul.bf16.gmra.mxu0 %v1793
  %v2546 = vpop.f32.mrf.mxu0
  %v2547 = vadd.f32 %v2514, %v2546
  %v2548 = vpop.f32.mrf.mxu0
  %v2549 = vadd.f32 %v2516, %v2548
  %2550 = vmatmul.bf16.gmra.mxu0 %v1802
  %v2551 = vpop.f32.mrf.mxu0
  %v2552 = vadd.f32 %v2519, %v2551
  %v2553 = vpop.f32.mrf.mxu0
  %v2554 = vadd.f32 %v2521, %v2553
  %2555 = vmatmul.bf16.gmra.mxu0 %v1797
  %v2556 = vpop.f32.mrf.mxu0
  %v2557 = vadd.f32 %v2524, %v2556
  %v2558 = vpop.f32.mrf.mxu0
  %v2559 = vadd.f32 %v2526, %v2558
  %2560 = vmatmul.bf16.gmra.mxu0 %v1809
  %v2561 = vpop.f32.mrf.mxu0
  %v2562 = vadd.f32 %v2529, %v2561
  %v2563 = vpop.f32.mrf.mxu0
  %v2564 = vadd.f32 %v2531, %v2563
  %2565 = vmatmul.bf16.gmra.mxu0 %v1820
  %v2566 = vpop.f32.mrf.mxu0
  %v2567 = vadd.f32 %v2534, %v2566
  %v2568 = vpop.f32.mrf.mxu0
  %2569 = vdwg.mxu0
  %2570 = vmatpush.bf16.msra.mxu0 %v2308
  %2571 = vmatpush.bf16.msra.mxu0 %v2307
  %2572 = vmatpush.bf16.msra.mxu0 %v2306
  %2573 = vmatpush.bf16.msra.mxu0 %v2305
  %2574 = vmatpush.bf16.msra.mxu0 %v2304
  %2575 = vmatpush.bf16.msra.mxu0 %v2303
  %2576 = vmatpush.bf16.msra.mxu0 %v2302
  %2577 = vmatpush.bf16.msra.mxu0 %v2301
  %2578 = vmatmul.bf16.gmra.mxu0 %v1794
  %v2579 = vpop.f32.mrf.mxu0
  %v2580 = vadd.f32 %v2547, %v2579
  %v2581 = vpop.f32.mrf.mxu0
  %v2582 = vadd.f32 %v2549, %v2581
  %2583 = vmatmul.bf16.gmra.mxu0 %v1803
  %v2584 = vpop.f32.mrf.mxu0
  %v2585 = vadd.f32 %v2552, %v2584
  %v2586 = vpop.f32.mrf.mxu0
  %v2587 = vadd.f32 %v2554, %v2586
  %2588 = vmatmul.bf16.gmra.mxu0 %v1808
  %v2589 = vpop.f32.mrf.mxu0
  %v2590 = vadd.f32 %v2557, %v2589
  %v2591 = vpop.f32.mrf.mxu0
  %v2592 = vadd.f32 %v2559, %v2591
  %2593 = vmatmul.bf16.gmra.mxu0 %v1810
  %v2594 = vpop.f32.mrf.mxu0
  %v2595 = vadd.f32 %v2562, %v2594
  %v2596 = vpop.f32.mrf.mxu0
  %v2597 = vadd.f32 %v2564, %v2596
  %2598 = vmatmul.bf16.gmra.mxu0 %v1821
  %v2599 = vpop.f32.mrf.mxu0
  %v2600 = vadd.f32 %v2567, %v2599
  %v2601 = vpop.f32.mrf.mxu0
  %2602 = vdwg.mxu0
  %2603 = vmatpush.bf16.msra.mxu0 %v2316
  %2604 = vmatpush.bf16.msra.mxu0 %v2315
  %2605 = vmatpush.bf16.msra.mxu0 %v2314
  %2606 = vmatpush.bf16.msra.mxu0 %v2313
  %2607 = vmatpush.bf16.msra.mxu0 %v2312
  %2608 = vmatpush.bf16.msra.mxu0 %v2311
  %2609 = vmatpush.bf16.msra.mxu0 %v2310
  %2610 = vmatpush.bf16.msra.mxu0 %v2309
  %2611 = vmatmul.bf16.gmra.mxu0 %v1795
  %v2612 = vpop.f32.mrf.mxu0
  %v2613 = vadd.f32 %v2580, %v2612
  %v2614 = vpop.f32.mrf.mxu0
  %v2615 = vadd.f32 %v2582, %v2614
  %2616 = vmatmul.bf16.gmra.mxu0 %v1804
  %v2617 = vpop.f32.mrf.mxu0
  %v2618 = vadd.f32 %v2585, %v2617
  %v2619 = vpop.f32.mrf.mxu0
  %v2620 = vadd.f32 %v2587, %v2619
  %2621 = vmatmul.bf16.gmra.mxu0 %v1809
  %v2622 = vpop.f32.mrf.mxu0
  %v2623 = vadd.f32 %v2590, %v2622
  %v2624 = vpop.f32.mrf.mxu0
  %v2625 = vadd.f32 %v2592, %v2624
  %2626 = vmatmul.bf16.gmra.mxu0 %v1813
  %v2627 = vpop.f32.mrf.mxu0
  %v2628 = vadd.f32 %v2595, %v2627
  %v2629 = vpop.f32.mrf.mxu0
  %v2630 = vadd.f32 %v2597, %v2629
  %2631 = vmatmul.bf16.gmra.mxu0 %v1822
  %v2632 = vpop.f32.mrf.mxu0
  %v2633 = vadd.f32 %v2600, %v2632
  %v2634 = vpop.f32.mrf.mxu0
  %2635 = vdwg.mxu0
  %2636 = vmatpush.bf16.msra.mxu0 %v2324
  %2637 = vmatpush.bf16.msra.mxu0 %v2323
  %2638 = vmatpush.bf16.msra.mxu0 %v2322
  %2639 = vmatpush.bf16.msra.mxu0 %v2321
  %2640 = vmatpush.bf16.msra.mxu0 %v2320
  %2641 = vmatpush.bf16.msra.mxu0 %v2319
  %2642 = vmatpush.bf16.msra.mxu0 %v2318
  %2643 = vmatpush.bf16.msra.mxu0 %v2317
  %2644 = vmatmul.bf16.gmra.mxu0 %v1796
  %v2645 = vpop.f32.mrf.mxu0
  %v2646 = vadd.f32 %v2613, %v2645
  %v2647 = vpop.f32.mrf.mxu0
  %v2648 = vadd.f32 %v2615, %v2647
  %2649 = vmatmul.bf16.gmra.mxu0 %v1805
  %v2650 = vpop.f32.mrf.mxu0
  %v2651 = vadd.f32 %v2618, %v2650
  %v2652 = vpop.f32.mrf.mxu0
  %v2653 = vadd.f32 %v2620, %v2652
  %2654 = vmatmul.bf16.gmra.mxu0 %v1810
  %v2655 = vpop.f32.mrf.mxu0
  %v2656 = vadd.f32 %v2623, %v2655
  %v2657 = vpop.f32.mrf.mxu0
  %v2658 = vadd.f32 %v2625, %v2657
  %2659 = vmatmul.bf16.gmra.mxu0 %v1814
  %v2660 = vpop.f32.mrf.mxu0
  %v2661 = vadd.f32 %v2628, %v2660
  %v2662 = vpop.f32.mrf.mxu0
  %v2663 = vadd.f32 %v2630, %v2662
  %2664 = vmatmul.bf16.gmra.mxu0 %v1823
  %v2665 = vpop.f32.mrf.mxu0
  %v2666 = vadd.f32 %v2633, %v2665
  %v2667 = vpop.f32.mrf.mxu0
  %2668 = vdwg.mxu0
  %2669 = vmatpush.bf16.msra.mxu0 %v2332
  %2670 = vmatpush.bf16.msra.mxu0 %v2331
  %2671 = vmatpush.bf16.msra.mxu0 %v2330
  %2672 = vmatpush.bf16.msra.mxu0 %v2329
  %2673 = vmatpush.bf16.msra.mxu0 %v2328
  %2674 = vmatpush.bf16.msra.mxu0 %v2327
  %2675 = vmatpush.bf16.msra.mxu0 %v2326
  %2676 = vmatpush.bf16.msra.mxu0 %v2325
  %2677 = vmatmul.bf16.gmra.mxu0 %v1797
  %v2678 = vpop.f32.mrf.mxu0
  %v2679 = vadd.f32 %v2646, %v2678
  %v2680 = vpop.f32.mrf.mxu0
  %v2681 = vadd.f32 %v2648, %v2680
  %2682 = vmatmul.bf16.gmra.mxu0 %v1806
  %v2683 = vpop.f32.mrf.mxu0
  %v2684 = vadd.f32 %v2651, %v2683
  %v2685 = vpop.f32.mrf.mxu0
  %v2686 = vadd.f32 %v2653, %v2685
  %2687 = vmatmul.bf16.gmra.mxu0 %v1811
  %v2688 = vpop.f32.mrf.mxu0
  %v2689 = vadd.f32 %v2656, %v2688
  %v2690 = vpop.f32.mrf.mxu0
  %v2691 = vadd.f32 %v2658, %v2690
  %2692 = vmatmul.bf16.gmra.mxu0 %v1815
  %v2693 = vpop.f32.mrf.mxu0
  %v2694 = vadd.f32 %v2661, %v2693
  %v2695 = vpop.f32.mrf.mxu0
  %v2696 = vadd.f32 %v2663, %v2695
  %2697 = vmatmul.bf16.gmra.mxu0 %v1824
  %v2698 = vpop.f32.mrf.mxu0
  %v2699 = vadd.f32 %v2666, %v2698
  %v2700 = vpop.f32.mrf.mxu0
  %2701 = vdwg.mxu0
  %v2702 = vmax.f32 %v2679, 0.0
  %v2703 = vmax.f32 %v2681, 0.0
  %v2704 = vmax.f32 %v2684, 0.0
  %v2705 = vmax.f32 %v2686, 0.0
  %v2706 = vmax.f32 %v2689, 0.0
  %v2707 = vmax.f32 %v2691, 0.0
  %v2708 = vmax.f32 %v2694, 0.0
  %v2709 = vmax.f32 %v2696, 0.0
  %v2710 = vmax.f32 %v2699, 0.0
  %v2711 = vpack.c.bf16 %v2702, %v2702
  %v2712 = vpack.c.bf16 %v2703, %v2703
  %v2713 = vpack.c.bf16 %v2704, %v2704
  %v2714 = vpack.c.bf16 %v2705, %v2705
  %v2715 = vpack.c.bf16 %v2706, %v2706
  %v2716 = vpack.c.bf16 %v2707, %v2707
  %v2717 = vpack.c.bf16 %v2708, %v2708
  %v2718 = vpack.c.bf16 %v2709, %v2709
  %v2719 = vpack.c.bf16 %v2710, %v2710
  %v2720 = vld [vmem:[%s5] sm:$0xf]
  %v2721 = vld [vmem:[%s5 + $0x4] sm:$0xf]
  %v2722 = vld [vmem:[%s5 + $0x8] sm:$0xf]
  %v2723 = vld [vmem:[%s5 + $0xc] sm:$0xf]
  %v2724 = vld [vmem:[%s5 + $0x10] sm:$0xf]
  %v2725 = vld [vmem:[%s5 + $0x14] sm:$0xf]
  %v2726 = vld [vmem:[%s5 + $0x18] sm:$0xf]
  %v2727 = vld [vmem:[%s5 + $0x1c] sm:$0xf]
  %v2728 = vld [vmem:[%s5 + $0x20] sm:$0xf]
  %v2729 = vld [vmem:[%s5 + $0x24] sm:$0xf]
  %v2730 = vld [vmem:[%s5 + $0x28] sm:$0xf]
  %v2731 = vld [vmem:[%s5 + $0x2c] sm:$0xf]
  %v2732 = vld [vmem:[%s5 + $0x30] sm:$0xf]
  %v2733 = vld [vmem:[%s5 + $0x34] sm:$0xf]
  %v2734 = vld [vmem:[%s5 + $0x38] sm:$0xf]
  %v2735 = vld [vmem:[%s5 + $0x3c] sm:$0xf]
  %v2736 = vld [vmem:[%s5 + $0x40] sm:$0xf]
  %v2737 = vld [vmem:[%s5 + $0x44] sm:$0xf]
  %v2738 = vld [vmem:[%s5 + $0x48] sm:$0xf]
  %v2739 = vld [vmem:[%s5 + $0x4c] sm:$0xf]
  %v2740 = vld [vmem:[%s5 + $0x50] sm:$0xf]
  %v2741 = vld [vmem:[%s5 + $0x54] sm:$0xf]
  %v2742 = vld [vmem:[%s5 + $0x58] sm:$0xf]
  %v2743 = vld [vmem:[%s5 + $0x5c] sm:$0xf]
  %v2744 = vld [vmem:[%s5 + $0x60] sm:$0xf]
  %v2745 = vld [vmem:[%s5 + $0x64] sm:$0xf]
  %v2746 = vld [vmem:[%s5 + $0x68] sm:$0xf]
  %v2747 = vld [vmem:[%s5 + $0x6c] sm:$0xf]
  %v2748 = vld [vmem:[%s5 + $0x70] sm:$0xf]
  %v2749 = vld [vmem:[%s5 + $0x74] sm:$0xf]
  %v2750 = vld [vmem:[%s5 + $0x78] sm:$0xf]
  %v2751 = vld [vmem:[%s5 + $0x7c] sm:$0xf]
  %v2752 = vld [vmem:[%s5 + $0x80] sm:$0xf]
  %v2753 = vld [vmem:[%s5 + $0x84] sm:$0xf]
  %v2754 = vld [vmem:[%s5 + $0x88] sm:$0xf]
  %v2755 = vld [vmem:[%s5 + $0x8c] sm:$0xf]
  %v2756 = vld [vmem:[%s5 + $0x90] sm:$0xf]
  %v2757 = vld [vmem:[%s5 + $0x94] sm:$0xf]
  %v2758 = vld [vmem:[%s5 + $0x98] sm:$0xf]
  %v2759 = vld [vmem:[%s5 + $0x9c] sm:$0xf]
  %v2760 = vld [vmem:[%s5 + $0xa0] sm:$0xf]
  %v2761 = vld [vmem:[%s5 + $0xa4] sm:$0xf]
  %v2762 = vld [vmem:[%s5 + $0xa8] sm:$0xf]
  %v2763 = vld [vmem:[%s5 + $0xac] sm:$0xf]
  %v2764 = vld [vmem:[%s5 + $0xb0] sm:$0xf]
  %v2765 = vld [vmem:[%s5 + $0xb4] sm:$0xf]
  %v2766 = vld [vmem:[%s5 + $0xb8] sm:$0xf]
  %v2767 = vld [vmem:[%s5 + $0xbc] sm:$0xf]
  %v2768 = vld [vmem:[%s5 + $0xc0] sm:$0xf]
  %v2769 = vld [vmem:[%s5 + $0xc4] sm:$0xf]
  %v2770 = vld [vmem:[%s5 + $0xc8] sm:$0xf]
  %v2771 = vld [vmem:[%s5 + $0xcc] sm:$0xf]
  %v2772 = vld [vmem:[%s5 + $0xd0] sm:$0xf]
  %v2773 = vld [vmem:[%s5 + $0xd4] sm:$0xf]
  %v2774 = vld [vmem:[%s5 + $0xd8] sm:$0xf]
  %v2775 = vld [vmem:[%s5 + $0xdc] sm:$0xf]
  %v2776 = vld [vmem:[%s5 + $0xe0] sm:$0xf]
  %v2777 = vld [vmem:[%s5 + $0xe4] sm:$0xf]
  %v2778 = vld [vmem:[%s5 + $0xe8] sm:$0xf]
  %v2779 = vld [vmem:[%s5 + $0xec] sm:$0xf]
  %v2780 = vld [vmem:[%s5 + $0xf0] sm:$0xf]
  %v2781 = vld [vmem:[%s5 + $0xf4] sm:$0xf]
  %v2782 = vld [vmem:[%s5 + $0xf8] sm:$0xf]
  %v2783 = vld [vmem:[%s5 + $0xfc] sm:$0xf]
  %v2784 = vld [vmem:[%s5 + $0x100] sm:$0xf]
  %v2785 = vld [vmem:[%s5 + $0x104] sm:$0xf]
  %v2786 = vld [vmem:[%s5 + $0x108] sm:$0xf]
  %v2787 = vld [vmem:[%s5 + $0x10c] sm:$0xf]
  %v2788 = vld [vmem:[%s5 + $0x110] sm:$0xf]
  %v2789 = vld [vmem:[%s5 + $0x114] sm:$0xf]
  %v2790 = vld [vmem:[%s5 + $0x118] sm:$0xf]
  %v2791 = vld [vmem:[%s5 + $0x11c] sm:$0xf]
  %v2792 = vld [vmem:[%s5 + $0x120] sm:$0xf]
  %v2793 = vld [vmem:[%s5 + $0x124] sm:$0xf]
  %v2794 = vld [vmem:[%s5 + $0x128] sm:$0xf]
  %v2795 = vld [vmem:[%s5 + $0x12c] sm:$0xf]
  %v2796 = vld [vmem:[%s5 + $0x130] sm:$0xf]
  %v2797 = vld [vmem:[%s5 + $0x134] sm:$0xf]
  %v2798 = vld [vmem:[%s5 + $0x138] sm:$0xf]
  %v2799 = vld [vmem:[%s5 + $0x13c] sm:$0xf]
  %v2800 = vld [vmem:[%s5 + $0x140] sm:$0xf]
  %v2801 = vld [vmem:[%s5 + $0x144] sm:$0xf]
  %v2802 = vld [vmem:[%s5 + $0x148] sm:$0xf]
  %v2803 = vld [vmem:[%s5 + $0x14c] sm:$0xf]
  %v2804 = vld [vmem:[%s5 + $0x150] sm:$0xf]
  %v2805 = vld [vmem:[%s5 + $0x154] sm:$0xf]
  %v2806 = vld [vmem:[%s5 + $0x158] sm:$0xf]
  %v2807 = vld [vmem:[%s5 + $0x15c] sm:$0xf]
  %v2808 = vld [vmem:[%s5 + $0x160] sm:$0xf]
  %v2809 = vld [vmem:[%s5 + $0x164] sm:$0xf]
  %v2810 = vld [vmem:[%s5 + $0x168] sm:$0xf]
  %v2811 = vld [vmem:[%s5 + $0x16c] sm:$0xf]
  %v2812 = vld [vmem:[%s5 + $0x170] sm:$0xf]
  %v2813 = vld [vmem:[%s5 + $0x174] sm:$0xf]
  %v2814 = vld [vmem:[%s5 + $0x178] sm:$0xf]
  %v2815 = vld [vmem:[%s5 + $0x17c] sm:$0xf]
  %v2816 = vld [vmem:[%s5 + $0x180] sm:$0xf]
  %v2817 = vld [vmem:[%s5 + $0x184] sm:$0xf]
  %v2818 = vld [vmem:[%s5 + $0x188] sm:$0xf]
  %v2819 = vld [vmem:[%s5 + $0x18c] sm:$0xf]
  %v2820 = vld [vmem:[%s5 + $0x190] sm:$0xf]
  %v2821 = vld [vmem:[%s5 + $0x194] sm:$0xf]
  %v2822 = vld [vmem:[%s5 + $0x198] sm:$0xf]
  %v2823 = vld [vmem:[%s5 + $0x19c] sm:$0xf]
  %v2824 = vld [vmem:[%s5 + $0x1a0] sm:$0xf]
  %v2825 = vld [vmem:[%s5 + $0x1a4] sm:$0xf]
  %v2826 = vld [vmem:[%s5 + $0x1a8] sm:$0xf]
  %v2827 = vld [vmem:[%s5 + $0x1ac] sm:$0xf]
  %v2828 = vld [vmem:[%s5 + $0x1b0] sm:$0xf]
  %v2829 = vld [vmem:[%s5 + $0x1b4] sm:$0xf]
  %v2830 = vld [vmem:[%s5 + $0x1b8] sm:$0xf]
  %v2831 = vld [vmem:[%s5 + $0x1bc] sm:$0xf]
  %v2832 = vld [vmem:[%s5 + $0x1c0] sm:$0xf]
  %v2833 = vld [vmem:[%s5 + $0x1c4] sm:$0xf]
  %v2834 = vld [vmem:[%s5 + $0x1c8] sm:$0xf]
  %v2835 = vld [vmem:[%s5 + $0x1cc] sm:$0xf]
  %v2836 = vld [vmem:[%s5 + $0x1d0] sm:$0xf]
  %v2837 = vld [vmem:[%s5 + $0x1d4] sm:$0xf]
  %v2838 = vld [vmem:[%s5 + $0x1d8] sm:$0xf]
  %v2839 = vld [vmem:[%s5 + $0x1dc] sm:$0xf]
  %v2840 = vld [vmem:[%s5 + $0x1e0] sm:$0xf]
  %v2841 = vld [vmem:[%s5 + $0x1e4] sm:$0xf]
  %v2842 = vld [vmem:[%s5 + $0x1e8] sm:$0xf]
  %v2843 = vld [vmem:[%s5 + $0x1ec] sm:$0xf]
  %v2844 = vld [vmem:[%s5 + $0x1f0] sm:$0xf]
  %v2845 = vld [vmem:[%s5 + $0x1f4] sm:$0xf]
  %v2846 = vld [vmem:[%s5 + $0x1f8] sm:$0xf]
  %v2847 = vld [vmem:[%s5 + $0x1fc] sm:$0xf]
  %v2848 = vld [vmem:[%s5 + $0x200] sm:$0xf]
  %v2849 = vld [vmem:[%s5 + $0x204] sm:$0xf]
  %v2850 = vld [vmem:[%s5 + $0x208] sm:$0xf]
  %v2851 = vld [vmem:[%s5 + $0x20c] sm:$0xf]
  %v2852 = vld [vmem:[%s5 + $0x210] sm:$0xf]
  %v2853 = vld [vmem:[%s5 + $0x214] sm:$0xf]
  %v2854 = vld [vmem:[%s5 + $0x218] sm:$0xf]
  %v2855 = vld [vmem:[%s5 + $0x21c] sm:$0xf]
  %v2856 = vld [vmem:[%s5 + $0x220] sm:$0xf]
  %v2857 = vld [vmem:[%s5 + $0x224] sm:$0xf]
  %v2858 = vld [vmem:[%s5 + $0x228] sm:$0xf]
  %v2859 = vld [vmem:[%s5 + $0x22c] sm:$0xf]
  %v2860 = vld [vmem:[%s5 + $0x230] sm:$0xf]
  %v2861 = vld [vmem:[%s5 + $0x234] sm:$0xf]
  %v2862 = vld [vmem:[%s5 + $0x238] sm:$0xf]
  %v2863 = vld [vmem:[%s5 + $0x23c] sm:$0xf]
  %v2864 = vld [vmem:[%s6] sm:$0x1]
  %v2866 = vperm.slane %v2864, 0
  %v3012 = vunpack.c.l.b16 %v2720
  %v3013 = vunpack.c.l.b16 %v2721
  %v3014 = vunpack.c.l.b16 %v2722
  %v3015 = vunpack.c.l.b16 %v2723
  %v3016 = vunpack.c.l.b16 %v2724
  %v3017 = vunpack.c.l.b16 %v2725
  %v3018 = vunpack.c.l.b16 %v2726
  %v3019 = vunpack.c.l.b16 %v2727
  %v3020 = vunpack.c.l.b16 %v2728
  %v3021 = vunpack.c.l.b16 %v2729
  %v3022 = vunpack.c.l.b16 %v2730
  %v3023 = vunpack.c.l.b16 %v2731
  %v3024 = vunpack.c.l.b16 %v2732
  %v3025 = vunpack.c.l.b16 %v2733
  %v3026 = vunpack.c.l.b16 %v2734
  %v3027 = vunpack.c.l.b16 %v2735
  %v3028 = vunpack.c.l.b16 %v2736
  %v3029 = vunpack.c.l.b16 %v2737
  %v3030 = vunpack.c.l.b16 %v2738
  %v3031 = vunpack.c.l.b16 %v2739
  %v3032 = vunpack.c.l.b16 %v2740
  %v3033 = vunpack.c.l.b16 %v2741
  %v3034 = vunpack.c.l.b16 %v2742
  %v3035 = vunpack.c.l.b16 %v2743
  %v3036 = vunpack.c.l.b16 %v2744
  %v3037 = vunpack.c.l.b16 %v2745
  %v3038 = vunpack.c.l.b16 %v2746
  %v3039 = vunpack.c.l.b16 %v2747
  %v3040 = vunpack.c.l.b16 %v2748
  %v3041 = vunpack.c.l.b16 %v2749
  %v3042 = vunpack.c.l.b16 %v2750
  %v3043 = vunpack.c.l.b16 %v2751
  %v3044 = vunpack.c.l.b16 %v2752
  %v3045 = vunpack.c.l.b16 %v2753
  %v3046 = vunpack.c.l.b16 %v2754
  %v3047 = vunpack.c.l.b16 %v2755
  %v3048 = vunpack.c.l.b16 %v2756
  %v3049 = vunpack.c.l.b16 %v2757
  %v3050 = vunpack.c.l.b16 %v2758
  %v3051 = vunpack.c.l.b16 %v2759
  %v3052 = vunpack.c.l.b16 %v2760
  %v3053 = vunpack.c.l.b16 %v2761
  %v3054 = vunpack.c.l.b16 %v2762
  %v3055 = vunpack.c.l.b16 %v2763
  %v3056 = vunpack.c.l.b16 %v2764
  %v3057 = vunpack.c.l.b16 %v2765
  %v3058 = vunpack.c.l.b16 %v2766
  %v3059 = vunpack.c.l.b16 %v2767
  %v3060 = vunpack.c.l.b16 %v2768
  %v3061 = vunpack.c.l.b16 %v2769
  %v3062 = vunpack.c.l.b16 %v2770
  %v3063 = vunpack.c.l.b16 %v2771
  %v3064 = vunpack.c.l.b16 %v2772
  %v3065 = vunpack.c.l.b16 %v2773
  %v3066 = vunpack.c.l.b16 %v2774
  %v3067 = vunpack.c.l.b16 %v2775
  %v3068 = vunpack.c.l.b16 %v2776
  %v3069 = vunpack.c.l.b16 %v2777
  %v3070 = vunpack.c.l.b16 %v2778
  %v3071 = vunpack.c.l.b16 %v2779
  %v3072 = vunpack.c.l.b16 %v2780
  %v3073 = vunpack.c.l.b16 %v2781
  %v3074 = vunpack.c.l.b16 %v2782
  %v3075 = vunpack.c.l.b16 %v2783
  %v3076 = vunpack.c.l.b16 %v2784
  %v3077 = vunpack.c.l.b16 %v2785
  %v3078 = vunpack.c.l.b16 %v2786
  %v3079 = vunpack.c.l.b16 %v2787
  %v3080 = vunpack.c.l.b16 %v2788
  %v3081 = vunpack.c.l.b16 %v2789
  %v3082 = vunpack.c.l.b16 %v2790
  %v3083 = vunpack.c.l.b16 %v2791
  %v3084 = vunpack.c.l.b16 %v2792
  %v3085 = vunpack.c.l.b16 %v2793
  %v3086 = vunpack.c.l.b16 %v2794
  %v3087 = vunpack.c.l.b16 %v2795
  %v3088 = vunpack.c.l.b16 %v2796
  %v3089 = vunpack.c.l.b16 %v2797
  %v3090 = vunpack.c.l.b16 %v2798
  %v3091 = vunpack.c.l.b16 %v2799
  %v3092 = vunpack.c.l.b16 %v2800
  %v3093 = vunpack.c.l.b16 %v2801
  %v3094 = vunpack.c.l.b16 %v2802
  %v3095 = vunpack.c.l.b16 %v2803
  %v3096 = vunpack.c.l.b16 %v2804
  %v3097 = vunpack.c.l.b16 %v2805
  %v3098 = vunpack.c.l.b16 %v2806
  %v3099 = vunpack.c.l.b16 %v2807
  %v3100 = vunpack.c.l.b16 %v2808
  %v3101 = vunpack.c.l.b16 %v2809
  %v3102 = vunpack.c.l.b16 %v2810
  %v3103 = vunpack.c.l.b16 %v2811
  %v3104 = vunpack.c.l.b16 %v2812
  %v3105 = vunpack.c.l.b16 %v2813
  %v3106 = vunpack.c.l.b16 %v2814
  %v3107 = vunpack.c.l.b16 %v2815
  %v3108 = vunpack.c.l.b16 %v2816
  %v3109 = vunpack.c.l.b16 %v2817
  %v3110 = vunpack.c.l.b16 %v2818
  %v3111 = vunpack.c.l.b16 %v2819
  %v3112 = vunpack.c.l.b16 %v2820
  %v3113 = vunpack.c.l.b16 %v2821
  %v3114 = vunpack.c.l.b16 %v2822
  %v3115 = vunpack.c.l.b16 %v2823
  %v3116 = vunpack.c.l.b16 %v2824
  %v3117 = vunpack.c.l.b16 %v2825
  %v3118 = vunpack.c.l.b16 %v2826
  %v3119 = vunpack.c.l.b16 %v2827
  %v3120 = vunpack.c.l.b16 %v2828
  %v3121 = vunpack.c.l.b16 %v2829
  %v3122 = vunpack.c.l.b16 %v2830
  %v3123 = vunpack.c.l.b16 %v2831
  %v3124 = vunpack.c.l.b16 %v2832
  %v3125 = vunpack.c.l.b16 %v2833
  %v3126 = vunpack.c.l.b16 %v2834
  %v3127 = vunpack.c.l.b16 %v2835
  %v3128 = vunpack.c.l.b16 %v2836
  %v3129 = vunpack.c.l.b16 %v2837
  %v3130 = vunpack.c.l.b16 %v2838
  %v3131 = vunpack.c.l.b16 %v2839
  %v3132 = vunpack.c.l.b16 %v2840
  %v3133 = vunpack.c.l.b16 %v2841
  %v3134 = vunpack.c.l.b16 %v2842
  %v3135 = vunpack.c.l.b16 %v2843
  %v3136 = vunpack.c.l.b16 %v2844
  %v3137 = vunpack.c.l.b16 %v2845
  %v3138 = vunpack.c.l.b16 %v2846
  %v3139 = vunpack.c.l.b16 %v2847
  %v3140 = vunpack.c.l.b16 %v2848
  %v3141 = vunpack.c.l.b16 %v2849
  %v3142 = vunpack.c.l.b16 %v2850
  %v3143 = vunpack.c.l.b16 %v2851
  %v3144 = vunpack.c.l.b16 %v2852
  %v3145 = vunpack.c.l.b16 %v2853
  %v3146 = vunpack.c.l.b16 %v2854
  %v3147 = vunpack.c.l.b16 %v2855
  %v3148 = vunpack.c.l.b16 %v2856
  %v3149 = vunpack.c.l.b16 %v2857
  %v3150 = vunpack.c.l.b16 %v2858
  %v3151 = vunpack.c.l.b16 %v2859
  %v3152 = vunpack.c.l.b16 %v2860
  %v3153 = vunpack.c.l.b16 %v2861
  %v3154 = vunpack.c.l.b16 %v2862
  %v3155 = vunpack.c.l.b16 %v2863
  %v3156 = vpack.c.b16 %v3013, %v3012
  %v3157 = vpack.c.b16 %v3015, %v3014
  %v3158 = vpack.c.b16 %v3017, %v3016
  %v3159 = vpack.c.b16 %v3019, %v3018
  %v3160 = vpack.c.b16 %v3021, %v3020
  %v3161 = vpack.c.b16 %v3023, %v3022
  %v3162 = vpack.c.b16 %v3025, %v3024
  %v3163 = vpack.c.b16 %v3027, %v3026
  %v3164 = vpack.c.b16 %v3029, %v3028
  %v3165 = vpack.c.b16 %v3031, %v3030
  %v3166 = vpack.c.b16 %v3033, %v3032
  %v3167 = vpack.c.b16 %v3035, %v3034
  %v3168 = vpack.c.b16 %v3037, %v3036
  %v3169 = vpack.c.b16 %v3039, %v3038
  %v3170 = vpack.c.b16 %v3041, %v3040
  %v3171 = vpack.c.b16 %v3043, %v3042
  %v3172 = vpack.c.b16 %v3045, %v3044
  %v3173 = vpack.c.b16 %v3047, %v3046
  %v3174 = vpack.c.b16 %v3049, %v3048
  %v3175 = vpack.c.b16 %v3051, %v3050
  %v3176 = vpack.c.b16 %v3053, %v3052
  %v3177 = vpack.c.b16 %v3055, %v3054
  %v3178 = vpack.c.b16 %v3057, %v3056
  %v3179 = vpack.c.b16 %v3059, %v3058
  %v3180 = vpack.c.b16 %v3061, %v3060
  %v3181 = vpack.c.b16 %v3063, %v3062
  %v3182 = vpack.c.b16 %v3065, %v3064
  %v3183 = vpack.c.b16 %v3067, %v3066
  %v3184 = vpack.c.b16 %v3069, %v3068
  %v3185 = vpack.c.b16 %v3071, %v3070
  %v3186 = vpack.c.b16 %v3073, %v3072
  %v3187 = vpack.c.b16 %v3075, %v3074
  %v3188 = vpack.c.b16 %v3077, %v3076
  %v3189 = vpack.c.b16 %v3079, %v3078
  %v3190 = vpack.c.b16 %v3081, %v3080
  %v3191 = vpack.c.b16 %v3083, %v3082
  %v3192 = vpack.c.b16 %v3085, %v3084
  %v3193 = vpack.c.b16 %v3087, %v3086
  %v3194 = vpack.c.b16 %v3089, %v3088
  %v3195 = vpack.c.b16 %v3091, %v3090
  %v3196 = vpack.c.b16 %v3093, %v3092
  %v3197 = vpack.c.b16 %v3095, %v3094
  %v3198 = vpack.c.b16 %v3097, %v3096
  %v3199 = vpack.c.b16 %v3099, %v3098
  %v3200 = vpack.c.b16 %v3101, %v3100
  %v3201 = vpack.c.b16 %v3103, %v3102
  %v3202 = vpack.c.b16 %v3105, %v3104
  %v3203 = vpack.c.b16 %v3107, %v3106
  %v3204 = vpack.c.b16 %v3109, %v3108
  %v3205 = vpack.c.b16 %v3111, %v3110
  %v3206 = vpack.c.b16 %v3113, %v3112
  %v3207 = vpack.c.b16 %v3115, %v3114
  %v3208 = vpack.c.b16 %v3117, %v3116
  %v3209 = vpack.c.b16 %v3119, %v3118
  %v3210 = vpack.c.b16 %v3121, %v3120
  %v3211 = vpack.c.b16 %v3123, %v3122
  %v3212 = vpack.c.b16 %v3125, %v3124
  %v3213 = vpack.c.b16 %v3127, %v3126
  %v3214 = vpack.c.b16 %v3129, %v3128
  %v3215 = vpack.c.b16 %v3131, %v3130
  %v3216 = vpack.c.b16 %v3133, %v3132
  %v3217 = vpack.c.b16 %v3135, %v3134
  %v3218 = vpack.c.b16 %v3137, %v3136
  %v3219 = vpack.c.b16 %v3139, %v3138
  %v3220 = vpack.c.b16 %v3141, %v3140
  %v3221 = vpack.c.b16 %v3143, %v3142
  %v3222 = vpack.c.b16 %v3145, %v3144
  %v3223 = vpack.c.b16 %v3147, %v3146
  %v3224 = vpack.c.b16 %v3149, %v3148
  %v3225 = vpack.c.b16 %v3151, %v3150
  %v3226 = vpack.c.b16 %v3153, %v3152
  %v3227 = vpack.c.b16 %v3155, %v3154
  %3300 = vmatpush.bf16.msra.mxu0 %v3163
  %3301 = vmatpush.bf16.msra.mxu0 %v3162
  %3302 = vmatpush.bf16.msra.mxu0 %v3161
  %3303 = vmatpush.bf16.msra.mxu0 %v3160
  %3304 = vmatpush.bf16.msra.mxu0 %v3159
  %3305 = vmatpush.bf16.msra.mxu0 %v3158
  %3306 = vmatpush.bf16.msra.mxu0 %v3157
  %3307 = vmatpush.bf16.msra.mxu0 %v3156
  %3308 = vmatmul.bf16.gmra.mxu0 %v2711
  %v3309 = vpop.f32.mrf.mxu0
  %v3310 = vadd.f32 %v2866, %v3309
  %v3311 = vpop.f32.mrf.mxu0
  %3312 = vdwg.mxu0
  %3313 = vmatpush.bf16.msra.mxu0 %v3171
  %3314 = vmatpush.bf16.msra.mxu0 %v3170
  %3315 = vmatpush.bf16.msra.mxu0 %v3169
  %3316 = vmatpush.bf16.msra.mxu0 %v3168
  %3317 = vmatpush.bf16.msra.mxu0 %v3167
  %3318 = vmatpush.bf16.msra.mxu0 %v3166
  %3319 = vmatpush.bf16.msra.mxu0 %v3165
  %3320 = vmatpush.bf16.msra.mxu0 %v3164
  %3321 = vmatmul.bf16.gmra.mxu0 %v2712
  %v3322 = vpop.f32.mrf.mxu0
  %v3323 = vadd.f32 %v3310, %v3322
  %v3324 = vpop.f32.mrf.mxu0
  %3325 = vdwg.mxu0
  %3326 = vmatpush.bf16.msra.mxu0 %v3179
  %3327 = vmatpush.bf16.msra.mxu0 %v3178
  %3328 = vmatpush.bf16.msra.mxu0 %v3177
  %3329 = vmatpush.bf16.msra.mxu0 %v3176
  %3330 = vmatpush.bf16.msra.mxu0 %v3175
  %3331 = vmatpush.bf16.msra.mxu0 %v3174
  %3332 = vmatpush.bf16.msra.mxu0 %v3173
  %3333 = vmatpush.bf16.msra.mxu0 %v3172
  %3334 = vmatmul.bf16.gmra.mxu0 %v2713
  %v3335 = vpop.f32.mrf.mxu0
  %v3336 = vadd.f32 %v3323, %v3335
  %v3337 = vpop.f32.mrf.mxu0
  %3338 = vdwg.mxu0
  %3339 = vmatpush.bf16.msra.mxu0 %v3187
  %3340 = vmatpush.bf16.msra.mxu0 %v3186
  %3341 = vmatpush.bf16.msra.mxu0 %v3185
  %3342 = vmatpush.bf16.msra.mxu0 %v3184
  %3343 = vmatpush.bf16.msra.mxu0 %v3183
  %3344 = vmatpush.bf16.msra.mxu0 %v3182
  %3345 = vmatpush.bf16.msra.mxu0 %v3181
  %3346 = vmatpush.bf16.msra.mxu0 %v3180
  %3347 = vmatmul.bf16.gmra.mxu0 %v2714
  %v3348 = vpop.f32.mrf.mxu0
  %v3349 = vadd.f32 %v3336, %v3348
  %v3350 = vpop.f32.mrf.mxu0
  %3351 = vdwg.mxu0
  %3352 = vmatpush.bf16.msra.mxu0 %v3195
  %3353 = vmatpush.bf16.msra.mxu0 %v3194
  %3354 = vmatpush.bf16.msra.mxu0 %v3193
  %3355 = vmatpush.bf16.msra.mxu0 %v3192
  %3356 = vmatpush.bf16.msra.mxu0 %v3191
  %3357 = vmatpush.bf16.msra.mxu0 %v3190
  %3358 = vmatpush.bf16.msra.mxu0 %v3189
  %3359 = vmatpush.bf16.msra.mxu0 %v3188
  %3360 = vmatmul.bf16.gmra.mxu0 %v2715
  %v3361 = vpop.f32.mrf.mxu0
  %v3362 = vadd.f32 %v3349, %v3361
  %v3363 = vpop.f32.mrf.mxu0
  %3364 = vdwg.mxu0
  %3365 = vmatpush.bf16.msra.mxu0 %v3203
  %3366 = vmatpush.bf16.msra.mxu0 %v3202
  %3367 = vmatpush.bf16.msra.mxu0 %v3201
  %3368 = vmatpush.bf16.msra.mxu0 %v3200
  %3369 = vmatpush.bf16.msra.mxu0 %v3199
  %3370 = vmatpush.bf16.msra.mxu0 %v3198
  %3371 = vmatpush.bf16.msra.mxu0 %v3197
  %3372 = vmatpush.bf16.msra.mxu0 %v3196
  %3373 = vmatmul.bf16.gmra.mxu0 %v2716
  %v3374 = vpop.f32.mrf.mxu0
  %v3375 = vadd.f32 %v3362, %v3374
  %v3376 = vpop.f32.mrf.mxu0
  %3377 = vdwg.mxu0
  %3378 = vmatpush.bf16.msra.mxu0 %v3211
  %3379 = vmatpush.bf16.msra.mxu0 %v3210
  %3380 = vmatpush.bf16.msra.mxu0 %v3209
  %3381 = vmatpush.bf16.msra.mxu0 %v3208
  %3382 = vmatpush.bf16.msra.mxu0 %v3207
  %3383 = vmatpush.bf16.msra.mxu0 %v3206
  %3384 = vmatpush.bf16.msra.mxu0 %v3205
  %3385 = vmatpush.bf16.msra.mxu0 %v3204
  %3386 = vmatmul.bf16.gmra.mxu0 %v2717
  %v3387 = vpop.f32.mrf.mxu0
  %v3388 = vadd.f32 %v3375, %v3387
  %v3389 = vpop.f32.mrf.mxu0
  %3390 = vdwg.mxu0
  %3391 = vmatpush.bf16.msra.mxu0 %v3219
  %3392 = vmatpush.bf16.msra.mxu0 %v3218
  %3393 = vmatpush.bf16.msra.mxu0 %v3217
  %3394 = vmatpush.bf16.msra.mxu0 %v3216
  %3395 = vmatpush.bf16.msra.mxu0 %v3215
  %3396 = vmatpush.bf16.msra.mxu0 %v3214
  %3397 = vmatpush.bf16.msra.mxu0 %v3213
  %3398 = vmatpush.bf16.msra.mxu0 %v3212
  %3399 = vmatmul.bf16.gmra.mxu0 %v2718
  %v3400 = vpop.f32.mrf.mxu0
  %v3401 = vadd.f32 %v3388, %v3400
  %v3402 = vpop.f32.mrf.mxu0
  %3403 = vdwg.mxu0
  %3404 = vmatpush.bf16.msra.mxu0 %v3227
  %3405 = vmatpush.bf16.msra.mxu0 %v3226
  %3406 = vmatpush.bf16.msra.mxu0 %v3225
  %3407 = vmatpush.bf16.msra.mxu0 %v3224
  %3408 = vmatpush.bf16.msra.mxu0 %v3223
  %3409 = vmatpush.bf16.msra.mxu0 %v3222
  %3410 = vmatpush.bf16.msra.mxu0 %v3221
  %3411 = vmatpush.bf16.msra.mxu0 %v3220
  %3412 = vmatmul.bf16.gmra.mxu0 %v2719
  %v3413 = vpop.f32.mrf.mxu0
  %v3414 = vadd.f32 %v3401, %v3413
  %v3415 = vpop.f32.mrf.mxu0
  %3416 = vdwg.mxu0
  %v3417 = vmax.f32 %v3414, 0.0
  %v3418 = vpack.c.bf16 %v3417, %v3417
  %v3419 = vld [vmem:[%s7] sm:$0xff]
  %v3420 = vld [vmem:[%s7 + $0x8] sm:$0xff]
  %v3421 = vld [vmem:[%s7 + $0x10] sm:$0xff]
  %v3422 = vld [vmem:[%s7 + $0x18] sm:$0xff]
  %v3423 = vld [vmem:[%s7 + $0x20] sm:$0xff]
  %v3424 = vld [vmem:[%s7 + $0x28] sm:$0xff]
  %v3425 = vld [vmem:[%s7 + $0x30] sm:$0xff]
  %v3426 = vld [vmem:[%s7 + $0x38] sm:$0xff]
  %v3427 = vld [vmem:[%s7 + $0x40] sm:$0xff]
  %v3428 = vld [vmem:[%s7 + $0x48] sm:$0xff]
  %v3429 = vld [vmem:[%s7 + $0x50] sm:$0xff]
  %v3430 = vld [vmem:[%s7 + $0x58] sm:$0xff]
  %v3431 = vld [vmem:[%s7 + $0x60] sm:$0xff]
  %v3432 = vld [vmem:[%s7 + $0x68] sm:$0xff]
  %v3433 = vld [vmem:[%s7 + $0x70] sm:$0xff]
  %v3434 = vld [vmem:[%s7 + $0x78] sm:$0xff]
  %v3435 = vld [vmem:[%s7 + $0x80] sm:$0xff]
  %v3436 = vld [vmem:[%s7 + $0x88] sm:$0xff]
  %v3437 = vld [vmem:[%s7 + $0x90] sm:$0xff]
  %v3438 = vld [vmem:[%s7 + $0x98] sm:$0xff]
  %v3439 = vld [vmem:[%s7 + $0xa0] sm:$0xff]
  %v3440 = vld [vmem:[%s7 + $0xa8] sm:$0xff]
  %v3441 = vld [vmem:[%s7 + $0xb0] sm:$0xff]
  %v3442 = vld [vmem:[%s7 + $0xb8] sm:$0xff]
  %v3443 = vld [vmem:[%s7 + $0xc0] sm:$0xff]
  %v3444 = vld [vmem:[%s7 + $0xc8] sm:$0xff]
  %v3445 = vld [vmem:[%s7 + $0xd0] sm:$0xff]
  %v3446 = vld [vmem:[%s7 + $0xd8] sm:$0xff]
  %v3447 = vld [vmem:[%s7 + $0xe0] sm:$0xff]
  %v3448 = vld [vmem:[%s7 + $0xe8] sm:$0xff]
  %v3449 = vld [vmem:[%s7 + $0xf0] sm:$0xff]
  %v3450 = vld [vmem:[%s7 + $0xf8] sm:$0xff]
  %v3451 = vld [vmem:[%s7 + $0x100] sm:$0xff]
  %v3452 = vld [vmem:[%s7 + $0x108] sm:$0xff]
  %v3453 = vld [vmem:[%s7 + $0x110] sm:$0xff]
  %v3454 = vld [vmem:[%s7 + $0x118] sm:$0xff]
  %v3455 = vld [vmem:[%s7 + $0x120] sm:$0xff]
  %v3456 = vld [vmem:[%s7 + $0x128] sm:$0xff]
  %v3457 = vld [vmem:[%s7 + $0x130] sm:$0xff]
  %v3458 = vld [vmem:[%s7 + $0x138] sm:$0xff]
  %v3459 = vld [vmem:[%s7 + $0x140] sm:$0xff]
  %v3460 = vld [vmem:[%s7 + $0x148] sm:$0xff]
  %v3461 = vld [vmem:[%s7 + $0x150] sm:$0xff]
  %v3462 = vld [vmem:[%s7 + $0x158] sm:$0xff]
  %v3463 = vld [vmem:[%s7 + $0x160] sm:$0xff]
  %v3464 = vld [vmem:[%s7 + $0x168] sm:$0xff]
  %v3465 = vld [vmem:[%s7 + $0x170] sm:$0xff]
  %v3466 = vld [vmem:[%s7 + $0x178] sm:$0xff]
  %v3467 = vld [vmem:[%s7 + $0x180] sm:$0xff]
  %v3468 = vld [vmem:[%s7 + $0x188] sm:$0xff]
  %v3469 = vld [vmem:[%s7 + $0x190] sm:$0xff]
  %v3470 = vld [vmem:[%s7 + $0x198] sm:$0xff]
  %v3471 = vld [vmem:[%s7 + $0x1a0] sm:$0xff]
  %v3472 = vld [vmem:[%s7 + $0x1a8] sm:$0xff]
  %v3473 = vld [vmem:[%s7 + $0x1b0] sm:$0xff]
  %v3474 = vld [vmem:[%s7 + $0x1b8] sm:$0xff]
  %v3475 = vld [vmem:[%s7 + $0x1c0] sm:$0xff]
  %v3476 = vld [vmem:[%s7 + $0x1c8] sm:$0xff]
  %v3477 = vld [vmem:[%s7 + $0x1d0] sm:$0xff]
  %v3478 = vld [vmem:[%s7 + $0x1d8] sm:$0xff]
  %v3479 = vld [vmem:[%s7 + $0x1e0] sm:$0xff]
  %v3480 = vld [vmem:[%s7 + $0x1e8] sm:$0xff]
  %v3481 = vld [vmem:[%s7 + $0x1f0] sm:$0xff]
  %v3482 = vld [vmem:[%s7 + $0x1f8] sm:$0xff]
  %v3483 = vld [vmem:[%s7 + $0x200] sm:$0xff]
  %v3484 = vld [vmem:[%s7 + $0x208] sm:$0xff]
  %v3485 = vld [vmem:[%s7 + $0x210] sm:$0xff]
  %v3486 = vld [vmem:[%s7 + $0x218] sm:$0xff]
  %v3487 = vld [vmem:[%s7 + $0x220] sm:$0xff]
  %v3488 = vld [vmem:[%s7 + $0x228] sm:$0xff]
  %v3489 = vld [vmem:[%s7 + $0x230] sm:$0xff]
  %v3490 = vld [vmem:[%s7 + $0x238] sm:$0xff]
  %v3491 = vld [vmem:[%s7 + $0x240] sm:$0xff]
  %v3492 = vld [vmem:[%s7 + $0x248] sm:$0xff]
  %v3493 = vld [vmem:[%s7 + $0x250] sm:$0xff]
  %v3494 = vld [vmem:[%s7 + $0x258] sm:$0xff]
  %v3495 = vld [vmem:[%s7 + $0x260] sm:$0xff]
  %v3496 = vld [vmem:[%s7 + $0x268] sm:$0xff]
  %v3497 = vld [vmem:[%s7 + $0x270] sm:$0xff]
  %v3498 = vld [vmem:[%s7 + $0x278] sm:$0xff]
  %v3499 = vld [vmem:[%s8] sm:$0xff]
  %v3500 = vld [vmem:[%s8 + $0x8] sm:$0x3]
  %v3503 = vperm.slane %v3499, 0
  %v3504 = vperm.slane %v3499, 1
  %v3505 = vperm.slane %v3499, 2
  %v3506 = vperm.slane %v3499, 3
  %v3507 = vperm.slane %v3499, 4
  %v3508 = vperm.slane %v3499, 5
  %v3509 = vperm.slane %v3499, 6
  %v3510 = vperm.slane %v3499, 7
  %v3511 = vperm.slane %v3500, 0
  %v3512 = vperm.slane %v3500, 1
  %v3603 = vunpack.c.l.b16 %v3419
  %v3604 = vunpack.c.h.b16 %v3419
  %v3605 = vunpack.c.l.b16 %v3420
  %v3606 = vunpack.c.h.b16 %v3420
  %v3607 = vunpack.c.l.b16 %v3421
  %v3608 = vunpack.c.h.b16 %v3421
  %v3609 = vunpack.c.l.b16 %v3422
  %v3610 = vunpack.c.h.b16 %v3422
  %v3611 = vunpack.c.l.b16 %v3423
  %v3612 = vunpack.c.h.b16 %v3423
  %v3613 = vunpack.c.l.b16 %v3424
  %v3614 = vunpack.c.h.b16 %v3424
  %v3615 = vunpack.c.l.b16 %v3425
  %v3616 = vunpack.c.h.b16 %v3425
  %v3617 = vunpack.c.l.b16 %v3426
  %v3618 = vunpack.c.h.b16 %v3426
  %v3619 = vunpack.c.l.b16 %v3427
  %v3620 = vunpack.c.h.b16 %v3427
  %v3621 = vunpack.c.l.b16 %v3428
  %v3622 = vunpack.c.h.b16 %v3428
  %v3623 = vunpack.c.l.b16 %v3429
  %v3624 = vunpack.c.h.b16 %v3429
  %v3625 = vunpack.c.l.b16 %v3430
  %v3626 = vunpack.c.h.b16 %v3430
  %v3627 = vunpack.c.l.b16 %v3431
  %v3628 = vunpack.c.h.b16 %v3431
  %v3629 = vunpack.c.l.b16 %v3432
  %v3630 = vunpack.c.h.b16 %v3432
  %v3631 = vunpack.c.l.b16 %v3433
  %v3632 = vunpack.c.h.b16 %v3433
  %v3633 = vunpack.c.l.b16 %v3434
  %v3634 = vunpack.c.h.b16 %v3434
  %v3635 = vunpack.c.l.b16 %v3435
  %v3636 = vunpack.c.h.b16 %v3435
  %v3637 = vunpack.c.l.b16 %v3436
  %v3638 = vunpack.c.h.b16 %v3436
  %v3639 = vunpack.c.l.b16 %v3437
  %v3640 = vunpack.c.h.b16 %v3437
  %v3641 = vunpack.c.l.b16 %v3438
  %v3642 = vunpack.c.h.b16 %v3438
  %v3643 = vunpack.c.l.b16 %v3439
  %v3644 = vunpack.c.h.b16 %v3439
  %v3645 = vunpack.c.l.b16 %v3440
  %v3646 = vunpack.c.h.b16 %v3440
  %v3647 = vunpack.c.l.b16 %v3441
  %v3648 = vunpack.c.h.b16 %v3441
  %v3649 = vunpack.c.l.b16 %v3442
  %v3650 = vunpack.c.h.b16 %v3442
  %v3651 = vunpack.c.l.b16 %v3443
  %v3652 = vunpack.c.h.b16 %v3443
  %v3653 = vunpack.c.l.b16 %v3444
  %v3654 = vunpack.c.h.b16 %v3444
  %v3655 = vunpack.c.l.b16 %v3445
  %v3656 = vunpack.c.h.b16 %v3445
  %v3657 = vunpack.c.l.b16 %v3446
  %v3658 = vunpack.c.h.b16 %v3446
  %v3659 = vunpack.c.l.b16 %v3447
  %v3660 = vunpack.c.h.b16 %v3447
  %v3661 = vunpack.c.l.b16 %v3448
  %v3662 = vunpack.c.h.b16 %v3448
  %v3663 = vunpack.c.l.b16 %v3449
  %v3664 = vunpack.c.h.b16 %v3449
  %v3665 = vunpack.c.l.b16 %v3450
  %v3666 = vunpack.c.h.b16 %v3450
  %v3667 = vunpack.c.l.b16 %v3451
  %v3668 = vunpack.c.h.b16 %v3451
  %v3669 = vunpack.c.l.b16 %v3452
  %v3670 = vunpack.c.h.b16 %v3452
  %v3671 = vunpack.c.l.b16 %v3453
  %v3672 = vunpack.c.h.b16 %v3453
  %v3673 = vunpack.c.l.b16 %v3454
  %v3674 = vunpack.c.h.b16 %v3454
  %v3675 = vunpack.c.l.b16 %v3455
  %v3676 = vunpack.c.h.b16 %v3455
  %v3677 = vunpack.c.l.b16 %v3456
  %v3678 = vunpack.c.h.b16 %v3456
  %v3679 = vunpack.c.l.b16 %v3457
  %v3680 = vunpack.c.h.b16 %v3457
  %v3681 = vunpack.c.l.b16 %v3458
  %v3682 = vunpack.c.h.b16 %v3458
  %v3683 = vunpack.c.l.b16 %v3459
  %v3684 = vunpack.c.h.b16 %v3459
  %v3685 = vunpack.c.l.b16 %v3460
  %v3686 = vunpack.c.h.b16 %v3460
  %v3687 = vunpack.c.l.b16 %v3461
  %v3688 = vunpack.c.h.b16 %v3461
  %v3689 = vunpack.c.l.b16 %v3462
  %v3690 = vunpack.c.h.b16 %v3462
  %v3691 = vunpack.c.l.b16 %v3463
  %v3692 = vunpack.c.h.b16 %v3463
  %v3693 = vunpack.c.l.b16 %v3464
  %v3694 = vunpack.c.h.b16 %v3464
  %v3695 = vunpack.c.l.b16 %v3465
  %v3696 = vunpack.c.h.b16 %v3465
  %v3697 = vunpack.c.l.b16 %v3466
  %v3698 = vunpack.c.h.b16 %v3466
  %v3699 = vunpack.c.l.b16 %v3467
  %v3700 = vunpack.c.h.b16 %v3467
  %v3701 = vunpack.c.l.b16 %v3468
  %v3702 = vunpack.c.h.b16 %v3468
  %v3703 = vunpack.c.l.b16 %v3469
  %v3704 = vunpack.c.h.b16 %v3469
  %v3705 = vunpack.c.l.b16 %v3470
  %v3706 = vunpack.c.h.b16 %v3470
  %v3707 = vunpack.c.l.b16 %v3471
  %v3708 = vunpack.c.h.b16 %v3471
  %v3709 = vunpack.c.l.b16 %v3472
  %v3710 = vunpack.c.h.b16 %v3472
  %v3711 = vunpack.c.l.b16 %v3473
  %v3712 = vunpack.c.h.b16 %v3473
  %v3713 = vunpack.c.l.b16 %v3474
  %v3714 = vunpack.c.h.b16 %v3474
  %v3715 = vunpack.c.l.b16 %v3475
  %v3716 = vunpack.c.h.b16 %v3475
  %v3717 = vunpack.c.l.b16 %v3476
  %v3718 = vunpack.c.h.b16 %v3476
  %v3719 = vunpack.c.l.b16 %v3477
  %v3720 = vunpack.c.h.b16 %v3477
  %v3721 = vunpack.c.l.b16 %v3478
  %v3722 = vunpack.c.h.b16 %v3478
  %v3723 = vunpack.c.l.b16 %v3479
  %v3724 = vunpack.c.h.b16 %v3479
  %v3725 = vunpack.c.l.b16 %v3480
  %v3726 = vunpack.c.h.b16 %v3480
  %v3727 = vunpack.c.l.b16 %v3481
  %v3728 = vunpack.c.h.b16 %v3481
  %v3729 = vunpack.c.l.b16 %v3482
  %v3730 = vunpack.c.h.b16 %v3482
  %v3731 = vunpack.c.l.b16 %v3483
  %v3732 = vunpack.c.h.b16 %v3483
  %v3733 = vunpack.c.l.b16 %v3484
  %v3734 = vunpack.c.h.b16 %v3484
  %v3735 = vunpack.c.l.b16 %v3485
  %v3736 = vunpack.c.h.b16 %v3485
  %v3737 = vunpack.c.l.b16 %v3486
  %v3738 = vunpack.c.h.b16 %v3486
  %v3739 = vunpack.c.l.b16 %v3487
  %v3740 = vunpack.c.h.b16 %v3487
  %v3741 = vunpack.c.l.b16 %v3488
  %v3742 = vunpack.c.h.b16 %v3488
  %v3743 = vunpack.c.l.b16 %v3489
  %v3744 = vunpack.c.h.b16 %v3489
  %v3745 = vunpack.c.l.b16 %v3490
  %v3746 = vunpack.c.h.b16 %v3490
  %v3747 = vunpack.c.l.b16 %v3491
  %v3748 = vunpack.c.h.b16 %v3491
  %v3749 = vunpack.c.l.b16 %v3492
  %v3750 = vunpack.c.h.b16 %v3492
  %v3751 = vunpack.c.l.b16 %v3493
  %v3752 = vunpack.c.h.b16 %v3493
  %v3753 = vunpack.c.l.b16 %v3494
  %v3754 = vunpack.c.h.b16 %v3494
  %v3755 = vunpack.c.l.b16 %v3495
  %v3756 = vunpack.c.h.b16 %v3495
  %v3757 = vunpack.c.l.b16 %v3496
  %v3758 = vunpack.c.h.b16 %v3496
  %v3759 = vunpack.c.l.b16 %v3497
  %v3760 = vunpack.c.h.b16 %v3497
  %v3761 = vunpack.c.l.b16 %v3498
  %v3762 = vunpack.c.h.b16 %v3498
  %v3763 = vpack.c.b16 %v3613, %v3603
  %v3764 = vpack.c.b16 %v3614, %v3604
  %v3765 = vpack.c.b16 %v3615, %v3605
  %v3766 = vpack.c.b16 %v3616, %v3606
  %v3767 = vpack.c.b16 %v3617, %v3607
  %v3768 = vpack.c.b16 %v3618, %v3608
  %v3769 = vpack.c.b16 %v3619, %v3609
  %v3770 = vpack.c.b16 %v3620, %v3610
  %v3771 = vpack.c.b16 %v3621, %v3611
  %v3772 = vpack.c.b16 %v3622, %v3612
  %v3773 = vpack.c.b16 %v3633, %v3623
  %v3774 = vpack.c.b16 %v3634, %v3624
  %v3775 = vpack.c.b16 %v3635, %v3625
  %v3776 = vpack.c.b16 %v3636, %v3626
  %v3777 = vpack.c.b16 %v3637, %v3627
  %v3778 = vpack.c.b16 %v3638, %v3628
  %v3779 = vpack.c.b16 %v3639, %v3629
  %v3780 = vpack.c.b16 %v3640, %v3630
  %v3781 = vpack.c.b16 %v3641, %v3631
  %v3782 = vpack.c.b16 %v3642, %v3632
  %v3783 = vpack.c.b16 %v3653, %v3643
  %v3784 = vpack.c.b16 %v3654, %v3644
  %v3785 = vpack.c.b16 %v3655, %v3645
  %v3786 = vpack.c.b16 %v3656, %v3646
  %v3787 = vpack.c.b16 %v3657, %v3647
  %v3788 = vpack.c.b16 %v3658, %v3648
  %v3789 = vpack.c.b16 %v3659, %v3649
  %v3790 = vpack.c.b16 %v3660, %v3650
  %v3791 = vpack.c.b16 %v3661, %v3651
  %v3792 = vpack.c.b16 %v3662, %v3652
  %v3793 = vpack.c.b16 %v3673, %v3663
  %v3794 = vpack.c.b16 %v3674, %v3664
  %v3795 = vpack.c.b16 %v3675, %v3665
  %v3796 = vpack.c.b16 %v3676, %v3666
  %v3797 = vpack.c.b16 %v3677, %v3667
  %v3798 = vpack.c.b16 %v3678, %v3668
  %v3799 = vpack.c.b16 %v3679, %v3669
  %v3800 = vpack.c.b16 %v3680, %v3670
  %v3801 = vpack.c.b16 %v3681, %v3671
  %v3802 = vpack.c.b16 %v3682, %v3672
  %v3803 = vpack.c.b16 %v3693, %v3683
  %v3804 = vpack.c.b16 %v3694, %v3684
  %v3805 = vpack.c.b16 %v3695, %v3685
  %v3806 = vpack.c.b16 %v3696, %v3686
  %v3807 = vpack.c.b16 %v3697, %v3687
  %v3808 = vpack.c.b16 %v3698, %v3688
  %v3809 = vpack.c.b16 %v3699, %v3689
  %v3810 = vpack.c.b16 %v3700, %v3690
  %v3811 = vpack.c.b16 %v3701, %v3691
  %v3812 = vpack.c.b16 %v3702, %v3692
  %v3813 = vpack.c.b16 %v3713, %v3703
  %v3814 = vpack.c.b16 %v3714, %v3704
  %v3815 = vpack.c.b16 %v3715, %v3705
  %v3816 = vpack.c.b16 %v3716, %v3706
  %v3817 = vpack.c.b16 %v3717, %v3707
  %v3818 = vpack.c.b16 %v3718, %v3708
  %v3819 = vpack.c.b16 %v3719, %v3709
  %v3820 = vpack.c.b16 %v3720, %v3710
  %v3821 = vpack.c.b16 %v3721, %v3711
  %v3822 = vpack.c.b16 %v3722, %v3712
  %v3823 = vpack.c.b16 %v3733, %v3723
  %v3824 = vpack.c.b16 %v3734, %v3724
  %v3825 = vpack.c.b16 %v3735, %v3725
  %v3826 = vpack.c.b16 %v3736, %v3726
  %v3827 = vpack.c.b16 %v3737, %v3727
  %v3828 = vpack.c.b16 %v3738, %v3728
  %v3829 = vpack.c.b16 %v3739, %v3729
  %v3830 = vpack.c.b16 %v3740, %v3730
  %v3831 = vpack.c.b16 %v3741, %v3731
  %v3832 = vpack.c.b16 %v3742, %v3732
  %v3833 = vpack.c.b16 %v3753, %v3743
  %v3834 = vpack.c.b16 %v3754, %v3744
  %v3835 = vpack.c.b16 %v3755, %v3745
  %v3836 = vpack.c.b16 %v3756, %v3746
  %v3837 = vpack.c.b16 %v3757, %v3747
  %v3838 = vpack.c.b16 %v3758, %v3748
  %v3839 = vpack.c.b16 %v3759, %v3749
  %v3840 = vpack.c.b16 %v3760, %v3750
  %v3841 = vpack.c.b16 %v3761, %v3751
  %v3842 = vpack.c.b16 %v3762, %v3752
  %3923 = vmatpush.bf16.msra.mxu0 %v3833
  %3924 = vmatpush.bf16.msra.mxu0 %v3823
  %3925 = vmatpush.bf16.msra.mxu0 %v3813
  %3926 = vmatpush.bf16.msra.mxu0 %v3803
  %3927 = vmatpush.bf16.msra.mxu0 %v3793
  %3928 = vmatpush.bf16.msra.mxu0 %v3783
  %3929 = vmatpush.bf16.msra.mxu0 %v3773
  %3930 = vmatpush.bf16.msra.mxu0 %v3763
  %3931 = vmatmul.bf16.gmra.mxu0 %v3418
  %v3932 = vpop.f32.mrf.mxu0
  %v3933 = vadd.f32 %v3503, %v3932
  %v3934 = vpop.f32.mrf.mxu0
  %3935 = vdwg.mxu0
  %3936 = vmatpush.bf16.msra.mxu0 %v3834
  %3937 = vmatpush.bf16.msra.mxu0 %v3824
  %3938 = vmatpush.bf16.msra.mxu0 %v3814
  %3939 = vmatpush.bf16.msra.mxu0 %v3804
  %3940 = vmatpush.bf16.msra.mxu0 %v3794
  %3941 = vmatpush.bf16.msra.mxu0 %v3784
  %3942 = vmatpush.bf16.msra.mxu0 %v3774
  %3943 = vmatpush.bf16.msra.mxu0 %v3764
  %3944 = vmatmul.bf16.gmra.mxu0 %v3418
  %v3945 = vpop.f32.mrf.mxu0
  %v3946 = vadd.f32 %v3504, %v3945
  %v3947 = vpop.f32.mrf.mxu0
  %3948 = vdwg.mxu0
  %3949 = vmatpush.bf16.msra.mxu0 %v3835
  %3950 = vmatpush.bf16.msra.mxu0 %v3825
  %3951 = vmatpush.bf16.msra.mxu0 %v3815
  %3952 = vmatpush.bf16.msra.mxu0 %v3805
  %3953 = vmatpush.bf16.msra.mxu0 %v3795
  %3954 = vmatpush.bf16.msra.mxu0 %v3785
  %3955 = vmatpush.bf16.msra.mxu0 %v3775
  %3956 = vmatpush.bf16.msra.mxu0 %v3765
  %3957 = vmatmul.bf16.gmra.mxu0 %v3418
  %v3958 = vpop.f32.mrf.mxu0
  %v3959 = vadd.f32 %v3505, %v3958
  %v3960 = vpop.f32.mrf.mxu0
  %3961 = vdwg.mxu0
  %3962 = vmatpush.bf16.msra.mxu0 %v3836
  %3963 = vmatpush.bf16.msra.mxu0 %v3826
  %3964 = vmatpush.bf16.msra.mxu0 %v3816
  %3965 = vmatpush.bf16.msra.mxu0 %v3806
  %3966 = vmatpush.bf16.msra.mxu0 %v3796
  %3967 = vmatpush.bf16.msra.mxu0 %v3786
  %3968 = vmatpush.bf16.msra.mxu0 %v3776
  %3969 = vmatpush.bf16.msra.mxu0 %v3766
  %3970 = vmatmul.bf16.gmra.mxu0 %v3418
  %v3971 = vpop.f32.mrf.mxu0
  %v3972 = vadd.f32 %v3506, %v3971
  %v3973 = vpop.f32.mrf.mxu0
  %3974 = vdwg.mxu0
  %3975 = vmatpush.bf16.msra.mxu0 %v3837
  %3976 = vmatpush.bf16.msra.mxu0 %v3827
  %3977 = vmatpush.bf16.msra.mxu0 %v3817
  %3978 = vmatpush.bf16.msra.mxu0 %v3807
  %3979 = vmatpush.bf16.msra.mxu0 %v3797
  %3980 = vmatpush.bf16.msra.mxu0 %v3787
  %3981 = vmatpush.bf16.msra.mxu0 %v3777
  %3982 = vmatpush.bf16.msra.mxu0 %v3767
  %3983 = vmatmul.bf16.gmra.mxu0 %v3418
  %v3984 = vpop.f32.mrf.mxu0
  %v3985 = vadd.f32 %v3507, %v3984
  %v3986 = vpop.f32.mrf.mxu0
  %3987 = vdwg.mxu0
  %3988 = vmatpush.bf16.msra.mxu0 %v3838
  %3989 = vmatpush.bf16.msra.mxu0 %v3828
  %3990 = vmatpush.bf16.msra.mxu0 %v3818
  %3991 = vmatpush.bf16.msra.mxu0 %v3808
  %3992 = vmatpush.bf16.msra.mxu0 %v3798
  %3993 = vmatpush.bf16.msra.mxu0 %v3788
  %3994 = vmatpush.bf16.msra.mxu0 %v3778
  %3995 = vmatpush.bf16.msra.mxu0 %v3768
  %3996 = vmatmul.bf16.gmra.mxu0 %v3418
  %v3997 = vpop.f32.mrf.mxu0
  %v3998 = vadd.f32 %v3508, %v3997
  %v3999 = vpop.f32.mrf.mxu0
  %4000 = vdwg.mxu0
  %4001 = vmatpush.bf16.msra.mxu0 %v3839
  %4002 = vmatpush.bf16.msra.mxu0 %v3829
  %4003 = vmatpush.bf16.msra.mxu0 %v3819
  %4004 = vmatpush.bf16.msra.mxu0 %v3809
  %4005 = vmatpush.bf16.msra.mxu0 %v3799
  %4006 = vmatpush.bf16.msra.mxu0 %v3789
  %4007 = vmatpush.bf16.msra.mxu0 %v3779
  %4008 = vmatpush.bf16.msra.mxu0 %v3769
  %4009 = vmatmul.bf16.gmra.mxu0 %v3418
  %v4010 = vpop.f32.mrf.mxu0
  %v4011 = vadd.f32 %v3509, %v4010
  %v4012 = vpop.f32.mrf.mxu0
  %4013 = vdwg.mxu0
  %4014 = vmatpush.bf16.msra.mxu0 %v3840
  %4015 = vmatpush.bf16.msra.mxu0 %v3830
  %4016 = vmatpush.bf16.msra.mxu0 %v3820
  %4017 = vmatpush.bf16.msra.mxu0 %v3810
  %4018 = vmatpush.bf16.msra.mxu0 %v3800
  %4019 = vmatpush.bf16.msra.mxu0 %v3790
  %4020 = vmatpush.bf16.msra.mxu0 %v3780
  %4021 = vmatpush.bf16.msra.mxu0 %v3770
  %4022 = vmatmul.bf16.gmra.mxu0 %v3418
  %v4023 = vpop.f32.mrf.mxu0
  %v4024 = vadd.f32 %v3510, %v4023
  %v4025 = vpop.f32.mrf.mxu0
  %4026 = vdwg.mxu0
  %4027 = vmatpush.bf16.msra.mxu0 %v3841
  %4028 = vmatpush.bf16.msra.mxu0 %v3831
  %4029 = vmatpush.bf16.msra.mxu0 %v3821
  %4030 = vmatpush.bf16.msra.mxu0 %v3811
  %4031 = vmatpush.bf16.msra.mxu0 %v3801
  %4032 = vmatpush.bf16.msra.mxu0 %v3791
  %4033 = vmatpush.bf16.msra.mxu0 %v3781
  %4034 = vmatpush.bf16.msra.mxu0 %v3771
  %4035 = vmatmul.bf16.gmra.mxu0 %v3418
  %v4036 = vpop.f32.mrf.mxu0
  %v4037 = vadd.f32 %v3511, %v4036
  %v4038 = vpop.f32.mrf.mxu0
  %4039 = vdwg.mxu0
  %4040 = vmatpush.bf16.msra.mxu0 %v3842
  %4041 = vmatpush.bf16.msra.mxu0 %v3832
  %4042 = vmatpush.bf16.msra.mxu0 %v3822
  %4043 = vmatpush.bf16.msra.mxu0 %v3812
  %4044 = vmatpush.bf16.msra.mxu0 %v3802
  %4045 = vmatpush.bf16.msra.mxu0 %v3792
  %4046 = vmatpush.bf16.msra.mxu0 %v3782
  %4047 = vmatpush.bf16.msra.mxu0 %v3772
  %4048 = vmatmul.bf16.gmra.mxu0 %v3418
  %v4049 = vpop.f32.mrf.mxu0
  %v4050 = vadd.f32 %v3512, %v4049
  %v4051 = vpop.f32.mrf.mxu0
  %4052 = vdwg.mxu0
  %v4053 = vmax.f32 %v3933, 0.0
  %v4054 = vmax.f32 %v3946, 0.0
  %v4055 = vmax.f32 %v3959, 0.0
  %v4056 = vmax.f32 %v3972, 0.0
  %v4057 = vmax.f32 %v3985, 0.0
  %v4058 = vmax.f32 %v3998, 0.0
  %v4059 = vmax.f32 %v4011, 0.0
  %v4060 = vmax.f32 %v4024, 0.0
  %v4061 = vmax.f32 %v4037, 0.0
  %v4062 = vmax.f32 %v4050, 0.0
  %v4063 = vpack.c.bf16 %v4053, %v4053
  %v4064 = vpack.c.bf16 %v4054, %v4054
  %v4065 = vpack.c.bf16 %v4055, %v4055
  %v4066 = vpack.c.bf16 %v4056, %v4056
  %v4067 = vpack.c.bf16 %v4057, %v4057
  %v4068 = vpack.c.bf16 %v4058, %v4058
  %v4069 = vpack.c.bf16 %v4059, %v4059
  %v4070 = vpack.c.bf16 %v4060, %v4060
  %v4071 = vpack.c.bf16 %v4061, %v4061
  %v4072 = vpack.c.bf16 %v4062, %v4062
  %v4073 = vld [vmem:[%s9] sm:$0xf]
  %v4074 = vld [vmem:[%s9 + $0x4] sm:$0xf]
  %v4075 = vld [vmem:[%s9 + $0x8] sm:$0xf]
  %v4076 = vld [vmem:[%s9 + $0xc] sm:$0xf]
  %v4077 = vld [vmem:[%s9 + $0x10] sm:$0xf]
  %v4078 = vld [vmem:[%s9 + $0x14] sm:$0xf]
  %v4079 = vld [vmem:[%s9 + $0x18] sm:$0xf]
  %v4080 = vld [vmem:[%s9 + $0x1c] sm:$0xf]
  %v4081 = vld [vmem:[%s9 + $0x20] sm:$0xf]
  %v4082 = vld [vmem:[%s9 + $0x24] sm:$0xf]
  %v4083 = vld [vmem:[%s9 + $0x28] sm:$0xf]
  %v4084 = vld [vmem:[%s9 + $0x2c] sm:$0xf]
  %v4085 = vld [vmem:[%s9 + $0x30] sm:$0xf]
  %v4086 = vld [vmem:[%s9 + $0x34] sm:$0xf]
  %v4087 = vld [vmem:[%s9 + $0x38] sm:$0xf]
  %v4088 = vld [vmem:[%s9 + $0x3c] sm:$0xf]
  %v4089 = vld [vmem:[%s9 + $0x40] sm:$0xf]
  %v4090 = vld [vmem:[%s9 + $0x44] sm:$0xf]
  %v4091 = vld [vmem:[%s9 + $0x48] sm:$0xf]
  %v4092 = vld [vmem:[%s9 + $0x4c] sm:$0xf]
  %v4093 = vld [vmem:[%s9 + $0x50] sm:$0xf]
  %v4094 = vld [vmem:[%s9 + $0x54] sm:$0xf]
  %v4095 = vld [vmem:[%s9 + $0x58] sm:$0xf]
  %v4096 = vld [vmem:[%s9 + $0x5c] sm:$0xf]
  %v4097 = vld [vmem:[%s9 + $0x60] sm:$0xf]
  %v4098 = vld [vmem:[%s9 + $0x64] sm:$0xf]
  %v4099 = vld [vmem:[%s9 + $0x68] sm:$0xf]
  %v4100 = vld [vmem:[%s9 + $0x6c] sm:$0xf]
  %v4101 = vld [vmem:[%s9 + $0x70] sm:$0xf]
  %v4102 = vld [vmem:[%s9 + $0x74] sm:$0xf]
  %v4103 = vld [vmem:[%s9 + $0x78] sm:$0xf]
  %v4104 = vld [vmem:[%s9 + $0x7c] sm:$0xf]
  %v4105 = vld [vmem:[%s9 + $0x80] sm:$0xf]
  %v4106 = vld [vmem:[%s9 + $0x84] sm:$0xf]
  %v4107 = vld [vmem:[%s9 + $0x88] sm:$0xf]
  %v4108 = vld [vmem:[%s9 + $0x8c] sm:$0xf]
  %v4109 = vld [vmem:[%s9 + $0x90] sm:$0xf]
  %v4110 = vld [vmem:[%s9 + $0x94] sm:$0xf]
  %v4111 = vld [vmem:[%s9 + $0x98] sm:$0xf]
  %v4112 = vld [vmem:[%s9 + $0x9c] sm:$0xf]
  %v4113 = vld [vmem:[%s9 + $0xa0] sm:$0xf]
  %v4114 = vld [vmem:[%s9 + $0xa4] sm:$0xf]
  %v4115 = vld [vmem:[%s9 + $0xa8] sm:$0xf]
  %v4116 = vld [vmem:[%s9 + $0xac] sm:$0xf]
  %v4117 = vld [vmem:[%s9 + $0xb0] sm:$0xf]
  %v4118 = vld [vmem:[%s9 + $0xb4] sm:$0xf]
  %v4119 = vld [vmem:[%s9 + $0xb8] sm:$0xf]
  %v4120 = vld [vmem:[%s9 + $0xbc] sm:$0xf]
  %v4121 = vld [vmem:[%s9 + $0xc0] sm:$0xf]
  %v4122 = vld [vmem:[%s9 + $0xc4] sm:$0xf]
  %v4123 = vld [vmem:[%s9 + $0xc8] sm:$0xf]
  %v4124 = vld [vmem:[%s9 + $0xcc] sm:$0xf]
  %v4125 = vld [vmem:[%s9 + $0xd0] sm:$0xf]
  %v4126 = vld [vmem:[%s9 + $0xd4] sm:$0xf]
  %v4127 = vld [vmem:[%s9 + $0xd8] sm:$0xf]
  %v4128 = vld [vmem:[%s9 + $0xdc] sm:$0xf]
  %v4129 = vld [vmem:[%s9 + $0xe0] sm:$0xf]
  %v4130 = vld [vmem:[%s9 + $0xe4] sm:$0xf]
  %v4131 = vld [vmem:[%s9 + $0xe8] sm:$0xf]
  %v4132 = vld [vmem:[%s9 + $0xec] sm:$0xf]
  %v4133 = vld [vmem:[%s9 + $0xf0] sm:$0xf]
  %v4134 = vld [vmem:[%s9 + $0xf4] sm:$0xf]
  %v4135 = vld [vmem:[%s9 + $0xf8] sm:$0xf]
  %v4136 = vld [vmem:[%s9 + $0xfc] sm:$0xf]
  %v4137 = vld [vmem:[%s9 + $0x100] sm:$0xf]
  %v4138 = vld [vmem:[%s9 + $0x104] sm:$0xf]
  %v4139 = vld [vmem:[%s9 + $0x108] sm:$0xf]
  %v4140 = vld [vmem:[%s9 + $0x10c] sm:$0xf]
  %v4141 = vld [vmem:[%s9 + $0x110] sm:$0xf]
  %v4142 = vld [vmem:[%s9 + $0x114] sm:$0xf]
  %v4143 = vld [vmem:[%s9 + $0x118] sm:$0xf]
  %v4144 = vld [vmem:[%s9 + $0x11c] sm:$0xf]
  %v4145 = vld [vmem:[%s9 + $0x120] sm:$0xf]
  %v4146 = vld [vmem:[%s9 + $0x124] sm:$0xf]
  %v4147 = vld [vmem:[%s9 + $0x128] sm:$0xf]
  %v4148 = vld [vmem:[%s9 + $0x12c] sm:$0xf]
  %v4149 = vld [vmem:[%s9 + $0x130] sm:$0xf]
  %v4150 = vld [vmem:[%s9 + $0x134] sm:$0xf]
  %v4151 = vld [vmem:[%s9 + $0x138] sm:$0xf]
  %v4152 = vld [vmem:[%s9 + $0x13c] sm:$0xf]
  %v4153 = vld [vmem:[%s9 + $0x140] sm:$0xf]
  %v4154 = vld [vmem:[%s9 + $0x144] sm:$0xf]
  %v4155 = vld [vmem:[%s9 + $0x148] sm:$0xf]
  %v4156 = vld [vmem:[%s9 + $0x14c] sm:$0xf]
  %v4157 = vld [vmem:[%s9 + $0x150] sm:$0xf]
  %v4158 = vld [vmem:[%s9 + $0x154] sm:$0xf]
  %v4159 = vld [vmem:[%s9 + $0x158] sm:$0xf]
  %v4160 = vld [vmem:[%s9 + $0x15c] sm:$0xf]
  %v4161 = vld [vmem:[%s9 + $0x160] sm:$0xf]
  %v4162 = vld [vmem:[%s9 + $0x164] sm:$0xf]
  %v4163 = vld [vmem:[%s9 + $0x168] sm:$0xf]
  %v4164 = vld [vmem:[%s9 + $0x16c] sm:$0xf]
  %v4165 = vld [vmem:[%s9 + $0x170] sm:$0xf]
  %v4166 = vld [vmem:[%s9 + $0x174] sm:$0xf]
  %v4167 = vld [vmem:[%s9 + $0x178] sm:$0xf]
  %v4168 = vld [vmem:[%s9 + $0x17c] sm:$0xf]
  %v4169 = vld [vmem:[%s9 + $0x180] sm:$0xf]
  %v4170 = vld [vmem:[%s9 + $0x184] sm:$0xf]
  %v4171 = vld [vmem:[%s9 + $0x188] sm:$0xf]
  %v4172 = vld [vmem:[%s9 + $0x18c] sm:$0xf]
  %v4173 = vld [vmem:[%s9 + $0x190] sm:$0xf]
  %v4174 = vld [vmem:[%s9 + $0x194] sm:$0xf]
  %v4175 = vld [vmem:[%s9 + $0x198] sm:$0xf]
  %v4176 = vld [vmem:[%s9 + $0x19c] sm:$0xf]
  %v4177 = vld [vmem:[%s9 + $0x1a0] sm:$0xf]
  %v4178 = vld [vmem:[%s9 + $0x1a4] sm:$0xf]
  %v4179 = vld [vmem:[%s9 + $0x1a8] sm:$0xf]
  %v4180 = vld [vmem:[%s9 + $0x1ac] sm:$0xf]
  %v4181 = vld [vmem:[%s9 + $0x1b0] sm:$0xf]
  %v4182 = vld [vmem:[%s9 + $0x1b4] sm:$0xf]
  %v4183 = vld [vmem:[%s9 + $0x1b8] sm:$0xf]
  %v4184 = vld [vmem:[%s9 + $0x1bc] sm:$0xf]
  %v4185 = vld [vmem:[%s9 + $0x1c0] sm:$0xf]
  %v4186 = vld [vmem:[%s9 + $0x1c4] sm:$0xf]
  %v4187 = vld [vmem:[%s9 + $0x1c8] sm:$0xf]
  %v4188 = vld [vmem:[%s9 + $0x1cc] sm:$0xf]
  %v4189 = vld [vmem:[%s9 + $0x1d0] sm:$0xf]
  %v4190 = vld [vmem:[%s9 + $0x1d4] sm:$0xf]
  %v4191 = vld [vmem:[%s9 + $0x1d8] sm:$0xf]
  %v4192 = vld [vmem:[%s9 + $0x1dc] sm:$0xf]
  %v4193 = vld [vmem:[%s9 + $0x1e0] sm:$0xf]
  %v4194 = vld [vmem:[%s9 + $0x1e4] sm:$0xf]
  %v4195 = vld [vmem:[%s9 + $0x1e8] sm:$0xf]
  %v4196 = vld [vmem:[%s9 + $0x1ec] sm:$0xf]
  %v4197 = vld [vmem:[%s9 + $0x1f0] sm:$0xf]
  %v4198 = vld [vmem:[%s9 + $0x1f4] sm:$0xf]
  %v4199 = vld [vmem:[%s9 + $0x1f8] sm:$0xf]
  %v4200 = vld [vmem:[%s9 + $0x1fc] sm:$0xf]
  %v4201 = vld [vmem:[%s9 + $0x200] sm:$0xf]
  %v4202 = vld [vmem:[%s9 + $0x204] sm:$0xf]
  %v4203 = vld [vmem:[%s9 + $0x208] sm:$0xf]
  %v4204 = vld [vmem:[%s9 + $0x20c] sm:$0xf]
  %v4205 = vld [vmem:[%s9 + $0x210] sm:$0xf]
  %v4206 = vld [vmem:[%s9 + $0x214] sm:$0xf]
  %v4207 = vld [vmem:[%s9 + $0x218] sm:$0xf]
  %v4208 = vld [vmem:[%s9 + $0x21c] sm:$0xf]
  %v4209 = vld [vmem:[%s9 + $0x220] sm:$0xf]
  %v4210 = vld [vmem:[%s9 + $0x224] sm:$0xf]
  %v4211 = vld [vmem:[%s9 + $0x228] sm:$0xf]
  %v4212 = vld [vmem:[%s9 + $0x22c] sm:$0xf]
  %v4213 = vld [vmem:[%s9 + $0x230] sm:$0xf]
  %v4214 = vld [vmem:[%s9 + $0x234] sm:$0xf]
  %v4215 = vld [vmem:[%s9 + $0x238] sm:$0xf]
  %v4216 = vld [vmem:[%s9 + $0x23c] sm:$0xf]
  %v4217 = vld [vmem:[%s9 + $0x240] sm:$0xf]
  %v4218 = vld [vmem:[%s9 + $0x244] sm:$0xf]
  %v4219 = vld [vmem:[%s9 + $0x248] sm:$0xf]
  %v4220 = vld [vmem:[%s9 + $0x24c] sm:$0xf]
  %v4221 = vld [vmem:[%s9 + $0x250] sm:$0xf]
  %v4222 = vld [vmem:[%s9 + $0x254] sm:$0xf]
  %v4223 = vld [vmem:[%s9 + $0x258] sm:$0xf]
  %v4224 = vld [vmem:[%s9 + $0x25c] sm:$0xf]
  %v4225 = vld [vmem:[%s9 + $0x260] sm:$0xf]
  %v4226 = vld [vmem:[%s9 + $0x264] sm:$0xf]
  %v4227 = vld [vmem:[%s9 + $0x268] sm:$0xf]
  %v4228 = vld [vmem:[%s9 + $0x26c] sm:$0xf]
  %v4229 = vld [vmem:[%s9 + $0x270] sm:$0xf]
  %v4230 = vld [vmem:[%s9 + $0x274] sm:$0xf]
  %v4231 = vld [vmem:[%s9 + $0x278] sm:$0xf]
  %v4232 = vld [vmem:[%s9 + $0x27c] sm:$0xf]
  %v4233 = vld [vmem:[%s10] sm:$0x1]
  %v4235 = vperm.slane %v4233, 0
  %v4397 = vunpack.c.l.b16 %v4073
  %v4398 = vunpack.c.l.b16 %v4074
  %v4399 = vunpack.c.l.b16 %v4075
  %v4400 = vunpack.c.l.b16 %v4076
  %v4401 = vunpack.c.l.b16 %v4077
  %v4402 = vunpack.c.l.b16 %v4078
  %v4403 = vunpack.c.l.b16 %v4079
  %v4404 = vunpack.c.l.b16 %v4080
  %v4405 = vunpack.c.l.b16 %v4081
  %v4406 = vunpack.c.l.b16 %v4082
  %v4407 = vunpack.c.l.b16 %v4083
  %v4408 = vunpack.c.l.b16 %v4084
  %v4409 = vunpack.c.l.b16 %v4085
  %v4410 = vunpack.c.l.b16 %v4086
  %v4411 = vunpack.c.l.b16 %v4087
  %v4412 = vunpack.c.l.b16 %v4088
  %v4413 = vunpack.c.l.b16 %v4089
  %v4414 = vunpack.c.l.b16 %v4090
  %v4415 = vunpack.c.l.b16 %v4091
  %v4416 = vunpack.c.l.b16 %v4092
  %v4417 = vunpack.c.l.b16 %v4093
  %v4418 = vunpack.c.l.b16 %v4094
  %v4419 = vunpack.c.l.b16 %v4095
  %v4420 = vunpack.c.l.b16 %v4096
  %v4421 = vunpack.c.l.b16 %v4097
  %v4422 = vunpack.c.l.b16 %v4098
  %v4423 = vunpack.c.l.b16 %v4099
  %v4424 = vunpack.c.l.b16 %v4100
  %v4425 = vunpack.c.l.b16 %v4101
  %v4426 = vunpack.c.l.b16 %v4102
  %v4427 = vunpack.c.l.b16 %v4103
  %v4428 = vunpack.c.l.b16 %v4104
  %v4429 = vunpack.c.l.b16 %v4105
  %v4430 = vunpack.c.l.b16 %v4106
  %v4431 = vunpack.c.l.b16 %v4107
  %v4432 = vunpack.c.l.b16 %v4108
  %v4433 = vunpack.c.l.b16 %v4109
  %v4434 = vunpack.c.l.b16 %v4110
  %v4435 = vunpack.c.l.b16 %v4111
  %v4436 = vunpack.c.l.b16 %v4112
  %v4437 = vunpack.c.l.b16 %v4113
  %v4438 = vunpack.c.l.b16 %v4114
  %v4439 = vunpack.c.l.b16 %v4115
  %v4440 = vunpack.c.l.b16 %v4116
  %v4441 = vunpack.c.l.b16 %v4117
  %v4442 = vunpack.c.l.b16 %v4118
  %v4443 = vunpack.c.l.b16 %v4119
  %v4444 = vunpack.c.l.b16 %v4120
  %v4445 = vunpack.c.l.b16 %v4121
  %v4446 = vunpack.c.l.b16 %v4122
  %v4447 = vunpack.c.l.b16 %v4123
  %v4448 = vunpack.c.l.b16 %v4124
  %v4449 = vunpack.c.l.b16 %v4125
  %v4450 = vunpack.c.l.b16 %v4126
  %v4451 = vunpack.c.l.b16 %v4127
  %v4452 = vunpack.c.l.b16 %v4128
  %v4453 = vunpack.c.l.b16 %v4129
  %v4454 = vunpack.c.l.b16 %v4130
  %v4455 = vunpack.c.l.b16 %v4131
  %v4456 = vunpack.c.l.b16 %v4132
  %v4457 = vunpack.c.l.b16 %v4133
  %v4458 = vunpack.c.l.b16 %v4134
  %v4459 = vunpack.c.l.b16 %v4135
  %v4460 = vunpack.c.l.b16 %v4136
  %v4461 = vunpack.c.l.b16 %v4137
  %v4462 = vunpack.c.l.b16 %v4138
  %v4463 = vunpack.c.l.b16 %v4139
  %v4464 = vunpack.c.l.b16 %v4140
  %v4465 = vunpack.c.l.b16 %v4141
  %v4466 = vunpack.c.l.b16 %v4142
  %v4467 = vunpack.c.l.b16 %v4143
  %v4468 = vunpack.c.l.b16 %v4144
  %v4469 = vunpack.c.l.b16 %v4145
  %v4470 = vunpack.c.l.b16 %v4146
  %v4471 = vunpack.c.l.b16 %v4147
  %v4472 = vunpack.c.l.b16 %v4148
  %v4473 = vunpack.c.l.b16 %v4149
  %v4474 = vunpack.c.l.b16 %v4150
  %v4475 = vunpack.c.l.b16 %v4151
  %v4476 = vunpack.c.l.b16 %v4152
  %v4477 = vunpack.c.l.b16 %v4153
  %v4478 = vunpack.c.l.b16 %v4154
  %v4479 = vunpack.c.l.b16 %v4155
  %v4480 = vunpack.c.l.b16 %v4156
  %v4481 = vunpack.c.l.b16 %v4157
  %v4482 = vunpack.c.l.b16 %v4158
  %v4483 = vunpack.c.l.b16 %v4159
  %v4484 = vunpack.c.l.b16 %v4160
  %v4485 = vunpack.c.l.b16 %v4161
  %v4486 = vunpack.c.l.b16 %v4162
  %v4487 = vunpack.c.l.b16 %v4163
  %v4488 = vunpack.c.l.b16 %v4164
  %v4489 = vunpack.c.l.b16 %v4165
  %v4490 = vunpack.c.l.b16 %v4166
  %v4491 = vunpack.c.l.b16 %v4167
  %v4492 = vunpack.c.l.b16 %v4168
  %v4493 = vunpack.c.l.b16 %v4169
  %v4494 = vunpack.c.l.b16 %v4170
  %v4495 = vunpack.c.l.b16 %v4171
  %v4496 = vunpack.c.l.b16 %v4172
  %v4497 = vunpack.c.l.b16 %v4173
  %v4498 = vunpack.c.l.b16 %v4174
  %v4499 = vunpack.c.l.b16 %v4175
  %v4500 = vunpack.c.l.b16 %v4176
  %v4501 = vunpack.c.l.b16 %v4177
  %v4502 = vunpack.c.l.b16 %v4178
  %v4503 = vunpack.c.l.b16 %v4179
  %v4504 = vunpack.c.l.b16 %v4180
  %v4505 = vunpack.c.l.b16 %v4181
  %v4506 = vunpack.c.l.b16 %v4182
  %v4507 = vunpack.c.l.b16 %v4183
  %v4508 = vunpack.c.l.b16 %v4184
  %v4509 = vunpack.c.l.b16 %v4185
  %v4510 = vunpack.c.l.b16 %v4186
  %v4511 = vunpack.c.l.b16 %v4187
  %v4512 = vunpack.c.l.b16 %v4188
  %v4513 = vunpack.c.l.b16 %v4189
  %v4514 = vunpack.c.l.b16 %v4190
  %v4515 = vunpack.c.l.b16 %v4191
  %v4516 = vunpack.c.l.b16 %v4192
  %v4517 = vunpack.c.l.b16 %v4193
  %v4518 = vunpack.c.l.b16 %v4194
  %v4519 = vunpack.c.l.b16 %v4195
  %v4520 = vunpack.c.l.b16 %v4196
  %v4521 = vunpack.c.l.b16 %v4197
  %v4522 = vunpack.c.l.b16 %v4198
  %v4523 = vunpack.c.l.b16 %v4199
  %v4524 = vunpack.c.l.b16 %v4200
  %v4525 = vunpack.c.l.b16 %v4201
  %v4526 = vunpack.c.l.b16 %v4202
  %v4527 = vunpack.c.l.b16 %v4203
  %v4528 = vunpack.c.l.b16 %v4204
  %v4529 = vunpack.c.l.b16 %v4205
  %v4530 = vunpack.c.l.b16 %v4206
  %v4531 = vunpack.c.l.b16 %v4207
  %v4532 = vunpack.c.l.b16 %v4208
  %v4533 = vunpack.c.l.b16 %v4209
  %v4534 = vunpack.c.l.b16 %v4210
  %v4535 = vunpack.c.l.b16 %v4211
  %v4536 = vunpack.c.l.b16 %v4212
  %v4537 = vunpack.c.l.b16 %v4213
  %v4538 = vunpack.c.l.b16 %v4214
  %v4539 = vunpack.c.l.b16 %v4215
  %v4540 = vunpack.c.l.b16 %v4216
  %v4541 = vunpack.c.l.b16 %v4217
  %v4542 = vunpack.c.l.b16 %v4218
  %v4543 = vunpack.c.l.b16 %v4219
  %v4544 = vunpack.c.l.b16 %v4220
  %v4545 = vunpack.c.l.b16 %v4221
  %v4546 = vunpack.c.l.b16 %v4222
  %v4547 = vunpack.c.l.b16 %v4223
  %v4548 = vunpack.c.l.b16 %v4224
  %v4549 = vunpack.c.l.b16 %v4225
  %v4550 = vunpack.c.l.b16 %v4226
  %v4551 = vunpack.c.l.b16 %v4227
  %v4552 = vunpack.c.l.b16 %v4228
  %v4553 = vunpack.c.l.b16 %v4229
  %v4554 = vunpack.c.l.b16 %v4230
  %v4555 = vunpack.c.l.b16 %v4231
  %v4556 = vunpack.c.l.b16 %v4232
  %v4557 = vpack.c.b16 %v4398, %v4397
  %v4558 = vpack.c.b16 %v4400, %v4399
  %v4559 = vpack.c.b16 %v4402, %v4401
  %v4560 = vpack.c.b16 %v4404, %v4403
  %v4561 = vpack.c.b16 %v4406, %v4405
  %v4562 = vpack.c.b16 %v4408, %v4407
  %v4563 = vpack.c.b16 %v4410, %v4409
  %v4564 = vpack.c.b16 %v4412, %v4411
  %v4565 = vpack.c.b16 %v4414, %v4413
  %v4566 = vpack.c.b16 %v4416, %v4415
  %v4567 = vpack.c.b16 %v4418, %v4417
  %v4568 = vpack.c.b16 %v4420, %v4419
  %v4569 = vpack.c.b16 %v4422, %v4421
  %v4570 = vpack.c.b16 %v4424, %v4423
  %v4571 = vpack.c.b16 %v4426, %v4425
  %v4572 = vpack.c.b16 %v4428, %v4427
  %v4573 = vpack.c.b16 %v4430, %v4429
  %v4574 = vpack.c.b16 %v4432, %v4431
  %v4575 = vpack.c.b16 %v4434, %v4433
  %v4576 = vpack.c.b16 %v4436, %v4435
  %v4577 = vpack.c.b16 %v4438, %v4437
  %v4578 = vpack.c.b16 %v4440, %v4439
  %v4579 = vpack.c.b16 %v4442, %v4441
  %v4580 = vpack.c.b16 %v4444, %v4443
  %v4581 = vpack.c.b16 %v4446, %v4445
  %v4582 = vpack.c.b16 %v4448, %v4447
  %v4583 = vpack.c.b16 %v4450, %v4449
  %v4584 = vpack.c.b16 %v4452, %v4451
  %v4585 = vpack.c.b16 %v4454, %v4453
  %v4586 = vpack.c.b16 %v4456, %v4455
  %v4587 = vpack.c.b16 %v4458, %v4457
  %v4588 = vpack.c.b16 %v4460, %v4459
  %v4589 = vpack.c.b16 %v4462, %v4461
  %v4590 = vpack.c.b16 %v4464, %v4463
  %v4591 = vpack.c.b16 %v4466, %v4465
  %v4592 = vpack.c.b16 %v4468, %v4467
  %v4593 = vpack.c.b16 %v4470, %v4469
  %v4594 = vpack.c.b16 %v4472, %v4471
  %v4595 = vpack.c.b16 %v4474, %v4473
  %v4596 = vpack.c.b16 %v4476, %v4475
  %v4597 = vpack.c.b16 %v4478, %v4477
  %v4598 = vpack.c.b16 %v4480, %v4479
  %v4599 = vpack.c.b16 %v4482, %v4481
  %v4600 = vpack.c.b16 %v4484, %v4483
  %v4601 = vpack.c.b16 %v4486, %v4485
  %v4602 = vpack.c.b16 %v4488, %v4487
  %v4603 = vpack.c.b16 %v4490, %v4489
  %v4604 = vpack.c.b16 %v4492, %v4491
  %v4605 = vpack.c.b16 %v4494, %v4493
  %v4606 = vpack.c.b16 %v4496, %v4495
  %v4607 = vpack.c.b16 %v4498, %v4497
  %v4608 = vpack.c.b16 %v4500, %v4499
  %v4609 = vpack.c.b16 %v4502, %v4501
  %v4610 = vpack.c.b16 %v4504, %v4503
  %v4611 = vpack.c.b16 %v4506, %v4505
  %v4612 = vpack.c.b16 %v4508, %v4507
  %v4613 = vpack.c.b16 %v4510, %v4509
  %v4614 = vpack.c.b16 %v4512, %v4511
  %v4615 = vpack.c.b16 %v4514, %v4513
  %v4616 = vpack.c.b16 %v4516, %v4515
  %v4617 = vpack.c.b16 %v4518, %v4517
  %v4618 = vpack.c.b16 %v4520, %v4519
  %v4619 = vpack.c.b16 %v4522, %v4521
  %v4620 = vpack.c.b16 %v4524, %v4523
  %v4621 = vpack.c.b16 %v4526, %v4525
  %v4622 = vpack.c.b16 %v4528, %v4527
  %v4623 = vpack.c.b16 %v4530, %v4529
  %v4624 = vpack.c.b16 %v4532, %v4531
  %v4625 = vpack.c.b16 %v4534, %v4533
  %v4626 = vpack.c.b16 %v4536, %v4535
  %v4627 = vpack.c.b16 %v4538, %v4537
  %v4628 = vpack.c.b16 %v4540, %v4539
  %v4629 = vpack.c.b16 %v4542, %v4541
  %v4630 = vpack.c.b16 %v4544, %v4543
  %v4631 = vpack.c.b16 %v4546, %v4545
  %v4632 = vpack.c.b16 %v4548, %v4547
  %v4633 = vpack.c.b16 %v4550, %v4549
  %v4634 = vpack.c.b16 %v4552, %v4551
  %v4635 = vpack.c.b16 %v4554, %v4553
  %v4636 = vpack.c.b16 %v4556, %v4555
  %4717 = vmatpush.bf16.msra.mxu0 %v4564
  %4718 = vmatpush.bf16.msra.mxu0 %v4563
  %4719 = vmatpush.bf16.msra.mxu0 %v4562
  %4720 = vmatpush.bf16.msra.mxu0 %v4561
  %4721 = vmatpush.bf16.msra.mxu0 %v4560
  %4722 = vmatpush.bf16.msra.mxu0 %v4559
  %4723 = vmatpush.bf16.msra.mxu0 %v4558
  %4724 = vmatpush.bf16.msra.mxu0 %v4557
  %4725 = vmatmul.bf16.gmra.mxu0 %v4063
  %v4726 = vpop.f32.mrf.mxu0
  %v4727 = vadd.f32 %v4235, %v4726
  %v4728 = vpop.f32.mrf.mxu0
  %4729 = vdwg.mxu0
  %4730 = vmatpush.bf16.msra.mxu0 %v4572
  %4731 = vmatpush.bf16.msra.mxu0 %v4571
  %4732 = vmatpush.bf16.msra.mxu0 %v4570
  %4733 = vmatpush.bf16.msra.mxu0 %v4569
  %4734 = vmatpush.bf16.msra.mxu0 %v4568
  %4735 = vmatpush.bf16.msra.mxu0 %v4567
  %4736 = vmatpush.bf16.msra.mxu0 %v4566
  %4737 = vmatpush.bf16.msra.mxu0 %v4565
  %4738 = vmatmul.bf16.gmra.mxu0 %v4064
  %v4739 = vpop.f32.mrf.mxu0
  %v4740 = vadd.f32 %v4727, %v4739
  %v4741 = vpop.f32.mrf.mxu0
  %4742 = vdwg.mxu0
  %4743 = vmatpush.bf16.msra.mxu0 %v4580
  %4744 = vmatpush.bf16.msra.mxu0 %v4579
  %4745 = vmatpush.bf16.msra.mxu0 %v4578
  %4746 = vmatpush.bf16.msra.mxu0 %v4577
  %4747 = vmatpush.bf16.msra.mxu0 %v4576
  %4748 = vmatpush.bf16.msra.mxu0 %v4575
  %4749 = vmatpush.bf16.msra.mxu0 %v4574
  %4750 = vmatpush.bf16.msra.mxu0 %v4573
  %4751 = vmatmul.bf16.gmra.mxu0 %v4065
  %v4752 = vpop.f32.mrf.mxu0
  %v4753 = vadd.f32 %v4740, %v4752
  %v4754 = vpop.f32.mrf.mxu0
  %4755 = vdwg.mxu0
  %4756 = vmatpush.bf16.msra.mxu0 %v4588
  %4757 = vmatpush.bf16.msra.mxu0 %v4587
  %4758 = vmatpush.bf16.msra.mxu0 %v4586
  %4759 = vmatpush.bf16.msra.mxu0 %v4585
  %4760 = vmatpush.bf16.msra.mxu0 %v4584
  %4761 = vmatpush.bf16.msra.mxu0 %v4583
  %4762 = vmatpush.bf16.msra.mxu0 %v4582
  %4763 = vmatpush.bf16.msra.mxu0 %v4581
  %4764 = vmatmul.bf16.gmra.mxu0 %v4066
  %v4765 = vpop.f32.mrf.mxu0
  %v4766 = vadd.f32 %v4753, %v4765
  %v4767 = vpop.f32.mrf.mxu0
  %4768 = vdwg.mxu0
  %4769 = vmatpush.bf16.msra.mxu0 %v4596
  %4770 = vmatpush.bf16.msra.mxu0 %v4595
  %4771 = vmatpush.bf16.msra.mxu0 %v4594
  %4772 = vmatpush.bf16.msra.mxu0 %v4593
  %4773 = vmatpush.bf16.msra.mxu0 %v4592
  %4774 = vmatpush.bf16.msra.mxu0 %v4591
  %4775 = vmatpush.bf16.msra.mxu0 %v4590
  %4776 = vmatpush.bf16.msra.mxu0 %v4589
  %4777 = vmatmul.bf16.gmra.mxu0 %v4067
  %v4778 = vpop.f32.mrf.mxu0
  %v4779 = vadd.f32 %v4766, %v4778
  %v4780 = vpop.f32.mrf.mxu0
  %4781 = vdwg.mxu0
  %4782 = vmatpush.bf16.msra.mxu0 %v4604
  %4783 = vmatpush.bf16.msra.mxu0 %v4603
  %4784 = vmatpush.bf16.msra.mxu0 %v4602
  %4785 = vmatpush.bf16.msra.mxu0 %v4601
  %4786 = vmatpush.bf16.msra.mxu0 %v4600
  %4787 = vmatpush.bf16.msra.mxu0 %v4599
  %4788 = vmatpush.bf16.msra.mxu0 %v4598
  %4789 = vmatpush.bf16.msra.mxu0 %v4597
  %4790 = vmatmul.bf16.gmra.mxu0 %v4068
  %v4791 = vpop.f32.mrf.mxu0
  %v4792 = vadd.f32 %v4779, %v4791
  %v4793 = vpop.f32.mrf.mxu0
  %4794 = vdwg.mxu0
  %4795 = vmatpush.bf16.msra.mxu0 %v4612
  %4796 = vmatpush.bf16.msra.mxu0 %v4611
  %4797 = vmatpush.bf16.msra.mxu0 %v4610
  %4798 = vmatpush.bf16.msra.mxu0 %v4609
  %4799 = vmatpush.bf16.msra.mxu0 %v4608
  %4800 = vmatpush.bf16.msra.mxu0 %v4607
  %4801 = vmatpush.bf16.msra.mxu0 %v4606
  %4802 = vmatpush.bf16.msra.mxu0 %v4605
  %4803 = vmatmul.bf16.gmra.mxu0 %v4069
  %v4804 = vpop.f32.mrf.mxu0
  %v4805 = vadd.f32 %v4792, %v4804
  %v4806 = vpop.f32.mrf.mxu0
  %4807 = vdwg.mxu0
  %4808 = vmatpush.bf16.msra.mxu0 %v4620
  %4809 = vmatpush.bf16.msra.mxu0 %v4619
  %4810 = vmatpush.bf16.msra.mxu0 %v4618
  %4811 = vmatpush.bf16.msra.mxu0 %v4617
  %4812 = vmatpush.bf16.msra.mxu0 %v4616
  %4813 = vmatpush.bf16.msra.mxu0 %v4615
  %4814 = vmatpush.bf16.msra.mxu0 %v4614
  %4815 = vmatpush.bf16.msra.mxu0 %v4613
  %4816 = vmatmul.bf16.gmra.mxu0 %v4070
  %v4817 = vpop.f32.mrf.mxu0
  %v4818 = vadd.f32 %v4805, %v4817
  %v4819 = vpop.f32.mrf.mxu0
  %4820 = vdwg.mxu0
  %4821 = vmatpush.bf16.msra.mxu0 %v4628
  %4822 = vmatpush.bf16.msra.mxu0 %v4627
  %4823 = vmatpush.bf16.msra.mxu0 %v4626
  %4824 = vmatpush.bf16.msra.mxu0 %v4625
  %4825 = vmatpush.bf16.msra.mxu0 %v4624
  %4826 = vmatpush.bf16.msra.mxu0 %v4623
  %4827 = vmatpush.bf16.msra.mxu0 %v4622
  %4828 = vmatpush.bf16.msra.mxu0 %v4621
  %4829 = vmatmul.bf16.gmra.mxu0 %v4071
  %v4830 = vpop.f32.mrf.mxu0
  %v4831 = vadd.f32 %v4818, %v4830
  %v4832 = vpop.f32.mrf.mxu0
  %4833 = vdwg.mxu0
  %4834 = vmatpush.bf16.msra.mxu0 %v4636
  %4835 = vmatpush.bf16.msra.mxu0 %v4635
  %4836 = vmatpush.bf16.msra.mxu0 %v4634
  %4837 = vmatpush.bf16.msra.mxu0 %v4633
  %4838 = vmatpush.bf16.msra.mxu0 %v4632
  %4839 = vmatpush.bf16.msra.mxu0 %v4631
  %4840 = vmatpush.bf16.msra.mxu0 %v4630
  %4841 = vmatpush.bf16.msra.mxu0 %v4629
  %4842 = vmatmul.bf16.gmra.mxu0 %v4072
  %v4843 = vpop.f32.mrf.mxu0
  %v4844 = vadd.f32 %v4831, %v4843
  %v4845 = vpop.f32.mrf.mxu0
  %4846 = vdwg.mxu0
  %v4847 = vmax.f32 %v4844, 0.0
  %v4848 = vpack.c.bf16 %v4847, %v4847
  %v4849 = vld [vmem:[%s11] sm:$0xf]
  %v4850 = vld [vmem:[%s11 + $0x4] sm:$0xf]
  %v4851 = vld [vmem:[%s11 + $0x8] sm:$0xf]
  %v4852 = vld [vmem:[%s11 + $0xc] sm:$0xf]
  %v4853 = vld [vmem:[%s11 + $0x10] sm:$0xf]
  %v4854 = vld [vmem:[%s11 + $0x14] sm:$0xf]
  %v4855 = vld [vmem:[%s11 + $0x18] sm:$0xf]
  %v4856 = vld [vmem:[%s11 + $0x1c] sm:$0xf]
  %v4857 = vld [vmem:[%s11 + $0x20] sm:$0xf]
  %v4858 = vld [vmem:[%s11 + $0x24] sm:$0xf]
  %v4859 = vld [vmem:[%s11 + $0x28] sm:$0xf]
  %v4860 = vld [vmem:[%s11 + $0x2c] sm:$0xf]
  %v4861 = vld [vmem:[%s11 + $0x30] sm:$0xf]
  %v4862 = vld [vmem:[%s11 + $0x34] sm:$0xf]
  %v4863 = vld [vmem:[%s11 + $0x38] sm:$0xf]
  %v4864 = vld [vmem:[%s11 + $0x3c] sm:$0xf]
  %v4865 = vld [vmem:[%s12] sm:$0x1]
  %v4867 = vperm.slane %v4865, 0
  %v4885 = vunpack.c.l.b16 %v4849
  %v4886 = vunpack.c.l.b16 %v4850
  %v4887 = vunpack.c.l.b16 %v4851
  %v4888 = vunpack.c.l.b16 %v4852
  %v4889 = vunpack.c.l.b16 %v4853
  %v4890 = vunpack.c.l.b16 %v4854
  %v4891 = vunpack.c.l.b16 %v4855
  %v4892 = vunpack.c.l.b16 %v4856
  %v4893 = vunpack.c.l.b16 %v4857
  %v4894 = vunpack.c.l.b16 %v4858
  %v4895 = vunpack.c.l.b16 %v4859
  %v4896 = vunpack.c.l.b16 %v4860
  %v4897 = vunpack.c.l.b16 %v4861
  %v4898 = vunpack.c.l.b16 %v4862
  %v4899 = vunpack.c.l.b16 %v4863
  %v4900 = vunpack.c.l.b16 %v4864
  %v4901 = vpack.c.b16 %v4886, %v4885
  %v4902 = vpack.c.b16 %v4888, %v4887
  %v4903 = vpack.c.b16 %v4890, %v4889
  %v4904 = vpack.c.b16 %v4892, %v4891
  %v4905 = vpack.c.b16 %v4894, %v4893
  %v4906 = vpack.c.b16 %v4896, %v4895
  %v4907 = vpack.c.b16 %v4898, %v4897
  %v4908 = vpack.c.b16 %v4900, %v4899
  %4917 = vmatpush.bf16.msra.mxu0 %v4908
  %4918 = vmatpush.bf16.msra.mxu0 %v4907
  %4919 = vmatpush.bf16.msra.mxu0 %v4906
  %4920 = vmatpush.bf16.msra.mxu0 %v4905
  %4921 = vmatpush.bf16.msra.mxu0 %v4904
  %4922 = vmatpush.bf16.msra.mxu0 %v4903
  %4923 = vmatpush.bf16.msra.mxu0 %v4902
  %4924 = vmatpush.bf16.msra.mxu0 %v4901
  %4925 = vmatmul.bf16.gmra.mxu0 %v4848
  %v4926 = vpop.f32.mrf.mxu0
  %v4927 = vadd.f32 %v4867, %v4926
  %v4928 = vpop.f32.mrf.mxu0
  %4929 = vdwg.mxu0
  %v4930 = vmax.f32 %v4927, 0.0
  %v4931 = vpack.c.bf16 %v4930, %v4930
  %v4932 = vld [vmem:[%s13] sm:$0xf]
  %v4933 = vld [vmem:[%s13 + $0x4] sm:$0xf]
  %v4934 = vld [vmem:[%s13 + $0x8] sm:$0xf]
  %v4935 = vld [vmem:[%s13 + $0xc] sm:$0xf]
  %v4936 = vld [vmem:[%s13 + $0x10] sm:$0xf]
  %v4937 = vld [vmem:[%s13 + $0x14] sm:$0xf]
  %v4938 = vld [vmem:[%s13 + $0x18] sm:$0xf]
  %v4939 = vld [vmem:[%s13 + $0x1c] sm:$0xf]
  %v4940 = vld [vmem:[%s13 + $0x20] sm:$0xf]
  %v4941 = vld [vmem:[%s13 + $0x24] sm:$0xf]
  %v4942 = vld [vmem:[%s13 + $0x28] sm:$0xf]
  %v4943 = vld [vmem:[%s13 + $0x2c] sm:$0xf]
  %v4944 = vld [vmem:[%s13 + $0x30] sm:$0xf]
  %v4945 = vld [vmem:[%s13 + $0x34] sm:$0xf]
  %v4946 = vld [vmem:[%s13 + $0x38] sm:$0xf]
  %v4947 = vld [vmem:[%s13 + $0x3c] sm:$0xf]
  %v4948 = vld [vmem:[%s14] sm:$0x1]
  %v4950 = vperm.slane %v4948, 0
  %v4968 = vunpack.c.l.b16 %v4932
  %v4969 = vunpack.c.l.b16 %v4933
  %v4970 = vunpack.c.l.b16 %v4934
  %v4971 = vunpack.c.l.b16 %v4935
  %v4972 = vunpack.c.l.b16 %v4936
  %v4973 = vunpack.c.l.b16 %v4937
  %v4974 = vunpack.c.l.b16 %v4938
  %v4975 = vunpack.c.l.b16 %v4939
  %v4976 = vunpack.c.l.b16 %v4940
  %v4977 = vunpack.c.l.b16 %v4941
  %v4978 = vunpack.c.l.b16 %v4942
  %v4979 = vunpack.c.l.b16 %v4943
  %v4980 = vunpack.c.l.b16 %v4944
  %v4981 = vunpack.c.l.b16 %v4945
  %v4982 = vunpack.c.l.b16 %v4946
  %v4983 = vunpack.c.l.b16 %v4947
  %v4984 = vpack.c.b16 %v4969, %v4968
  %v4985 = vpack.c.b16 %v4971, %v4970
  %v4986 = vpack.c.b16 %v4973, %v4972
  %v4987 = vpack.c.b16 %v4975, %v4974
  %v4988 = vpack.c.b16 %v4977, %v4976
  %v4989 = vpack.c.b16 %v4979, %v4978
  %v4990 = vpack.c.b16 %v4981, %v4980
  %v4991 = vpack.c.b16 %v4983, %v4982
  %5000 = vmatpush.bf16.msra.mxu0 %v4991
  %5001 = vmatpush.bf16.msra.mxu0 %v4990
  %5002 = vmatpush.bf16.msra.mxu0 %v4989
  %5003 = vmatpush.bf16.msra.mxu0 %v4988
  %5004 = vmatpush.bf16.msra.mxu0 %v4987
  %5005 = vmatpush.bf16.msra.mxu0 %v4986
  %5006 = vmatpush.bf16.msra.mxu0 %v4985
  %5007 = vmatpush.bf16.msra.mxu0 %v4984
  %5008 = vmatmul.bf16.gmra.mxu0 %v4931
  %v5009 = vpop.f32.mrf.mxu0
  %v5010 = vadd.f32 %v4950, %v5009
  %v5011 = vpop.f32.mrf.mxu0
  %5012 = vdwg.mxu0
  %v5013 = vmax.f32 %v5010, 0.0
  %v5014 = vpack.c.bf16 %v5013, %v5013
  %v5015 = vld [vmem:[%s15] sm:$0xf]
  %v5016 = vld [vmem:[%s15 + $0x4] sm:$0xf]
  %v5017 = vld [vmem:[%s15 + $0x8] sm:$0xf]
  %v5018 = vld [vmem:[%s15 + $0xc] sm:$0xf]
  %v5019 = vld [vmem:[%s15 + $0x10] sm:$0xf]
  %v5020 = vld [vmem:[%s15 + $0x14] sm:$0xf]
  %v5021 = vld [vmem:[%s15 + $0x18] sm:$0xf]
  %v5022 = vld [vmem:[%s15 + $0x1c] sm:$0xf]
  %v5023 = vld [vmem:[%s15 + $0x20] sm:$0xf]
  %v5024 = vld [vmem:[%s15 + $0x24] sm:$0xf]
  %v5025 = vld [vmem:[%s15 + $0x28] sm:$0xf]
  %v5026 = vld [vmem:[%s15 + $0x2c] sm:$0xf]
  %v5027 = vld [vmem:[%s15 + $0x30] sm:$0xf]
  %v5028 = vld [vmem:[%s15 + $0x34] sm:$0xf]
  %v5029 = vld [vmem:[%s15 + $0x38] sm:$0xf]
  %v5030 = vld [vmem:[%s15 + $0x3c] sm:$0xf]
  %v5031 = vld [vmem:[%s16] sm:$0x1]
  %v5033 = vperm.slane %v5031, 0
  %v5051 = vunpack.c.l.b16 %v5015
  %v5052 = vunpack.c.l.b16 %v5016
  %v5053 = vunpack.c.l.b16 %v5017
  %v5054 = vunpack.c.l.b16 %v5018
  %v5055 = vunpack.c.l.b16 %v5019
  %v5056 = vunpack.c.l.b16 %v5020
  %v5057 = vunpack.c.l.b16 %v5021
  %v5058 = vunpack.c.l.b16 %v5022
  %v5059 = vunpack.c.l.b16 %v5023
  %v5060 = vunpack.c.l.b16 %v5024
  %v5061 = vunpack.c.l.b16 %v5025
  %v5062 = vunpack.c.l.b16 %v5026
  %v5063 = vunpack.c.l.b16 %v5027
  %v5064 = vunpack.c.l.b16 %v5028
  %v5065 = vunpack.c.l.b16 %v5029
  %v5066 = vunpack.c.l.b16 %v5030
  %v5067 = vpack.c.b16 %v5052, %v5051
  %v5068 = vpack.c.b16 %v5054, %v5053
  %v5069 = vpack.c.b16 %v5056, %v5055
  %v5070 = vpack.c.b16 %v5058, %v5057
  %v5071 = vpack.c.b16 %v5060, %v5059
  %v5072 = vpack.c.b16 %v5062, %v5061
  %v5073 = vpack.c.b16 %v5064, %v5063
  %v5074 = vpack.c.b16 %v5066, %v5065
  %5083 = vmatpush.bf16.msra.mxu0 %v5074
  %5084 = vmatpush.bf16.msra.mxu0 %v5073
  %5085 = vmatpush.bf16.msra.mxu0 %v5072
  %5086 = vmatpush.bf16.msra.mxu0 %v5071
  %5087 = vmatpush.bf16.msra.mxu0 %v5070
  %5088 = vmatpush.bf16.msra.mxu0 %v5069
  %5089 = vmatpush.bf16.msra.mxu0 %v5068
  %5090 = vmatpush.bf16.msra.mxu0 %v5067
  %5091 = vmatmul.bf16.gmra.mxu0 %v5014
  %v5092 = vpop.f32.mrf.mxu0
  %v5093 = vadd.f32 %v5033, %v5092
  %v5094 = vpop.f32.mrf.mxu0
  %5095 = vdwg.mxu0
  %5096 = vst [vmem:[%s17] sm:$0xff] %v5093
  // Predicated region
  $region70: #{steering_prediction_forward.5} parent=0 // pred_check
    _
  $region71: #{steering_prediction_forward.5} parent=0 // pred_check_branch
    %5098 = sbr.rel (0) target = $region73
  $region72: #{steering_prediction_forward.5} parent=0 // pred_region
    _
  $region73: #{steering_prediction_forward.5} parent=0 // pred_fallthru
    _
  // Predicated region
  $region74: #{steering_prediction_forward.5} parent=0 // pred_check
    _
  $region75: #{steering_prediction_forward.5} parent=0 // pred_check_branch
    %5100 = sbr.rel (0) target = $region77
  $region76: #{steering_prediction_forward.5} parent=0 // pred_region
    _
  $region77: #{steering_prediction_forward.5} parent=0 // pred_fallthru
    _

</llo_original>
